<compile_context>
chip_gen: v7x
topology: tpu7x:2x2x1
jax: 0.10.0
libtpu: 0.0.40
codegen_flags: <defaults>
</compile_context>

<pallas_src>
import functools

import jax
import jax.numpy as jnp
from jax.experimental import pallas as pl
from jax.experimental.pallas import tpu as pltpu

LANE = 128
SUBLANE = 8


def _round_up(x, m):
    return ((x + m - 1) // m) * m


def _fused_cnn_kernel(*refs, layer_shapes, cact, npad, kh, kw):
    """Whole SimpleCNN forward for ONE batch element (grid is over batch).

    refs = (x_ref, w_0, b_0, ..., w_{L-1}, b_{L-1}, o_ref, act_0, ..., act_{L-2})
      x_ref  : (1, H, W, cact)   VMEM  (channels zero-padded to sublane granule)
      w_l    : (kh*kw*cact, npad) VMEM (per-tap stacked, lane-padded weight matrix)
      b_l    : (1, npad)          VMEM
      o_ref  : (1, Hf, Wf, npad)  VMEM (lane-dense final store)
      act_l  : (hout_l, wout_l, cact) f32 VMEM scratch, exact per-layer size
    """
    n_layers = len(layer_shapes)
    x_ref = refs[0]
    wb = refs[1:1 + 2 * n_layers]
    o_ref = refs[1 + 2 * n_layers]
    acts = refs[2 + 2 * n_layers:]

    src = x_ref
    for l in range(n_layers):
        hin, win, hout, wout = layer_shapes[l]
        last = (l == n_layers - 1)
        m = hout * wout

        # Hoisted per-layer reads (done once, not per tap).
        w_mat = wb[2 * l][...]          # (kh*kw*cact, npad) f32
        bias = wb[2 * l + 1][...]       # (1, npad)          f32
        a = src[...].reshape(hin, win, cact)

        # kh*kw accumulating dots directly from the tap views:
        # full-layer M, tiny K (= cact), lane-dense N (= npad).
        acc = None
        for t in range(kh * kw):
            i, j = t // kw, t % kw
            lhs = a[i:i + hout, j:j + wout, :].reshape(m, cact)
            rhs = w_mat[t * cact:(t + 1) * cact, :]          # sublane-aligned slice
            d = jnp.dot(lhs, rhs, preferred_element_type=jnp.float32)
            acc = d if acc is None else acc + d

        out = acc + bias                                     # bias added once
        if not last:
            out = jnp.maximum(out, 0.0)
            # Padded channels are exactly zero (zero weight cols + zero bias),
            # and the next layer's weight rows for them are zero as well.
            dst = acts[l]
            dst[...] = out[:, :cact].reshape(hout, wout, cact)
            src = dst
        else:
            o_ref[...] = out.reshape(1, hout, wout, npad).astype(o_ref.dtype)


def pack_simple_cnn_params(params, n_input_channels):
    """Pack/pad weights ONCE (not per forward call).

    Returns (packed_list, meta). Each layer contributes:
      weight matrix (kh*kw*cact, npad) f32 -- per-tap stacked along rows,
      bias          (1, npad)          f32.
    cact = channel count rounded up to the f32 sublane granule (8);
    npad = output-channel count rounded up to the 128-lane width.
    """
    kh, kw = params[0][0].shape[0], params[0][0].shape[1]
    layer_input_chans = [n_input_channels] + [p[0].shape[-1] for p in params[:-1]]
    cact = _round_up(max(layer_input_chans), SUBLANE)
    npad = _round_up(max(p[0].shape[-1] for p in params), LANE)

    packed = []
    for wt, b in params:
        ci, co = wt.shape[2], wt.shape[3]
        wp = jnp.zeros((kh, kw, cact, npad), jnp.float32)
        wp = wp.at[:, :, :ci, :co].set(wt.astype(jnp.float32))
        packed.append(wp.reshape(kh * kw * cact, npad))
        packed.append(jnp.zeros((1, npad), jnp.float32).at[0, :co].set(
            b.astype(jnp.float32)))

    meta = dict(kh=kh, kw=kw, cact=cact, npad=npad,
                n_layers=len(params),
                n_input_channels=n_input_channels,
                n_output_channels=params[-1][0].shape[-1])
    return packed, meta


def simple_cnn_forward(packed, meta, x_nchw):
    """Forward pass identical to SimpleCNN.forward (NCHW in, NCHW out)."""
    n, cin, h, w = x_nchw.shape
    kh, kw = meta["kh"], meta["kw"]
    cact, npad = meta["cact"], meta["npad"]
    n_layers = meta["n_layers"]

    # NCHW -> NHWC, zero-pad channels up to the sublane granule (done once/call).
    x_p = jnp.pad(jnp.transpose(x_nchw, (0, 2, 3, 1)).astype(jnp.float32),
                  ((0, 0), (0, 0), (0, 0), (0, cact - cin)))

    # Static per-layer spatial shapes (VALID conv, stride 1).
    layer_shapes = []
    hin, win = h, w
    for _ in range(n_layers):
        hout, wout = hin - kh + 1, win - kw + 1
        layer_shapes.append((hin, win, hout, wout))
        hin, win = hout, wout
    hf, wf = layer_shapes[-1][2], layer_shapes[-1][3]

    in_specs = [pl.BlockSpec((1, h, w, cact), lambda b: (b, 0, 0, 0))]
    for _ in range(n_layers):
        in_specs.append(pl.BlockSpec((kh * kw * cact, npad), lambda b: (0, 0)))
        in_specs.append(pl.BlockSpec((1, npad), lambda b: (0, 0)))

    # Exact-size per-layer activation scratches (only the intermediates).
    scratch_shapes = [pltpu.VMEM((ls[2], ls[3], cact), jnp.float32)
                      for ls in layer_shapes[:-1]]

    kernel = functools.partial(_fused_cnn_kernel,
                               layer_shapes=tuple(layer_shapes),
                               cact=cact, npad=npad, kh=kh, kw=kw)

    out_nhwc = pl.pallas_call(
        kernel,
        out_shape=jax.ShapeDtypeStruct((n, hf, wf, npad), jnp.float32),
        grid_spec=pltpu.PrefetchScalarGridSpec(
            num_scalar_prefetch=0,
            grid=(n,),
            in_specs=in_specs,
            out_specs=pl.BlockSpec((1, hf, wf, npad), lambda b: (b, 0, 0, 0)),
            scratch_shapes=scratch_shapes),
        compiler_params=pltpu.CompilerParams(
            dimension_semantics=("parallel",)),
    )(x_p, *packed)

    # Drop padded output channels, back to NCHW.
    return jnp.transpose(out_nhwc[..., :meta["n_output_channels"]], (0, 3, 1, 2))


def init_simple_cnn(key, n_input_channels, n_hidden_kernels, n_hidden_layers,
                    n_output_channels, kernel_size=3):
    """Deterministic init mimicking torch Conv2d default (uniform +/- 1/sqrt(fan_in))."""
    params = []
    cin = n_input_channels
    out_channels = [n_hidden_kernels] * n_hidden_layers + [n_output_channels]
    for cout in out_channels:
        key, k_w, k_b = jax.random.split(key, 3)
        fan_in = cin * kernel_size * kernel_size
        bound = 1.0 / (fan_in ** 0.5)
        wt = jax.random.uniform(k_w, (kernel_size, kernel_size, cin, cout),
                                jnp.float32, -bound, bound)
        b = jax.random.uniform(k_b, (cout,), jnp.float32, -bound, bound)
        params.append((wt, b))
        cin = cout
    return params


if __name__ == "__main__":
    key = jax.random.PRNGKey(0)
    key, xk = jax.random.split(key)

    # SimpleCNN(n_input_channels=4, n_hidden_kernels=8, n_hidden_layers=2, n_output_channels=3)
    N, C_IN, H, W = 2, 4, 16, 16
    N_HIDDEN, N_LAYERS, C_OUT = 8, 2, 3

    x = jax.random.normal(xk, (N, C_IN, H, W), jnp.float32)
    params = init_simple_cnn(key, C_IN, N_HIDDEN, N_LAYERS, C_OUT)

    # Pack/pad weights once (init-time), reuse for every forward call.
    packed, meta = pack_simple_cnn_params(params, C_IN)

    out = simple_cnn_forward(packed, meta, x)
    out = jax.block_until_ready(out)

    # Reference check with lax.conv (same params, NCHW / OIHW).
    ref = x
    for idx, (wt, b) in enumerate(params):
        w_oihw = jnp.transpose(wt, (3, 2, 0, 1))
        ref = jax.lax.conv_general_dilated(
            ref, w_oihw, window_strides=(1, 1), padding="VALID",
            dimension_numbers=("NCHW", "OIHW", "NCHW"))
        ref = ref + b.reshape(1, -1, 1, 1)
        if idx < len(params) - 1:
            ref = jnp.maximum(ref, 0.0)

    assert out.shape == (N, C_OUT, H - 2 * (N_LAYERS + 1), W - 2 * (N_LAYERS + 1)), out.shape
    assert jnp.allclose(out, ref, atol=1e-3, rtol=1e-3)
    print("KERNEL_OK")
</pallas_src>

<mosaic_0001>
module attributes {stable_mosaic.version = 11 : i64} {
  func.func @_fused_cnn_kernel(%arg0: i32, %arg1: memref<1x16x16x8xf32, #tpu.memory_space<vmem>>, %arg2: memref<72x128xf32, #tpu.memory_space<vmem>>, %arg3: memref<1x128xf32, #tpu.memory_space<vmem>>, %arg4: memref<72x128xf32, #tpu.memory_space<vmem>>, %arg5: memref<1x128xf32, #tpu.memory_space<vmem>>, %arg6: memref<72x128xf32, #tpu.memory_space<vmem>>, %arg7: memref<1x128xf32, #tpu.memory_space<vmem>>, %arg8: memref<1x10x10x128xf32, #tpu.memory_space<vmem>>, %arg9: memref<14x14x8xf32, #tpu.memory_space<vmem>>, %arg10: memref<12x12x8xf32, #tpu.memory_space<vmem>>) attributes {dimension_semantics = [#tpu.dimension_semantics<parallel>], iteration_bounds = array<i64: 2>, scalar_prefetch = 0 : i64, scratch_operands = 2 : i64, tpu.core_type = #tpu.core_type<tc>, window_params = [{transform_indices = @transform_0, window_bounds = array<i64: 1, 16, 16, 8>}, {pipeline_mode = #tpu.pipeline_mode<synchronous>, transform_indices = @transform_1, window_bounds = array<i64: 72, 128>}, {pipeline_mode = #tpu.pipeline_mode<synchronous>, transform_indices = @transform_2, window_bounds = array<i64: 1, 128>}, {pipeline_mode = #tpu.pipeline_mode<synchronous>, transform_indices = @transform_3, window_bounds = array<i64: 72, 128>}, {pipeline_mode = #tpu.pipeline_mode<synchronous>, transform_indices = @transform_4, window_bounds = array<i64: 1, 128>}, {pipeline_mode = #tpu.pipeline_mode<synchronous>, transform_indices = @transform_5, window_bounds = array<i64: 72, 128>}, {pipeline_mode = #tpu.pipeline_mode<synchronous>, transform_indices = @transform_6, window_bounds = array<i64: 1, 128>}, {transform_indices = @transform_7, window_bounds = array<i64: 1, 10, 10, 128>}]} {
    %c0 = arith.constant 0 : index
    %c0_0 = arith.constant 0 : index
    %0 = vector.load %arg2[%c0, %c0_0] : memref<72x128xf32, #tpu.memory_space<vmem>>, vector<72x128xf32>
    %c0_1 = arith.constant 0 : index
    %c0_2 = arith.constant 0 : index
    %1 = vector.load %arg3[%c0_1, %c0_2] : memref<1x128xf32, #tpu.memory_space<vmem>>, vector<1x128xf32>
    %c0_3 = arith.constant 0 : index
    %c0_4 = arith.constant 0 : index
    %c0_5 = arith.constant 0 : index
    %c0_6 = arith.constant 0 : index
    %2 = vector.load %arg1[%c0_3, %c0_4, %c0_5, %c0_6] : memref<1x16x16x8xf32, #tpu.memory_space<vmem>>, vector<1x16x16x8xf32>
    %3 = vector.shape_cast %2 : vector<1x16x16x8xf32> to vector<16x16x8xf32>
    %4 = vector.extract_strided_slice %3 {offsets = [0, 0, 0], sizes = [14, 14, 8], strides = [1, 1, 1]} : vector<16x16x8xf32> to vector<14x14x8xf32>
    %5 = vector.shape_cast %4 : vector<14x14x8xf32> to vector<196x8xf32>
    %6 = vector.extract_strided_slice %0 {offsets = [0, 0], sizes = [8, 128], strides = [1, 1]} : vector<72x128xf32> to vector<8x128xf32>
    %cst = arith.constant dense<0.000000e+00> : vector<196x128xf32>
    %7 = tpu.matmul %5, %6, %cst {dimension_numbers = #tpu.dot_dimension_numbers<[1], [0], [0], [1], [0, 0, 1, 1], [], []>} : vector<196x8xf32>, vector<8x128xf32>, vector<196x128xf32> -> vector<196x128xf32>
    %8 = vector.extract_strided_slice %3 {offsets = [0, 1, 0], sizes = [14, 14, 8], strides = [1, 1, 1]} : vector<16x16x8xf32> to vector<14x14x8xf32>
    %9 = vector.shape_cast %8 : vector<14x14x8xf32> to vector<196x8xf32>
    %10 = vector.extract_strided_slice %0 {offsets = [8, 0], sizes = [8, 128], strides = [1, 1]} : vector<72x128xf32> to vector<8x128xf32>
    %cst_7 = arith.constant dense<0.000000e+00> : vector<196x128xf32>
    %11 = tpu.matmul %9, %10, %cst_7 {dimension_numbers = #tpu.dot_dimension_numbers<[1], [0], [0], [1], [0, 0, 1, 1], [], []>} : vector<196x8xf32>, vector<8x128xf32>, vector<196x128xf32> -> vector<196x128xf32>
    %12 = arith.addf %7, %11 : vector<196x128xf32>
    %13 = vector.extract_strided_slice %3 {offsets = [0, 2, 0], sizes = [14, 14, 8], strides = [1, 1, 1]} : vector<16x16x8xf32> to vector<14x14x8xf32>
    %14 = vector.shape_cast %13 : vector<14x14x8xf32> to vector<196x8xf32>
    %15 = vector.extract_strided_slice %0 {offsets = [16, 0], sizes = [8, 128], strides = [1, 1]} : vector<72x128xf32> to vector<8x128xf32>
    %cst_8 = arith.constant dense<0.000000e+00> : vector<196x128xf32>
    %16 = tpu.matmul %14, %15, %cst_8 {dimension_numbers = #tpu.dot_dimension_numbers<[1], [0], [0], [1], [0, 0, 1, 1], [], []>} : vector<196x8xf32>, vector<8x128xf32>, vector<196x128xf32> -> vector<196x128xf32>
    %17 = arith.addf %12, %16 : vector<196x128xf32>
    %18 = vector.extract_strided_slice %3 {offsets = [1, 0, 0], sizes = [14, 14, 8], strides = [1, 1, 1]} : vector<16x16x8xf32> to vector<14x14x8xf32>
    %19 = vector.shape_cast %18 : vector<14x14x8xf32> to vector<196x8xf32>
    %20 = vector.extract_strided_slice %0 {offsets = [24, 0], sizes = [8, 128], strides = [1, 1]} : vector<72x128xf32> to vector<8x128xf32>
    %cst_9 = arith.constant dense<0.000000e+00> : vector<196x128xf32>
    %21 = tpu.matmul %19, %20, %cst_9 {dimension_numbers = #tpu.dot_dimension_numbers<[1], [0], [0], [1], [0, 0, 1, 1], [], []>} : vector<196x8xf32>, vector<8x128xf32>, vector<196x128xf32> -> vector<196x128xf32>
    %22 = arith.addf %17, %21 : vector<196x128xf32>
    %23 = vector.extract_strided_slice %3 {offsets = [1, 1, 0], sizes = [14, 14, 8], strides = [1, 1, 1]} : vector<16x16x8xf32> to vector<14x14x8xf32>
    %24 = vector.shape_cast %23 : vector<14x14x8xf32> to vector<196x8xf32>
    %25 = vector.extract_strided_slice %0 {offsets = [32, 0], sizes = [8, 128], strides = [1, 1]} : vector<72x128xf32> to vector<8x128xf32>
    %cst_10 = arith.constant dense<0.000000e+00> : vector<196x128xf32>
    %26 = tpu.matmul %24, %25, %cst_10 {dimension_numbers = #tpu.dot_dimension_numbers<[1], [0], [0], [1], [0, 0, 1, 1], [], []>} : vector<196x8xf32>, vector<8x128xf32>, vector<196x128xf32> -> vector<196x128xf32>
    %27 = arith.addf %22, %26 : vector<196x128xf32>
    %28 = vector.extract_strided_slice %3 {offsets = [1, 2, 0], sizes = [14, 14, 8], strides = [1, 1, 1]} : vector<16x16x8xf32> to vector<14x14x8xf32>
    %29 = vector.shape_cast %28 : vector<14x14x8xf32> to vector<196x8xf32>
    %30 = vector.extract_strided_slice %0 {offsets = [40, 0], sizes = [8, 128], strides = [1, 1]} : vector<72x128xf32> to vector<8x128xf32>
    %cst_11 = arith.constant dense<0.000000e+00> : vector<196x128xf32>
    %31 = tpu.matmul %29, %30, %cst_11 {dimension_numbers = #tpu.dot_dimension_numbers<[1], [0], [0], [1], [0, 0, 1, 1], [], []>} : vector<196x8xf32>, vector<8x128xf32>, vector<196x128xf32> -> vector<196x128xf32>
    %32 = arith.addf %27, %31 : vector<196x128xf32>
    %33 = vector.extract_strided_slice %3 {offsets = [2, 0, 0], sizes = [14, 14, 8], strides = [1, 1, 1]} : vector<16x16x8xf32> to vector<14x14x8xf32>
    %34 = vector.shape_cast %33 : vector<14x14x8xf32> to vector<196x8xf32>
    %35 = vector.extract_strided_slice %0 {offsets = [48, 0], sizes = [8, 128], strides = [1, 1]} : vector<72x128xf32> to vector<8x128xf32>
    %cst_12 = arith.constant dense<0.000000e+00> : vector<196x128xf32>
    %36 = tpu.matmul %34, %35, %cst_12 {dimension_numbers = #tpu.dot_dimension_numbers<[1], [0], [0], [1], [0, 0, 1, 1], [], []>} : vector<196x8xf32>, vector<8x128xf32>, vector<196x128xf32> -> vector<196x128xf32>
    %37 = arith.addf %32, %36 : vector<196x128xf32>
    %38 = vector.extract_strided_slice %3 {offsets = [2, 1, 0], sizes = [14, 14, 8], strides = [1, 1, 1]} : vector<16x16x8xf32> to vector<14x14x8xf32>
    %39 = vector.shape_cast %38 : vector<14x14x8xf32> to vector<196x8xf32>
    %40 = vector.extract_strided_slice %0 {offsets = [56, 0], sizes = [8, 128], strides = [1, 1]} : vector<72x128xf32> to vector<8x128xf32>
    %cst_13 = arith.constant dense<0.000000e+00> : vector<196x128xf32>
    %41 = tpu.matmul %39, %40, %cst_13 {dimension_numbers = #tpu.dot_dimension_numbers<[1], [0], [0], [1], [0, 0, 1, 1], [], []>} : vector<196x8xf32>, vector<8x128xf32>, vector<196x128xf32> -> vector<196x128xf32>
    %42 = arith.addf %37, %41 : vector<196x128xf32>
    %43 = vector.extract_strided_slice %3 {offsets = [2, 2, 0], sizes = [14, 14, 8], strides = [1, 1, 1]} : vector<16x16x8xf32> to vector<14x14x8xf32>
    %44 = vector.shape_cast %43 : vector<14x14x8xf32> to vector<196x8xf32>
    %45 = vector.extract_strided_slice %0 {offsets = [64, 0], sizes = [8, 128], strides = [1, 1]} : vector<72x128xf32> to vector<8x128xf32>
    %cst_14 = arith.constant dense<0.000000e+00> : vector<196x128xf32>
    %46 = tpu.matmul %44, %45, %cst_14 {dimension_numbers = #tpu.dot_dimension_numbers<[1], [0], [0], [1], [0, 0, 1, 1], [], []>} : vector<196x8xf32>, vector<8x128xf32>, vector<196x128xf32> -> vector<196x128xf32>
    %47 = arith.addf %42, %46 : vector<196x128xf32>
    %48 = vector.broadcast %1 : vector<1x128xf32> to vector<196x128xf32>
    %49 = arith.addf %47, %48 : vector<196x128xf32>
    %cst_15 = arith.constant 0.000000e+00 : f32
    %50 = vector.broadcast %cst_15 : f32 to vector<196x128xf32>
    %51 = arith.maximumf %49, %50 : vector<196x128xf32>
    %52 = vector.extract_strided_slice %51 {offsets = [0, 0], sizes = [196, 8], strides = [1, 1]} : vector<196x128xf32> to vector<196x8xf32>
    %53 = vector.shape_cast %52 : vector<196x8xf32> to vector<14x14x8xf32>
    %c0_16 = arith.constant 0 : index
    %c0_17 = arith.constant 0 : index
    %c0_18 = arith.constant 0 : index
    %54 = vector.load %arg9[%c0_16, %c0_17, %c0_18] : memref<14x14x8xf32, #tpu.memory_space<vmem>>, vector<14x14x8xf32>
    tpu.vector_store %arg9[%c0_16, %c0_17, %c0_18], %53 {strides = array<i32>} : memref<14x14x8xf32, #tpu.memory_space<vmem>>, vector<14x14x8xf32>,
    %c0_19 = arith.constant 0 : index
    %c0_20 = arith.constant 0 : index
    %55 = vector.load %arg4[%c0_19, %c0_20] : memref<72x128xf32, #tpu.memory_space<vmem>>, vector<72x128xf32>
    %c0_21 = arith.constant 0 : index
    %c0_22 = arith.constant 0 : index
    %56 = vector.load %arg5[%c0_21, %c0_22] : memref<1x128xf32, #tpu.memory_space<vmem>>, vector<1x128xf32>
    %c0_23 = arith.constant 0 : index
    %c0_24 = arith.constant 0 : index
    %c0_25 = arith.constant 0 : index
    %57 = vector.load %arg9[%c0_23, %c0_24, %c0_25] : memref<14x14x8xf32, #tpu.memory_space<vmem>>, vector<14x14x8xf32>
    %58 = vector.extract_strided_slice %57 {offsets = [0, 0, 0], sizes = [12, 12, 8], strides = [1, 1, 1]} : vector<14x14x8xf32> to vector<12x12x8xf32>
    %59 = vector.shape_cast %58 : vector<12x12x8xf32> to vector<144x8xf32>
    %60 = vector.extract_strided_slice %55 {offsets = [0, 0], sizes = [8, 128], strides = [1, 1]} : vector<72x128xf32> to vector<8x128xf32>
    %cst_26 = arith.constant dense<0.000000e+00> : vector<144x128xf32>
    %61 = tpu.matmul %59, %60, %cst_26 {dimension_numbers = #tpu.dot_dimension_numbers<[1], [0], [0], [1], [0, 0, 1, 1], [], []>} : vector<144x8xf32>, vector<8x128xf32>, vector<144x128xf32> -> vector<144x128xf32>
    %62 = vector.extract_strided_slice %57 {offsets = [0, 1, 0], sizes = [12, 12, 8], strides = [1, 1, 1]} : vector<14x14x8xf32> to vector<12x12x8xf32>
    %63 = vector.shape_cast %62 : vector<12x12x8xf32> to vector<144x8xf32>
    %64 = vector.extract_strided_slice %55 {offsets = [8, 0], sizes = [8, 128], strides = [1, 1]} : vector<72x128xf32> to vector<8x128xf32>
    %cst_27 = arith.constant dense<0.000000e+00> : vector<144x128xf32>
    %65 = tpu.matmul %63, %64, %cst_27 {dimension_numbers = #tpu.dot_dimension_numbers<[1], [0], [0], [1], [0, 0, 1, 1], [], []>} : vector<144x8xf32>, vector<8x128xf32>, vector<144x128xf32> -> vector<144x128xf32>
    %66 = arith.addf %61, %65 : vector<144x128xf32>
    %67 = vector.extract_strided_slice %57 {offsets = [0, 2, 0], sizes = [12, 12, 8], strides = [1, 1, 1]} : vector<14x14x8xf32> to vector<12x12x8xf32>
    %68 = vector.shape_cast %67 : vector<12x12x8xf32> to vector<144x8xf32>
    %69 = vector.extract_strided_slice %55 {offsets = [16, 0], sizes = [8, 128], strides = [1, 1]} : vector<72x128xf32> to vector<8x128xf32>
    %cst_28 = arith.constant dense<0.000000e+00> : vector<144x128xf32>
    %70 = tpu.matmul %68, %69, %cst_28 {dimension_numbers = #tpu.dot_dimension_numbers<[1], [0], [0], [1], [0, 0, 1, 1], [], []>} : vector<144x8xf32>, vector<8x128xf32>, vector<144x128xf32> -> vector<144x128xf32>
    %71 = arith.addf %66, %70 : vector<144x128xf32>
    %72 = vector.extract_strided_slice %57 {offsets = [1, 0, 0], sizes = [12, 12, 8], strides = [1, 1, 1]} : vector<14x14x8xf32> to vector<12x12x8xf32>
    %73 = vector.shape_cast %72 : vector<12x12x8xf32> to vector<144x8xf32>
    %74 = vector.extract_strided_slice %55 {offsets = [24, 0], sizes = [8, 128], strides = [1, 1]} : vector<72x128xf32> to vector<8x128xf32>
    %cst_29 = arith.constant dense<0.000000e+00> : vector<144x128xf32>
    %75 = tpu.matmul %73, %74, %cst_29 {dimension_numbers = #tpu.dot_dimension_numbers<[1], [0], [0], [1], [0, 0, 1, 1], [], []>} : vector<144x8xf32>, vector<8x128xf32>, vector<144x128xf32> -> vector<144x128xf32>
    %76 = arith.addf %71, %75 : vector<144x128xf32>
    %77 = vector.extract_strided_slice %57 {offsets = [1, 1, 0], sizes = [12, 12, 8], strides = [1, 1, 1]} : vector<14x14x8xf32> to vector<12x12x8xf32>
    %78 = vector.shape_cast %77 : vector<12x12x8xf32> to vector<144x8xf32>
    %79 = vector.extract_strided_slice %55 {offsets = [32, 0], sizes = [8, 128], strides = [1, 1]} : vector<72x128xf32> to vector<8x128xf32>
    %cst_30 = arith.constant dense<0.000000e+00> : vector<144x128xf32>
    %80 = tpu.matmul %78, %79, %cst_30 {dimension_numbers = #tpu.dot_dimension_numbers<[1], [0], [0], [1], [0, 0, 1, 1], [], []>} : vector<144x8xf32>, vector<8x128xf32>, vector<144x128xf32> -> vector<144x128xf32>
    %81 = arith.addf %76, %80 : vector<144x128xf32>
    %82 = vector.extract_strided_slice %57 {offsets = [1, 2, 0], sizes = [12, 12, 8], strides = [1, 1, 1]} : vector<14x14x8xf32> to vector<12x12x8xf32>
    %83 = vector.shape_cast %82 : vector<12x12x8xf32> to vector<144x8xf32>
    %84 = vector.extract_strided_slice %55 {offsets = [40, 0], sizes = [8, 128], strides = [1, 1]} : vector<72x128xf32> to vector<8x128xf32>
    %cst_31 = arith.constant dense<0.000000e+00> : vector<144x128xf32>
    %85 = tpu.matmul %83, %84, %cst_31 {dimension_numbers = #tpu.dot_dimension_numbers<[1], [0], [0], [1], [0, 0, 1, 1], [], []>} : vector<144x8xf32>, vector<8x128xf32>, vector<144x128xf32> -> vector<144x128xf32>
    %86 = arith.addf %81, %85 : vector<144x128xf32>
    %87 = vector.extract_strided_slice %57 {offsets = [2, 0, 0], sizes = [12, 12, 8], strides = [1, 1, 1]} : vector<14x14x8xf32> to vector<12x12x8xf32>
    %88 = vector.shape_cast %87 : vector<12x12x8xf32> to vector<144x8xf32>
    %89 = vector.extract_strided_slice %55 {offsets = [48, 0], sizes = [8, 128], strides = [1, 1]} : vector<72x128xf32> to vector<8x128xf32>
    %cst_32 = arith.constant dense<0.000000e+00> : vector<144x128xf32>
    %90 = tpu.matmul %88, %89, %cst_32 {dimension_numbers = #tpu.dot_dimension_numbers<[1], [0], [0], [1], [0, 0, 1, 1], [], []>} : vector<144x8xf32>, vector<8x128xf32>, vector<144x128xf32> -> vector<144x128xf32>
    %91 = arith.addf %86, %90 : vector<144x128xf32>
    %92 = vector.extract_strided_slice %57 {offsets = [2, 1, 0], sizes = [12, 12, 8], strides = [1, 1, 1]} : vector<14x14x8xf32> to vector<12x12x8xf32>
    %93 = vector.shape_cast %92 : vector<12x12x8xf32> to vector<144x8xf32>
    %94 = vector.extract_strided_slice %55 {offsets = [56, 0], sizes = [8, 128], strides = [1, 1]} : vector<72x128xf32> to vector<8x128xf32>
    %cst_33 = arith.constant dense<0.000000e+00> : vector<144x128xf32>
    %95 = tpu.matmul %93, %94, %cst_33 {dimension_numbers = #tpu.dot_dimension_numbers<[1], [0], [0], [1], [0, 0, 1, 1], [], []>} : vector<144x8xf32>, vector<8x128xf32>, vector<144x128xf32> -> vector<144x128xf32>
    %96 = arith.addf %91, %95 : vector<144x128xf32>
    %97 = vector.extract_strided_slice %57 {offsets = [2, 2, 0], sizes = [12, 12, 8], strides = [1, 1, 1]} : vector<14x14x8xf32> to vector<12x12x8xf32>
    %98 = vector.shape_cast %97 : vector<12x12x8xf32> to vector<144x8xf32>
    %99 = vector.extract_strided_slice %55 {offsets = [64, 0], sizes = [8, 128], strides = [1, 1]} : vector<72x128xf32> to vector<8x128xf32>
    %cst_34 = arith.constant dense<0.000000e+00> : vector<144x128xf32>
    %100 = tpu.matmul %98, %99, %cst_34 {dimension_numbers = #tpu.dot_dimension_numbers<[1], [0], [0], [1], [0, 0, 1, 1], [], []>} : vector<144x8xf32>, vector<8x128xf32>, vector<144x128xf32> -> vector<144x128xf32>
    %101 = arith.addf %96, %100 : vector<144x128xf32>
    %102 = vector.broadcast %56 : vector<1x128xf32> to vector<144x128xf32>
    %103 = arith.addf %101, %102 : vector<144x128xf32>
    %cst_35 = arith.constant 0.000000e+00 : f32
    %104 = vector.broadcast %cst_35 : f32 to vector<144x128xf32>
    %105 = arith.maximumf %103, %104 : vector<144x128xf32>
    %106 = vector.extract_strided_slice %105 {offsets = [0, 0], sizes = [144, 8], strides = [1, 1]} : vector<144x128xf32> to vector<144x8xf32>
    %107 = vector.shape_cast %106 : vector<144x8xf32> to vector<12x12x8xf32>
    %c0_36 = arith.constant 0 : index
    %c0_37 = arith.constant 0 : index
    %c0_38 = arith.constant 0 : index
    %108 = vector.load %arg10[%c0_36, %c0_37, %c0_38] : memref<12x12x8xf32, #tpu.memory_space<vmem>>, vector<12x12x8xf32>
    tpu.vector_store %arg10[%c0_36, %c0_37, %c0_38], %107 {strides = array<i32>} : memref<12x12x8xf32, #tpu.memory_space<vmem>>, vector<12x12x8xf32>,
    %c0_39 = arith.constant 0 : index
    %c0_40 = arith.constant 0 : index
    %109 = vector.load %arg6[%c0_39, %c0_40] : memref<72x128xf32, #tpu.memory_space<vmem>>, vector<72x128xf32>
    %c0_41 = arith.constant 0 : index
    %c0_42 = arith.constant 0 : index
    %110 = vector.load %arg7[%c0_41, %c0_42] : memref<1x128xf32, #tpu.memory_space<vmem>>, vector<1x128xf32>
    %c0_43 = arith.constant 0 : index
    %c0_44 = arith.constant 0 : index
    %c0_45 = arith.constant 0 : index
    %111 = vector.load %arg10[%c0_43, %c0_44, %c0_45] : memref<12x12x8xf32, #tpu.memory_space<vmem>>, vector<12x12x8xf32>
    %112 = vector.extract_strided_slice %111 {offsets = [0, 0, 0], sizes = [10, 10, 8], strides = [1, 1, 1]} : vector<12x12x8xf32> to vector<10x10x8xf32>
    %113 = vector.shape_cast %112 : vector<10x10x8xf32> to vector<100x8xf32>
    %114 = vector.extract_strided_slice %109 {offsets = [0, 0], sizes = [8, 128], strides = [1, 1]} : vector<72x128xf32> to vector<8x128xf32>
    %cst_46 = arith.constant dense<0.000000e+00> : vector<100x128xf32>
    %115 = tpu.matmul %113, %114, %cst_46 {dimension_numbers = #tpu.dot_dimension_numbers<[1], [0], [0], [1], [0, 0, 1, 1], [], []>} : vector<100x8xf32>, vector<8x128xf32>, vector<100x128xf32> -> vector<100x128xf32>
    %116 = vector.extract_strided_slice %111 {offsets = [0, 1, 0], sizes = [10, 10, 8], strides = [1, 1, 1]} : vector<12x12x8xf32> to vector<10x10x8xf32>
    %117 = vector.shape_cast %116 : vector<10x10x8xf32> to vector<100x8xf32>
    %118 = vector.extract_strided_slice %109 {offsets = [8, 0], sizes = [8, 128], strides = [1, 1]} : vector<72x128xf32> to vector<8x128xf32>
    %cst_47 = arith.constant dense<0.000000e+00> : vector<100x128xf32>
    %119 = tpu.matmul %117, %118, %cst_47 {dimension_numbers = #tpu.dot_dimension_numbers<[1], [0], [0], [1], [0, 0, 1, 1], [], []>} : vector<100x8xf32>, vector<8x128xf32>, vector<100x128xf32> -> vector<100x128xf32>
    %120 = arith.addf %115, %119 : vector<100x128xf32>
    %121 = vector.extract_strided_slice %111 {offsets = [0, 2, 0], sizes = [10, 10, 8], strides = [1, 1, 1]} : vector<12x12x8xf32> to vector<10x10x8xf32>
    %122 = vector.shape_cast %121 : vector<10x10x8xf32> to vector<100x8xf32>
    %123 = vector.extract_strided_slice %109 {offsets = [16, 0], sizes = [8, 128], strides = [1, 1]} : vector<72x128xf32> to vector<8x128xf32>
    %cst_48 = arith.constant dense<0.000000e+00> : vector<100x128xf32>
    %124 = tpu.matmul %122, %123, %cst_48 {dimension_numbers = #tpu.dot_dimension_numbers<[1], [0], [0], [1], [0, 0, 1, 1], [], []>} : vector<100x8xf32>, vector<8x128xf32>, vector<100x128xf32> -> vector<100x128xf32>
    %125 = arith.addf %120, %124 : vector<100x128xf32>
    %126 = vector.extract_strided_slice %111 {offsets = [1, 0, 0], sizes = [10, 10, 8], strides = [1, 1, 1]} : vector<12x12x8xf32> to vector<10x10x8xf32>
    %127 = vector.shape_cast %126 : vector<10x10x8xf32> to vector<100x8xf32>
    %128 = vector.extract_strided_slice %109 {offsets = [24, 0], sizes = [8, 128], strides = [1, 1]} : vector<72x128xf32> to vector<8x128xf32>
    %cst_49 = arith.constant dense<0.000000e+00> : vector<100x128xf32>
    %129 = tpu.matmul %127, %128, %cst_49 {dimension_numbers = #tpu.dot_dimension_numbers<[1], [0], [0], [1], [0, 0, 1, 1], [], []>} : vector<100x8xf32>, vector<8x128xf32>, vector<100x128xf32> -> vector<100x128xf32>
    %130 = arith.addf %125, %129 : vector<100x128xf32>
    %131 = vector.extract_strided_slice %111 {offsets = [1, 1, 0], sizes = [10, 10, 8], strides = [1, 1, 1]} : vector<12x12x8xf32> to vector<10x10x8xf32>
    %132 = vector.shape_cast %131 : vector<10x10x8xf32> to vector<100x8xf32>
    %133 = vector.extract_strided_slice %109 {offsets = [32, 0], sizes = [8, 128], strides = [1, 1]} : vector<72x128xf32> to vector<8x128xf32>
    %cst_50 = arith.constant dense<0.000000e+00> : vector<100x128xf32>
    %134 = tpu.matmul %132, %133, %cst_50 {dimension_numbers = #tpu.dot_dimension_numbers<[1], [0], [0], [1], [0, 0, 1, 1], [], []>} : vector<100x8xf32>, vector<8x128xf32>, vector<100x128xf32> -> vector<100x128xf32>
    %135 = arith.addf %130, %134 : vector<100x128xf32>
    %136 = vector.extract_strided_slice %111 {offsets = [1, 2, 0], sizes = [10, 10, 8], strides = [1, 1, 1]} : vector<12x12x8xf32> to vector<10x10x8xf32>
    %137 = vector.shape_cast %136 : vector<10x10x8xf32> to vector<100x8xf32>
    %138 = vector.extract_strided_slice %109 {offsets = [40, 0], sizes = [8, 128], strides = [1, 1]} : vector<72x128xf32> to vector<8x128xf32>
    %cst_51 = arith.constant dense<0.000000e+00> : vector<100x128xf32>
    %139 = tpu.matmul %137, %138, %cst_51 {dimension_numbers = #tpu.dot_dimension_numbers<[1], [0], [0], [1], [0, 0, 1, 1], [], []>} : vector<100x8xf32>, vector<8x128xf32>, vector<100x128xf32> -> vector<100x128xf32>
    %140 = arith.addf %135, %139 : vector<100x128xf32>
    %141 = vector.extract_strided_slice %111 {offsets = [2, 0, 0], sizes = [10, 10, 8], strides = [1, 1, 1]} : vector<12x12x8xf32> to vector<10x10x8xf32>
    %142 = vector.shape_cast %141 : vector<10x10x8xf32> to vector<100x8xf32>
    %143 = vector.extract_strided_slice %109 {offsets = [48, 0], sizes = [8, 128], strides = [1, 1]} : vector<72x128xf32> to vector<8x128xf32>
    %cst_52 = arith.constant dense<0.000000e+00> : vector<100x128xf32>
    %144 = tpu.matmul %142, %143, %cst_52 {dimension_numbers = #tpu.dot_dimension_numbers<[1], [0], [0], [1], [0, 0, 1, 1], [], []>} : vector<100x8xf32>, vector<8x128xf32>, vector<100x128xf32> -> vector<100x128xf32>
    %145 = arith.addf %140, %144 : vector<100x128xf32>
    %146 = vector.extract_strided_slice %111 {offsets = [2, 1, 0], sizes = [10, 10, 8], strides = [1, 1, 1]} : vector<12x12x8xf32> to vector<10x10x8xf32>
    %147 = vector.shape_cast %146 : vector<10x10x8xf32> to vector<100x8xf32>
    %148 = vector.extract_strided_slice %109 {offsets = [56, 0], sizes = [8, 128], strides = [1, 1]} : vector<72x128xf32> to vector<8x128xf32>
    %cst_53 = arith.constant dense<0.000000e+00> : vector<100x128xf32>
    %149 = tpu.matmul %147, %148, %cst_53 {dimension_numbers = #tpu.dot_dimension_numbers<[1], [0], [0], [1], [0, 0, 1, 1], [], []>} : vector<100x8xf32>, vector<8x128xf32>, vector<100x128xf32> -> vector<100x128xf32>
    %150 = arith.addf %145, %149 : vector<100x128xf32>
    %151 = vector.extract_strided_slice %111 {offsets = [2, 2, 0], sizes = [10, 10, 8], strides = [1, 1, 1]} : vector<12x12x8xf32> to vector<10x10x8xf32>
    %152 = vector.shape_cast %151 : vector<10x10x8xf32> to vector<100x8xf32>
    %153 = vector.extract_strided_slice %109 {offsets = [64, 0], sizes = [8, 128], strides = [1, 1]} : vector<72x128xf32> to vector<8x128xf32>
    %cst_54 = arith.constant dense<0.000000e+00> : vector<100x128xf32>
    %154 = tpu.matmul %152, %153, %cst_54 {dimension_numbers = #tpu.dot_dimension_numbers<[1], [0], [0], [1], [0, 0, 1, 1], [], []>} : vector<100x8xf32>, vector<8x128xf32>, vector<100x128xf32> -> vector<100x128xf32>
    %155 = arith.addf %150, %154 : vector<100x128xf32>
    %156 = vector.broadcast %110 : vector<1x128xf32> to vector<100x128xf32>
    %157 = arith.addf %155, %156 : vector<100x128xf32>
    %158 = vector.shape_cast %157 : vector<100x128xf32> to vector<1x10x10x128xf32>
    %c0_55 = arith.constant 0 : index
    %c0_56 = arith.constant 0 : index
    %c0_57 = arith.constant 0 : index
    %c0_58 = arith.constant 0 : index
    %159 = vector.load %arg8[%c0_55, %c0_56, %c0_57, %c0_58] : memref<1x10x10x128xf32, #tpu.memory_space<vmem>>, vector<1x10x10x128xf32>
    tpu.vector_store %arg8[%c0_55, %c0_56, %c0_57, %c0_58], %158 {strides = array<i32>} : memref<1x10x10x128xf32, #tpu.memory_space<vmem>>, vector<1x10x10x128xf32>,
    return
  }
  func.func @transform_0(%arg0: i32) -> (i32, i32, i32, i32) {
    %c0_i32 = arith.constant 0 : i32
    %c0_i32_0 = arith.constant 0 : i32
    %c0_i32_1 = arith.constant 0 : i32
    %c0_i32_2 = arith.constant 0 : i32
    return %arg0, %c0_i32, %c0_i32_0, %c0_i32_1 : i32, i32, i32, i32
  }
  func.func @transform_1(%arg0: i32) -> (i32, i32) {
    %c0_i32 = arith.constant 0 : i32
    %c0_i32_0 = arith.constant 0 : i32
    %c0_i32_1 = arith.constant 0 : i32
    return %c0_i32, %c0_i32_0 : i32, i32
  }
  func.func @transform_2(%arg0: i32) -> (i32, i32) {
    %c0_i32 = arith.constant 0 : i32
    %c0_i32_0 = arith.constant 0 : i32
    %c0_i32_1 = arith.constant 0 : i32
    return %c0_i32, %c0_i32_0 : i32, i32
  }
  func.func @transform_3(%arg0: i32) -> (i32, i32) {
    %c0_i32 = arith.constant 0 : i32
    %c0_i32_0 = arith.constant 0 : i32
    %c0_i32_1 = arith.constant 0 : i32
    return %c0_i32, %c0_i32_0 : i32, i32
  }
  func.func @transform_4(%arg0: i32) -> (i32, i32) {
    %c0_i32 = arith.constant 0 : i32
    %c0_i32_0 = arith.constant 0 : i32
    %c0_i32_1 = arith.constant 0 : i32
    return %c0_i32, %c0_i32_0 : i32, i32
  }
  func.func @transform_5(%arg0: i32) -> (i32, i32) {
    %c0_i32 = arith.constant 0 : i32
    %c0_i32_0 = arith.constant 0 : i32
    %c0_i32_1 = arith.constant 0 : i32
    return %c0_i32, %c0_i32_0 : i32, i32
  }
  func.func @transform_6(%arg0: i32) -> (i32, i32) {
    %c0_i32 = arith.constant 0 : i32
    %c0_i32_0 = arith.constant 0 : i32
    %c0_i32_1 = arith.constant 0 : i32
    return %c0_i32, %c0_i32_0 : i32, i32
  }
  func.func @transform_7(%arg0: i32) -> (i32, i32, i32, i32) {
    %c0_i32 = arith.constant 0 : i32
    %c0_i32_0 = arith.constant 0 : i32
    %c0_i32_1 = arith.constant 0 : i32
    %c0_i32_2 = arith.constant 0 : i32
    return %arg0, %c0_i32, %c0_i32_0, %c0_i32_1 : i32, i32, i32, i32
  }
}

</mosaic_0001>

<llo_original>
// kernel: tpu_custom_call.1
$region0: #{tpu_custom_call.1}
  #allocation0 [shape = 'u32[]', space=smem, size = 0x4, offset = 0x4, fixed_abs, tag = 'smem constant byte address 0x4 - core index']
  #allocation1 [shape = 'u32[144,128]{1,0:T(1,128)}', space=vmem, size = 0x12000, scoped, tag = 'internal scratch']
  #allocation2 [shape = 'f32[14,14,8]{2,1,0:T(8,128)}', space=vmem, size = 0x1c000, scoped, tag = 'scratch operand']
  #allocation3 [shape = 'f32[12,12,8]{2,1,0:T(8,128)}', space=vmem, size = 0x18000, scoped, tag = 'scratch operand']
  %s0 = inlined_call_operand.vmem [shape: f32[2,16,16,8], index: 0, kind: input, shape index: {}]
  %s1 = inlined_call_operand.vmem [shape: f32[72,128], index: 1, kind: input, shape index: {}]
  %s2 = inlined_call_operand.vmem [shape: f32[1,128], index: 2, kind: input, shape index: {}]
  %s3 = inlined_call_operand.vmem [shape: f32[72,128], index: 3, kind: input, shape index: {}]
  %s4 = inlined_call_operand.vmem [shape: f32[1,128], index: 4, kind: input, shape index: {}]
  %s5 = inlined_call_operand.vmem [shape: f32[72,128], index: 5, kind: input, shape index: {}]
  %s6 = inlined_call_operand.vmem [shape: f32[1,128], index: 6, kind: input, shape index: {}]
  %s7 = inlined_call_operand.vmem [shape: f32[2,10,10,128], index: 7, kind: output, shape index: {}]
  %s8 = sld [smem:[#allocation0]]
  $region61: #{tpu_custom_call.1} parent=0
    _
  %s10 = ssub.s32 1, %s8
  %s11 = scalar_select 0, %s10, %s8
  loop: start=0, step=1, limit=4
  $region2: #{tpu_custom_call.1} parent=0 // loop_pre_header
    _
  $region3: #{tpu_custom_call.1} parent=0 // loop_header
    %s13 = sphi 0, %s17
    %p14 = scmp.ge.s32.totalorder %s13, 4
    %s23 = sphi 0, %s25
    %s26 = sphi 0, %s23
    %s27 = sphi 0, %s26
    %s43 = sphi 0, %s27
    %s47 = sphi 0, %s47
    %s49 = sphi 0, %s47
    %s50 = sphi 0, %s49
    %s64 = sphi 0, %s50
    %s68 = sphi 0, %s68
    %s70 = sphi 0, %s68
    %s71 = sphi 0, %s70
    %s85 = sphi 0, %s71
    %s89 = sphi 0, %s89
    %s91 = sphi 0, %s89
    %s92 = sphi 0, %s91
    %s106 = sphi 0, %s92
    %s110 = sphi 0, %s110
    %s112 = sphi 0, %s110
    %s113 = sphi 0, %s112
    %s127 = sphi 0, %s113
    %s131 = sphi 0, %s131
    %s133 = sphi 0, %s131
    %s134 = sphi 0, %s133
    %s148 = sphi 0, %s134
    %s152 = sphi 0, %s152
    %s154 = sphi 0, %s152
    %s155 = sphi 0, %s154
    %s169 = sphi 0, %s155
    %s175 = sphi 0, %s177
    %s178 = sphi 0, %s175
    %s179 = sphi 0, %s178
    %s195 = sphi 0, %s179
  $region4: #{tpu_custom_call.1} parent=0 // loop_header_branch
    %16 = sbr.rel (%p14) target = $region8
  $region5: #{tpu_custom_call.1} parent=0 // loop_body
    %s18 = ssub.s32 %s13, 1
    %s19 = ssub.s32 %s13, 2
    %s20 = sadd.s32 %s13, 1
    %s21 = ssub.s32 %s13, %s20
    %p22 = scmp.eq.s32.totalorder %s21, 0
    %s24 = sadd.s32 %s23, 1
    %s25 = scalar_select %p22, %s23, %s24
    %p28 = pneg %p22
    %p29 = scmp.eq.s32.totalorder %s13, 1
    %p30 = por %p28, %p29
    %p31 = scmp.ne.s32.totalorder %s23, %s26
    %p32 = scmp.eq.s32.totalorder %s13, 0
    %p33 = por %p31, %p32
    %p34 = scmp.ne.s32.totalorder %s23, %s26
    %p35 = scmp.eq.s32.totalorder %s18, 1
    %p36 = por %p34, %p35
    %p37 = scmp.ne.s32.totalorder %s26, %s27
    %p38 = scmp.eq.s32.totalorder %s18, 0
    %p39 = por %p37, %p38
    %p40 = scmp.ne.s32.totalorder %s26, %s27
    %p41 = scmp.eq.s32.totalorder %s19, 1
    %p42 = por %p40, %p41
    %p44 = scmp.ne.s32.totalorder %s27, %s43
    %p45 = scmp.eq.s32.totalorder %s19, 0
    %p46 = por %p44, %p45
    %s48 = sadd.s32 %s47, 1
    %p51 = scmp.eq.s32.totalorder %s13, 1
    %p52 = scmp.ne.s32.totalorder %s47, %s49
    %p53 = scmp.eq.s32.totalorder %s13, 0
    %p54 = por %p52, %p53
    %p55 = scmp.ne.s32.totalorder %s47, %s49
    %p56 = scmp.eq.s32.totalorder %s18, 1
    %p57 = por %p55, %p56
    %p58 = scmp.ne.s32.totalorder %s49, %s50
    %p59 = scmp.eq.s32.totalorder %s18, 0
    %p60 = por %p58, %p59
    %p61 = scmp.ne.s32.totalorder %s49, %s50
    %p62 = scmp.eq.s32.totalorder %s19, 1
    %p63 = por %p61, %p62
    %p65 = scmp.ne.s32.totalorder %s50, %s64
    %p66 = scmp.eq.s32.totalorder %s19, 0
    %p67 = por %p65, %p66
    %s69 = sadd.s32 %s68, 1
    %p72 = scmp.eq.s32.totalorder %s13, 1
    %p73 = scmp.ne.s32.totalorder %s68, %s70
    %p74 = scmp.eq.s32.totalorder %s13, 0
    %p75 = por %p73, %p74
    %p76 = scmp.ne.s32.totalorder %s68, %s70
    %p77 = scmp.eq.s32.totalorder %s18, 1
    %p78 = por %p76, %p77
    %p79 = scmp.ne.s32.totalorder %s70, %s71
    %p80 = scmp.eq.s32.totalorder %s18, 0
    %p81 = por %p79, %p80
    %p82 = scmp.ne.s32.totalorder %s70, %s71
    %p83 = scmp.eq.s32.totalorder %s19, 1
    %p84 = por %p82, %p83
    %p86 = scmp.ne.s32.totalorder %s71, %s85
    %p87 = scmp.eq.s32.totalorder %s19, 0
    %p88 = por %p86, %p87
    %s90 = sadd.s32 %s89, 1
    %p93 = scmp.eq.s32.totalorder %s13, 1
    %p94 = scmp.ne.s32.totalorder %s89, %s91
    %p95 = scmp.eq.s32.totalorder %s13, 0
    %p96 = por %p94, %p95
    %p97 = scmp.ne.s32.totalorder %s89, %s91
    %p98 = scmp.eq.s32.totalorder %s18, 1
    %p99 = por %p97, %p98
    %p100 = scmp.ne.s32.totalorder %s91, %s92
    %p101 = scmp.eq.s32.totalorder %s18, 0
    %p102 = por %p100, %p101
    %p103 = scmp.ne.s32.totalorder %s91, %s92
    %p104 = scmp.eq.s32.totalorder %s19, 1
    %p105 = por %p103, %p104
    %p107 = scmp.ne.s32.totalorder %s92, %s106
    %p108 = scmp.eq.s32.totalorder %s19, 0
    %p109 = por %p107, %p108
    %s111 = sadd.s32 %s110, 1
    %p114 = scmp.eq.s32.totalorder %s13, 1
    %p115 = scmp.ne.s32.totalorder %s110, %s112
    %p116 = scmp.eq.s32.totalorder %s13, 0
    %p117 = por %p115, %p116
    %p118 = scmp.ne.s32.totalorder %s110, %s112
    %p119 = scmp.eq.s32.totalorder %s18, 1
    %p120 = por %p118, %p119
    %p121 = scmp.ne.s32.totalorder %s112, %s113
    %p122 = scmp.eq.s32.totalorder %s18, 0
    %p123 = por %p121, %p122
    %p124 = scmp.ne.s32.totalorder %s112, %s113
    %p125 = scmp.eq.s32.totalorder %s19, 1
    %p126 = por %p124, %p125
    %p128 = scmp.ne.s32.totalorder %s113, %s127
    %p129 = scmp.eq.s32.totalorder %s19, 0
    %p130 = por %p128, %p129
    %s132 = sadd.s32 %s131, 1
    %p135 = scmp.eq.s32.totalorder %s13, 1
    %p136 = scmp.ne.s32.totalorder %s131, %s133
    %p137 = scmp.eq.s32.totalorder %s13, 0
    %p138 = por %p136, %p137
    %p139 = scmp.ne.s32.totalorder %s131, %s133
    %p140 = scmp.eq.s32.totalorder %s18, 1
    %p141 = por %p139, %p140
    %p142 = scmp.ne.s32.totalorder %s133, %s134
    %p143 = scmp.eq.s32.totalorder %s18, 0
    %p144 = por %p142, %p143
    %p145 = scmp.ne.s32.totalorder %s133, %s134
    %p146 = scmp.eq.s32.totalorder %s19, 1
    %p147 = por %p145, %p146
    %p149 = scmp.ne.s32.totalorder %s134, %s148
    %p150 = scmp.eq.s32.totalorder %s19, 0
    %p151 = por %p149, %p150
    %s153 = sadd.s32 %s152, 1
    %p156 = scmp.eq.s32.totalorder %s13, 1
    %p157 = scmp.ne.s32.totalorder %s152, %s154
    %p158 = scmp.eq.s32.totalorder %s13, 0
    %p159 = por %p157, %p158
    %p160 = scmp.ne.s32.totalorder %s152, %s154
    %p161 = scmp.eq.s32.totalorder %s18, 1
    %p162 = por %p160, %p161
    %p163 = scmp.ne.s32.totalorder %s154, %s155
    %p164 = scmp.eq.s32.totalorder %s18, 0
    %p165 = por %p163, %p164
    %p166 = scmp.ne.s32.totalorder %s154, %s155
    %p167 = scmp.eq.s32.totalorder %s19, 1
    %p168 = por %p166, %p167
    %p170 = scmp.ne.s32.totalorder %s155, %s169
    %p171 = scmp.eq.s32.totalorder %s19, 0
    %p172 = por %p170, %p171
    %s173 = ssub.s32 %s13, %s20
    %p174 = scmp.eq.s32.totalorder %s173, 0
    %s176 = sadd.s32 %s175, 1
    %s177 = scalar_select %p174, %s175, %s176
    %p180 = pneg %p174
    %p181 = scmp.eq.s32.totalorder %s13, 1
    %p182 = por %p180, %p181
    %p183 = scmp.ne.s32.totalorder %s175, %s178
    %p184 = scmp.eq.s32.totalorder %s13, 0
    %p185 = por %p183, %p184
    %p186 = scmp.ne.s32.totalorder %s175, %s178
    %p187 = scmp.eq.s32.totalorder %s18, 1
    %p188 = por %p186, %p187
    %p189 = scmp.ne.s32.totalorder %s178, %s179
    %p190 = scmp.eq.s32.totalorder %s18, 0
    %p191 = por %p189, %p190
    %p192 = scmp.ne.s32.totalorder %s178, %s179
    %p193 = scmp.eq.s32.totalorder %s19, 1
    %p194 = por %p192, %p193
    %p196 = scmp.ne.s32.totalorder %s179, %s195
    %p197 = scmp.eq.s32.totalorder %s19, 0
    %p198 = por %p196, %p197
    %p199 = scmp.le.s32.totalorder 1, %s13
    %p200 = scmp.lt.s32.totalorder %s13, 3
    %p201 = pnand %p199, %p200
    %p202 = pneg %p201
    // Predicated region
    $region9: #{tpu_custom_call.1} parent=5 // pred_check
      _
    $region10: #{tpu_custom_call.1} parent=5 // pred_check_branch
      %204 = sbr.rel (%p201) target = $region12
    $region11: #{tpu_custom_call.1} parent=5 // pred_region
      %s205 = ssub.s32 %s13, 1
      // Predicated region
      $region13: #{tpu_custom_call.1} parent=11 // pred_check
        %p206 = pneg %p60
      $region14: #{tpu_custom_call.1} parent=11 // pred_check_branch
        %208 = sbr.rel (%p206) target = $region16
      $region15: #{tpu_custom_call.1} parent=11 // pred_region
        _
      $region16: #{tpu_custom_call.1} parent=11 // pred_fallthru
        _
      // Predicated region
      $region17: #{tpu_custom_call.1} parent=11 // pred_check
        %p209 = pneg %p81
      $region18: #{tpu_custom_call.1} parent=11 // pred_check_branch
        %211 = sbr.rel (%p209) target = $region20
      $region19: #{tpu_custom_call.1} parent=11 // pred_region
        _
      $region20: #{tpu_custom_call.1} parent=11 // pred_fallthru
        _
      // Predicated region
      $region21: #{tpu_custom_call.1} parent=11 // pred_check
        %p212 = pneg %p102
      $region22: #{tpu_custom_call.1} parent=11 // pred_check_branch
        %214 = sbr.rel (%p212) target = $region24
      $region23: #{tpu_custom_call.1} parent=11 // pred_region
        _
      $region24: #{tpu_custom_call.1} parent=11 // pred_fallthru
        _
      // Predicated region
      $region25: #{tpu_custom_call.1} parent=11 // pred_check
        %p215 = pneg %p123
      $region26: #{tpu_custom_call.1} parent=11 // pred_check_branch
        %217 = sbr.rel (%p215) target = $region28
      $region27: #{tpu_custom_call.1} parent=11 // pred_region
        _
      $region28: #{tpu_custom_call.1} parent=11 // pred_fallthru
        _
      // Predicated region
      $region29: #{tpu_custom_call.1} parent=11 // pred_check
        %p218 = pneg %p144
      $region30: #{tpu_custom_call.1} parent=11 // pred_check_branch
        %220 = sbr.rel (%p218) target = $region32
      $region31: #{tpu_custom_call.1} parent=11 // pred_region
        _
      $region32: #{tpu_custom_call.1} parent=11 // pred_fallthru
        _
      // Predicated region
      $region33: #{tpu_custom_call.1} parent=11 // pred_check
        %p221 = pneg %p165
      $region34: #{tpu_custom_call.1} parent=11 // pred_check_branch
        %223 = sbr.rel (%p221) target = $region36
      $region35: #{tpu_custom_call.1} parent=11 // pred_region
        _
      $region36: #{tpu_custom_call.1} parent=11 // pred_fallthru
        _
    $region12: #{tpu_custom_call.1} parent=5 // pred_fallthru
      _
    %p224 = scmp.lt.s32.totalorder %s13, 2
    // Predicated region
    $region37: #{tpu_custom_call.1} parent=5 // pred_check
      %p225 = pneg %p224
    $region38: #{tpu_custom_call.1} parent=5 // pred_check_branch
      %227 = sbr.rel (%p225) target = $region40
    $region39: #{tpu_custom_call.1} parent=5 // pred_region
      // Predicated region
      $region41: #{tpu_custom_call.1} parent=39 // pred_check
        %p228 = pneg %p33
      $region42: #{tpu_custom_call.1} parent=39 // pred_check_branch
        %230 = sbr.rel (%p228) target = $region44
      $region43: #{tpu_custom_call.1} parent=39 // pred_region
        %p231 = scmp.lt.s32.totalorder %s13, 1
        %s232 = scalar_select %p231, %s13, 1
        %s233 = smul.addr %s232, 32
        %s234 = smul.addr %s233, 8
        %s235 = scalar_lea.vmem %s0, %s234
      $region44: #{tpu_custom_call.1} parent=39 // pred_fallthru
        _
    $region40: #{tpu_custom_call.1} parent=5 // pred_fallthru
      _
    %p236 = scmp.le.s32.totalorder 1, %s13
    %p237 = scmp.lt.s32.totalorder %s13, 3
    %p238 = pnand %p236, %p237
    %p239 = pneg %p238
    // Predicated region
    $region45: #{tpu_custom_call.1} parent=5 // pred_check
      _
    $region46: #{tpu_custom_call.1} parent=5 // pred_check_branch
      %241 = sbr.rel (%p238) target = $region48
    $region47: #{tpu_custom_call.1} parent=5 // pred_region
      %s242 = ssub.s32 %s13, 1
      %p243 = scmp.lt.s32.totalorder %s18, 1
      %s244 = scalar_select %p243, %s18, 1
      %s245 = smul.addr %s244, 32
      %s246 = smul.addr %s245, 8
      %s247 = scalar_lea.vmem %s0, %s246
      %p248 = pneg %p39
      %p249 = pneg %p36
      %p250 = pneg %p60
      %p251 = pneg %p57
      %p252 = pneg %p81
      %p253 = pneg %p78
      %p254 = pneg %p102
      %p255 = pneg %p99
      %p256 = pneg %p123
      %p257 = pneg %p120
      %p258 = pneg %p144
      %p259 = pneg %p141
      %p260 = pneg %p165
      %p261 = pneg %p162
      %p262 = pneg %p191
      %p263 = pneg %p188
      %p264 = scmp.lt.s32.totalorder %s18, 1
      %s265 = scalar_select %p264, %s18, 1
      %s266 = smul.addr %s265, 20
      %s267 = smul.addr %s266, 8
      %s268 = scalar_lea.vmem %s7, %s267
      %p269 = scmp.lt.s32.totalorder %s18, 1
      %s270 = scalar_select %p269, %s18, 1
      %s271 = smul.addr %s270, 32
      %s272 = smul.addr %s271, 8
      %s273 = scalar_lea.vmem %s0, %s272
      %p274 = scmp.lt.s32.totalorder %s18, 1
      %s275 = scalar_select %p274, %s18, 1
      %s276 = smul.addr %s275, 20
      %s277 = smul.addr %s276, 8
      %s278 = scalar_lea.vmem %s7, %s277
      %v279 = vld [vmem:[%s1] sm:$0xff]
      %v280 = vld [vmem:[%s1 + $0x8] sm:$0xff]
      %v281 = vld [vmem:[%s1 + $0x10] sm:$0xff]
      %v282 = vld [vmem:[%s1 + $0x18] sm:$0xff]
      %v283 = vld [vmem:[%s1 + $0x20] sm:$0xff]
      %v284 = vld [vmem:[%s1 + $0x28] sm:$0xff]
      %v285 = vld [vmem:[%s1 + $0x30] sm:$0xff]
      %v286 = vld [vmem:[%s1 + $0x38] sm:$0xff]
      %v287 = vld [vmem:[%s1 + $0x40] sm:$0xff]
      %v288 = vld [vmem:[%s2] sm:$0x1]
      %v289 = vld [vmem:[%s273] sm:$0xff]
      %v290 = vld [vmem:[%s273 + $0x8] sm:$0xff]
      %v291 = vld [vmem:[%s273 + $0x10] sm:$0xff]
      %v292 = vld [vmem:[%s273 + $0x18] sm:$0xff]
      %v293 = vld [vmem:[%s273 + $0x20] sm:$0xff]
      %v294 = vld [vmem:[%s273 + $0x28] sm:$0xff]
      %v295 = vld [vmem:[%s273 + $0x30] sm:$0xff]
      %v296 = vld [vmem:[%s273 + $0x38] sm:$0xff]
      %v297 = vld [vmem:[%s273 + $0x40] sm:$0xff]
      %v298 = vld [vmem:[%s273 + $0x48] sm:$0xff]
      %v299 = vld [vmem:[%s273 + $0x50] sm:$0xff]
      %v300 = vld [vmem:[%s273 + $0x58] sm:$0xff]
      %v301 = vld [vmem:[%s273 + $0x60] sm:$0xff]
      %v302 = vld [vmem:[%s273 + $0x68] sm:$0xff]
      %v303 = vld [vmem:[%s273 + $0x70] sm:$0xff]
      %v304 = vld [vmem:[%s273 + $0x78] sm:$0xff]
      %v305 = vld [vmem:[%s273 + $0x80] sm:$0xff]
      %v306 = vld [vmem:[%s273 + $0x88] sm:$0xff]
      %v307 = vld [vmem:[%s273 + $0x90] sm:$0xff]
      %v308 = vld [vmem:[%s273 + $0x98] sm:$0xff]
      %v309 = vld [vmem:[%s273 + $0xa0] sm:$0xff]
      %v310 = vld [vmem:[%s273 + $0xa8] sm:$0xff]
      %v311 = vld [vmem:[%s273 + $0xb0] sm:$0xff]
      %v312 = vld [vmem:[%s273 + $0xb8] sm:$0xff]
      %v313 = vld [vmem:[%s273 + $0xc0] sm:$0xff]
      %v314 = vld [vmem:[%s273 + $0xc8] sm:$0xff]
      %v315 = vld [vmem:[%s273 + $0xd0] sm:$0xff]
      %v316 = vld [vmem:[%s273 + $0xd8] sm:$0xff]
      %v317 = vld [vmem:[%s273 + $0xe0] sm:$0xff]
      %v318 = vld [vmem:[%s273 + $0xe8] sm:$0xff]
      %v319 = vld [vmem:[%s273 + $0xf0] sm:$0xff]
      %v320 = vld [vmem:[%s273 + $0xf8] sm:$0xff]
      %v349 = vcombine.high %v289, %v289
      %v351 = vunpack.c.l.s4 1983009808
      %v352 = vunpack.c.0.s8 %v351
      %v353 = vlaneseq
      %v354 = vshrl.u32 %v353, 7
      %v355 = vsub.s32 %v352, %v354
      %v356 = vrot.slane %v289, %v355
      %v358 = vunpack.c.l.s4 1983009808
      %v359 = vunpack.c.0.s8 %v358
      %v360 = vlaneseq
      %v361 = vshrl.u32 %v360, 7
      %v362 = vsub.s32 %v359, %v361
      %v363 = vrot.slane %v349, %v362
      %v364 = vcombine.high %v356, %v356
      %v365 = vcombine.high %v363, %v363
      %v366 = vcombine.high %v290, %v290
      %v368 = vunpack.c.l.s4 1983009808
      %v369 = vunpack.c.0.s8 %v368
      %v370 = vlaneseq
      %v371 = vshrl.u32 %v370, 7
      %v372 = vsub.s32 %v369, %v371
      %v373 = vrot.slane %v290, %v372
      %v375 = vunpack.c.l.s4 1983009808
      %v376 = vunpack.c.0.s8 %v375
      %v377 = vlaneseq
      %v378 = vshrl.u32 %v377, 7
      %v379 = vsub.s32 %v376, %v378
      %v380 = vrot.slane %v366, %v379
      %v381 = vcombine.high %v373, %v373
      %v382 = vcombine.high %v291, %v291
      %v384 = vunpack.c.l.s4 1983009808
      %v385 = vunpack.c.0.s8 %v384
      %v386 = vlaneseq
      %v387 = vshrl.u32 %v386, 7
      %v388 = vsub.s32 %v385, %v387
      %v389 = vrot.slane %v291, %v388
      %v391 = vunpack.c.l.s4 1983009808
      %v392 = vunpack.c.0.s8 %v391
      %v393 = vlaneseq
      %v394 = vshrl.u32 %v393, 7
      %v395 = vsub.s32 %v392, %v394
      %v396 = vrot.slane %v382, %v395
      %v397 = vcombine.high %v389, %v389
      %v398 = vcombine.high %v396, %v396
      %v399 = vcombine.high %v292, %v292
      %v401 = vunpack.c.l.s4 1983009808
      %v402 = vunpack.c.0.s8 %v401
      %v403 = vlaneseq
      %v404 = vshrl.u32 %v403, 7
      %v405 = vsub.s32 %v402, %v404
      %v406 = vrot.slane %v292, %v405
      %v408 = vunpack.c.l.s4 1983009808
      %v409 = vunpack.c.0.s8 %v408
      %v410 = vlaneseq
      %v411 = vshrl.u32 %v410, 7
      %v412 = vsub.s32 %v409, %v411
      %v413 = vrot.slane %v399, %v412
      %v414 = vcombine.high %v406, %v406
      %v415 = vcombine.high %v293, %v293
      %v417 = vunpack.c.l.s4 1983009808
      %v418 = vunpack.c.0.s8 %v417
      %v419 = vlaneseq
      %v420 = vshrl.u32 %v419, 7
      %v421 = vsub.s32 %v418, %v420
      %v422 = vrot.slane %v293, %v421
      %v424 = vunpack.c.l.s4 1983009808
      %v425 = vunpack.c.0.s8 %v424
      %v426 = vlaneseq
      %v427 = vshrl.u32 %v426, 7
      %v428 = vsub.s32 %v425, %v427
      %v429 = vrot.slane %v415, %v428
      %v430 = vcombine.high %v422, %v422
      %v431 = vcombine.high %v429, %v429
      %v432 = vcombine.high %v294, %v294
      %v434 = vunpack.c.l.s4 1983009808
      %v435 = vunpack.c.0.s8 %v434
      %v436 = vlaneseq
      %v437 = vshrl.u32 %v436, 7
      %v438 = vsub.s32 %v435, %v437
      %v439 = vrot.slane %v294, %v438
      %v441 = vunpack.c.l.s4 1983009808
      %v442 = vunpack.c.0.s8 %v441
      %v443 = vlaneseq
      %v444 = vshrl.u32 %v443, 7
      %v445 = vsub.s32 %v442, %v444
      %v446 = vrot.slane %v432, %v445
      %v447 = vcombine.high %v439, %v439
      %v448 = vcombine.high %v295, %v295
      %v450 = vunpack.c.l.s4 1983009808
      %v451 = vunpack.c.0.s8 %v450
      %v452 = vlaneseq
      %v453 = vshrl.u32 %v452, 7
      %v454 = vsub.s32 %v451, %v453
      %v455 = vrot.slane %v295, %v454
      %v457 = vunpack.c.l.s4 1983009808
      %v458 = vunpack.c.0.s8 %v457
      %v459 = vlaneseq
      %v460 = vshrl.u32 %v459, 7
      %v461 = vsub.s32 %v458, %v460
      %v462 = vrot.slane %v448, %v461
      %v463 = vcombine.high %v455, %v455
      %v464 = vcombine.high %v462, %v462
      %v465 = vcombine.high %v296, %v296
      %v467 = vunpack.c.l.s4 1983009808
      %v468 = vunpack.c.0.s8 %v467
      %v469 = vlaneseq
      %v470 = vshrl.u32 %v469, 7
      %v471 = vsub.s32 %v468, %v470
      %v472 = vrot.slane %v296, %v471
      %v474 = vunpack.c.l.s4 1983009808
      %v475 = vunpack.c.0.s8 %v474
      %v476 = vlaneseq
      %v477 = vshrl.u32 %v476, 7
      %v478 = vsub.s32 %v475, %v477
      %v479 = vrot.slane %v465, %v478
      %v480 = vcombine.high %v472, %v472
      %v481 = vcombine.high %v297, %v297
      %v483 = vunpack.c.l.s4 1983009808
      %v484 = vunpack.c.0.s8 %v483
      %v485 = vlaneseq
      %v486 = vshrl.u32 %v485, 7
      %v487 = vsub.s32 %v484, %v486
      %v488 = vrot.slane %v297, %v487
      %v490 = vunpack.c.l.s4 1983009808
      %v491 = vunpack.c.0.s8 %v490
      %v492 = vlaneseq
      %v493 = vshrl.u32 %v492, 7
      %v494 = vsub.s32 %v491, %v493
      %v495 = vrot.slane %v481, %v494
      %v496 = vcombine.high %v488, %v488
      %v497 = vcombine.high %v495, %v495
      %v498 = vcombine.high %v298, %v298
      %v500 = vunpack.c.l.s4 1983009808
      %v501 = vunpack.c.0.s8 %v500
      %v502 = vlaneseq
      %v503 = vshrl.u32 %v502, 7
      %v504 = vsub.s32 %v501, %v503
      %v505 = vrot.slane %v298, %v504
      %v507 = vunpack.c.l.s4 1983009808
      %v508 = vunpack.c.0.s8 %v507
      %v509 = vlaneseq
      %v510 = vshrl.u32 %v509, 7
      %v511 = vsub.s32 %v508, %v510
      %v512 = vrot.slane %v498, %v511
      %v513 = vcombine.high %v505, %v505
      %v514 = vcombine.high %v299, %v299
      %v516 = vunpack.c.l.s4 1983009808
      %v517 = vunpack.c.0.s8 %v516
      %v518 = vlaneseq
      %v519 = vshrl.u32 %v518, 7
      %v520 = vsub.s32 %v517, %v519
      %v521 = vrot.slane %v299, %v520
      %v523 = vunpack.c.l.s4 1983009808
      %v524 = vunpack.c.0.s8 %v523
      %v525 = vlaneseq
      %v526 = vshrl.u32 %v525, 7
      %v527 = vsub.s32 %v524, %v526
      %v528 = vrot.slane %v514, %v527
      %v529 = vcombine.high %v521, %v521
      %v530 = vcombine.high %v528, %v528
      %v531 = vcombine.high %v300, %v300
      %v533 = vunpack.c.l.s4 1983009808
      %v534 = vunpack.c.0.s8 %v533
      %v535 = vlaneseq
      %v536 = vshrl.u32 %v535, 7
      %v537 = vsub.s32 %v534, %v536
      %v538 = vrot.slane %v300, %v537
      %v540 = vunpack.c.l.s4 1983009808
      %v541 = vunpack.c.0.s8 %v540
      %v542 = vlaneseq
      %v543 = vshrl.u32 %v542, 7
      %v544 = vsub.s32 %v541, %v543
      %v545 = vrot.slane %v531, %v544
      %v546 = vcombine.high %v538, %v538
      %v547 = vcombine.high %v301, %v301
      %v549 = vunpack.c.l.s4 1983009808
      %v550 = vunpack.c.0.s8 %v549
      %v551 = vlaneseq
      %v552 = vshrl.u32 %v551, 7
      %v553 = vsub.s32 %v550, %v552
      %v554 = vrot.slane %v301, %v553
      %v556 = vunpack.c.l.s4 1983009808
      %v557 = vunpack.c.0.s8 %v556
      %v558 = vlaneseq
      %v559 = vshrl.u32 %v558, 7
      %v560 = vsub.s32 %v557, %v559
      %v561 = vrot.slane %v547, %v560
      %v562 = vcombine.high %v554, %v554
      %v563 = vcombine.high %v561, %v561
      %v564 = vcombine.high %v302, %v302
      %v566 = vunpack.c.l.s4 1983009808
      %v567 = vunpack.c.0.s8 %v566
      %v568 = vlaneseq
      %v569 = vshrl.u32 %v568, 7
      %v570 = vsub.s32 %v567, %v569
      %v571 = vrot.slane %v302, %v570
      %v573 = vunpack.c.l.s4 1983009808
      %v574 = vunpack.c.0.s8 %v573
      %v575 = vlaneseq
      %v576 = vshrl.u32 %v575, 7
      %v577 = vsub.s32 %v574, %v576
      %v578 = vrot.slane %v564, %v577
      %v579 = vcombine.high %v571, %v571
      %v580 = vcombine.high %v303, %v303
      %v582 = vunpack.c.l.s4 1983009808
      %v583 = vunpack.c.0.s8 %v582
      %v584 = vlaneseq
      %v585 = vshrl.u32 %v584, 7
      %v586 = vsub.s32 %v583, %v585
      %v587 = vrot.slane %v303, %v586
      %v589 = vunpack.c.l.s4 1983009808
      %v590 = vunpack.c.0.s8 %v589
      %v591 = vlaneseq
      %v592 = vshrl.u32 %v591, 7
      %v593 = vsub.s32 %v590, %v592
      %v594 = vrot.slane %v580, %v593
      %v595 = vcombine.high %v587, %v587
      %v596 = vcombine.high %v594, %v594
      %v597 = vcombine.high %v304, %v304
      %v599 = vunpack.c.l.s4 1983009808
      %v600 = vunpack.c.0.s8 %v599
      %v601 = vlaneseq
      %v602 = vshrl.u32 %v601, 7
      %v603 = vsub.s32 %v600, %v602
      %v604 = vrot.slane %v304, %v603
      %v606 = vunpack.c.l.s4 1983009808
      %v607 = vunpack.c.0.s8 %v606
      %v608 = vlaneseq
      %v609 = vshrl.u32 %v608, 7
      %v610 = vsub.s32 %v607, %v609
      %v611 = vrot.slane %v597, %v610
      %v612 = vcombine.high %v604, %v604
      %v613 = vcombine.high %v305, %v305
      %v615 = vunpack.c.l.s4 1983009808
      %v616 = vunpack.c.0.s8 %v615
      %v617 = vlaneseq
      %v618 = vshrl.u32 %v617, 7
      %v619 = vsub.s32 %v616, %v618
      %v620 = vrot.slane %v305, %v619
      %v622 = vunpack.c.l.s4 1983009808
      %v623 = vunpack.c.0.s8 %v622
      %v624 = vlaneseq
      %v625 = vshrl.u32 %v624, 7
      %v626 = vsub.s32 %v623, %v625
      %v627 = vrot.slane %v613, %v626
      %v628 = vcombine.high %v620, %v620
      %v629 = vcombine.high %v627, %v627
      %v630 = vcombine.high %v306, %v306
      %v632 = vunpack.c.l.s4 1983009808
      %v633 = vunpack.c.0.s8 %v632
      %v634 = vlaneseq
      %v635 = vshrl.u32 %v634, 7
      %v636 = vsub.s32 %v633, %v635
      %v637 = vrot.slane %v306, %v636
      %v639 = vunpack.c.l.s4 1983009808
      %v640 = vunpack.c.0.s8 %v639
      %v641 = vlaneseq
      %v642 = vshrl.u32 %v641, 7
      %v643 = vsub.s32 %v640, %v642
      %v644 = vrot.slane %v630, %v643
      %v645 = vcombine.high %v637, %v637
      %v646 = vcombine.high %v307, %v307
      %v648 = vunpack.c.l.s4 1983009808
      %v649 = vunpack.c.0.s8 %v648
      %v650 = vlaneseq
      %v651 = vshrl.u32 %v650, 7
      %v652 = vsub.s32 %v649, %v651
      %v653 = vrot.slane %v307, %v652
      %v655 = vunpack.c.l.s4 1983009808
      %v656 = vunpack.c.0.s8 %v655
      %v657 = vlaneseq
      %v658 = vshrl.u32 %v657, 7
      %v659 = vsub.s32 %v656, %v658
      %v660 = vrot.slane %v646, %v659
      %v661 = vcombine.high %v653, %v653
      %v662 = vcombine.high %v660, %v660
      %v663 = vcombine.high %v308, %v308
      %v665 = vunpack.c.l.s4 1983009808
      %v666 = vunpack.c.0.s8 %v665
      %v667 = vlaneseq
      %v668 = vshrl.u32 %v667, 7
      %v669 = vsub.s32 %v666, %v668
      %v670 = vrot.slane %v308, %v669
      %v672 = vunpack.c.l.s4 1983009808
      %v673 = vunpack.c.0.s8 %v672
      %v674 = vlaneseq
      %v675 = vshrl.u32 %v674, 7
      %v676 = vsub.s32 %v673, %v675
      %v677 = vrot.slane %v663, %v676
      %v678 = vcombine.high %v670, %v670
      %v679 = vcombine.high %v309, %v309
      %v681 = vunpack.c.l.s4 1983009808
      %v682 = vunpack.c.0.s8 %v681
      %v683 = vlaneseq
      %v684 = vshrl.u32 %v683, 7
      %v685 = vsub.s32 %v682, %v684
      %v686 = vrot.slane %v309, %v685
      %v688 = vunpack.c.l.s4 1983009808
      %v689 = vunpack.c.0.s8 %v688
      %v690 = vlaneseq
      %v691 = vshrl.u32 %v690, 7
      %v692 = vsub.s32 %v689, %v691
      %v693 = vrot.slane %v679, %v692
      %v694 = vcombine.high %v686, %v686
      %v695 = vcombine.high %v693, %v693
      %v696 = vcombine.high %v310, %v310
      %v698 = vunpack.c.l.s4 1983009808
      %v699 = vunpack.c.0.s8 %v698
      %v700 = vlaneseq
      %v701 = vshrl.u32 %v700, 7
      %v702 = vsub.s32 %v699, %v701
      %v703 = vrot.slane %v310, %v702
      %v705 = vunpack.c.l.s4 1983009808
      %v706 = vunpack.c.0.s8 %v705
      %v707 = vlaneseq
      %v708 = vshrl.u32 %v707, 7
      %v709 = vsub.s32 %v706, %v708
      %v710 = vrot.slane %v696, %v709
      %v711 = vcombine.high %v703, %v703
      %v712 = vcombine.high %v311, %v311
      %v714 = vunpack.c.l.s4 1983009808
      %v715 = vunpack.c.0.s8 %v714
      %v716 = vlaneseq
      %v717 = vshrl.u32 %v716, 7
      %v718 = vsub.s32 %v715, %v717
      %v719 = vrot.slane %v311, %v718
      %v721 = vunpack.c.l.s4 1983009808
      %v722 = vunpack.c.0.s8 %v721
      %v723 = vlaneseq
      %v724 = vshrl.u32 %v723, 7
      %v725 = vsub.s32 %v722, %v724
      %v726 = vrot.slane %v712, %v725
      %v727 = vcombine.high %v719, %v719
      %v728 = vcombine.high %v726, %v726
      %v729 = vcombine.high %v312, %v312
      %v731 = vunpack.c.l.s4 1983009808
      %v732 = vunpack.c.0.s8 %v731
      %v733 = vlaneseq
      %v734 = vshrl.u32 %v733, 7
      %v735 = vsub.s32 %v732, %v734
      %v736 = vrot.slane %v312, %v735
      %v738 = vunpack.c.l.s4 1983009808
      %v739 = vunpack.c.0.s8 %v738
      %v740 = vlaneseq
      %v741 = vshrl.u32 %v740, 7
      %v742 = vsub.s32 %v739, %v741
      %v743 = vrot.slane %v729, %v742
      %v744 = vcombine.high %v736, %v736
      %v745 = vcombine.high %v313, %v313
      %v747 = vunpack.c.l.s4 1983009808
      %v748 = vunpack.c.0.s8 %v747
      %v749 = vlaneseq
      %v750 = vshrl.u32 %v749, 7
      %v751 = vsub.s32 %v748, %v750
      %v752 = vrot.slane %v313, %v751
      %v754 = vunpack.c.l.s4 1983009808
      %v755 = vunpack.c.0.s8 %v754
      %v756 = vlaneseq
      %v757 = vshrl.u32 %v756, 7
      %v758 = vsub.s32 %v755, %v757
      %v759 = vrot.slane %v745, %v758
      %v760 = vcombine.high %v752, %v752
      %v761 = vcombine.high %v759, %v759
      %v762 = vcombine.high %v314, %v314
      %v764 = vunpack.c.l.s4 1983009808
      %v765 = vunpack.c.0.s8 %v764
      %v766 = vlaneseq
      %v767 = vshrl.u32 %v766, 7
      %v768 = vsub.s32 %v765, %v767
      %v769 = vrot.slane %v314, %v768
      %v771 = vunpack.c.l.s4 1983009808
      %v772 = vunpack.c.0.s8 %v771
      %v773 = vlaneseq
      %v774 = vshrl.u32 %v773, 7
      %v775 = vsub.s32 %v772, %v774
      %v776 = vrot.slane %v762, %v775
      %v777 = vcombine.high %v769, %v769
      %v778 = vcombine.high %v315, %v315
      %v780 = vunpack.c.l.s4 1983009808
      %v781 = vunpack.c.0.s8 %v780
      %v782 = vlaneseq
      %v783 = vshrl.u32 %v782, 7
      %v784 = vsub.s32 %v781, %v783
      %v785 = vrot.slane %v315, %v784
      %v787 = vunpack.c.l.s4 1983009808
      %v788 = vunpack.c.0.s8 %v787
      %v789 = vlaneseq
      %v790 = vshrl.u32 %v789, 7
      %v791 = vsub.s32 %v788, %v790
      %v792 = vrot.slane %v778, %v791
      %v793 = vcombine.high %v785, %v785
      %v794 = vcombine.high %v792, %v792
      %v795 = vcombine.high %v316, %v316
      %v797 = vunpack.c.l.s4 1983009808
      %v798 = vunpack.c.0.s8 %v797
      %v799 = vlaneseq
      %v800 = vshrl.u32 %v799, 7
      %v801 = vsub.s32 %v798, %v800
      %v802 = vrot.slane %v316, %v801
      %v804 = vunpack.c.l.s4 1983009808
      %v805 = vunpack.c.0.s8 %v804
      %v806 = vlaneseq
      %v807 = vshrl.u32 %v806, 7
      %v808 = vsub.s32 %v805, %v807
      %v809 = vrot.slane %v795, %v808
      %v810 = vcombine.high %v802, %v802
      %v811 = vcombine.high %v380, %v380
      %v812 = vcombine.high %v413, %v413
      %v813 = vcombine.high %v446, %v446
      %v814 = vcombine.high %v479, %v479
      %v815 = vcombine.high %v512, %v512
      %v816 = vcombine.high %v545, %v545
      %v817 = vcombine.high %v578, %v578
      %v818 = vcombine.high %v611, %v611
      %v819 = vcombine.high %v644, %v644
      %v820 = vcombine.high %v677, %v677
      %v821 = vcombine.high %v710, %v710
      %v822 = vcombine.high %v743, %v743
      %v823 = vcombine.high %v776, %v776
      %v824 = vcombine.high %v809, %v809
      %vm825 = vcmask 1040384
      %vm826 = vcmask 1042434
      %vm827 = vmor %vm825, %vm826
      %vm828 = vcmask 1044484
      %vm829 = vmor %vm827, %vm828
      %vm830 = vcmask 1046534
      %vm831 = vmor %vm829, %vm830
      %v832 = vrot.slane %v356, 7
      %v833 = vrot.slane %v832, 2
      %v834 = vrot.slane %v364, 7
      %v835 = vsel %vm831, %v833, %v834
      %v836 = vrot.slane %v834, 2
      %v837 = vrot.slane %v363, 7
      %v838 = vsel %vm831, %v836, %v837
      %v839 = vrot.slane %v837, 2
      %v840 = vrot.slane %v365, 7
      %v841 = vsel %vm831, %v839, %v840
      %v842 = vrot.slane %v840, 2
      %v843 = vrot.slane %v373, 7
      %v844 = vsel %vm831, %v842, %v843
      %v845 = vrot.slane %v843, 2
      %v846 = vrot.slane %v381, 7
      %v847 = vsel %vm831, %v845, %v846
      %v848 = vrot.slane %v846, 2
      %v849 = vrot.slane %v380, 7
      %v850 = vsel %vm831, %v848, %v849
      %v851 = vrot.slane %v849, 2
      %v852 = vrot.slane %v811, 7
      %v853 = vsel %vm831, %v851, %v852
      %v854 = vrot.slane %v389, 7
      %v855 = vrot.slane %v854, 2
      %v856 = vrot.slane %v397, 7
      %v857 = vsel %vm831, %v855, %v856
      %v858 = vrot.slane %v856, 2
      %v859 = vrot.slane %v396, 7
      %v860 = vsel %vm831, %v858, %v859
      %v861 = vrot.slane %v859, 2
      %v862 = vrot.slane %v398, 7
      %v863 = vsel %vm831, %v861, %v862
      %v864 = vrot.slane %v862, 2
      %v865 = vrot.slane %v406, 7
      %v866 = vsel %vm831, %v864, %v865
      %v867 = vrot.slane %v865, 2
      %v868 = vrot.slane %v414, 7
      %v869 = vsel %vm831, %v867, %v868
      %v870 = vrot.slane %v868, 2
      %v871 = vrot.slane %v413, 7
      %v872 = vsel %vm831, %v870, %v871
      %v873 = vrot.slane %v871, 2
      %v874 = vrot.slane %v812, 7
      %v875 = vsel %vm831, %v873, %v874
      %v876 = vrot.slane %v422, 7
      %v877 = vrot.slane %v876, 2
      %v878 = vrot.slane %v430, 7
      %v879 = vsel %vm831, %v877, %v878
      %v880 = vrot.slane %v878, 2
      %v881 = vrot.slane %v429, 7
      %v882 = vsel %vm831, %v880, %v881
      %v883 = vrot.slane %v881, 2
      %v884 = vrot.slane %v431, 7
      %v885 = vsel %vm831, %v883, %v884
      %v886 = vrot.slane %v884, 2
      %v887 = vrot.slane %v439, 7
      %v888 = vsel %vm831, %v886, %v887
      %v889 = vrot.slane %v887, 2
      %v890 = vrot.slane %v447, 7
      %v891 = vsel %vm831, %v889, %v890
      %v892 = vrot.slane %v890, 2
      %v893 = vrot.slane %v446, 7
      %v894 = vsel %vm831, %v892, %v893
      %v895 = vrot.slane %v893, 2
      %v896 = vrot.slane %v813, 7
      %v897 = vsel %vm831, %v895, %v896
      %v898 = vrot.slane %v455, 7
      %v899 = vrot.slane %v898, 2
      %v900 = vrot.slane %v463, 7
      %v901 = vsel %vm831, %v899, %v900
      %v902 = vrot.slane %v900, 2
      %v903 = vrot.slane %v462, 7
      %v904 = vsel %vm831, %v902, %v903
      %v905 = vrot.slane %v903, 2
      %v906 = vrot.slane %v464, 7
      %v907 = vsel %vm831, %v905, %v906
      %v908 = vrot.slane %v906, 2
      %v909 = vrot.slane %v472, 7
      %v910 = vsel %vm831, %v908, %v909
      %v911 = vrot.slane %v909, 2
      %v912 = vrot.slane %v480, 7
      %v913 = vsel %vm831, %v911, %v912
      %v914 = vrot.slane %v912, 2
      %v915 = vrot.slane %v479, 7
      %v916 = vsel %vm831, %v914, %v915
      %v917 = vrot.slane %v915, 2
      %v918 = vrot.slane %v814, 7
      %v919 = vsel %vm831, %v917, %v918
      %v920 = vrot.slane %v488, 7
      %v921 = vrot.slane %v920, 2
      %v922 = vrot.slane %v496, 7
      %v923 = vsel %vm831, %v921, %v922
      %v924 = vrot.slane %v922, 2
      %v925 = vrot.slane %v495, 7
      %v926 = vsel %vm831, %v924, %v925
      %v927 = vrot.slane %v925, 2
      %v928 = vrot.slane %v497, 7
      %v929 = vsel %vm831, %v927, %v928
      %v930 = vrot.slane %v928, 2
      %v931 = vrot.slane %v505, 7
      %v932 = vsel %vm831, %v930, %v931
      %v933 = vrot.slane %v931, 2
      %v934 = vrot.slane %v513, 7
      %v935 = vsel %vm831, %v933, %v934
      %v936 = vrot.slane %v934, 2
      %v937 = vrot.slane %v512, 7
      %v938 = vsel %vm831, %v936, %v937
      %v939 = vrot.slane %v937, 2
      %v940 = vrot.slane %v815, 7
      %v941 = vsel %vm831, %v939, %v940
      %v942 = vrot.slane %v521, 7
      %v943 = vrot.slane %v942, 2
      %v944 = vrot.slane %v529, 7
      %v945 = vsel %vm831, %v943, %v944
      %v946 = vrot.slane %v944, 2
      %v947 = vrot.slane %v528, 7
      %v948 = vsel %vm831, %v946, %v947
      %v949 = vrot.slane %v947, 2
      %v950 = vrot.slane %v530, 7
      %v951 = vsel %vm831, %v949, %v950
      %v952 = vrot.slane %v950, 2
      %v953 = vrot.slane %v538, 7
      %v954 = vsel %vm831, %v952, %v953
      %v955 = vrot.slane %v953, 2
      %v956 = vrot.slane %v546, 7
      %v957 = vsel %vm831, %v955, %v956
      %v958 = vrot.slane %v956, 2
      %v959 = vrot.slane %v545, 7
      %v960 = vsel %vm831, %v958, %v959
      %v961 = vrot.slane %v959, 2
      %v962 = vrot.slane %v816, 7
      %v963 = vsel %vm831, %v961, %v962
      %v964 = vrot.slane %v554, 7
      %v965 = vrot.slane %v964, 2
      %v966 = vrot.slane %v562, 7
      %v967 = vsel %vm831, %v965, %v966
      %v968 = vrot.slane %v966, 2
      %v969 = vrot.slane %v561, 7
      %v970 = vsel %vm831, %v968, %v969
      %v971 = vrot.slane %v969, 2
      %v972 = vrot.slane %v563, 7
      %v973 = vsel %vm831, %v971, %v972
      %v974 = vrot.slane %v972, 2
      %v975 = vrot.slane %v571, 7
      %v976 = vsel %vm831, %v974, %v975
      %v977 = vrot.slane %v975, 2
      %v978 = vrot.slane %v579, 7
      %v979 = vsel %vm831, %v977, %v978
      %v980 = vrot.slane %v978, 2
      %v981 = vrot.slane %v578, 7
      %v982 = vsel %vm831, %v980, %v981
      %v983 = vrot.slane %v981, 2
      %v984 = vrot.slane %v817, 7
      %v985 = vsel %vm831, %v983, %v984
      %v986 = vrot.slane %v587, 7
      %v987 = vrot.slane %v986, 2
      %v988 = vrot.slane %v595, 7
      %v989 = vsel %vm831, %v987, %v988
      %v990 = vrot.slane %v988, 2
      %v991 = vrot.slane %v594, 7
      %v992 = vsel %vm831, %v990, %v991
      %v993 = vrot.slane %v991, 2
      %v994 = vrot.slane %v596, 7
      %v995 = vsel %vm831, %v993, %v994
      %v996 = vrot.slane %v994, 2
      %v997 = vrot.slane %v604, 7
      %v998 = vsel %vm831, %v996, %v997
      %v999 = vrot.slane %v997, 2
      %v1000 = vrot.slane %v612, 7
      %v1001 = vsel %vm831, %v999, %v1000
      %v1002 = vrot.slane %v1000, 2
      %v1003 = vrot.slane %v611, 7
      %v1004 = vsel %vm831, %v1002, %v1003
      %v1005 = vrot.slane %v1003, 2
      %v1006 = vrot.slane %v818, 7
      %v1007 = vsel %vm831, %v1005, %v1006
      %v1008 = vrot.slane %v620, 7
      %v1009 = vrot.slane %v1008, 2
      %v1010 = vrot.slane %v628, 7
      %v1011 = vsel %vm831, %v1009, %v1010
      %v1012 = vrot.slane %v1010, 2
      %v1013 = vrot.slane %v627, 7
      %v1014 = vsel %vm831, %v1012, %v1013
      %v1015 = vrot.slane %v1013, 2
      %v1016 = vrot.slane %v629, 7
      %v1017 = vsel %vm831, %v1015, %v1016
      %v1018 = vrot.slane %v1016, 2
      %v1019 = vrot.slane %v637, 7
      %v1020 = vsel %vm831, %v1018, %v1019
      %v1021 = vrot.slane %v1019, 2
      %v1022 = vrot.slane %v645, 7
      %v1023 = vsel %vm831, %v1021, %v1022
      %v1024 = vrot.slane %v1022, 2
      %v1025 = vrot.slane %v644, 7
      %v1026 = vsel %vm831, %v1024, %v1025
      %v1027 = vrot.slane %v1025, 2
      %v1028 = vrot.slane %v819, 7
      %v1029 = vsel %vm831, %v1027, %v1028
      %v1030 = vrot.slane %v653, 7
      %v1031 = vrot.slane %v1030, 2
      %v1032 = vrot.slane %v661, 7
      %v1033 = vsel %vm831, %v1031, %v1032
      %v1034 = vrot.slane %v1032, 2
      %v1035 = vrot.slane %v660, 7
      %v1036 = vsel %vm831, %v1034, %v1035
      %v1037 = vrot.slane %v1035, 2
      %v1038 = vrot.slane %v662, 7
      %v1039 = vsel %vm831, %v1037, %v1038
      %v1040 = vrot.slane %v1038, 2
      %v1041 = vrot.slane %v670, 7
      %v1042 = vsel %vm831, %v1040, %v1041
      %v1043 = vrot.slane %v1041, 2
      %v1044 = vrot.slane %v678, 7
      %v1045 = vsel %vm831, %v1043, %v1044
      %v1046 = vrot.slane %v1044, 2
      %v1047 = vrot.slane %v677, 7
      %v1048 = vsel %vm831, %v1046, %v1047
      %v1049 = vrot.slane %v1047, 2
      %v1050 = vrot.slane %v820, 7
      %v1051 = vsel %vm831, %v1049, %v1050
      %v1052 = vrot.slane %v686, 7
      %v1053 = vrot.slane %v1052, 2
      %v1054 = vrot.slane %v694, 7
      %v1055 = vsel %vm831, %v1053, %v1054
      %v1056 = vrot.slane %v1054, 2
      %v1057 = vrot.slane %v693, 7
      %v1058 = vsel %vm831, %v1056, %v1057
      %v1059 = vrot.slane %v1057, 2
      %v1060 = vrot.slane %v695, 7
      %v1061 = vsel %vm831, %v1059, %v1060
      %v1062 = vrot.slane %v1060, 2
      %v1063 = vrot.slane %v703, 7
      %v1064 = vsel %vm831, %v1062, %v1063
      %v1065 = vrot.slane %v1063, 2
      %v1066 = vrot.slane %v711, 7
      %v1067 = vsel %vm831, %v1065, %v1066
      %v1068 = vrot.slane %v1066, 2
      %v1069 = vrot.slane %v710, 7
      %v1070 = vsel %vm831, %v1068, %v1069
      %v1071 = vrot.slane %v1069, 2
      %v1072 = vrot.slane %v821, 7
      %v1073 = vsel %vm831, %v1071, %v1072
      %v1074 = vrot.slane %v719, 7
      %v1075 = vrot.slane %v1074, 2
      %v1076 = vrot.slane %v727, 7
      %v1077 = vsel %vm831, %v1075, %v1076
      %v1078 = vrot.slane %v1076, 2
      %v1079 = vrot.slane %v726, 7
      %v1080 = vsel %vm831, %v1078, %v1079
      %v1081 = vrot.slane %v1079, 2
      %v1082 = vrot.slane %v728, 7
      %v1083 = vsel %vm831, %v1081, %v1082
      %v1084 = vrot.slane %v1082, 2
      %v1085 = vrot.slane %v736, 7
      %v1086 = vsel %vm831, %v1084, %v1085
      %v1087 = vrot.slane %v1085, 2
      %v1088 = vrot.slane %v744, 7
      %v1089 = vsel %vm831, %v1087, %v1088
      %v1090 = vrot.slane %v1088, 2
      %v1091 = vrot.slane %v743, 7
      %v1092 = vsel %vm831, %v1090, %v1091
      %v1093 = vrot.slane %v1091, 2
      %v1094 = vrot.slane %v822, 7
      %v1095 = vsel %vm831, %v1093, %v1094
      %v1096 = vrot.slane %v752, 7
      %v1097 = vrot.slane %v1096, 2
      %v1098 = vrot.slane %v760, 7
      %v1099 = vsel %vm831, %v1097, %v1098
      %v1100 = vrot.slane %v1098, 2
      %v1101 = vrot.slane %v759, 7
      %v1102 = vsel %vm831, %v1100, %v1101
      %v1103 = vrot.slane %v1101, 2
      %v1104 = vrot.slane %v761, 7
      %v1105 = vsel %vm831, %v1103, %v1104
      %v1106 = vrot.slane %v1104, 2
      %v1107 = vrot.slane %v769, 7
      %v1108 = vsel %vm831, %v1106, %v1107
      %v1109 = vrot.slane %v1107, 2
      %v1110 = vrot.slane %v777, 7
      %v1111 = vsel %vm831, %v1109, %v1110
      %v1112 = vrot.slane %v1110, 2
      %v1113 = vrot.slane %v776, 7
      %v1114 = vsel %vm831, %v1112, %v1113
      %v1115 = vrot.slane %v1113, 2
      %v1116 = vrot.slane %v823, 7
      %v1117 = vsel %vm831, %v1115, %v1116
      %v1118 = vrot.slane %v785, 7
      %v1119 = vrot.slane %v1118, 2
      %v1120 = vrot.slane %v793, 7
      %v1121 = vsel %vm831, %v1119, %v1120
      %v1122 = vrot.slane %v1120, 2
      %v1123 = vrot.slane %v792, 7
      %v1124 = vsel %vm831, %v1122, %v1123
      %v1125 = vrot.slane %v1123, 2
      %v1126 = vrot.slane %v794, 7
      %v1127 = vsel %vm831, %v1125, %v1126
      %v1128 = vrot.slane %v1126, 2
      %v1129 = vrot.slane %v802, 7
      %v1130 = vsel %vm831, %v1128, %v1129
      %v1131 = vrot.slane %v1129, 2
      %v1132 = vrot.slane %v810, 7
      %v1133 = vsel %vm831, %v1131, %v1132
      %v1134 = vrot.slane %v1132, 2
      %v1135 = vrot.slane %v809, 7
      %v1136 = vsel %vm831, %v1134, %v1135
      %v1137 = vrot.slane %v1135, 2
      %v1138 = vrot.slane %v824, 7
      %v1139 = vsel %vm831, %v1137, %v1138
      %v1140 = vcombine.low %v835, %v838
      %v1141 = vcombine.low %v841, %v844
      %v1143 = vunpack.c.l.s4 1983009808
      %v1144 = vunpack.c.0.s8 %v1143
      %v1145 = vlaneseq
      %v1146 = vshrl.u32 %v1145, 7
      %v1147 = vsub.s32 %v1144, %v1146
      %v1148 = vrot.slane %v1140, %v1147
      %v1150 = vunpack.c.l.s4 1983009808
      %v1151 = vunpack.c.0.s8 %v1150
      %v1152 = vlaneseq
      %v1153 = vshrl.u32 %v1152, 7
      %v1154 = vsub.s32 %v1151, %v1153
      %v1155 = vrot.slane %v1141, %v1154
      %v1156 = vcombine.low %v1148, %v1155
      %v1157 = vcombine.low %v847, %v850
      %v1158 = vcombine.low %v853, %v857
      %v1160 = vunpack.c.l.s4 1983009808
      %v1161 = vunpack.c.0.s8 %v1160
      %v1162 = vlaneseq
      %v1163 = vshrl.u32 %v1162, 7
      %v1164 = vsub.s32 %v1161, %v1163
      %v1165 = vrot.slane %v1157, %v1164
      %v1167 = vunpack.c.l.s4 1983009808
      %v1168 = vunpack.c.0.s8 %v1167
      %v1169 = vlaneseq
      %v1170 = vshrl.u32 %v1169, 7
      %v1171 = vsub.s32 %v1168, %v1170
      %v1172 = vrot.slane %v1158, %v1171
      %v1173 = vcombine.low %v1165, %v1172
      %v1174 = vcombine.low %v860, %v863
      %v1175 = vcombine.low %v866, %v869
      %v1177 = vunpack.c.l.s4 1983009808
      %v1178 = vunpack.c.0.s8 %v1177
      %v1179 = vlaneseq
      %v1180 = vshrl.u32 %v1179, 7
      %v1181 = vsub.s32 %v1178, %v1180
      %v1182 = vrot.slane %v1174, %v1181
      %v1184 = vunpack.c.l.s4 1983009808
      %v1185 = vunpack.c.0.s8 %v1184
      %v1186 = vlaneseq
      %v1187 = vshrl.u32 %v1186, 7
      %v1188 = vsub.s32 %v1185, %v1187
      %v1189 = vrot.slane %v1175, %v1188
      %v1190 = vcombine.low %v1182, %v1189
      %v1191 = vcombine.low %v872, %v875
      %v1192 = vcombine.low %v879, %v882
      %v1194 = vunpack.c.l.s4 1983009808
      %v1195 = vunpack.c.0.s8 %v1194
      %v1196 = vlaneseq
      %v1197 = vshrl.u32 %v1196, 7
      %v1198 = vsub.s32 %v1195, %v1197
      %v1199 = vrot.slane %v1191, %v1198
      %v1201 = vunpack.c.l.s4 1983009808
      %v1202 = vunpack.c.0.s8 %v1201
      %v1203 = vlaneseq
      %v1204 = vshrl.u32 %v1203, 7
      %v1205 = vsub.s32 %v1202, %v1204
      %v1206 = vrot.slane %v1192, %v1205
      %v1207 = vcombine.low %v1199, %v1206
      %v1208 = vcombine.low %v885, %v888
      %v1209 = vcombine.low %v891, %v894
      %v1211 = vunpack.c.l.s4 1983009808
      %v1212 = vunpack.c.0.s8 %v1211
      %v1213 = vlaneseq
      %v1214 = vshrl.u32 %v1213, 7
      %v1215 = vsub.s32 %v1212, %v1214
      %v1216 = vrot.slane %v1208, %v1215
      %v1218 = vunpack.c.l.s4 1983009808
      %v1219 = vunpack.c.0.s8 %v1218
      %v1220 = vlaneseq
      %v1221 = vshrl.u32 %v1220, 7
      %v1222 = vsub.s32 %v1219, %v1221
      %v1223 = vrot.slane %v1209, %v1222
      %v1224 = vcombine.low %v1216, %v1223
      %v1225 = vcombine.low %v897, %v901
      %v1226 = vcombine.low %v904, %v907
      %v1228 = vunpack.c.l.s4 1983009808
      %v1229 = vunpack.c.0.s8 %v1228
      %v1230 = vlaneseq
      %v1231 = vshrl.u32 %v1230, 7
      %v1232 = vsub.s32 %v1229, %v1231
      %v1233 = vrot.slane %v1225, %v1232
      %v1235 = vunpack.c.l.s4 1983009808
      %v1236 = vunpack.c.0.s8 %v1235
      %v1237 = vlaneseq
      %v1238 = vshrl.u32 %v1237, 7
      %v1239 = vsub.s32 %v1236, %v1238
      %v1240 = vrot.slane %v1226, %v1239
      %v1241 = vcombine.low %v1233, %v1240
      %v1242 = vcombine.low %v910, %v913
      %v1243 = vcombine.low %v916, %v919
      %v1245 = vunpack.c.l.s4 1983009808
      %v1246 = vunpack.c.0.s8 %v1245
      %v1247 = vlaneseq
      %v1248 = vshrl.u32 %v1247, 7
      %v1249 = vsub.s32 %v1246, %v1248
      %v1250 = vrot.slane %v1242, %v1249
      %v1252 = vunpack.c.l.s4 1983009808
      %v1253 = vunpack.c.0.s8 %v1252
      %v1254 = vlaneseq
      %v1255 = vshrl.u32 %v1254, 7
      %v1256 = vsub.s32 %v1253, %v1255
      %v1257 = vrot.slane %v1243, %v1256
      %v1258 = vcombine.low %v1250, %v1257
      %v1259 = vcombine.low %v923, %v926
      %v1260 = vcombine.low %v929, %v932
      %v1262 = vunpack.c.l.s4 1983009808
      %v1263 = vunpack.c.0.s8 %v1262
      %v1264 = vlaneseq
      %v1265 = vshrl.u32 %v1264, 7
      %v1266 = vsub.s32 %v1263, %v1265
      %v1267 = vrot.slane %v1259, %v1266
      %v1269 = vunpack.c.l.s4 1983009808
      %v1270 = vunpack.c.0.s8 %v1269
      %v1271 = vlaneseq
      %v1272 = vshrl.u32 %v1271, 7
      %v1273 = vsub.s32 %v1270, %v1272
      %v1274 = vrot.slane %v1260, %v1273
      %v1275 = vcombine.low %v1267, %v1274
      %v1276 = vcombine.low %v935, %v938
      %v1277 = vcombine.low %v941, %v945
      %v1279 = vunpack.c.l.s4 1983009808
      %v1280 = vunpack.c.0.s8 %v1279
      %v1281 = vlaneseq
      %v1282 = vshrl.u32 %v1281, 7
      %v1283 = vsub.s32 %v1280, %v1282
      %v1284 = vrot.slane %v1276, %v1283
      %v1286 = vunpack.c.l.s4 1983009808
      %v1287 = vunpack.c.0.s8 %v1286
      %v1288 = vlaneseq
      %v1289 = vshrl.u32 %v1288, 7
      %v1290 = vsub.s32 %v1287, %v1289
      %v1291 = vrot.slane %v1277, %v1290
      %v1292 = vcombine.low %v1284, %v1291
      %v1293 = vcombine.low %v948, %v951
      %v1294 = vcombine.low %v954, %v957
      %v1296 = vunpack.c.l.s4 1983009808
      %v1297 = vunpack.c.0.s8 %v1296
      %v1298 = vlaneseq
      %v1299 = vshrl.u32 %v1298, 7
      %v1300 = vsub.s32 %v1297, %v1299
      %v1301 = vrot.slane %v1293, %v1300
      %v1303 = vunpack.c.l.s4 1983009808
      %v1304 = vunpack.c.0.s8 %v1303
      %v1305 = vlaneseq
      %v1306 = vshrl.u32 %v1305, 7
      %v1307 = vsub.s32 %v1304, %v1306
      %v1308 = vrot.slane %v1294, %v1307
      %v1309 = vcombine.low %v1301, %v1308
      %v1310 = vcombine.low %v960, %v963
      %v1311 = vcombine.low %v967, %v970
      %v1313 = vunpack.c.l.s4 1983009808
      %v1314 = vunpack.c.0.s8 %v1313
      %v1315 = vlaneseq
      %v1316 = vshrl.u32 %v1315, 7
      %v1317 = vsub.s32 %v1314, %v1316
      %v1318 = vrot.slane %v1310, %v1317
      %v1320 = vunpack.c.l.s4 1983009808
      %v1321 = vunpack.c.0.s8 %v1320
      %v1322 = vlaneseq
      %v1323 = vshrl.u32 %v1322, 7
      %v1324 = vsub.s32 %v1321, %v1323
      %v1325 = vrot.slane %v1311, %v1324
      %v1326 = vcombine.low %v1318, %v1325
      %v1327 = vcombine.low %v973, %v976
      %v1328 = vcombine.low %v979, %v982
      %v1330 = vunpack.c.l.s4 1983009808
      %v1331 = vunpack.c.0.s8 %v1330
      %v1332 = vlaneseq
      %v1333 = vshrl.u32 %v1332, 7
      %v1334 = vsub.s32 %v1331, %v1333
      %v1335 = vrot.slane %v1327, %v1334
      %v1337 = vunpack.c.l.s4 1983009808
      %v1338 = vunpack.c.0.s8 %v1337
      %v1339 = vlaneseq
      %v1340 = vshrl.u32 %v1339, 7
      %v1341 = vsub.s32 %v1338, %v1340
      %v1342 = vrot.slane %v1328, %v1341
      %v1343 = vcombine.low %v1335, %v1342
      %v1344 = vcombine.low %v985, %v989
      %v1345 = vcombine.low %v992, %v995
      %v1347 = vunpack.c.l.s4 1983009808
      %v1348 = vunpack.c.0.s8 %v1347
      %v1349 = vlaneseq
      %v1350 = vshrl.u32 %v1349, 7
      %v1351 = vsub.s32 %v1348, %v1350
      %v1352 = vrot.slane %v1344, %v1351
      %v1354 = vunpack.c.l.s4 1983009808
      %v1355 = vunpack.c.0.s8 %v1354
      %v1356 = vlaneseq
      %v1357 = vshrl.u32 %v1356, 7
      %v1358 = vsub.s32 %v1355, %v1357
      %v1359 = vrot.slane %v1345, %v1358
      %v1360 = vcombine.low %v1352, %v1359
      %v1361 = vcombine.low %v998, %v1001
      %v1362 = vcombine.low %v1004, %v1007
      %v1364 = vunpack.c.l.s4 1983009808
      %v1365 = vunpack.c.0.s8 %v1364
      %v1366 = vlaneseq
      %v1367 = vshrl.u32 %v1366, 7
      %v1368 = vsub.s32 %v1365, %v1367
      %v1369 = vrot.slane %v1361, %v1368
      %v1371 = vunpack.c.l.s4 1983009808
      %v1372 = vunpack.c.0.s8 %v1371
      %v1373 = vlaneseq
      %v1374 = vshrl.u32 %v1373, 7
      %v1375 = vsub.s32 %v1372, %v1374
      %v1376 = vrot.slane %v1362, %v1375
      %v1377 = vcombine.low %v1369, %v1376
      %v1378 = vcombine.low %v1011, %v1014
      %v1379 = vcombine.low %v1017, %v1020
      %v1381 = vunpack.c.l.s4 1983009808
      %v1382 = vunpack.c.0.s8 %v1381
      %v1383 = vlaneseq
      %v1384 = vshrl.u32 %v1383, 7
      %v1385 = vsub.s32 %v1382, %v1384
      %v1386 = vrot.slane %v1378, %v1385
      %v1388 = vunpack.c.l.s4 1983009808
      %v1389 = vunpack.c.0.s8 %v1388
      %v1390 = vlaneseq
      %v1391 = vshrl.u32 %v1390, 7
      %v1392 = vsub.s32 %v1389, %v1391
      %v1393 = vrot.slane %v1379, %v1392
      %v1394 = vcombine.low %v1386, %v1393
      %v1395 = vcombine.low %v1023, %v1026
      %v1396 = vcombine.low %v1029, %v1033
      %v1398 = vunpack.c.l.s4 1983009808
      %v1399 = vunpack.c.0.s8 %v1398
      %v1400 = vlaneseq
      %v1401 = vshrl.u32 %v1400, 7
      %v1402 = vsub.s32 %v1399, %v1401
      %v1403 = vrot.slane %v1395, %v1402
      %v1405 = vunpack.c.l.s4 1983009808
      %v1406 = vunpack.c.0.s8 %v1405
      %v1407 = vlaneseq
      %v1408 = vshrl.u32 %v1407, 7
      %v1409 = vsub.s32 %v1406, %v1408
      %v1410 = vrot.slane %v1396, %v1409
      %v1411 = vcombine.low %v1403, %v1410
      %v1412 = vcombine.low %v1036, %v1039
      %v1413 = vcombine.low %v1042, %v1045
      %v1415 = vunpack.c.l.s4 1983009808
      %v1416 = vunpack.c.0.s8 %v1415
      %v1417 = vlaneseq
      %v1418 = vshrl.u32 %v1417, 7
      %v1419 = vsub.s32 %v1416, %v1418
      %v1420 = vrot.slane %v1412, %v1419
      %v1422 = vunpack.c.l.s4 1983009808
      %v1423 = vunpack.c.0.s8 %v1422
      %v1424 = vlaneseq
      %v1425 = vshrl.u32 %v1424, 7
      %v1426 = vsub.s32 %v1423, %v1425
      %v1427 = vrot.slane %v1413, %v1426
      %v1428 = vcombine.low %v1420, %v1427
      %v1429 = vcombine.low %v1048, %v1051
      %v1430 = vcombine.low %v1055, %v1058
      %v1432 = vunpack.c.l.s4 1983009808
      %v1433 = vunpack.c.0.s8 %v1432
      %v1434 = vlaneseq
      %v1435 = vshrl.u32 %v1434, 7
      %v1436 = vsub.s32 %v1433, %v1435
      %v1437 = vrot.slane %v1429, %v1436
      %v1439 = vunpack.c.l.s4 1983009808
      %v1440 = vunpack.c.0.s8 %v1439
      %v1441 = vlaneseq
      %v1442 = vshrl.u32 %v1441, 7
      %v1443 = vsub.s32 %v1440, %v1442
      %v1444 = vrot.slane %v1430, %v1443
      %v1445 = vcombine.low %v1437, %v1444
      %v1446 = vcombine.low %v1061, %v1064
      %v1447 = vcombine.low %v1067, %v1070
      %v1449 = vunpack.c.l.s4 1983009808
      %v1450 = vunpack.c.0.s8 %v1449
      %v1451 = vlaneseq
      %v1452 = vshrl.u32 %v1451, 7
      %v1453 = vsub.s32 %v1450, %v1452
      %v1454 = vrot.slane %v1446, %v1453
      %v1456 = vunpack.c.l.s4 1983009808
      %v1457 = vunpack.c.0.s8 %v1456
      %v1458 = vlaneseq
      %v1459 = vshrl.u32 %v1458, 7
      %v1460 = vsub.s32 %v1457, %v1459
      %v1461 = vrot.slane %v1447, %v1460
      %v1462 = vcombine.low %v1454, %v1461
      %v1463 = vcombine.low %v1073, %v1077
      %v1464 = vcombine.low %v1080, %v1083
      %v1466 = vunpack.c.l.s4 1983009808
      %v1467 = vunpack.c.0.s8 %v1466
      %v1468 = vlaneseq
      %v1469 = vshrl.u32 %v1468, 7
      %v1470 = vsub.s32 %v1467, %v1469
      %v1471 = vrot.slane %v1463, %v1470
      %v1473 = vunpack.c.l.s4 1983009808
      %v1474 = vunpack.c.0.s8 %v1473
      %v1475 = vlaneseq
      %v1476 = vshrl.u32 %v1475, 7
      %v1477 = vsub.s32 %v1474, %v1476
      %v1478 = vrot.slane %v1464, %v1477
      %v1479 = vcombine.low %v1471, %v1478
      %v1480 = vcombine.low %v1086, %v1089
      %v1481 = vcombine.low %v1092, %v1095
      %v1483 = vunpack.c.l.s4 1983009808
      %v1484 = vunpack.c.0.s8 %v1483
      %v1485 = vlaneseq
      %v1486 = vshrl.u32 %v1485, 7
      %v1487 = vsub.s32 %v1484, %v1486
      %v1488 = vrot.slane %v1480, %v1487
      %v1490 = vunpack.c.l.s4 1983009808
      %v1491 = vunpack.c.0.s8 %v1490
      %v1492 = vlaneseq
      %v1493 = vshrl.u32 %v1492, 7
      %v1494 = vsub.s32 %v1491, %v1493
      %v1495 = vrot.slane %v1481, %v1494
      %v1496 = vcombine.low %v1488, %v1495
      %v1497 = vcombine.low %v1099, %v1102
      %v1498 = vcombine.low %v1105, %v1108
      %v1500 = vunpack.c.l.s4 1983009808
      %v1501 = vunpack.c.0.s8 %v1500
      %v1502 = vlaneseq
      %v1503 = vshrl.u32 %v1502, 7
      %v1504 = vsub.s32 %v1501, %v1503
      %v1505 = vrot.slane %v1497, %v1504
      %v1507 = vunpack.c.l.s4 1983009808
      %v1508 = vunpack.c.0.s8 %v1507
      %v1509 = vlaneseq
      %v1510 = vshrl.u32 %v1509, 7
      %v1511 = vsub.s32 %v1508, %v1510
      %v1512 = vrot.slane %v1498, %v1511
      %v1513 = vcombine.low %v1505, %v1512
      %v1514 = vcombine.low %v1111, %v1114
      %v1515 = vcombine.low %v1117, %v1121
      %v1517 = vunpack.c.l.s4 1983009808
      %v1518 = vunpack.c.0.s8 %v1517
      %v1519 = vlaneseq
      %v1520 = vshrl.u32 %v1519, 7
      %v1521 = vsub.s32 %v1518, %v1520
      %v1522 = vrot.slane %v1514, %v1521
      %v1524 = vunpack.c.l.s4 1983009808
      %v1525 = vunpack.c.0.s8 %v1524
      %v1526 = vlaneseq
      %v1527 = vshrl.u32 %v1526, 7
      %v1528 = vsub.s32 %v1525, %v1527
      %v1529 = vrot.slane %v1515, %v1528
      %v1530 = vcombine.low %v1522, %v1529
      %v1531 = vcombine.low %v1124, %v1127
      %v1532 = vcombine.low %v1130, %v1133
      %v1534 = vunpack.c.l.s4 1983009808
      %v1535 = vunpack.c.0.s8 %v1534
      %v1536 = vlaneseq
      %v1537 = vshrl.u32 %v1536, 7
      %v1538 = vsub.s32 %v1535, %v1537
      %v1539 = vrot.slane %v1531, %v1538
      %v1541 = vunpack.c.l.s4 1983009808
      %v1542 = vunpack.c.0.s8 %v1541
      %v1543 = vlaneseq
      %v1544 = vshrl.u32 %v1543, 7
      %v1545 = vsub.s32 %v1542, %v1544
      %v1546 = vrot.slane %v1532, %v1545
      %v1547 = vcombine.low %v1539, %v1546
      %v1548 = vcombine.low %v1136, %v1139
      %v1550 = vunpack.c.l.s4 1983009808
      %v1551 = vunpack.c.0.s8 %v1550
      %v1552 = vlaneseq
      %v1553 = vshrl.u32 %v1552, 7
      %v1554 = vsub.s32 %v1551, %v1553
      %v1555 = vrot.slane %v1548, %v1554
      %vm1556 = vcmask 64512
      %v1557 = vsel %vm1556, %v1156, 0
      %v1559 = vsel %vm1556, %v1173, 0
      %v1561 = vsel %vm1556, %v1190, 0
      %v1563 = vsel %vm1556, %v1207, 0
      %v1565 = vsel %vm1556, %v1224, 0
      %v1567 = vsel %vm1556, %v1241, 0
      %v1569 = vsel %vm1556, %v1258, 0
      %v1571 = vsel %vm1556, %v1275, 0
      %v1573 = vsel %vm1556, %v1292, 0
      %v1575 = vsel %vm1556, %v1309, 0
      %v1577 = vsel %vm1556, %v1326, 0
      %v1579 = vsel %vm1556, %v1343, 0
      %v1581 = vsel %vm1556, %v1360, 0
      %v1583 = vsel %vm1556, %v1377, 0
      %v1585 = vsel %vm1556, %v1394, 0
      %v1587 = vsel %vm1556, %v1411, 0
      %v1589 = vsel %vm1556, %v1428, 0
      %v1591 = vsel %vm1556, %v1445, 0
      %v1593 = vsel %vm1556, %v1462, 0
      %v1595 = vsel %vm1556, %v1479, 0
      %v1597 = vsel %vm1556, %v1496, 0
      %v1599 = vsel %vm1556, %v1513, 0
      %v1601 = vsel %vm1556, %v1530, 0
      %v1603 = vsel %vm1556, %v1547, 0
      %v1605 = vsel %vm1556, %v1555, 0
      %1607 = vmatprep.subr.mxu0 0.0
      %1608 = vmatpush1.msra.mxu0 %v280
      %1609 = vmatprep.subr.mxu0 0.0
      %1610 = vmatpush1.msra.mxu0 0.0
      %1611 = vmatprep.subr.mxu0 0.0
      %1612 = vmatpush1.msra.mxu0 0.0
      %1613 = vmatprep.subr.mxu0 0.0
      %1614 = vmatpush1.msra.mxu0 0.0
      %1615 = vmatprep.subr.mxu0 0.0
      %1616 = vmatpush1.msra.mxu0 0.0
      %1617 = vmatprep.subr.mxu0 0.0
      %1618 = vmatpush1.msra.mxu0 0.0
      %1619 = vmatprep.subr.mxu0 0.0
      %1620 = vmatpush1.msra.mxu0 0.0
      %1621 = vmatprep.subr.mxu0 0.0
      %1622 = vmatpush1.msra.mxu0 0.0
      %1623 = vmatprep.subr.mxu0 0.0
      %1624 = vmatpush1.msra.mxu0 0.0
      %1625 = vmatprep.subr.mxu0 0.0
      %1626 = vmatpush1.msra.mxu0 0.0
      %1627 = vmatprep.subr.mxu0 0.0
      %1628 = vmatpush1.msra.mxu0 0.0
      %1629 = vmatprep.subr.mxu0 0.0
      %1630 = vmatpush1.msra.mxu0 0.0
      %1631 = vmatprep.subr.mxu0 0.0
      %1632 = vmatpush1.msra.mxu0 0.0
      %1633 = vmatprep.subr.mxu0 0.0
      %1634 = vmatpush1.msra.mxu0 0.0
      %1635 = vmatprep.subr.mxu0 0.0
      %1636 = vmatpush1.msra.mxu0 0.0
      %1637 = vmatprep.subr.mxu0 0.0
      %1638 = vmatpush1.msra.mxu0 0.0
      %1639 = vmatprep.subr.mxu0 0.0
      %1640 = vmatpush1.msra.mxu0 0.0
      %1641 = vmatprep.subr.mxu0 0.0
      %1642 = vmatpush1.msra.mxu0 0.0
      %1643 = vmatprep.subr.mxu0 0.0
      %1644 = vmatpush1.msra.mxu0 0.0
      %1645 = vmatprep.subr.mxu0 0.0
      %1646 = vmatpush1.msra.mxu0 0.0
      %1647 = vmatprep.subr.mxu0 0.0
      %1648 = vmatpush1.msra.mxu0 0.0
      %1649 = vmatprep.subr.mxu0 0.0
      %1650 = vmatpush1.msra.mxu0 0.0
      %1651 = vmatprep.subr.mxu0 0.0
      %1652 = vmatpush1.msra.mxu0 0.0
      %1653 = vmatprep.subr.mxu0 0.0
      %1654 = vmatpush1.msra.mxu0 0.0
      %1655 = vmatprep.subr.mxu0 0.0
      %1656 = vmatpush1.msra.mxu0 0.0
      %1657 = vmatprep.subr.mxu0 0.0
      %1658 = vmatpush1.msra.mxu0 0.0
      %1659 = vmatprep.subr.mxu0 0.0
      %1660 = vmatpush1.msra.mxu0 0.0
      %1661 = vmatprep.subr.mxu0 0.0
      %1662 = vmatpush1.msra.mxu0 0.0
      %1663 = vmatprep.subr.mxu0 0.0
      %1664 = vmatpush1.msra.mxu0 0.0
      %1665 = vmatprep.subr.mxu0 0.0
      %1666 = vmatpush1.msra.mxu0 0.0
      %1667 = vmatprep.subr.mxu0 0.0
      %1668 = vmatpush1.msra.mxu0 0.0
      %1669 = vmatprep.subr.mxu0 0.0
      %1670 = vmatpush1.msra.mxu0 0.0
      %1671 = vmatprep.mubr.f32.mxu0 0.0
      %1672 = vmatmul.mubr.f32.gmra.mrb[0].mxu0 %v1557
      %v1673 = vpop.f32.mrb[0].mxu0
      %v1674 = vadd.f32 0.0, %v1673
      %v1675 = vpop.f32.mrb[0].mxu0
      %1676 = vmatprep.mubr.f32.mxu0 0.0
      %1677 = vmatmul.mubr.f32.gmra.mrb[0].mxu0 %v1559
      %v1678 = vpop.f32.mrb[0].mxu0
      %v1679 = vadd.f32 0.0, %v1678
      %v1680 = vpop.f32.mrb[0].mxu0
      %1681 = vmatprep.mubr.f32.mxu0 0.0
      %1682 = vmatmul.mubr.f32.gmra.mrb[0].mxu0 %v1561
      %v1683 = vpop.f32.mrb[0].mxu0
      %v1684 = vadd.f32 0.0, %v1683
      %v1685 = vpop.f32.mrb[0].mxu0
      %1686 = vmatprep.mubr.f32.mxu0 0.0
      %1687 = vmatmul.mubr.f32.gmra.mrb[0].mxu0 %v1563
      %v1688 = vpop.f32.mrb[0].mxu0
      %v1689 = vadd.f32 0.0, %v1688
      %v1690 = vpop.f32.mrb[0].mxu0
      %1691 = vmatprep.mubr.f32.mxu0 0.0
      %1692 = vmatmul.mubr.f32.gmra.mrb[0].mxu0 %v1565
      %v1693 = vpop.f32.mrb[0].mxu0
      %v1694 = vadd.f32 0.0, %v1693
      %v1695 = vpop.f32.mrb[0].mxu0
      %1696 = vmatprep.mubr.f32.mxu0 0.0
      %1697 = vmatmul.mubr.f32.gmra.mrb[0].mxu0 %v1567
      %v1698 = vpop.f32.mrb[0].mxu0
      %v1699 = vadd.f32 0.0, %v1698
      %v1700 = vpop.f32.mrb[0].mxu0
      %1701 = vmatprep.mubr.f32.mxu0 0.0
      %1702 = vmatmul.mubr.f32.gmra.mrb[0].mxu0 %v1569
      %v1703 = vpop.f32.mrb[0].mxu0
      %v1704 = vadd.f32 0.0, %v1703
      %v1705 = vpop.f32.mrb[0].mxu0
      %1706 = vmatprep.mubr.f32.mxu0 0.0
      %1707 = vmatmul.mubr.f32.gmra.mrb[0].mxu0 %v1571
      %v1708 = vpop.f32.mrb[0].mxu0
      %v1709 = vadd.f32 0.0, %v1708
      %v1710 = vpop.f32.mrb[0].mxu0
      %1711 = vmatprep.mubr.f32.mxu0 0.0
      %1712 = vmatmul.mubr.f32.gmra.mrb[0].mxu0 %v1573
      %v1713 = vpop.f32.mrb[0].mxu0
      %v1714 = vadd.f32 0.0, %v1713
      %v1715 = vpop.f32.mrb[0].mxu0
      %1716 = vmatprep.mubr.f32.mxu0 0.0
      %1717 = vmatmul.mubr.f32.gmra.mrb[0].mxu0 %v1575
      %v1718 = vpop.f32.mrb[0].mxu0
      %v1719 = vadd.f32 0.0, %v1718
      %v1720 = vpop.f32.mrb[0].mxu0
      %1721 = vmatprep.mubr.f32.mxu0 0.0
      %1722 = vmatmul.mubr.f32.gmra.mrb[0].mxu0 %v1577
      %v1723 = vpop.f32.mrb[0].mxu0
      %v1724 = vadd.f32 0.0, %v1723
      %v1725 = vpop.f32.mrb[0].mxu0
      %1726 = vmatprep.mubr.f32.mxu0 0.0
      %1727 = vmatmul.mubr.f32.gmra.mrb[0].mxu0 %v1579
      %v1728 = vpop.f32.mrb[0].mxu0
      %v1729 = vadd.f32 0.0, %v1728
      %v1730 = vpop.f32.mrb[0].mxu0
      %1731 = vmatprep.mubr.f32.mxu0 0.0
      %1732 = vmatmul.mubr.f32.gmra.mrb[0].mxu0 %v1581
      %v1733 = vpop.f32.mrb[0].mxu0
      %v1734 = vadd.f32 0.0, %v1733
      %v1735 = vpop.f32.mrb[0].mxu0
      %1736 = vmatprep.mubr.f32.mxu0 0.0
      %1737 = vmatmul.mubr.f32.gmra.mrb[0].mxu0 %v1583
      %v1738 = vpop.f32.mrb[0].mxu0
      %v1739 = vadd.f32 0.0, %v1738
      %v1740 = vpop.f32.mrb[0].mxu0
      %1741 = vmatprep.mubr.f32.mxu0 0.0
      %1742 = vmatmul.mubr.f32.gmra.mrb[0].mxu0 %v1585
      %v1743 = vpop.f32.mrb[0].mxu0
      %v1744 = vadd.f32 0.0, %v1743
      %v1745 = vpop.f32.mrb[0].mxu0
      %1746 = vmatprep.mubr.f32.mxu0 0.0
      %1747 = vmatmul.mubr.f32.gmra.mrb[0].mxu0 %v1587
      %v1748 = vpop.f32.mrb[0].mxu0
      %v1749 = vadd.f32 0.0, %v1748
      %v1750 = vpop.f32.mrb[0].mxu0
      %1751 = vmatprep.mubr.f32.mxu0 0.0
      %1752 = vmatmul.mubr.f32.gmra.mrb[0].mxu0 %v1589
      %v1753 = vpop.f32.mrb[0].mxu0
      %v1754 = vadd.f32 0.0, %v1753
      %v1755 = vpop.f32.mrb[0].mxu0
      %1756 = vmatprep.mubr.f32.mxu0 0.0
      %1757 = vmatmul.mubr.f32.gmra.mrb[0].mxu0 %v1591
      %v1758 = vpop.f32.mrb[0].mxu0
      %v1759 = vadd.f32 0.0, %v1758
      %v1760 = vpop.f32.mrb[0].mxu0
      %1761 = vmatprep.mubr.f32.mxu0 0.0
      %1762 = vmatmul.mubr.f32.gmra.mrb[0].mxu0 %v1593
      %v1763 = vpop.f32.mrb[0].mxu0
      %v1764 = vadd.f32 0.0, %v1763
      %v1765 = vpop.f32.mrb[0].mxu0
      %1766 = vmatprep.mubr.f32.mxu0 0.0
      %1767 = vmatmul.mubr.f32.gmra.mrb[0].mxu0 %v1595
      %v1768 = vpop.f32.mrb[0].mxu0
      %v1769 = vadd.f32 0.0, %v1768
      %v1770 = vpop.f32.mrb[0].mxu0
      %1771 = vmatprep.mubr.f32.mxu0 0.0
      %1772 = vmatmul.mubr.f32.gmra.mrb[0].mxu0 %v1597
      %v1773 = vpop.f32.mrb[0].mxu0
      %v1774 = vadd.f32 0.0, %v1773
      %v1775 = vpop.f32.mrb[0].mxu0
      %1776 = vmatprep.mubr.f32.mxu0 0.0
      %1777 = vmatmul.mubr.f32.gmra.mrb[0].mxu0 %v1599
      %v1778 = vpop.f32.mrb[0].mxu0
      %v1779 = vadd.f32 0.0, %v1778
      %v1780 = vpop.f32.mrb[0].mxu0
      %1781 = vmatprep.mubr.f32.mxu0 0.0
      %1782 = vmatmul.mubr.f32.gmra.mrb[0].mxu0 %v1601
      %v1783 = vpop.f32.mrb[0].mxu0
      %v1784 = vadd.f32 0.0, %v1783
      %v1785 = vpop.f32.mrb[0].mxu0
      %1786 = vmatprep.mubr.f32.mxu0 0.0
      %1787 = vmatmul.mubr.f32.gmra.mrb[0].mxu0 %v1603
      %v1788 = vpop.f32.mrb[0].mxu0
      %v1789 = vadd.f32 0.0, %v1788
      %v1790 = vpop.f32.mrb[0].mxu0
      %1791 = vmatprep.mubr.f32.mxu0 0.0
      %1792 = vmatmul.mubr.f32.gmra.mrb[0].mxu0 %v1605
      %v1793 = vpop.f32.mrb[0].mxu0
      %v1794 = vadd.f32 0.0, %v1793
      %v1795 = vpop.f32.mrb[0].mxu0
      %1796 = vdwg.mxu0
      %v1797 = vcombine.low %v356, %v364
      %v1798 = vcombine.low %v363, %v365
      %v1800 = vunpack.c.l.s4 1983009808
      %v1801 = vunpack.c.0.s8 %v1800
      %v1802 = vlaneseq
      %v1803 = vshrl.u32 %v1802, 7
      %v1804 = vsub.s32 %v1801, %v1803
      %v1805 = vrot.slane %v1797, %v1804
      %v1807 = vunpack.c.l.s4 1983009808
      %v1808 = vunpack.c.0.s8 %v1807
      %v1809 = vlaneseq
      %v1810 = vshrl.u32 %v1809, 7
      %v1811 = vsub.s32 %v1808, %v1810
      %v1812 = vrot.slane %v1798, %v1811
      %v1813 = vcombine.low %v1805, %v1812
      %v1814 = vcombine.low %v373, %v381
      %v1815 = vcombine.low %v380, %v389
      %v1817 = vunpack.c.l.s4 1983009808
      %v1818 = vunpack.c.0.s8 %v1817
      %v1819 = vlaneseq
      %v1820 = vshrl.u32 %v1819, 7
      %v1821 = vsub.s32 %v1818, %v1820
      %v1822 = vrot.slane %v1814, %v1821
      %v1824 = vunpack.c.l.s4 1983009808
      %v1825 = vunpack.c.0.s8 %v1824
      %v1826 = vlaneseq
      %v1827 = vshrl.u32 %v1826, 7
      %v1828 = vsub.s32 %v1825, %v1827
      %v1829 = vrot.slane %v1815, %v1828
      %v1830 = vcombine.low %v1822, %v1829
      %v1831 = vcombine.low %v397, %v396
      %v1832 = vcombine.low %v398, %v406
      %v1834 = vunpack.c.l.s4 1983009808
      %v1835 = vunpack.c.0.s8 %v1834
      %v1836 = vlaneseq
      %v1837 = vshrl.u32 %v1836, 7
      %v1838 = vsub.s32 %v1835, %v1837
      %v1839 = vrot.slane %v1831, %v1838
      %v1841 = vunpack.c.l.s4 1983009808
      %v1842 = vunpack.c.0.s8 %v1841
      %v1843 = vlaneseq
      %v1844 = vshrl.u32 %v1843, 7
      %v1845 = vsub.s32 %v1842, %v1844
      %v1846 = vrot.slane %v1832, %v1845
      %v1847 = vcombine.low %v1839, %v1846
      %v1848 = vcombine.low %v414, %v413
      %v1849 = vcombine.low %v422, %v430
      %v1851 = vunpack.c.l.s4 1983009808
      %v1852 = vunpack.c.0.s8 %v1851
      %v1853 = vlaneseq
      %v1854 = vshrl.u32 %v1853, 7
      %v1855 = vsub.s32 %v1852, %v1854
      %v1856 = vrot.slane %v1848, %v1855
      %v1858 = vunpack.c.l.s4 1983009808
      %v1859 = vunpack.c.0.s8 %v1858
      %v1860 = vlaneseq
      %v1861 = vshrl.u32 %v1860, 7
      %v1862 = vsub.s32 %v1859, %v1861
      %v1863 = vrot.slane %v1849, %v1862
      %v1864 = vcombine.low %v1856, %v1863
      %v1865 = vcombine.low %v429, %v431
      %v1866 = vcombine.low %v439, %v447
      %v1868 = vunpack.c.l.s4 1983009808
      %v1869 = vunpack.c.0.s8 %v1868
      %v1870 = vlaneseq
      %v1871 = vshrl.u32 %v1870, 7
      %v1872 = vsub.s32 %v1869, %v1871
      %v1873 = vrot.slane %v1865, %v1872
      %v1875 = vunpack.c.l.s4 1983009808
      %v1876 = vunpack.c.0.s8 %v1875
      %v1877 = vlaneseq
      %v1878 = vshrl.u32 %v1877, 7
      %v1879 = vsub.s32 %v1876, %v1878
      %v1880 = vrot.slane %v1866, %v1879
      %v1881 = vcombine.low %v1873, %v1880
      %v1882 = vcombine.low %v446, %v455
      %v1883 = vcombine.low %v463, %v462
      %v1885 = vunpack.c.l.s4 1983009808
      %v1886 = vunpack.c.0.s8 %v1885
      %v1887 = vlaneseq
      %v1888 = vshrl.u32 %v1887, 7
      %v1889 = vsub.s32 %v1886, %v1888
      %v1890 = vrot.slane %v1882, %v1889
      %v1892 = vunpack.c.l.s4 1983009808
      %v1893 = vunpack.c.0.s8 %v1892
      %v1894 = vlaneseq
      %v1895 = vshrl.u32 %v1894, 7
      %v1896 = vsub.s32 %v1893, %v1895
      %v1897 = vrot.slane %v1883, %v1896
      %v1898 = vcombine.low %v1890, %v1897
      %v1899 = vcombine.low %v464, %v472
      %v1900 = vcombine.low %v480, %v479
      %v1902 = vunpack.c.l.s4 1983009808
      %v1903 = vunpack.c.0.s8 %v1902
      %v1904 = vlaneseq
      %v1905 = vshrl.u32 %v1904, 7
      %v1906 = vsub.s32 %v1903, %v1905
      %v1907 = vrot.slane %v1899, %v1906
      %v1909 = vunpack.c.l.s4 1983009808
      %v1910 = vunpack.c.0.s8 %v1909
      %v1911 = vlaneseq
      %v1912 = vshrl.u32 %v1911, 7
      %v1913 = vsub.s32 %v1910, %v1912
      %v1914 = vrot.slane %v1900, %v1913
      %v1915 = vcombine.low %v1907, %v1914
      %v1916 = vcombine.low %v488, %v496
      %v1917 = vcombine.low %v495, %v497
      %v1919 = vunpack.c.l.s4 1983009808
      %v1920 = vunpack.c.0.s8 %v1919
      %v1921 = vlaneseq
      %v1922 = vshrl.u32 %v1921, 7
      %v1923 = vsub.s32 %v1920, %v1922
      %v1924 = vrot.slane %v1916, %v1923
      %v1926 = vunpack.c.l.s4 1983009808
      %v1927 = vunpack.c.0.s8 %v1926
      %v1928 = vlaneseq
      %v1929 = vshrl.u32 %v1928, 7
      %v1930 = vsub.s32 %v1927, %v1929
      %v1931 = vrot.slane %v1917, %v1930
      %v1932 = vcombine.low %v1924, %v1931
      %v1933 = vcombine.low %v505, %v513
      %v1934 = vcombine.low %v512, %v521
      %v1936 = vunpack.c.l.s4 1983009808
      %v1937 = vunpack.c.0.s8 %v1936
      %v1938 = vlaneseq
      %v1939 = vshrl.u32 %v1938, 7
      %v1940 = vsub.s32 %v1937, %v1939
      %v1941 = vrot.slane %v1933, %v1940
      %v1943 = vunpack.c.l.s4 1983009808
      %v1944 = vunpack.c.0.s8 %v1943
      %v1945 = vlaneseq
      %v1946 = vshrl.u32 %v1945, 7
      %v1947 = vsub.s32 %v1944, %v1946
      %v1948 = vrot.slane %v1934, %v1947
      %v1949 = vcombine.low %v1941, %v1948
      %v1950 = vcombine.low %v529, %v528
      %v1951 = vcombine.low %v530, %v538
      %v1953 = vunpack.c.l.s4 1983009808
      %v1954 = vunpack.c.0.s8 %v1953
      %v1955 = vlaneseq
      %v1956 = vshrl.u32 %v1955, 7
      %v1957 = vsub.s32 %v1954, %v1956
      %v1958 = vrot.slane %v1950, %v1957
      %v1960 = vunpack.c.l.s4 1983009808
      %v1961 = vunpack.c.0.s8 %v1960
      %v1962 = vlaneseq
      %v1963 = vshrl.u32 %v1962, 7
      %v1964 = vsub.s32 %v1961, %v1963
      %v1965 = vrot.slane %v1951, %v1964
      %v1966 = vcombine.low %v1958, %v1965
      %v1967 = vcombine.low %v546, %v545
      %v1968 = vcombine.low %v554, %v562
      %v1970 = vunpack.c.l.s4 1983009808
      %v1971 = vunpack.c.0.s8 %v1970
      %v1972 = vlaneseq
      %v1973 = vshrl.u32 %v1972, 7
      %v1974 = vsub.s32 %v1971, %v1973
      %v1975 = vrot.slane %v1967, %v1974
      %v1977 = vunpack.c.l.s4 1983009808
      %v1978 = vunpack.c.0.s8 %v1977
      %v1979 = vlaneseq
      %v1980 = vshrl.u32 %v1979, 7
      %v1981 = vsub.s32 %v1978, %v1980
      %v1982 = vrot.slane %v1968, %v1981
      %v1983 = vcombine.low %v1975, %v1982
      %v1984 = vcombine.low %v561, %v563
      %v1985 = vcombine.low %v571, %v579
      %v1987 = vunpack.c.l.s4 1983009808
      %v1988 = vunpack.c.0.s8 %v1987
      %v1989 = vlaneseq
      %v1990 = vshrl.u32 %v1989, 7
      %v1991 = vsub.s32 %v1988, %v1990
      %v1992 = vrot.slane %v1984, %v1991
      %v1994 = vunpack.c.l.s4 1983009808
      %v1995 = vunpack.c.0.s8 %v1994
      %v1996 = vlaneseq
      %v1997 = vshrl.u32 %v1996, 7
      %v1998 = vsub.s32 %v1995, %v1997
      %v1999 = vrot.slane %v1985, %v1998
      %v2000 = vcombine.low %v1992, %v1999
      %v2001 = vcombine.low %v578, %v587
      %v2002 = vcombine.low %v595, %v594
      %v2004 = vunpack.c.l.s4 1983009808
      %v2005 = vunpack.c.0.s8 %v2004
      %v2006 = vlaneseq
      %v2007 = vshrl.u32 %v2006, 7
      %v2008 = vsub.s32 %v2005, %v2007
      %v2009 = vrot.slane %v2001, %v2008
      %v2011 = vunpack.c.l.s4 1983009808
      %v2012 = vunpack.c.0.s8 %v2011
      %v2013 = vlaneseq
      %v2014 = vshrl.u32 %v2013, 7
      %v2015 = vsub.s32 %v2012, %v2014
      %v2016 = vrot.slane %v2002, %v2015
      %v2017 = vcombine.low %v2009, %v2016
      %v2018 = vcombine.low %v596, %v604
      %v2019 = vcombine.low %v612, %v611
      %v2021 = vunpack.c.l.s4 1983009808
      %v2022 = vunpack.c.0.s8 %v2021
      %v2023 = vlaneseq
      %v2024 = vshrl.u32 %v2023, 7
      %v2025 = vsub.s32 %v2022, %v2024
      %v2026 = vrot.slane %v2018, %v2025
      %v2028 = vunpack.c.l.s4 1983009808
      %v2029 = vunpack.c.0.s8 %v2028
      %v2030 = vlaneseq
      %v2031 = vshrl.u32 %v2030, 7
      %v2032 = vsub.s32 %v2029, %v2031
      %v2033 = vrot.slane %v2019, %v2032
      %v2034 = vcombine.low %v2026, %v2033
      %v2035 = vcombine.low %v620, %v628
      %v2036 = vcombine.low %v627, %v629
      %v2038 = vunpack.c.l.s4 1983009808
      %v2039 = vunpack.c.0.s8 %v2038
      %v2040 = vlaneseq
      %v2041 = vshrl.u32 %v2040, 7
      %v2042 = vsub.s32 %v2039, %v2041
      %v2043 = vrot.slane %v2035, %v2042
      %v2045 = vunpack.c.l.s4 1983009808
      %v2046 = vunpack.c.0.s8 %v2045
      %v2047 = vlaneseq
      %v2048 = vshrl.u32 %v2047, 7
      %v2049 = vsub.s32 %v2046, %v2048
      %v2050 = vrot.slane %v2036, %v2049
      %v2051 = vcombine.low %v2043, %v2050
      %v2052 = vcombine.low %v637, %v645
      %v2053 = vcombine.low %v644, %v653
      %v2055 = vunpack.c.l.s4 1983009808
      %v2056 = vunpack.c.0.s8 %v2055
      %v2057 = vlaneseq
      %v2058 = vshrl.u32 %v2057, 7
      %v2059 = vsub.s32 %v2056, %v2058
      %v2060 = vrot.slane %v2052, %v2059
      %v2062 = vunpack.c.l.s4 1983009808
      %v2063 = vunpack.c.0.s8 %v2062
      %v2064 = vlaneseq
      %v2065 = vshrl.u32 %v2064, 7
      %v2066 = vsub.s32 %v2063, %v2065
      %v2067 = vrot.slane %v2053, %v2066
      %v2068 = vcombine.low %v2060, %v2067
      %v2069 = vcombine.low %v661, %v660
      %v2070 = vcombine.low %v662, %v670
      %v2072 = vunpack.c.l.s4 1983009808
      %v2073 = vunpack.c.0.s8 %v2072
      %v2074 = vlaneseq
      %v2075 = vshrl.u32 %v2074, 7
      %v2076 = vsub.s32 %v2073, %v2075
      %v2077 = vrot.slane %v2069, %v2076
      %v2079 = vunpack.c.l.s4 1983009808
      %v2080 = vunpack.c.0.s8 %v2079
      %v2081 = vlaneseq
      %v2082 = vshrl.u32 %v2081, 7
      %v2083 = vsub.s32 %v2080, %v2082
      %v2084 = vrot.slane %v2070, %v2083
      %v2085 = vcombine.low %v2077, %v2084
      %v2086 = vcombine.low %v678, %v677
      %v2087 = vcombine.low %v686, %v694
      %v2089 = vunpack.c.l.s4 1983009808
      %v2090 = vunpack.c.0.s8 %v2089
      %v2091 = vlaneseq
      %v2092 = vshrl.u32 %v2091, 7
      %v2093 = vsub.s32 %v2090, %v2092
      %v2094 = vrot.slane %v2086, %v2093
      %v2096 = vunpack.c.l.s4 1983009808
      %v2097 = vunpack.c.0.s8 %v2096
      %v2098 = vlaneseq
      %v2099 = vshrl.u32 %v2098, 7
      %v2100 = vsub.s32 %v2097, %v2099
      %v2101 = vrot.slane %v2087, %v2100
      %v2102 = vcombine.low %v2094, %v2101
      %v2103 = vcombine.low %v693, %v695
      %v2104 = vcombine.low %v703, %v711
      %v2106 = vunpack.c.l.s4 1983009808
      %v2107 = vunpack.c.0.s8 %v2106
      %v2108 = vlaneseq
      %v2109 = vshrl.u32 %v2108, 7
      %v2110 = vsub.s32 %v2107, %v2109
      %v2111 = vrot.slane %v2103, %v2110
      %v2113 = vunpack.c.l.s4 1983009808
      %v2114 = vunpack.c.0.s8 %v2113
      %v2115 = vlaneseq
      %v2116 = vshrl.u32 %v2115, 7
      %v2117 = vsub.s32 %v2114, %v2116
      %v2118 = vrot.slane %v2104, %v2117
      %v2119 = vcombine.low %v2111, %v2118
      %v2120 = vcombine.low %v710, %v719
      %v2121 = vcombine.low %v727, %v726
      %v2123 = vunpack.c.l.s4 1983009808
      %v2124 = vunpack.c.0.s8 %v2123
      %v2125 = vlaneseq
      %v2126 = vshrl.u32 %v2125, 7
      %v2127 = vsub.s32 %v2124, %v2126
      %v2128 = vrot.slane %v2120, %v2127
      %v2130 = vunpack.c.l.s4 1983009808
      %v2131 = vunpack.c.0.s8 %v2130
      %v2132 = vlaneseq
      %v2133 = vshrl.u32 %v2132, 7
      %v2134 = vsub.s32 %v2131, %v2133
      %v2135 = vrot.slane %v2121, %v2134
      %v2136 = vcombine.low %v2128, %v2135
      %v2137 = vcombine.low %v728, %v736
      %v2138 = vcombine.low %v744, %v743
      %v2140 = vunpack.c.l.s4 1983009808
      %v2141 = vunpack.c.0.s8 %v2140
      %v2142 = vlaneseq
      %v2143 = vshrl.u32 %v2142, 7
      %v2144 = vsub.s32 %v2141, %v2143
      %v2145 = vrot.slane %v2137, %v2144
      %v2147 = vunpack.c.l.s4 1983009808
      %v2148 = vunpack.c.0.s8 %v2147
      %v2149 = vlaneseq
      %v2150 = vshrl.u32 %v2149, 7
      %v2151 = vsub.s32 %v2148, %v2150
      %v2152 = vrot.slane %v2138, %v2151
      %v2153 = vcombine.low %v2145, %v2152
      %v2154 = vcombine.low %v752, %v760
      %v2155 = vcombine.low %v759, %v761
      %v2157 = vunpack.c.l.s4 1983009808
      %v2158 = vunpack.c.0.s8 %v2157
      %v2159 = vlaneseq
      %v2160 = vshrl.u32 %v2159, 7
      %v2161 = vsub.s32 %v2158, %v2160
      %v2162 = vrot.slane %v2154, %v2161
      %v2164 = vunpack.c.l.s4 1983009808
      %v2165 = vunpack.c.0.s8 %v2164
      %v2166 = vlaneseq
      %v2167 = vshrl.u32 %v2166, 7
      %v2168 = vsub.s32 %v2165, %v2167
      %v2169 = vrot.slane %v2155, %v2168
      %v2170 = vcombine.low %v2162, %v2169
      %v2171 = vcombine.low %v769, %v777
      %v2172 = vcombine.low %v776, %v785
      %v2174 = vunpack.c.l.s4 1983009808
      %v2175 = vunpack.c.0.s8 %v2174
      %v2176 = vlaneseq
      %v2177 = vshrl.u32 %v2176, 7
      %v2178 = vsub.s32 %v2175, %v2177
      %v2179 = vrot.slane %v2171, %v2178
      %v2181 = vunpack.c.l.s4 1983009808
      %v2182 = vunpack.c.0.s8 %v2181
      %v2183 = vlaneseq
      %v2184 = vshrl.u32 %v2183, 7
      %v2185 = vsub.s32 %v2182, %v2184
      %v2186 = vrot.slane %v2172, %v2185
      %v2187 = vcombine.low %v2179, %v2186
      %v2188 = vcombine.low %v793, %v792
      %v2189 = vcombine.low %v794, %v802
      %v2191 = vunpack.c.l.s4 1983009808
      %v2192 = vunpack.c.0.s8 %v2191
      %v2193 = vlaneseq
      %v2194 = vshrl.u32 %v2193, 7
      %v2195 = vsub.s32 %v2192, %v2194
      %v2196 = vrot.slane %v2188, %v2195
      %v2198 = vunpack.c.l.s4 1983009808
      %v2199 = vunpack.c.0.s8 %v2198
      %v2200 = vlaneseq
      %v2201 = vshrl.u32 %v2200, 7
      %v2202 = vsub.s32 %v2199, %v2201
      %v2203 = vrot.slane %v2189, %v2202
      %v2204 = vcombine.low %v2196, %v2203
      %v2205 = vcombine.low %v810, %v809
      %v2207 = vunpack.c.l.s4 1983009808
      %v2208 = vunpack.c.0.s8 %v2207
      %v2209 = vlaneseq
      %v2210 = vshrl.u32 %v2209, 7
      %v2211 = vsub.s32 %v2208, %v2210
      %v2212 = vrot.slane %v2205, %v2211
      %v2213 = vsel %vm1556, %v1813, 0
      %v2215 = vsel %vm1556, %v1830, 0
      %v2217 = vsel %vm1556, %v1847, 0
      %v2219 = vsel %vm1556, %v1864, 0
      %v2221 = vsel %vm1556, %v1881, 0
      %v2223 = vsel %vm1556, %v1898, 0
      %v2225 = vsel %vm1556, %v1915, 0
      %v2227 = vsel %vm1556, %v1932, 0
      %v2229 = vsel %vm1556, %v1949, 0
      %v2231 = vsel %vm1556, %v1966, 0
      %v2233 = vsel %vm1556, %v1983, 0
      %v2235 = vsel %vm1556, %v2000, 0
      %v2237 = vsel %vm1556, %v2017, 0
      %v2239 = vsel %vm1556, %v2034, 0
      %v2241 = vsel %vm1556, %v2051, 0
      %v2243 = vsel %vm1556, %v2068, 0
      %v2245 = vsel %vm1556, %v2085, 0
      %v2247 = vsel %vm1556, %v2102, 0
      %v2249 = vsel %vm1556, %v2119, 0
      %v2251 = vsel %vm1556, %v2136, 0
      %v2253 = vsel %vm1556, %v2153, 0
      %v2255 = vsel %vm1556, %v2170, 0
      %v2257 = vsel %vm1556, %v2187, 0
      %v2259 = vsel %vm1556, %v2204, 0
      %v2261 = vsel %vm1556, %v2212, 0
      %2263 = vmatprep.subr.mxu0 0.0
      %2264 = vmatpush1.msra.mxu0 %v279
      %2265 = vmatprep.subr.mxu0 0.0
      %2266 = vmatpush1.msra.mxu0 0.0
      %2267 = vmatprep.subr.mxu0 0.0
      %2268 = vmatpush1.msra.mxu0 0.0
      %2269 = vmatprep.subr.mxu0 0.0
      %2270 = vmatpush1.msra.mxu0 0.0
      %2271 = vmatprep.subr.mxu0 0.0
      %2272 = vmatpush1.msra.mxu0 0.0
      %2273 = vmatprep.subr.mxu0 0.0
      %2274 = vmatpush1.msra.mxu0 0.0
      %2275 = vmatprep.subr.mxu0 0.0
      %2276 = vmatpush1.msra.mxu0 0.0
      %2277 = vmatprep.subr.mxu0 0.0
      %2278 = vmatpush1.msra.mxu0 0.0
      %2279 = vmatprep.subr.mxu0 0.0
      %2280 = vmatpush1.msra.mxu0 0.0
      %2281 = vmatprep.subr.mxu0 0.0
      %2282 = vmatpush1.msra.mxu0 0.0
      %2283 = vmatprep.subr.mxu0 0.0
      %2284 = vmatpush1.msra.mxu0 0.0
      %2285 = vmatprep.subr.mxu0 0.0
      %2286 = vmatpush1.msra.mxu0 0.0
      %2287 = vmatprep.subr.mxu0 0.0
      %2288 = vmatpush1.msra.mxu0 0.0
      %2289 = vmatprep.subr.mxu0 0.0
      %2290 = vmatpush1.msra.mxu0 0.0
      %2291 = vmatprep.subr.mxu0 0.0
      %2292 = vmatpush1.msra.mxu0 0.0
      %2293 = vmatprep.subr.mxu0 0.0
      %2294 = vmatpush1.msra.mxu0 0.0
      %2295 = vmatprep.subr.mxu0 0.0
      %2296 = vmatpush1.msra.mxu0 0.0
      %2297 = vmatprep.subr.mxu0 0.0
      %2298 = vmatpush1.msra.mxu0 0.0
      %2299 = vmatprep.subr.mxu0 0.0
      %2300 = vmatpush1.msra.mxu0 0.0
      %2301 = vmatprep.subr.mxu0 0.0
      %2302 = vmatpush1.msra.mxu0 0.0
      %2303 = vmatprep.subr.mxu0 0.0
      %2304 = vmatpush1.msra.mxu0 0.0
      %2305 = vmatprep.subr.mxu0 0.0
      %2306 = vmatpush1.msra.mxu0 0.0
      %2307 = vmatprep.subr.mxu0 0.0
      %2308 = vmatpush1.msra.mxu0 0.0
      %2309 = vmatprep.subr.mxu0 0.0
      %2310 = vmatpush1.msra.mxu0 0.0
      %2311 = vmatprep.subr.mxu0 0.0
      %2312 = vmatpush1.msra.mxu0 0.0
      %2313 = vmatprep.subr.mxu0 0.0
      %2314 = vmatpush1.msra.mxu0 0.0
      %2315 = vmatprep.subr.mxu0 0.0
      %2316 = vmatpush1.msra.mxu0 0.0
      %2317 = vmatprep.subr.mxu0 0.0
      %2318 = vmatpush1.msra.mxu0 0.0
      %2319 = vmatprep.subr.mxu0 0.0
      %2320 = vmatpush1.msra.mxu0 0.0
      %2321 = vmatprep.subr.mxu0 0.0
      %2322 = vmatpush1.msra.mxu0 0.0
      %2323 = vmatprep.subr.mxu0 0.0
      %2324 = vmatpush1.msra.mxu0 0.0
      %2325 = vmatprep.subr.mxu0 0.0
      %2326 = vmatpush1.msra.mxu0 0.0
      %2327 = vmatprep.mubr.f32.mxu0 0.0
      %2328 = vmatmul.mubr.f32.gmra.mrb[0].mxu0 %v2213
      %v2329 = vpop.f32.mrb[0].mxu0
      %v2330 = vadd.f32 %v1674, %v2329
      %v2331 = vpop.f32.mrb[0].mxu0
      %2332 = vmatprep.mubr.f32.mxu0 0.0
      %2333 = vmatmul.mubr.f32.gmra.mrb[0].mxu0 %v2215
      %v2334 = vpop.f32.mrb[0].mxu0
      %v2335 = vadd.f32 %v1679, %v2334
      %v2336 = vpop.f32.mrb[0].mxu0
      %2337 = vmatprep.mubr.f32.mxu0 0.0
      %2338 = vmatmul.mubr.f32.gmra.mrb[0].mxu0 %v2217
      %v2339 = vpop.f32.mrb[0].mxu0
      %v2340 = vadd.f32 %v1684, %v2339
      %v2341 = vpop.f32.mrb[0].mxu0
      %2342 = vmatprep.mubr.f32.mxu0 0.0
      %2343 = vmatmul.mubr.f32.gmra.mrb[0].mxu0 %v2219
      %v2344 = vpop.f32.mrb[0].mxu0
      %v2345 = vadd.f32 %v1689, %v2344
      %v2346 = vpop.f32.mrb[0].mxu0
      %2347 = vmatprep.mubr.f32.mxu0 0.0
      %2348 = vmatmul.mubr.f32.gmra.mrb[0].mxu0 %v2221
      %v2349 = vpop.f32.mrb[0].mxu0
      %v2350 = vadd.f32 %v1694, %v2349
      %v2351 = vpop.f32.mrb[0].mxu0
      %2352 = vmatprep.mubr.f32.mxu0 0.0
      %2353 = vmatmul.mubr.f32.gmra.mrb[0].mxu0 %v2223
      %v2354 = vpop.f32.mrb[0].mxu0
      %v2355 = vadd.f32 %v1699, %v2354
      %v2356 = vpop.f32.mrb[0].mxu0
      %2357 = vmatprep.mubr.f32.mxu0 0.0
      %2358 = vmatmul.mubr.f32.gmra.mrb[0].mxu0 %v2225
      %v2359 = vpop.f32.mrb[0].mxu0
      %v2360 = vadd.f32 %v1704, %v2359
      %v2361 = vpop.f32.mrb[0].mxu0
      %2362 = vmatprep.mubr.f32.mxu0 0.0
      %2363 = vmatmul.mubr.f32.gmra.mrb[0].mxu0 %v2227
      %v2364 = vpop.f32.mrb[0].mxu0
      %v2365 = vadd.f32 %v1709, %v2364
      %v2366 = vpop.f32.mrb[0].mxu0
      %2367 = vmatprep.mubr.f32.mxu0 0.0
      %2368 = vmatmul.mubr.f32.gmra.mrb[0].mxu0 %v2229
      %v2369 = vpop.f32.mrb[0].mxu0
      %v2370 = vadd.f32 %v1714, %v2369
      %v2371 = vpop.f32.mrb[0].mxu0
      %2372 = vmatprep.mubr.f32.mxu0 0.0
      %2373 = vmatmul.mubr.f32.gmra.mrb[0].mxu0 %v2231
      %v2374 = vpop.f32.mrb[0].mxu0
      %v2375 = vadd.f32 %v1719, %v2374
      %v2376 = vpop.f32.mrb[0].mxu0
      %2377 = vmatprep.mubr.f32.mxu0 0.0
      %2378 = vmatmul.mubr.f32.gmra.mrb[0].mxu0 %v2233
      %v2379 = vpop.f32.mrb[0].mxu0
      %v2380 = vadd.f32 %v1724, %v2379
      %v2381 = vpop.f32.mrb[0].mxu0
      %2382 = vmatprep.mubr.f32.mxu0 0.0
      %2383 = vmatmul.mubr.f32.gmra.mrb[0].mxu0 %v2235
      %v2384 = vpop.f32.mrb[0].mxu0
      %v2385 = vadd.f32 %v1729, %v2384
      %v2386 = vpop.f32.mrb[0].mxu0
      %2387 = vmatprep.mubr.f32.mxu0 0.0
      %2388 = vmatmul.mubr.f32.gmra.mrb[0].mxu0 %v2237
      %v2389 = vpop.f32.mrb[0].mxu0
      %v2390 = vadd.f32 %v1734, %v2389
      %v2391 = vpop.f32.mrb[0].mxu0
      %2392 = vmatprep.mubr.f32.mxu0 0.0
      %2393 = vmatmul.mubr.f32.gmra.mrb[0].mxu0 %v2239
      %v2394 = vpop.f32.mrb[0].mxu0
      %v2395 = vadd.f32 %v1739, %v2394
      %v2396 = vpop.f32.mrb[0].mxu0
      %2397 = vmatprep.mubr.f32.mxu0 0.0
      %2398 = vmatmul.mubr.f32.gmra.mrb[0].mxu0 %v2241
      %v2399 = vpop.f32.mrb[0].mxu0
      %v2400 = vadd.f32 %v1744, %v2399
      %v2401 = vpop.f32.mrb[0].mxu0
      %2402 = vmatprep.mubr.f32.mxu0 0.0
      %2403 = vmatmul.mubr.f32.gmra.mrb[0].mxu0 %v2243
      %v2404 = vpop.f32.mrb[0].mxu0
      %v2405 = vadd.f32 %v1749, %v2404
      %v2406 = vpop.f32.mrb[0].mxu0
      %2407 = vmatprep.mubr.f32.mxu0 0.0
      %2408 = vmatmul.mubr.f32.gmra.mrb[0].mxu0 %v2245
      %v2409 = vpop.f32.mrb[0].mxu0
      %v2410 = vadd.f32 %v1754, %v2409
      %v2411 = vpop.f32.mrb[0].mxu0
      %2412 = vmatprep.mubr.f32.mxu0 0.0
      %2413 = vmatmul.mubr.f32.gmra.mrb[0].mxu0 %v2247
      %v2414 = vpop.f32.mrb[0].mxu0
      %v2415 = vadd.f32 %v1759, %v2414
      %v2416 = vpop.f32.mrb[0].mxu0
      %2417 = vmatprep.mubr.f32.mxu0 0.0
      %2418 = vmatmul.mubr.f32.gmra.mrb[0].mxu0 %v2249
      %v2419 = vpop.f32.mrb[0].mxu0
      %v2420 = vadd.f32 %v1764, %v2419
      %v2421 = vpop.f32.mrb[0].mxu0
      %2422 = vmatprep.mubr.f32.mxu0 0.0
      %2423 = vmatmul.mubr.f32.gmra.mrb[0].mxu0 %v2251
      %v2424 = vpop.f32.mrb[0].mxu0
      %v2425 = vadd.f32 %v1769, %v2424
      %v2426 = vpop.f32.mrb[0].mxu0
      %2427 = vmatprep.mubr.f32.mxu0 0.0
      %2428 = vmatmul.mubr.f32.gmra.mrb[0].mxu0 %v2253
      %v2429 = vpop.f32.mrb[0].mxu0
      %v2430 = vadd.f32 %v1774, %v2429
      %v2431 = vpop.f32.mrb[0].mxu0
      %2432 = vmatprep.mubr.f32.mxu0 0.0
      %2433 = vmatmul.mubr.f32.gmra.mrb[0].mxu0 %v2255
      %v2434 = vpop.f32.mrb[0].mxu0
      %v2435 = vadd.f32 %v1779, %v2434
      %v2436 = vpop.f32.mrb[0].mxu0
      %2437 = vmatprep.mubr.f32.mxu0 0.0
      %2438 = vmatmul.mubr.f32.gmra.mrb[0].mxu0 %v2257
      %v2439 = vpop.f32.mrb[0].mxu0
      %v2440 = vadd.f32 %v1784, %v2439
      %v2441 = vpop.f32.mrb[0].mxu0
      %2442 = vmatprep.mubr.f32.mxu0 0.0
      %2443 = vmatmul.mubr.f32.gmra.mrb[0].mxu0 %v2259
      %v2444 = vpop.f32.mrb[0].mxu0
      %v2445 = vadd.f32 %v1789, %v2444
      %v2446 = vpop.f32.mrb[0].mxu0
      %2447 = vmatprep.mubr.f32.mxu0 0.0
      %2448 = vmatmul.mubr.f32.gmra.mrb[0].mxu0 %v2261
      %v2449 = vpop.f32.mrb[0].mxu0
      %v2450 = vadd.f32 %v1794, %v2449
      %v2451 = vpop.f32.mrb[0].mxu0
      %2452 = vdwg.mxu0
      %v2453 = vcombine.low %v364, %v363
      %v2454 = vcombine.low %v365, %v373
      %v2456 = vunpack.c.l.s4 1983009808
      %v2457 = vunpack.c.0.s8 %v2456
      %v2458 = vlaneseq
      %v2459 = vshrl.u32 %v2458, 7
      %v2460 = vsub.s32 %v2457, %v2459
      %v2461 = vrot.slane %v2453, %v2460
      %v2463 = vunpack.c.l.s4 1983009808
      %v2464 = vunpack.c.0.s8 %v2463
      %v2465 = vlaneseq
      %v2466 = vshrl.u32 %v2465, 7
      %v2467 = vsub.s32 %v2464, %v2466
      %v2468 = vrot.slane %v2454, %v2467
      %v2469 = vcombine.low %v2461, %v2468
      %v2470 = vcombine.low %v381, %v380
      %v2471 = vcombine.low %v811, %v397
      %v2473 = vunpack.c.l.s4 1983009808
      %v2474 = vunpack.c.0.s8 %v2473
      %v2475 = vlaneseq
      %v2476 = vshrl.u32 %v2475, 7
      %v2477 = vsub.s32 %v2474, %v2476
      %v2478 = vrot.slane %v2470, %v2477
      %v2480 = vunpack.c.l.s4 1983009808
      %v2481 = vunpack.c.0.s8 %v2480
      %v2482 = vlaneseq
      %v2483 = vshrl.u32 %v2482, 7
      %v2484 = vsub.s32 %v2481, %v2483
      %v2485 = vrot.slane %v2471, %v2484
      %v2486 = vcombine.low %v2478, %v2485
      %v2487 = vcombine.low %v396, %v398
      %v2488 = vcombine.low %v406, %v414
      %v2490 = vunpack.c.l.s4 1983009808
      %v2491 = vunpack.c.0.s8 %v2490
      %v2492 = vlaneseq
      %v2493 = vshrl.u32 %v2492, 7
      %v2494 = vsub.s32 %v2491, %v2493
      %v2495 = vrot.slane %v2487, %v2494
      %v2497 = vunpack.c.l.s4 1983009808
      %v2498 = vunpack.c.0.s8 %v2497
      %v2499 = vlaneseq
      %v2500 = vshrl.u32 %v2499, 7
      %v2501 = vsub.s32 %v2498, %v2500
      %v2502 = vrot.slane %v2488, %v2501
      %v2503 = vcombine.low %v2495, %v2502
      %v2504 = vcombine.low %v413, %v812
      %v2505 = vcombine.low %v430, %v429
      %v2507 = vunpack.c.l.s4 1983009808
      %v2508 = vunpack.c.0.s8 %v2507
      %v2509 = vlaneseq
      %v2510 = vshrl.u32 %v2509, 7
      %v2511 = vsub.s32 %v2508, %v2510
      %v2512 = vrot.slane %v2504, %v2511
      %v2514 = vunpack.c.l.s4 1983009808
      %v2515 = vunpack.c.0.s8 %v2514
      %v2516 = vlaneseq
      %v2517 = vshrl.u32 %v2516, 7
      %v2518 = vsub.s32 %v2515, %v2517
      %v2519 = vrot.slane %v2505, %v2518
      %v2520 = vcombine.low %v2512, %v2519
      %v2521 = vcombine.low %v431, %v439
      %v2522 = vcombine.low %v447, %v446
      %v2524 = vunpack.c.l.s4 1983009808
      %v2525 = vunpack.c.0.s8 %v2524
      %v2526 = vlaneseq
      %v2527 = vshrl.u32 %v2526, 7
      %v2528 = vsub.s32 %v2525, %v2527
      %v2529 = vrot.slane %v2521, %v2528
      %v2531 = vunpack.c.l.s4 1983009808
      %v2532 = vunpack.c.0.s8 %v2531
      %v2533 = vlaneseq
      %v2534 = vshrl.u32 %v2533, 7
      %v2535 = vsub.s32 %v2532, %v2534
      %v2536 = vrot.slane %v2522, %v2535
      %v2537 = vcombine.low %v2529, %v2536
      %v2538 = vcombine.low %v813, %v463
      %v2539 = vcombine.low %v462, %v464
      %v2541 = vunpack.c.l.s4 1983009808
      %v2542 = vunpack.c.0.s8 %v2541
      %v2543 = vlaneseq
      %v2544 = vshrl.u32 %v2543, 7
      %v2545 = vsub.s32 %v2542, %v2544
      %v2546 = vrot.slane %v2538, %v2545
      %v2548 = vunpack.c.l.s4 1983009808
      %v2549 = vunpack.c.0.s8 %v2548
      %v2550 = vlaneseq
      %v2551 = vshrl.u32 %v2550, 7
      %v2552 = vsub.s32 %v2549, %v2551
      %v2553 = vrot.slane %v2539, %v2552
      %v2554 = vcombine.low %v2546, %v2553
      %v2555 = vcombine.low %v472, %v480
      %v2556 = vcombine.low %v479, %v814
      %v2558 = vunpack.c.l.s4 1983009808
      %v2559 = vunpack.c.0.s8 %v2558
      %v2560 = vlaneseq
      %v2561 = vshrl.u32 %v2560, 7
      %v2562 = vsub.s32 %v2559, %v2561
      %v2563 = vrot.slane %v2555, %v2562
      %v2565 = vunpack.c.l.s4 1983009808
      %v2566 = vunpack.c.0.s8 %v2565
      %v2567 = vlaneseq
      %v2568 = vshrl.u32 %v2567, 7
      %v2569 = vsub.s32 %v2566, %v2568
      %v2570 = vrot.slane %v2556, %v2569
      %v2571 = vcombine.low %v2563, %v2570
      %v2572 = vcombine.low %v496, %v495
      %v2573 = vcombine.low %v497, %v505
      %v2575 = vunpack.c.l.s4 1983009808
      %v2576 = vunpack.c.0.s8 %v2575
      %v2577 = vlaneseq
      %v2578 = vshrl.u32 %v2577, 7
      %v2579 = vsub.s32 %v2576, %v2578
      %v2580 = vrot.slane %v2572, %v2579
      %v2582 = vunpack.c.l.s4 1983009808
      %v2583 = vunpack.c.0.s8 %v2582
      %v2584 = vlaneseq
      %v2585 = vshrl.u32 %v2584, 7
      %v2586 = vsub.s32 %v2583, %v2585
      %v2587 = vrot.slane %v2573, %v2586
      %v2588 = vcombine.low %v2580, %v2587
      %v2589 = vcombine.low %v513, %v512
      %v2590 = vcombine.low %v815, %v529
      %v2592 = vunpack.c.l.s4 1983009808
      %v2593 = vunpack.c.0.s8 %v2592
      %v2594 = vlaneseq
      %v2595 = vshrl.u32 %v2594, 7
      %v2596 = vsub.s32 %v2593, %v2595
      %v2597 = vrot.slane %v2589, %v2596
      %v2599 = vunpack.c.l.s4 1983009808
      %v2600 = vunpack.c.0.s8 %v2599
      %v2601 = vlaneseq
      %v2602 = vshrl.u32 %v2601, 7
      %v2603 = vsub.s32 %v2600, %v2602
      %v2604 = vrot.slane %v2590, %v2603
      %v2605 = vcombine.low %v2597, %v2604
      %v2606 = vcombine.low %v528, %v530
      %v2607 = vcombine.low %v538, %v546
      %v2609 = vunpack.c.l.s4 1983009808
      %v2610 = vunpack.c.0.s8 %v2609
      %v2611 = vlaneseq
      %v2612 = vshrl.u32 %v2611, 7
      %v2613 = vsub.s32 %v2610, %v2612
      %v2614 = vrot.slane %v2606, %v2613
      %v2616 = vunpack.c.l.s4 1983009808
      %v2617 = vunpack.c.0.s8 %v2616
      %v2618 = vlaneseq
      %v2619 = vshrl.u32 %v2618, 7
      %v2620 = vsub.s32 %v2617, %v2619
      %v2621 = vrot.slane %v2607, %v2620
      %v2622 = vcombine.low %v2614, %v2621
      %v2623 = vcombine.low %v545, %v816
      %v2624 = vcombine.low %v562, %v561
      %v2626 = vunpack.c.l.s4 1983009808
      %v2627 = vunpack.c.0.s8 %v2626
      %v2628 = vlaneseq
      %v2629 = vshrl.u32 %v2628, 7
      %v2630 = vsub.s32 %v2627, %v2629
      %v2631 = vrot.slane %v2623, %v2630
      %v2633 = vunpack.c.l.s4 1983009808
      %v2634 = vunpack.c.0.s8 %v2633
      %v2635 = vlaneseq
      %v2636 = vshrl.u32 %v2635, 7
      %v2637 = vsub.s32 %v2634, %v2636
      %v2638 = vrot.slane %v2624, %v2637
      %v2639 = vcombine.low %v2631, %v2638
      %v2640 = vcombine.low %v563, %v571
      %v2641 = vcombine.low %v579, %v578
      %v2643 = vunpack.c.l.s4 1983009808
      %v2644 = vunpack.c.0.s8 %v2643
      %v2645 = vlaneseq
      %v2646 = vshrl.u32 %v2645, 7
      %v2647 = vsub.s32 %v2644, %v2646
      %v2648 = vrot.slane %v2640, %v2647
      %v2650 = vunpack.c.l.s4 1983009808
      %v2651 = vunpack.c.0.s8 %v2650
      %v2652 = vlaneseq
      %v2653 = vshrl.u32 %v2652, 7
      %v2654 = vsub.s32 %v2651, %v2653
      %v2655 = vrot.slane %v2641, %v2654
      %v2656 = vcombine.low %v2648, %v2655
      %v2657 = vcombine.low %v817, %v595
      %v2658 = vcombine.low %v594, %v596
      %v2660 = vunpack.c.l.s4 1983009808
      %v2661 = vunpack.c.0.s8 %v2660
      %v2662 = vlaneseq
      %v2663 = vshrl.u32 %v2662, 7
      %v2664 = vsub.s32 %v2661, %v2663
      %v2665 = vrot.slane %v2657, %v2664
      %v2667 = vunpack.c.l.s4 1983009808
      %v2668 = vunpack.c.0.s8 %v2667
      %v2669 = vlaneseq
      %v2670 = vshrl.u32 %v2669, 7
      %v2671 = vsub.s32 %v2668, %v2670
      %v2672 = vrot.slane %v2658, %v2671
      %v2673 = vcombine.low %v2665, %v2672
      %v2674 = vcombine.low %v604, %v612
      %v2675 = vcombine.low %v611, %v818
      %v2677 = vunpack.c.l.s4 1983009808
      %v2678 = vunpack.c.0.s8 %v2677
      %v2679 = vlaneseq
      %v2680 = vshrl.u32 %v2679, 7
      %v2681 = vsub.s32 %v2678, %v2680
      %v2682 = vrot.slane %v2674, %v2681
      %v2684 = vunpack.c.l.s4 1983009808
      %v2685 = vunpack.c.0.s8 %v2684
      %v2686 = vlaneseq
      %v2687 = vshrl.u32 %v2686, 7
      %v2688 = vsub.s32 %v2685, %v2687
      %v2689 = vrot.slane %v2675, %v2688
      %v2690 = vcombine.low %v2682, %v2689
      %v2691 = vcombine.low %v628, %v627
      %v2692 = vcombine.low %v629, %v637
      %v2694 = vunpack.c.l.s4 1983009808
      %v2695 = vunpack.c.0.s8 %v2694
      %v2696 = vlaneseq
      %v2697 = vshrl.u32 %v2696, 7
      %v2698 = vsub.s32 %v2695, %v2697
      %v2699 = vrot.slane %v2691, %v2698
      %v2701 = vunpack.c.l.s4 1983009808
      %v2702 = vunpack.c.0.s8 %v2701
      %v2703 = vlaneseq
      %v2704 = vshrl.u32 %v2703, 7
      %v2705 = vsub.s32 %v2702, %v2704
      %v2706 = vrot.slane %v2692, %v2705
      %v2707 = vcombine.low %v2699, %v2706
      %v2708 = vcombine.low %v645, %v644
      %v2709 = vcombine.low %v819, %v661
      %v2711 = vunpack.c.l.s4 1983009808
      %v2712 = vunpack.c.0.s8 %v2711
      %v2713 = vlaneseq
      %v2714 = vshrl.u32 %v2713, 7
      %v2715 = vsub.s32 %v2712, %v2714
      %v2716 = vrot.slane %v2708, %v2715
      %v2718 = vunpack.c.l.s4 1983009808
      %v2719 = vunpack.c.0.s8 %v2718
      %v2720 = vlaneseq
      %v2721 = vshrl.u32 %v2720, 7
      %v2722 = vsub.s32 %v2719, %v2721
      %v2723 = vrot.slane %v2709, %v2722
      %v2724 = vcombine.low %v2716, %v2723
      %v2725 = vcombine.low %v660, %v662
      %v2726 = vcombine.low %v670, %v678
      %v2728 = vunpack.c.l.s4 1983009808
      %v2729 = vunpack.c.0.s8 %v2728
      %v2730 = vlaneseq
      %v2731 = vshrl.u32 %v2730, 7
      %v2732 = vsub.s32 %v2729, %v2731
      %v2733 = vrot.slane %v2725, %v2732
      %v2735 = vunpack.c.l.s4 1983009808
      %v2736 = vunpack.c.0.s8 %v2735
      %v2737 = vlaneseq
      %v2738 = vshrl.u32 %v2737, 7
      %v2739 = vsub.s32 %v2736, %v2738
      %v2740 = vrot.slane %v2726, %v2739
      %v2741 = vcombine.low %v2733, %v2740
      %v2742 = vcombine.low %v677, %v820
      %v2743 = vcombine.low %v694, %v693
      %v2745 = vunpack.c.l.s4 1983009808
      %v2746 = vunpack.c.0.s8 %v2745
      %v2747 = vlaneseq
      %v2748 = vshrl.u32 %v2747, 7
      %v2749 = vsub.s32 %v2746, %v2748
      %v2750 = vrot.slane %v2742, %v2749
      %v2752 = vunpack.c.l.s4 1983009808
      %v2753 = vunpack.c.0.s8 %v2752
      %v2754 = vlaneseq
      %v2755 = vshrl.u32 %v2754, 7
      %v2756 = vsub.s32 %v2753, %v2755
      %v2757 = vrot.slane %v2743, %v2756
      %v2758 = vcombine.low %v2750, %v2757
      %v2759 = vcombine.low %v695, %v703
      %v2760 = vcombine.low %v711, %v710
      %v2762 = vunpack.c.l.s4 1983009808
      %v2763 = vunpack.c.0.s8 %v2762
      %v2764 = vlaneseq
      %v2765 = vshrl.u32 %v2764, 7
      %v2766 = vsub.s32 %v2763, %v2765
      %v2767 = vrot.slane %v2759, %v2766
      %v2769 = vunpack.c.l.s4 1983009808
      %v2770 = vunpack.c.0.s8 %v2769
      %v2771 = vlaneseq
      %v2772 = vshrl.u32 %v2771, 7
      %v2773 = vsub.s32 %v2770, %v2772
      %v2774 = vrot.slane %v2760, %v2773
      %v2775 = vcombine.low %v2767, %v2774
      %v2776 = vcombine.low %v821, %v727
      %v2777 = vcombine.low %v726, %v728
      %v2779 = vunpack.c.l.s4 1983009808
      %v2780 = vunpack.c.0.s8 %v2779
      %v2781 = vlaneseq
      %v2782 = vshrl.u32 %v2781, 7
      %v2783 = vsub.s32 %v2780, %v2782
      %v2784 = vrot.slane %v2776, %v2783
      %v2786 = vunpack.c.l.s4 1983009808
      %v2787 = vunpack.c.0.s8 %v2786
      %v2788 = vlaneseq
      %v2789 = vshrl.u32 %v2788, 7
      %v2790 = vsub.s32 %v2787, %v2789
      %v2791 = vrot.slane %v2777, %v2790
      %v2792 = vcombine.low %v2784, %v2791
      %v2793 = vcombine.low %v736, %v744
      %v2794 = vcombine.low %v743, %v822
      %v2796 = vunpack.c.l.s4 1983009808
      %v2797 = vunpack.c.0.s8 %v2796
      %v2798 = vlaneseq
      %v2799 = vshrl.u32 %v2798, 7
      %v2800 = vsub.s32 %v2797, %v2799
      %v2801 = vrot.slane %v2793, %v2800
      %v2803 = vunpack.c.l.s4 1983009808
      %v2804 = vunpack.c.0.s8 %v2803
      %v2805 = vlaneseq
      %v2806 = vshrl.u32 %v2805, 7
      %v2807 = vsub.s32 %v2804, %v2806
      %v2808 = vrot.slane %v2794, %v2807
      %v2809 = vcombine.low %v2801, %v2808
      %v2810 = vcombine.low %v760, %v759
      %v2811 = vcombine.low %v761, %v769
      %v2813 = vunpack.c.l.s4 1983009808
      %v2814 = vunpack.c.0.s8 %v2813
      %v2815 = vlaneseq
      %v2816 = vshrl.u32 %v2815, 7
      %v2817 = vsub.s32 %v2814, %v2816
      %v2818 = vrot.slane %v2810, %v2817
      %v2820 = vunpack.c.l.s4 1983009808
      %v2821 = vunpack.c.0.s8 %v2820
      %v2822 = vlaneseq
      %v2823 = vshrl.u32 %v2822, 7
      %v2824 = vsub.s32 %v2821, %v2823
      %v2825 = vrot.slane %v2811, %v2824
      %v2826 = vcombine.low %v2818, %v2825
      %v2827 = vcombine.low %v777, %v776
      %v2828 = vcombine.low %v823, %v793
      %v2830 = vunpack.c.l.s4 1983009808
      %v2831 = vunpack.c.0.s8 %v2830
      %v2832 = vlaneseq
      %v2833 = vshrl.u32 %v2832, 7
      %v2834 = vsub.s32 %v2831, %v2833
      %v2835 = vrot.slane %v2827, %v2834
      %v2837 = vunpack.c.l.s4 1983009808
      %v2838 = vunpack.c.0.s8 %v2837
      %v2839 = vlaneseq
      %v2840 = vshrl.u32 %v2839, 7
      %v2841 = vsub.s32 %v2838, %v2840
      %v2842 = vrot.slane %v2828, %v2841
      %v2843 = vcombine.low %v2835, %v2842
      %v2844 = vcombine.low %v792, %v794
      %v2845 = vcombine.low %v802, %v810
      %v2847 = vunpack.c.l.s4 1983009808
      %v2848 = vunpack.c.0.s8 %v2847
      %v2849 = vlaneseq
      %v2850 = vshrl.u32 %v2849, 7
      %v2851 = vsub.s32 %v2848, %v2850
      %v2852 = vrot.slane %v2844, %v2851
      %v2854 = vunpack.c.l.s4 1983009808
      %v2855 = vunpack.c.0.s8 %v2854
      %v2856 = vlaneseq
      %v2857 = vshrl.u32 %v2856, 7
      %v2858 = vsub.s32 %v2855, %v2857
      %v2859 = vrot.slane %v2845, %v2858
      %v2860 = vcombine.low %v2852, %v2859
      %v2861 = vcombine.low %v809, %v824
      %v2863 = vunpack.c.l.s4 1983009808
      %v2864 = vunpack.c.0.s8 %v2863
      %v2865 = vlaneseq
      %v2866 = vshrl.u32 %v2865, 7
      %v2867 = vsub.s32 %v2864, %v2866
      %v2868 = vrot.slane %v2861, %v2867
      %v2869 = vsel %vm1556, %v2469, 0
      %v2871 = vsel %vm1556, %v2486, 0
      %v2873 = vsel %vm1556, %v2503, 0
      %v2875 = vsel %vm1556, %v2520, 0
      %v2877 = vsel %vm1556, %v2537, 0
      %v2879 = vsel %vm1556, %v2554, 0
      %v2881 = vsel %vm1556, %v2571, 0
      %v2883 = vsel %vm1556, %v2588, 0
      %v2885 = vsel %vm1556, %v2605, 0
      %v2887 = vsel %vm1556, %v2622, 0
      %v2889 = vsel %vm1556, %v2639, 0
      %v2891 = vsel %vm1556, %v2656, 0
      %v2893 = vsel %vm1556, %v2673, 0
      %v2895 = vsel %vm1556, %v2690, 0
      %v2897 = vsel %vm1556, %v2707, 0
      %v2899 = vsel %vm1556, %v2724, 0
      %v2901 = vsel %vm1556, %v2741, 0
      %v2903 = vsel %vm1556, %v2758, 0
      %v2905 = vsel %vm1556, %v2775, 0
      %v2907 = vsel %vm1556, %v2792, 0
      %v2909 = vsel %vm1556, %v2809, 0
      %v2911 = vsel %vm1556, %v2826, 0
      %v2913 = vsel %vm1556, %v2843, 0
      %v2915 = vsel %vm1556, %v2860, 0
      %v2917 = vsel %vm1556, %v2868, 0
      %2919 = vmatprep.subr.mxu0 0.0
      %2920 = vmatpush1.msra.mxu0 %v281
      %2921 = vmatprep.subr.mxu0 0.0
      %2922 = vmatpush1.msra.mxu0 0.0
      %2923 = vmatprep.subr.mxu0 0.0
      %2924 = vmatpush1.msra.mxu0 0.0
      %2925 = vmatprep.subr.mxu0 0.0
      %2926 = vmatpush1.msra.mxu0 0.0
      %2927 = vmatprep.subr.mxu0 0.0
      %2928 = vmatpush1.msra.mxu0 0.0
      %2929 = vmatprep.subr.mxu0 0.0
      %2930 = vmatpush1.msra.mxu0 0.0
      %2931 = vmatprep.subr.mxu0 0.0
      %2932 = vmatpush1.msra.mxu0 0.0
      %2933 = vmatprep.subr.mxu0 0.0
      %2934 = vmatpush1.msra.mxu0 0.0
      %2935 = vmatprep.subr.mxu0 0.0
      %2936 = vmatpush1.msra.mxu0 0.0
      %2937 = vmatprep.subr.mxu0 0.0
      %2938 = vmatpush1.msra.mxu0 0.0
      %2939 = vmatprep.subr.mxu0 0.0
      %2940 = vmatpush1.msra.mxu0 0.0
      %2941 = vmatprep.subr.mxu0 0.0
      %2942 = vmatpush1.msra.mxu0 0.0
      %2943 = vmatprep.subr.mxu0 0.0
      %2944 = vmatpush1.msra.mxu0 0.0
      %2945 = vmatprep.subr.mxu0 0.0
      %2946 = vmatpush1.msra.mxu0 0.0
      %2947 = vmatprep.subr.mxu0 0.0
      %2948 = vmatpush1.msra.mxu0 0.0
      %2949 = vmatprep.subr.mxu0 0.0
      %2950 = vmatpush1.msra.mxu0 0.0
      %2951 = vmatprep.subr.mxu0 0.0
      %2952 = vmatpush1.msra.mxu0 0.0
      %2953 = vmatprep.subr.mxu0 0.0
      %2954 = vmatpush1.msra.mxu0 0.0
      %2955 = vmatprep.subr.mxu0 0.0
      %2956 = vmatpush1.msra.mxu0 0.0
      %2957 = vmatprep.subr.mxu0 0.0
      %2958 = vmatpush1.msra.mxu0 0.0
      %2959 = vmatprep.subr.mxu0 0.0
      %2960 = vmatpush1.msra.mxu0 0.0
      %2961 = vmatprep.subr.mxu0 0.0
      %2962 = vmatpush1.msra.mxu0 0.0
      %2963 = vmatprep.subr.mxu0 0.0
      %2964 = vmatpush1.msra.mxu0 0.0
      %2965 = vmatprep.subr.mxu0 0.0
      %2966 = vmatpush1.msra.mxu0 0.0
      %2967 = vmatprep.subr.mxu0 0.0
      %2968 = vmatpush1.msra.mxu0 0.0
      %2969 = vmatprep.subr.mxu0 0.0
      %2970 = vmatpush1.msra.mxu0 0.0
      %2971 = vmatprep.subr.mxu0 0.0
      %2972 = vmatpush1.msra.mxu0 0.0
      %2973 = vmatprep.subr.mxu0 0.0
      %2974 = vmatpush1.msra.mxu0 0.0
      %2975 = vmatprep.subr.mxu0 0.0
      %2976 = vmatpush1.msra.mxu0 0.0
      %2977 = vmatprep.subr.mxu0 0.0
      %2978 = vmatpush1.msra.mxu0 0.0
      %2979 = vmatprep.subr.mxu0 0.0
      %2980 = vmatpush1.msra.mxu0 0.0
      %2981 = vmatprep.subr.mxu0 0.0
      %2982 = vmatpush1.msra.mxu0 0.0
      %2983 = vmatprep.mubr.f32.mxu0 0.0
      %2984 = vmatmul.mubr.f32.gmra.mrb[0].mxu0 %v2869
      %v2985 = vpop.f32.mrb[0].mxu0
      %v2986 = vadd.f32 0.0, %v2985
      %v2987 = vpop.f32.mrb[0].mxu0
      %2988 = vmatprep.mubr.f32.mxu0 0.0
      %2989 = vmatmul.mubr.f32.gmra.mrb[0].mxu0 %v2871
      %v2990 = vpop.f32.mrb[0].mxu0
      %v2991 = vadd.f32 0.0, %v2990
      %v2992 = vpop.f32.mrb[0].mxu0
      %2993 = vmatprep.mubr.f32.mxu0 0.0
      %2994 = vmatmul.mubr.f32.gmra.mrb[0].mxu0 %v2873
      %v2995 = vpop.f32.mrb[0].mxu0
      %v2996 = vadd.f32 0.0, %v2995
      %v2997 = vpop.f32.mrb[0].mxu0
      %2998 = vmatprep.mubr.f32.mxu0 0.0
      %2999 = vmatmul.mubr.f32.gmra.mrb[0].mxu0 %v2875
      %v3000 = vpop.f32.mrb[0].mxu0
      %v3001 = vadd.f32 0.0, %v3000
      %v3002 = vpop.f32.mrb[0].mxu0
      %3003 = vmatprep.mubr.f32.mxu0 0.0
      %3004 = vmatmul.mubr.f32.gmra.mrb[0].mxu0 %v2877
      %v3005 = vpop.f32.mrb[0].mxu0
      %v3006 = vadd.f32 0.0, %v3005
      %v3007 = vpop.f32.mrb[0].mxu0
      %3008 = vmatprep.mubr.f32.mxu0 0.0
      %3009 = vmatmul.mubr.f32.gmra.mrb[0].mxu0 %v2879
      %v3010 = vpop.f32.mrb[0].mxu0
      %v3011 = vadd.f32 0.0, %v3010
      %v3012 = vpop.f32.mrb[0].mxu0
      %3013 = vmatprep.mubr.f32.mxu0 0.0
      %3014 = vmatmul.mubr.f32.gmra.mrb[0].mxu0 %v2881
      %v3015 = vpop.f32.mrb[0].mxu0
      %v3016 = vadd.f32 0.0, %v3015
      %v3017 = vpop.f32.mrb[0].mxu0
      %3018 = vmatprep.mubr.f32.mxu0 0.0
      %3019 = vmatmul.mubr.f32.gmra.mrb[0].mxu0 %v2883
      %v3020 = vpop.f32.mrb[0].mxu0
      %v3021 = vadd.f32 0.0, %v3020
      %v3022 = vpop.f32.mrb[0].mxu0
      %3023 = vmatprep.mubr.f32.mxu0 0.0
      %3024 = vmatmul.mubr.f32.gmra.mrb[0].mxu0 %v2885
      %v3025 = vpop.f32.mrb[0].mxu0
      %v3026 = vadd.f32 0.0, %v3025
      %v3027 = vpop.f32.mrb[0].mxu0
      %3028 = vmatprep.mubr.f32.mxu0 0.0
      %3029 = vmatmul.mubr.f32.gmra.mrb[0].mxu0 %v2887
      %v3030 = vpop.f32.mrb[0].mxu0
      %v3031 = vadd.f32 0.0, %v3030
      %v3032 = vpop.f32.mrb[0].mxu0
      %3033 = vmatprep.mubr.f32.mxu0 0.0
      %3034 = vmatmul.mubr.f32.gmra.mrb[0].mxu0 %v2889
      %v3035 = vpop.f32.mrb[0].mxu0
      %v3036 = vadd.f32 0.0, %v3035
      %v3037 = vpop.f32.mrb[0].mxu0
      %3038 = vmatprep.mubr.f32.mxu0 0.0
      %3039 = vmatmul.mubr.f32.gmra.mrb[0].mxu0 %v2891
      %v3040 = vpop.f32.mrb[0].mxu0
      %v3041 = vadd.f32 0.0, %v3040
      %v3042 = vpop.f32.mrb[0].mxu0
      %3043 = vmatprep.mubr.f32.mxu0 0.0
      %3044 = vmatmul.mubr.f32.gmra.mrb[0].mxu0 %v2893
      %v3045 = vpop.f32.mrb[0].mxu0
      %v3046 = vadd.f32 0.0, %v3045
      %v3047 = vpop.f32.mrb[0].mxu0
      %3048 = vmatprep.mubr.f32.mxu0 0.0
      %3049 = vmatmul.mubr.f32.gmra.mrb[0].mxu0 %v2895
      %v3050 = vpop.f32.mrb[0].mxu0
      %v3051 = vadd.f32 0.0, %v3050
      %v3052 = vpop.f32.mrb[0].mxu0
      %3053 = vmatprep.mubr.f32.mxu0 0.0
      %3054 = vmatmul.mubr.f32.gmra.mrb[0].mxu0 %v2897
      %v3055 = vpop.f32.mrb[0].mxu0
      %v3056 = vadd.f32 0.0, %v3055
      %v3057 = vpop.f32.mrb[0].mxu0
      %3058 = vmatprep.mubr.f32.mxu0 0.0
      %3059 = vmatmul.mubr.f32.gmra.mrb[0].mxu0 %v2899
      %v3060 = vpop.f32.mrb[0].mxu0
      %v3061 = vadd.f32 0.0, %v3060
      %v3062 = vpop.f32.mrb[0].mxu0
      %3063 = vmatprep.mubr.f32.mxu0 0.0
      %3064 = vmatmul.mubr.f32.gmra.mrb[0].mxu0 %v2901
      %v3065 = vpop.f32.mrb[0].mxu0
      %v3066 = vadd.f32 0.0, %v3065
      %v3067 = vpop.f32.mrb[0].mxu0
      %3068 = vmatprep.mubr.f32.mxu0 0.0
      %3069 = vmatmul.mubr.f32.gmra.mrb[0].mxu0 %v2903
      %v3070 = vpop.f32.mrb[0].mxu0
      %v3071 = vadd.f32 0.0, %v3070
      %v3072 = vpop.f32.mrb[0].mxu0
      %3073 = vmatprep.mubr.f32.mxu0 0.0
      %3074 = vmatmul.mubr.f32.gmra.mrb[0].mxu0 %v2905
      %v3075 = vpop.f32.mrb[0].mxu0
      %v3076 = vadd.f32 0.0, %v3075
      %v3077 = vpop.f32.mrb[0].mxu0
      %3078 = vmatprep.mubr.f32.mxu0 0.0
      %3079 = vmatmul.mubr.f32.gmra.mrb[0].mxu0 %v2907
      %v3080 = vpop.f32.mrb[0].mxu0
      %v3081 = vadd.f32 0.0, %v3080
      %v3082 = vpop.f32.mrb[0].mxu0
      %3083 = vmatprep.mubr.f32.mxu0 0.0
      %3084 = vmatmul.mubr.f32.gmra.mrb[0].mxu0 %v2909
      %v3085 = vpop.f32.mrb[0].mxu0
      %v3086 = vadd.f32 0.0, %v3085
      %v3087 = vpop.f32.mrb[0].mxu0
      %3088 = vmatprep.mubr.f32.mxu0 0.0
      %3089 = vmatmul.mubr.f32.gmra.mrb[0].mxu0 %v2911
      %v3090 = vpop.f32.mrb[0].mxu0
      %v3091 = vadd.f32 0.0, %v3090
      %v3092 = vpop.f32.mrb[0].mxu0
      %3093 = vmatprep.mubr.f32.mxu0 0.0
      %3094 = vmatmul.mubr.f32.gmra.mrb[0].mxu0 %v2913
      %v3095 = vpop.f32.mrb[0].mxu0
      %v3096 = vadd.f32 0.0, %v3095
      %v3097 = vpop.f32.mrb[0].mxu0
      %3098 = vmatprep.mubr.f32.mxu0 0.0
      %3099 = vmatmul.mubr.f32.gmra.mrb[0].mxu0 %v2915
      %v3100 = vpop.f32.mrb[0].mxu0
      %v3101 = vadd.f32 0.0, %v3100
      %v3102 = vpop.f32.mrb[0].mxu0
      %3103 = vmatprep.mubr.f32.mxu0 0.0
      %3104 = vmatmul.mubr.f32.gmra.mrb[0].mxu0 %v2917
      %v3105 = vpop.f32.mrb[0].mxu0
      %v3106 = vadd.f32 0.0, %v3105
      %v3107 = vpop.f32.mrb[0].mxu0
      %3108 = vdwg.mxu0
      %v3109 = vadd.f32 %v2330, %v2986
      %v3110 = vadd.f32 %v2335, %v2991
      %v3111 = vadd.f32 %v2340, %v2996
      %v3112 = vadd.f32 %v2345, %v3001
      %v3113 = vadd.f32 %v2350, %v3006
      %v3114 = vadd.f32 %v2355, %v3011
      %v3115 = vadd.f32 %v2360, %v3016
      %v3116 = vadd.f32 %v2365, %v3021
      %v3117 = vadd.f32 %v2370, %v3026
      %v3118 = vadd.f32 %v2375, %v3031
      %v3119 = vadd.f32 %v2380, %v3036
      %v3120 = vadd.f32 %v2385, %v3041
      %v3121 = vadd.f32 %v2390, %v3046
      %v3122 = vadd.f32 %v2395, %v3051
      %v3123 = vadd.f32 %v2400, %v3056
      %v3124 = vadd.f32 %v2405, %v3061
      %v3125 = vadd.f32 %v2410, %v3066
      %v3126 = vadd.f32 %v2415, %v3071
      %v3127 = vadd.f32 %v2420, %v3076
      %v3128 = vadd.f32 %v2425, %v3081
      %v3129 = vadd.f32 %v2430, %v3086
      %v3130 = vadd.f32 %v2435, %v3091
      %v3131 = vadd.f32 %v2440, %v3096
      %v3132 = vadd.f32 %v2445, %v3101
      %v3133 = vadd.f32 %v2450, %v3106
      %v3136 = vcombine.high %v317, %v317
      %v3138 = vunpack.c.l.s4 1983009808
      %v3139 = vunpack.c.0.s8 %v3138
      %v3140 = vlaneseq
      %v3141 = vshrl.u32 %v3140, 7
      %v3142 = vsub.s32 %v3139, %v3141
      %v3143 = vrot.slane %v317, %v3142
      %v3145 = vunpack.c.l.s4 1983009808
      %v3146 = vunpack.c.0.s8 %v3145
      %v3147 = vlaneseq
      %v3148 = vshrl.u32 %v3147, 7
      %v3149 = vsub.s32 %v3146, %v3148
      %v3150 = vrot.slane %v3136, %v3149
      %v3151 = vcombine.high %v3143, %v3143
      %v3152 = vcombine.high %v3150, %v3150
      %v3153 = vcombine.high %v318, %v318
      %v3155 = vunpack.c.l.s4 1983009808
      %v3156 = vunpack.c.0.s8 %v3155
      %v3157 = vlaneseq
      %v3158 = vshrl.u32 %v3157, 7
      %v3159 = vsub.s32 %v3156, %v3158
      %v3160 = vrot.slane %v318, %v3159
      %v3162 = vunpack.c.l.s4 1983009808
      %v3163 = vunpack.c.0.s8 %v3162
      %v3164 = vlaneseq
      %v3165 = vshrl.u32 %v3164, 7
      %v3166 = vsub.s32 %v3163, %v3165
      %v3167 = vrot.slane %v3153, %v3166
      %v3168 = vcombine.high %v3160, %v3160
      %v3169 = vcombine.low %v389, %v397
      %v3171 = vunpack.c.l.s4 1983009808
      %v3172 = vunpack.c.0.s8 %v3171
      %v3173 = vlaneseq
      %v3174 = vshrl.u32 %v3173, 7
      %v3175 = vsub.s32 %v3172, %v3174
      %v3176 = vrot.slane %v3169, %v3175
      %v3177 = vcombine.low %v3176, %v2495
      %v3178 = vcombine.low %v413, %v422
      %v3180 = vunpack.c.l.s4 1983009808
      %v3181 = vunpack.c.0.s8 %v3180
      %v3182 = vlaneseq
      %v3183 = vshrl.u32 %v3182, 7
      %v3184 = vsub.s32 %v3181, %v3183
      %v3185 = vrot.slane %v3178, %v3184
      %v3186 = vcombine.low %v2502, %v3185
      %v3187 = vcombine.low %v2519, %v2529
      %v3188 = vcombine.low %v455, %v463
      %v3190 = vunpack.c.l.s4 1983009808
      %v3191 = vunpack.c.0.s8 %v3190
      %v3192 = vlaneseq
      %v3193 = vshrl.u32 %v3192, 7
      %v3194 = vsub.s32 %v3191, %v3193
      %v3195 = vrot.slane %v3188, %v3194
      %v3196 = vcombine.low %v2536, %v3195
      %v3197 = vcombine.low %v2553, %v2563
      %v3198 = vcombine.low %v479, %v488
      %v3200 = vunpack.c.l.s4 1983009808
      %v3201 = vunpack.c.0.s8 %v3200
      %v3202 = vlaneseq
      %v3203 = vshrl.u32 %v3202, 7
      %v3204 = vsub.s32 %v3201, %v3203
      %v3205 = vrot.slane %v3198, %v3204
      %v3206 = vcombine.low %v3205, %v2580
      %v3207 = vcombine.low %v2587, %v2597
      %v3208 = vcombine.low %v521, %v529
      %v3210 = vunpack.c.l.s4 1983009808
      %v3211 = vunpack.c.0.s8 %v3210
      %v3212 = vlaneseq
      %v3213 = vshrl.u32 %v3212, 7
      %v3214 = vsub.s32 %v3211, %v3213
      %v3215 = vrot.slane %v3208, %v3214
      %v3216 = vcombine.low %v3215, %v2614
      %v3217 = vcombine.low %v545, %v554
      %v3219 = vunpack.c.l.s4 1983009808
      %v3220 = vunpack.c.0.s8 %v3219
      %v3221 = vlaneseq
      %v3222 = vshrl.u32 %v3221, 7
      %v3223 = vsub.s32 %v3220, %v3222
      %v3224 = vrot.slane %v3217, %v3223
      %v3225 = vcombine.low %v2621, %v3224
      %v3226 = vcombine.low %v2638, %v2648
      %v3227 = vcombine.low %v587, %v595
      %v3229 = vunpack.c.l.s4 1983009808
      %v3230 = vunpack.c.0.s8 %v3229
      %v3231 = vlaneseq
      %v3232 = vshrl.u32 %v3231, 7
      %v3233 = vsub.s32 %v3230, %v3232
      %v3234 = vrot.slane %v3227, %v3233
      %v3235 = vcombine.low %v2655, %v3234
      %v3236 = vcombine.low %v2672, %v2682
      %v3237 = vcombine.low %v611, %v620
      %v3239 = vunpack.c.l.s4 1983009808
      %v3240 = vunpack.c.0.s8 %v3239
      %v3241 = vlaneseq
      %v3242 = vshrl.u32 %v3241, 7
      %v3243 = vsub.s32 %v3240, %v3242
      %v3244 = vrot.slane %v3237, %v3243
      %v3245 = vcombine.low %v3244, %v2699
      %v3246 = vcombine.low %v2706, %v2716
      %v3247 = vcombine.low %v653, %v661
      %v3249 = vunpack.c.l.s4 1983009808
      %v3250 = vunpack.c.0.s8 %v3249
      %v3251 = vlaneseq
      %v3252 = vshrl.u32 %v3251, 7
      %v3253 = vsub.s32 %v3250, %v3252
      %v3254 = vrot.slane %v3247, %v3253
      %v3255 = vcombine.low %v3254, %v2733
      %v3256 = vcombine.low %v677, %v686
      %v3258 = vunpack.c.l.s4 1983009808
      %v3259 = vunpack.c.0.s8 %v3258
      %v3260 = vlaneseq
      %v3261 = vshrl.u32 %v3260, 7
      %v3262 = vsub.s32 %v3259, %v3261
      %v3263 = vrot.slane %v3256, %v3262
      %v3264 = vcombine.low %v2740, %v3263
      %v3265 = vcombine.low %v2757, %v2767
      %v3266 = vcombine.low %v719, %v727
      %v3268 = vunpack.c.l.s4 1983009808
      %v3269 = vunpack.c.0.s8 %v3268
      %v3270 = vlaneseq
      %v3271 = vshrl.u32 %v3270, 7
      %v3272 = vsub.s32 %v3269, %v3271
      %v3273 = vrot.slane %v3266, %v3272
      %v3274 = vcombine.low %v2774, %v3273
      %v3275 = vcombine.low %v2791, %v2801
      %v3276 = vcombine.low %v743, %v752
      %v3278 = vunpack.c.l.s4 1983009808
      %v3279 = vunpack.c.0.s8 %v3278
      %v3280 = vlaneseq
      %v3281 = vshrl.u32 %v3280, 7
      %v3282 = vsub.s32 %v3279, %v3281
      %v3283 = vrot.slane %v3276, %v3282
      %v3284 = vcombine.low %v3283, %v2818
      %v3285 = vcombine.low %v2825, %v2835
      %v3286 = vcombine.low %v785, %v793
      %v3288 = vunpack.c.l.s4 1983009808
      %v3289 = vunpack.c.0.s8 %v3288
      %v3290 = vlaneseq
      %v3291 = vshrl.u32 %v3290, 7
      %v3292 = vsub.s32 %v3289, %v3291
      %v3293 = vrot.slane %v3286, %v3292
      %v3294 = vcombine.low %v3293, %v2852
      %v3295 = vcombine.low %v809, %v3143
      %v3297 = vunpack.c.l.s4 1983009808
      %v3298 = vunpack.c.0.s8 %v3297
      %v3299 = vlaneseq
      %v3300 = vshrl.u32 %v3299, 7
      %v3301 = vsub.s32 %v3298, %v3300
      %v3302 = vrot.slane %v3295, %v3301
      %v3303 = vcombine.low %v2859, %v3302
      %v3304 = vcombine.low %v3151, %v3150
      %v3305 = vcombine.low %v3152, %v3160
      %v3307 = vunpack.c.l.s4 1983009808
      %v3308 = vunpack.c.0.s8 %v3307
      %v3309 = vlaneseq
      %v3310 = vshrl.u32 %v3309, 7
      %v3311 = vsub.s32 %v3308, %v3310
      %v3312 = vrot.slane %v3304, %v3311
      %v3314 = vunpack.c.l.s4 1983009808
      %v3315 = vunpack.c.0.s8 %v3314
      %v3316 = vlaneseq
      %v3317 = vshrl.u32 %v3316, 7
      %v3318 = vsub.s32 %v3315, %v3317
      %v3319 = vrot.slane %v3305, %v3318
      %v3320 = vcombine.low %v3312, %v3319
      %v3321 = vcombine.low %v3168, %v3167
      %v3323 = vunpack.c.l.s4 1983009808
      %v3324 = vunpack.c.0.s8 %v3323
      %v3325 = vlaneseq
      %v3326 = vshrl.u32 %v3325, 7
      %v3327 = vsub.s32 %v3324, %v3326
      %v3328 = vrot.slane %v3321, %v3327
      %v3329 = vsel %vm1556, %v3177, 0
      %v3331 = vsel %vm1556, %v3186, 0
      %v3333 = vsel %vm1556, %v3187, 0
      %v3335 = vsel %vm1556, %v3196, 0
      %v3337 = vsel %vm1556, %v3197, 0
      %v3339 = vsel %vm1556, %v3206, 0
      %v3341 = vsel %vm1556, %v3207, 0
      %v3343 = vsel %vm1556, %v3216, 0
      %v3345 = vsel %vm1556, %v3225, 0
      %v3347 = vsel %vm1556, %v3226, 0
      %v3349 = vsel %vm1556, %v3235, 0
      %v3351 = vsel %vm1556, %v3236, 0
      %v3353 = vsel %vm1556, %v3245, 0
      %v3355 = vsel %vm1556, %v3246, 0
      %v3357 = vsel %vm1556, %v3255, 0
      %v3359 = vsel %vm1556, %v3264, 0
      %v3361 = vsel %vm1556, %v3265, 0
      %v3363 = vsel %vm1556, %v3274, 0
      %v3365 = vsel %vm1556, %v3275, 0
      %v3367 = vsel %vm1556, %v3284, 0
      %v3369 = vsel %vm1556, %v3285, 0
      %v3371 = vsel %vm1556, %v3294, 0
      %v3373 = vsel %vm1556, %v3303, 0
      %v3375 = vsel %vm1556, %v3320, 0
      %v3377 = vsel %vm1556, %v3328, 0
      %3379 = vmatprep.subr.mxu0 0.0
      %3380 = vmatpush1.msra.mxu0 %v282
      %3381 = vmatprep.subr.mxu0 0.0
      %3382 = vmatpush1.msra.mxu0 0.0
      %3383 = vmatprep.subr.mxu0 0.0
      %3384 = vmatpush1.msra.mxu0 0.0
      %3385 = vmatprep.subr.mxu0 0.0
      %3386 = vmatpush1.msra.mxu0 0.0
      %3387 = vmatprep.subr.mxu0 0.0
      %3388 = vmatpush1.msra.mxu0 0.0
      %3389 = vmatprep.subr.mxu0 0.0
      %3390 = vmatpush1.msra.mxu0 0.0
      %3391 = vmatprep.subr.mxu0 0.0
      %3392 = vmatpush1.msra.mxu0 0.0
      %3393 = vmatprep.subr.mxu0 0.0
      %3394 = vmatpush1.msra.mxu0 0.0
      %3395 = vmatprep.subr.mxu0 0.0
      %3396 = vmatpush1.msra.mxu0 0.0
      %3397 = vmatprep.subr.mxu0 0.0
      %3398 = vmatpush1.msra.mxu0 0.0
      %3399 = vmatprep.subr.mxu0 0.0
      %3400 = vmatpush1.msra.mxu0 0.0
      %3401 = vmatprep.subr.mxu0 0.0
      %3402 = vmatpush1.msra.mxu0 0.0
      %3403 = vmatprep.subr.mxu0 0.0
      %3404 = vmatpush1.msra.mxu0 0.0
      %3405 = vmatprep.subr.mxu0 0.0
      %3406 = vmatpush1.msra.mxu0 0.0
      %3407 = vmatprep.subr.mxu0 0.0
      %3408 = vmatpush1.msra.mxu0 0.0
      %3409 = vmatprep.subr.mxu0 0.0
      %3410 = vmatpush1.msra.mxu0 0.0
      %3411 = vmatprep.subr.mxu0 0.0
      %3412 = vmatpush1.msra.mxu0 0.0
      %3413 = vmatprep.subr.mxu0 0.0
      %3414 = vmatpush1.msra.mxu0 0.0
      %3415 = vmatprep.subr.mxu0 0.0
      %3416 = vmatpush1.msra.mxu0 0.0
      %3417 = vmatprep.subr.mxu0 0.0
      %3418 = vmatpush1.msra.mxu0 0.0
      %3419 = vmatprep.subr.mxu0 0.0
      %3420 = vmatpush1.msra.mxu0 0.0
      %3421 = vmatprep.subr.mxu0 0.0
      %3422 = vmatpush1.msra.mxu0 0.0
      %3423 = vmatprep.subr.mxu0 0.0
      %3424 = vmatpush1.msra.mxu0 0.0
      %3425 = vmatprep.subr.mxu0 0.0
      %3426 = vmatpush1.msra.mxu0 0.0
      %3427 = vmatprep.subr.mxu0 0.0
      %3428 = vmatpush1.msra.mxu0 0.0
      %3429 = vmatprep.subr.mxu0 0.0
      %3430 = vmatpush1.msra.mxu0 0.0
      %3431 = vmatprep.subr.mxu0 0.0
      %3432 = vmatpush1.msra.mxu0 0.0
      %3433 = vmatprep.subr.mxu0 0.0
      %3434 = vmatpush1.msra.mxu0 0.0
      %3435 = vmatprep.subr.mxu0 0.0
      %3436 = vmatpush1.msra.mxu0 0.0
      %3437 = vmatprep.subr.mxu0 0.0
      %3438 = vmatpush1.msra.mxu0 0.0
      %3439 = vmatprep.subr.mxu0 0.0
      %3440 = vmatpush1.msra.mxu0 0.0
      %3441 = vmatprep.subr.mxu0 0.0
      %3442 = vmatpush1.msra.mxu0 0.0
      %3443 = vmatprep.mubr.f32.mxu0 0.0
      %3444 = vmatmul.mubr.f32.gmra.mrb[0].mxu0 %v3329
      %v3445 = vpop.f32.mrb[0].mxu0
      %v3446 = vadd.f32 0.0, %v3445
      %v3447 = vpop.f32.mrb[0].mxu0
      %3448 = vmatprep.mubr.f32.mxu0 0.0
      %3449 = vmatmul.mubr.f32.gmra.mrb[0].mxu0 %v3331
      %v3450 = vpop.f32.mrb[0].mxu0
      %v3451 = vadd.f32 0.0, %v3450
      %v3452 = vpop.f32.mrb[0].mxu0
      %3453 = vmatprep.mubr.f32.mxu0 0.0
      %3454 = vmatmul.mubr.f32.gmra.mrb[0].mxu0 %v3333
      %v3455 = vpop.f32.mrb[0].mxu0
      %v3456 = vadd.f32 0.0, %v3455
      %v3457 = vpop.f32.mrb[0].mxu0
      %3458 = vmatprep.mubr.f32.mxu0 0.0
      %3459 = vmatmul.mubr.f32.gmra.mrb[0].mxu0 %v3335
      %v3460 = vpop.f32.mrb[0].mxu0
      %v3461 = vadd.f32 0.0, %v3460
      %v3462 = vpop.f32.mrb[0].mxu0
      %3463 = vmatprep.mubr.f32.mxu0 0.0
      %3464 = vmatmul.mubr.f32.gmra.mrb[0].mxu0 %v3337
      %v3465 = vpop.f32.mrb[0].mxu0
      %v3466 = vadd.f32 0.0, %v3465
      %v3467 = vpop.f32.mrb[0].mxu0
      %3468 = vmatprep.mubr.f32.mxu0 0.0
      %3469 = vmatmul.mubr.f32.gmra.mrb[0].mxu0 %v3339
      %v3470 = vpop.f32.mrb[0].mxu0
      %v3471 = vadd.f32 0.0, %v3470
      %v3472 = vpop.f32.mrb[0].mxu0
      %3473 = vmatprep.mubr.f32.mxu0 0.0
      %3474 = vmatmul.mubr.f32.gmra.mrb[0].mxu0 %v3341
      %v3475 = vpop.f32.mrb[0].mxu0
      %v3476 = vadd.f32 0.0, %v3475
      %v3477 = vpop.f32.mrb[0].mxu0
      %3478 = vmatprep.mubr.f32.mxu0 0.0
      %3479 = vmatmul.mubr.f32.gmra.mrb[0].mxu0 %v3343
      %v3480 = vpop.f32.mrb[0].mxu0
      %v3481 = vadd.f32 0.0, %v3480
      %v3482 = vpop.f32.mrb[0].mxu0
      %3483 = vmatprep.mubr.f32.mxu0 0.0
      %3484 = vmatmul.mubr.f32.gmra.mrb[0].mxu0 %v3345
      %v3485 = vpop.f32.mrb[0].mxu0
      %v3486 = vadd.f32 0.0, %v3485
      %v3487 = vpop.f32.mrb[0].mxu0
      %3488 = vmatprep.mubr.f32.mxu0 0.0
      %3489 = vmatmul.mubr.f32.gmra.mrb[0].mxu0 %v3347
      %v3490 = vpop.f32.mrb[0].mxu0
      %v3491 = vadd.f32 0.0, %v3490
      %v3492 = vpop.f32.mrb[0].mxu0
      %3493 = vmatprep.mubr.f32.mxu0 0.0
      %3494 = vmatmul.mubr.f32.gmra.mrb[0].mxu0 %v3349
      %v3495 = vpop.f32.mrb[0].mxu0
      %v3496 = vadd.f32 0.0, %v3495
      %v3497 = vpop.f32.mrb[0].mxu0
      %3498 = vmatprep.mubr.f32.mxu0 0.0
      %3499 = vmatmul.mubr.f32.gmra.mrb[0].mxu0 %v3351
      %v3500 = vpop.f32.mrb[0].mxu0
      %v3501 = vadd.f32 0.0, %v3500
      %v3502 = vpop.f32.mrb[0].mxu0
      %3503 = vmatprep.mubr.f32.mxu0 0.0
      %3504 = vmatmul.mubr.f32.gmra.mrb[0].mxu0 %v3353
      %v3505 = vpop.f32.mrb[0].mxu0
      %v3506 = vadd.f32 0.0, %v3505
      %v3507 = vpop.f32.mrb[0].mxu0
      %3508 = vmatprep.mubr.f32.mxu0 0.0
      %3509 = vmatmul.mubr.f32.gmra.mrb[0].mxu0 %v3355
      %v3510 = vpop.f32.mrb[0].mxu0
      %v3511 = vadd.f32 0.0, %v3510
      %v3512 = vpop.f32.mrb[0].mxu0
      %3513 = vmatprep.mubr.f32.mxu0 0.0
      %3514 = vmatmul.mubr.f32.gmra.mrb[0].mxu0 %v3357
      %v3515 = vpop.f32.mrb[0].mxu0
      %v3516 = vadd.f32 0.0, %v3515
      %v3517 = vpop.f32.mrb[0].mxu0
      %3518 = vmatprep.mubr.f32.mxu0 0.0
      %3519 = vmatmul.mubr.f32.gmra.mrb[0].mxu0 %v3359
      %v3520 = vpop.f32.mrb[0].mxu0
      %v3521 = vadd.f32 0.0, %v3520
      %v3522 = vpop.f32.mrb[0].mxu0
      %3523 = vmatprep.mubr.f32.mxu0 0.0
      %3524 = vmatmul.mubr.f32.gmra.mrb[0].mxu0 %v3361
      %v3525 = vpop.f32.mrb[0].mxu0
      %v3526 = vadd.f32 0.0, %v3525
      %v3527 = vpop.f32.mrb[0].mxu0
      %3528 = vmatprep.mubr.f32.mxu0 0.0
      %3529 = vmatmul.mubr.f32.gmra.mrb[0].mxu0 %v3363
      %v3530 = vpop.f32.mrb[0].mxu0
      %v3531 = vadd.f32 0.0, %v3530
      %v3532 = vpop.f32.mrb[0].mxu0
      %3533 = vmatprep.mubr.f32.mxu0 0.0
      %3534 = vmatmul.mubr.f32.gmra.mrb[0].mxu0 %v3365
      %v3535 = vpop.f32.mrb[0].mxu0
      %v3536 = vadd.f32 0.0, %v3535
      %v3537 = vpop.f32.mrb[0].mxu0
      %3538 = vmatprep.mubr.f32.mxu0 0.0
      %3539 = vmatmul.mubr.f32.gmra.mrb[0].mxu0 %v3367
      %v3540 = vpop.f32.mrb[0].mxu0
      %v3541 = vadd.f32 0.0, %v3540
      %v3542 = vpop.f32.mrb[0].mxu0
      %3543 = vmatprep.mubr.f32.mxu0 0.0
      %3544 = vmatmul.mubr.f32.gmra.mrb[0].mxu0 %v3369
      %v3545 = vpop.f32.mrb[0].mxu0
      %v3546 = vadd.f32 0.0, %v3545
      %v3547 = vpop.f32.mrb[0].mxu0
      %3548 = vmatprep.mubr.f32.mxu0 0.0
      %3549 = vmatmul.mubr.f32.gmra.mrb[0].mxu0 %v3371
      %v3550 = vpop.f32.mrb[0].mxu0
      %v3551 = vadd.f32 0.0, %v3550
      %v3552 = vpop.f32.mrb[0].mxu0
      %3553 = vmatprep.mubr.f32.mxu0 0.0
      %3554 = vmatmul.mubr.f32.gmra.mrb[0].mxu0 %v3373
      %v3555 = vpop.f32.mrb[0].mxu0
      %v3556 = vadd.f32 0.0, %v3555
      %v3557 = vpop.f32.mrb[0].mxu0
      %3558 = vmatprep.mubr.f32.mxu0 0.0
      %3559 = vmatmul.mubr.f32.gmra.mrb[0].mxu0 %v3375
      %v3560 = vpop.f32.mrb[0].mxu0
      %v3561 = vadd.f32 0.0, %v3560
      %v3562 = vpop.f32.mrb[0].mxu0
      %3563 = vmatprep.mubr.f32.mxu0 0.0
      %3564 = vmatmul.mubr.f32.gmra.mrb[0].mxu0 %v3377
      %v3565 = vpop.f32.mrb[0].mxu0
      %v3566 = vadd.f32 0.0, %v3565
      %v3567 = vpop.f32.mrb[0].mxu0
      %3568 = vdwg.mxu0
      %v3569 = vadd.f32 %v3109, %v3446
      %v3570 = vadd.f32 %v3110, %v3451
      %v3571 = vadd.f32 %v3111, %v3456
      %v3572 = vadd.f32 %v3112, %v3461
      %v3573 = vadd.f32 %v3113, %v3466
      %v3574 = vadd.f32 %v3114, %v3471
      %v3575 = vadd.f32 %v3115, %v3476
      %v3576 = vadd.f32 %v3116, %v3481
      %v3577 = vadd.f32 %v3117, %v3486
      %v3578 = vadd.f32 %v3118, %v3491
      %v3579 = vadd.f32 %v3119, %v3496
      %v3580 = vadd.f32 %v3120, %v3501
      %v3581 = vadd.f32 %v3121, %v3506
      %v3582 = vadd.f32 %v3122, %v3511
      %v3583 = vadd.f32 %v3123, %v3516
      %v3584 = vadd.f32 %v3124, %v3521
      %v3585 = vadd.f32 %v3125, %v3526
      %v3586 = vadd.f32 %v3126, %v3531
      %v3587 = vadd.f32 %v3127, %v3536
      %v3588 = vadd.f32 %v3128, %v3541
      %v3589 = vadd.f32 %v3129, %v3546
      %v3590 = vadd.f32 %v3130, %v3551
      %v3591 = vadd.f32 %v3131, %v3556
      %v3592 = vadd.f32 %v3132, %v3561
      %v3593 = vadd.f32 %v3133, %v3566
      %v3594 = vcombine.high %v3167, %v3167
      %v3595 = vrot.slane %v3143, 7
      %v3596 = vrot.slane %v3595, 2
      %v3597 = vrot.slane %v3151, 7
      %v3598 = vsel %vm831, %v3596, %v3597
      %v3599 = vrot.slane %v3597, 2
      %v3600 = vrot.slane %v3150, 7
      %v3601 = vsel %vm831, %v3599, %v3600
      %v3602 = vrot.slane %v3600, 2
      %v3603 = vrot.slane %v3152, 7
      %v3604 = vsel %vm831, %v3602, %v3603
      %v3605 = vrot.slane %v3603, 2
      %v3606 = vrot.slane %v3160, 7
      %v3607 = vsel %vm831, %v3605, %v3606
      %v3608 = vrot.slane %v3606, 2
      %v3609 = vrot.slane %v3168, 7
      %v3610 = vsel %vm831, %v3608, %v3609
      %v3611 = vrot.slane %v3609, 2
      %v3612 = vrot.slane %v3167, 7
      %v3613 = vsel %vm831, %v3611, %v3612
      %v3614 = vrot.slane %v3612, 2
      %v3615 = vrot.slane %v3594, 7
      %v3616 = vsel %vm831, %v3614, %v3615
      %v3617 = vcombine.low %v857, %v860
      %v3618 = vcombine.low %v863, %v866
      %v3620 = vunpack.c.l.s4 1983009808
      %v3621 = vunpack.c.0.s8 %v3620
      %v3622 = vlaneseq
      %v3623 = vshrl.u32 %v3622, 7
      %v3624 = vsub.s32 %v3621, %v3623
      %v3625 = vrot.slane %v3617, %v3624
      %v3627 = vunpack.c.l.s4 1983009808
      %v3628 = vunpack.c.0.s8 %v3627
      %v3629 = vlaneseq
      %v3630 = vshrl.u32 %v3629, 7
      %v3631 = vsub.s32 %v3628, %v3630
      %v3632 = vrot.slane %v3618, %v3631
      %v3633 = vcombine.low %v3625, %v3632
      %v3634 = vcombine.low %v869, %v872
      %v3635 = vcombine.low %v875, %v879
      %v3637 = vunpack.c.l.s4 1983009808
      %v3638 = vunpack.c.0.s8 %v3637
      %v3639 = vlaneseq
      %v3640 = vshrl.u32 %v3639, 7
      %v3641 = vsub.s32 %v3638, %v3640
      %v3642 = vrot.slane %v3634, %v3641
      %v3644 = vunpack.c.l.s4 1983009808
      %v3645 = vunpack.c.0.s8 %v3644
      %v3646 = vlaneseq
      %v3647 = vshrl.u32 %v3646, 7
      %v3648 = vsub.s32 %v3645, %v3647
      %v3649 = vrot.slane %v3635, %v3648
      %v3650 = vcombine.low %v3642, %v3649
      %v3651 = vcombine.low %v882, %v885
      %v3652 = vcombine.low %v888, %v891
      %v3654 = vunpack.c.l.s4 1983009808
      %v3655 = vunpack.c.0.s8 %v3654
      %v3656 = vlaneseq
      %v3657 = vshrl.u32 %v3656, 7
      %v3658 = vsub.s32 %v3655, %v3657
      %v3659 = vrot.slane %v3651, %v3658
      %v3661 = vunpack.c.l.s4 1983009808
      %v3662 = vunpack.c.0.s8 %v3661
      %v3663 = vlaneseq
      %v3664 = vshrl.u32 %v3663, 7
      %v3665 = vsub.s32 %v3662, %v3664
      %v3666 = vrot.slane %v3652, %v3665
      %v3667 = vcombine.low %v3659, %v3666
      %v3668 = vcombine.low %v894, %v897
      %v3669 = vcombine.low %v901, %v904
      %v3671 = vunpack.c.l.s4 1983009808
      %v3672 = vunpack.c.0.s8 %v3671
      %v3673 = vlaneseq
      %v3674 = vshrl.u32 %v3673, 7
      %v3675 = vsub.s32 %v3672, %v3674
      %v3676 = vrot.slane %v3668, %v3675
      %v3678 = vunpack.c.l.s4 1983009808
      %v3679 = vunpack.c.0.s8 %v3678
      %v3680 = vlaneseq
      %v3681 = vshrl.u32 %v3680, 7
      %v3682 = vsub.s32 %v3679, %v3681
      %v3683 = vrot.slane %v3669, %v3682
      %v3684 = vcombine.low %v3676, %v3683
      %v3685 = vcombine.low %v907, %v910
      %v3686 = vcombine.low %v913, %v916
      %v3688 = vunpack.c.l.s4 1983009808
      %v3689 = vunpack.c.0.s8 %v3688
      %v3690 = vlaneseq
      %v3691 = vshrl.u32 %v3690, 7
      %v3692 = vsub.s32 %v3689, %v3691
      %v3693 = vrot.slane %v3685, %v3692
      %v3695 = vunpack.c.l.s4 1983009808
      %v3696 = vunpack.c.0.s8 %v3695
      %v3697 = vlaneseq
      %v3698 = vshrl.u32 %v3697, 7
      %v3699 = vsub.s32 %v3696, %v3698
      %v3700 = vrot.slane %v3686, %v3699
      %v3701 = vcombine.low %v3693, %v3700
      %v3702 = vcombine.low %v919, %v923
      %v3703 = vcombine.low %v926, %v929
      %v3705 = vunpack.c.l.s4 1983009808
      %v3706 = vunpack.c.0.s8 %v3705
      %v3707 = vlaneseq
      %v3708 = vshrl.u32 %v3707, 7
      %v3709 = vsub.s32 %v3706, %v3708
      %v3710 = vrot.slane %v3702, %v3709
      %v3712 = vunpack.c.l.s4 1983009808
      %v3713 = vunpack.c.0.s8 %v3712
      %v3714 = vlaneseq
      %v3715 = vshrl.u32 %v3714, 7
      %v3716 = vsub.s32 %v3713, %v3715
      %v3717 = vrot.slane %v3703, %v3716
      %v3718 = vcombine.low %v3710, %v3717
      %v3719 = vcombine.low %v932, %v935
      %v3720 = vcombine.low %v938, %v941
      %v3722 = vunpack.c.l.s4 1983009808
      %v3723 = vunpack.c.0.s8 %v3722
      %v3724 = vlaneseq
      %v3725 = vshrl.u32 %v3724, 7
      %v3726 = vsub.s32 %v3723, %v3725
      %v3727 = vrot.slane %v3719, %v3726
      %v3729 = vunpack.c.l.s4 1983009808
      %v3730 = vunpack.c.0.s8 %v3729
      %v3731 = vlaneseq
      %v3732 = vshrl.u32 %v3731, 7
      %v3733 = vsub.s32 %v3730, %v3732
      %v3734 = vrot.slane %v3720, %v3733
      %v3735 = vcombine.low %v3727, %v3734
      %v3736 = vcombine.low %v945, %v948
      %v3737 = vcombine.low %v951, %v954
      %v3739 = vunpack.c.l.s4 1983009808
      %v3740 = vunpack.c.0.s8 %v3739
      %v3741 = vlaneseq
      %v3742 = vshrl.u32 %v3741, 7
      %v3743 = vsub.s32 %v3740, %v3742
      %v3744 = vrot.slane %v3736, %v3743
      %v3746 = vunpack.c.l.s4 1983009808
      %v3747 = vunpack.c.0.s8 %v3746
      %v3748 = vlaneseq
      %v3749 = vshrl.u32 %v3748, 7
      %v3750 = vsub.s32 %v3747, %v3749
      %v3751 = vrot.slane %v3737, %v3750
      %v3752 = vcombine.low %v3744, %v3751
      %v3753 = vcombine.low %v957, %v960
      %v3754 = vcombine.low %v963, %v967
      %v3756 = vunpack.c.l.s4 1983009808
      %v3757 = vunpack.c.0.s8 %v3756
      %v3758 = vlaneseq
      %v3759 = vshrl.u32 %v3758, 7
      %v3760 = vsub.s32 %v3757, %v3759
      %v3761 = vrot.slane %v3753, %v3760
      %v3763 = vunpack.c.l.s4 1983009808
      %v3764 = vunpack.c.0.s8 %v3763
      %v3765 = vlaneseq
      %v3766 = vshrl.u32 %v3765, 7
      %v3767 = vsub.s32 %v3764, %v3766
      %v3768 = vrot.slane %v3754, %v3767
      %v3769 = vcombine.low %v3761, %v3768
      %v3770 = vcombine.low %v970, %v973
      %v3771 = vcombine.low %v976, %v979
      %v3773 = vunpack.c.l.s4 1983009808
      %v3774 = vunpack.c.0.s8 %v3773
      %v3775 = vlaneseq
      %v3776 = vshrl.u32 %v3775, 7
      %v3777 = vsub.s32 %v3774, %v3776
      %v3778 = vrot.slane %v3770, %v3777
      %v3780 = vunpack.c.l.s4 1983009808
      %v3781 = vunpack.c.0.s8 %v3780
      %v3782 = vlaneseq
      %v3783 = vshrl.u32 %v3782, 7
      %v3784 = vsub.s32 %v3781, %v3783
      %v3785 = vrot.slane %v3771, %v3784
      %v3786 = vcombine.low %v3778, %v3785
      %v3787 = vcombine.low %v982, %v985
      %v3788 = vcombine.low %v989, %v992
      %v3790 = vunpack.c.l.s4 1983009808
      %v3791 = vunpack.c.0.s8 %v3790
      %v3792 = vlaneseq
      %v3793 = vshrl.u32 %v3792, 7
      %v3794 = vsub.s32 %v3791, %v3793
      %v3795 = vrot.slane %v3787, %v3794
      %v3797 = vunpack.c.l.s4 1983009808
      %v3798 = vunpack.c.0.s8 %v3797
      %v3799 = vlaneseq
      %v3800 = vshrl.u32 %v3799, 7
      %v3801 = vsub.s32 %v3798, %v3800
      %v3802 = vrot.slane %v3788, %v3801
      %v3803 = vcombine.low %v3795, %v3802
      %v3804 = vcombine.low %v995, %v998
      %v3805 = vcombine.low %v1001, %v1004
      %v3807 = vunpack.c.l.s4 1983009808
      %v3808 = vunpack.c.0.s8 %v3807
      %v3809 = vlaneseq
      %v3810 = vshrl.u32 %v3809, 7
      %v3811 = vsub.s32 %v3808, %v3810
      %v3812 = vrot.slane %v3804, %v3811
      %v3814 = vunpack.c.l.s4 1983009808
      %v3815 = vunpack.c.0.s8 %v3814
      %v3816 = vlaneseq
      %v3817 = vshrl.u32 %v3816, 7
      %v3818 = vsub.s32 %v3815, %v3817
      %v3819 = vrot.slane %v3805, %v3818
      %v3820 = vcombine.low %v3812, %v3819
      %v3821 = vcombine.low %v1007, %v1011
      %v3822 = vcombine.low %v1014, %v1017
      %v3824 = vunpack.c.l.s4 1983009808
      %v3825 = vunpack.c.0.s8 %v3824
      %v3826 = vlaneseq
      %v3827 = vshrl.u32 %v3826, 7
      %v3828 = vsub.s32 %v3825, %v3827
      %v3829 = vrot.slane %v3821, %v3828
      %v3831 = vunpack.c.l.s4 1983009808
      %v3832 = vunpack.c.0.s8 %v3831
      %v3833 = vlaneseq
      %v3834 = vshrl.u32 %v3833, 7
      %v3835 = vsub.s32 %v3832, %v3834
      %v3836 = vrot.slane %v3822, %v3835
      %v3837 = vcombine.low %v3829, %v3836
      %v3838 = vcombine.low %v1020, %v1023
      %v3839 = vcombine.low %v1026, %v1029
      %v3841 = vunpack.c.l.s4 1983009808
      %v3842 = vunpack.c.0.s8 %v3841
      %v3843 = vlaneseq
      %v3844 = vshrl.u32 %v3843, 7
      %v3845 = vsub.s32 %v3842, %v3844
      %v3846 = vrot.slane %v3838, %v3845
      %v3848 = vunpack.c.l.s4 1983009808
      %v3849 = vunpack.c.0.s8 %v3848
      %v3850 = vlaneseq
      %v3851 = vshrl.u32 %v3850, 7
      %v3852 = vsub.s32 %v3849, %v3851
      %v3853 = vrot.slane %v3839, %v3852
      %v3854 = vcombine.low %v3846, %v3853
      %v3855 = vcombine.low %v1033, %v1036
      %v3856 = vcombine.low %v1039, %v1042
      %v3858 = vunpack.c.l.s4 1983009808
      %v3859 = vunpack.c.0.s8 %v3858
      %v3860 = vlaneseq
      %v3861 = vshrl.u32 %v3860, 7
      %v3862 = vsub.s32 %v3859, %v3861
      %v3863 = vrot.slane %v3855, %v3862
      %v3865 = vunpack.c.l.s4 1983009808
      %v3866 = vunpack.c.0.s8 %v3865
      %v3867 = vlaneseq
      %v3868 = vshrl.u32 %v3867, 7
      %v3869 = vsub.s32 %v3866, %v3868
      %v3870 = vrot.slane %v3856, %v3869
      %v3871 = vcombine.low %v3863, %v3870
      %v3872 = vcombine.low %v1045, %v1048
      %v3873 = vcombine.low %v1051, %v1055
      %v3875 = vunpack.c.l.s4 1983009808
      %v3876 = vunpack.c.0.s8 %v3875
      %v3877 = vlaneseq
      %v3878 = vshrl.u32 %v3877, 7
      %v3879 = vsub.s32 %v3876, %v3878
      %v3880 = vrot.slane %v3872, %v3879
      %v3882 = vunpack.c.l.s4 1983009808
      %v3883 = vunpack.c.0.s8 %v3882
      %v3884 = vlaneseq
      %v3885 = vshrl.u32 %v3884, 7
      %v3886 = vsub.s32 %v3883, %v3885
      %v3887 = vrot.slane %v3873, %v3886
      %v3888 = vcombine.low %v3880, %v3887
      %v3889 = vcombine.low %v1058, %v1061
      %v3890 = vcombine.low %v1064, %v1067
      %v3892 = vunpack.c.l.s4 1983009808
      %v3893 = vunpack.c.0.s8 %v3892
      %v3894 = vlaneseq
      %v3895 = vshrl.u32 %v3894, 7
      %v3896 = vsub.s32 %v3893, %v3895
      %v3897 = vrot.slane %v3889, %v3896
      %v3899 = vunpack.c.l.s4 1983009808
      %v3900 = vunpack.c.0.s8 %v3899
      %v3901 = vlaneseq
      %v3902 = vshrl.u32 %v3901, 7
      %v3903 = vsub.s32 %v3900, %v3902
      %v3904 = vrot.slane %v3890, %v3903
      %v3905 = vcombine.low %v3897, %v3904
      %v3906 = vcombine.low %v1070, %v1073
      %v3907 = vcombine.low %v1077, %v1080
      %v3909 = vunpack.c.l.s4 1983009808
      %v3910 = vunpack.c.0.s8 %v3909
      %v3911 = vlaneseq
      %v3912 = vshrl.u32 %v3911, 7
      %v3913 = vsub.s32 %v3910, %v3912
      %v3914 = vrot.slane %v3906, %v3913
      %v3916 = vunpack.c.l.s4 1983009808
      %v3917 = vunpack.c.0.s8 %v3916
      %v3918 = vlaneseq
      %v3919 = vshrl.u32 %v3918, 7
      %v3920 = vsub.s32 %v3917, %v3919
      %v3921 = vrot.slane %v3907, %v3920
      %v3922 = vcombine.low %v3914, %v3921
      %v3923 = vcombine.low %v1083, %v1086
      %v3924 = vcombine.low %v1089, %v1092
      %v3926 = vunpack.c.l.s4 1983009808
      %v3927 = vunpack.c.0.s8 %v3926
      %v3928 = vlaneseq
      %v3929 = vshrl.u32 %v3928, 7
      %v3930 = vsub.s32 %v3927, %v3929
      %v3931 = vrot.slane %v3923, %v3930
      %v3933 = vunpack.c.l.s4 1983009808
      %v3934 = vunpack.c.0.s8 %v3933
      %v3935 = vlaneseq
      %v3936 = vshrl.u32 %v3935, 7
      %v3937 = vsub.s32 %v3934, %v3936
      %v3938 = vrot.slane %v3924, %v3937
      %v3939 = vcombine.low %v3931, %v3938
      %v3940 = vcombine.low %v1095, %v1099
      %v3941 = vcombine.low %v1102, %v1105
      %v3943 = vunpack.c.l.s4 1983009808
      %v3944 = vunpack.c.0.s8 %v3943
      %v3945 = vlaneseq
      %v3946 = vshrl.u32 %v3945, 7
      %v3947 = vsub.s32 %v3944, %v3946
      %v3948 = vrot.slane %v3940, %v3947
      %v3950 = vunpack.c.l.s4 1983009808
      %v3951 = vunpack.c.0.s8 %v3950
      %v3952 = vlaneseq
      %v3953 = vshrl.u32 %v3952, 7
      %v3954 = vsub.s32 %v3951, %v3953
      %v3955 = vrot.slane %v3941, %v3954
      %v3956 = vcombine.low %v3948, %v3955
      %v3957 = vcombine.low %v1108, %v1111
      %v3958 = vcombine.low %v1114, %v1117
      %v3960 = vunpack.c.l.s4 1983009808
      %v3961 = vunpack.c.0.s8 %v3960
      %v3962 = vlaneseq
      %v3963 = vshrl.u32 %v3962, 7
      %v3964 = vsub.s32 %v3961, %v3963
      %v3965 = vrot.slane %v3957, %v3964
      %v3967 = vunpack.c.l.s4 1983009808
      %v3968 = vunpack.c.0.s8 %v3967
      %v3969 = vlaneseq
      %v3970 = vshrl.u32 %v3969, 7
      %v3971 = vsub.s32 %v3968, %v3970
      %v3972 = vrot.slane %v3958, %v3971
      %v3973 = vcombine.low %v3965, %v3972
      %v3974 = vcombine.low %v1121, %v1124
      %v3975 = vcombine.low %v1127, %v1130
      %v3977 = vunpack.c.l.s4 1983009808
      %v3978 = vunpack.c.0.s8 %v3977
      %v3979 = vlaneseq
      %v3980 = vshrl.u32 %v3979, 7
      %v3981 = vsub.s32 %v3978, %v3980
      %v3982 = vrot.slane %v3974, %v3981
      %v3984 = vunpack.c.l.s4 1983009808
      %v3985 = vunpack.c.0.s8 %v3984
      %v3986 = vlaneseq
      %v3987 = vshrl.u32 %v3986, 7
      %v3988 = vsub.s32 %v3985, %v3987
      %v3989 = vrot.slane %v3975, %v3988
      %v3990 = vcombine.low %v3982, %v3989
      %v3991 = vcombine.low %v1133, %v1136
      %v3992 = vcombine.low %v1139, %v3598
      %v3994 = vunpack.c.l.s4 1983009808
      %v3995 = vunpack.c.0.s8 %v3994
      %v3996 = vlaneseq
      %v3997 = vshrl.u32 %v3996, 7
      %v3998 = vsub.s32 %v3995, %v3997
      %v3999 = vrot.slane %v3991, %v3998
      %v4001 = vunpack.c.l.s4 1983009808
      %v4002 = vunpack.c.0.s8 %v4001
      %v4003 = vlaneseq
      %v4004 = vshrl.u32 %v4003, 7
      %v4005 = vsub.s32 %v4002, %v4004
      %v4006 = vrot.slane %v3992, %v4005
      %v4007 = vcombine.low %v3999, %v4006
      %v4008 = vcombine.low %v3601, %v3604
      %v4009 = vcombine.low %v3607, %v3610
      %v4011 = vunpack.c.l.s4 1983009808
      %v4012 = vunpack.c.0.s8 %v4011
      %v4013 = vlaneseq
      %v4014 = vshrl.u32 %v4013, 7
      %v4015 = vsub.s32 %v4012, %v4014
      %v4016 = vrot.slane %v4008, %v4015
      %v4018 = vunpack.c.l.s4 1983009808
      %v4019 = vunpack.c.0.s8 %v4018
      %v4020 = vlaneseq
      %v4021 = vshrl.u32 %v4020, 7
      %v4022 = vsub.s32 %v4019, %v4021
      %v4023 = vrot.slane %v4009, %v4022
      %v4024 = vcombine.low %v4016, %v4023
      %v4025 = vcombine.low %v3613, %v3616
      %v4027 = vunpack.c.l.s4 1983009808
      %v4028 = vunpack.c.0.s8 %v4027
      %v4029 = vlaneseq
      %v4030 = vshrl.u32 %v4029, 7
      %v4031 = vsub.s32 %v4028, %v4030
      %v4032 = vrot.slane %v4025, %v4031
      %v4033 = vsel %vm1556, %v3633, 0
      %v4035 = vsel %vm1556, %v3650, 0
      %v4037 = vsel %vm1556, %v3667, 0
      %v4039 = vsel %vm1556, %v3684, 0
      %v4041 = vsel %vm1556, %v3701, 0
      %v4043 = vsel %vm1556, %v3718, 0
      %v4045 = vsel %vm1556, %v3735, 0
      %v4047 = vsel %vm1556, %v3752, 0
      %v4049 = vsel %vm1556, %v3769, 0
      %v4051 = vsel %vm1556, %v3786, 0
      %v4053 = vsel %vm1556, %v3803, 0
      %v4055 = vsel %vm1556, %v3820, 0
      %v4057 = vsel %vm1556, %v3837, 0
      %v4059 = vsel %vm1556, %v3854, 0
      %v4061 = vsel %vm1556, %v3871, 0
      %v4063 = vsel %vm1556, %v3888, 0
      %v4065 = vsel %vm1556, %v3905, 0
      %v4067 = vsel %vm1556, %v3922, 0
      %v4069 = vsel %vm1556, %v3939, 0
      %v4071 = vsel %vm1556, %v3956, 0
      %v4073 = vsel %vm1556, %v3973, 0
      %v4075 = vsel %vm1556, %v3990, 0
      %v4077 = vsel %vm1556, %v4007, 0
      %v4079 = vsel %vm1556, %v4024, 0
      %v4081 = vsel %vm1556, %v4032, 0
      %4083 = vmatprep.subr.mxu0 0.0
      %4084 = vmatpush1.msra.mxu0 %v283
      %4085 = vmatprep.subr.mxu0 0.0
      %4086 = vmatpush1.msra.mxu0 0.0
      %4087 = vmatprep.subr.mxu0 0.0
      %4088 = vmatpush1.msra.mxu0 0.0
      %4089 = vmatprep.subr.mxu0 0.0
      %4090 = vmatpush1.msra.mxu0 0.0
      %4091 = vmatprep.subr.mxu0 0.0
      %4092 = vmatpush1.msra.mxu0 0.0
      %4093 = vmatprep.subr.mxu0 0.0
      %4094 = vmatpush1.msra.mxu0 0.0
      %4095 = vmatprep.subr.mxu0 0.0
      %4096 = vmatpush1.msra.mxu0 0.0
      %4097 = vmatprep.subr.mxu0 0.0
      %4098 = vmatpush1.msra.mxu0 0.0
      %4099 = vmatprep.subr.mxu0 0.0
      %4100 = vmatpush1.msra.mxu0 0.0
      %4101 = vmatprep.subr.mxu0 0.0
      %4102 = vmatpush1.msra.mxu0 0.0
      %4103 = vmatprep.subr.mxu0 0.0
      %4104 = vmatpush1.msra.mxu0 0.0
      %4105 = vmatprep.subr.mxu0 0.0
      %4106 = vmatpush1.msra.mxu0 0.0
      %4107 = vmatprep.subr.mxu0 0.0
      %4108 = vmatpush1.msra.mxu0 0.0
      %4109 = vmatprep.subr.mxu0 0.0
      %4110 = vmatpush1.msra.mxu0 0.0
      %4111 = vmatprep.subr.mxu0 0.0
      %4112 = vmatpush1.msra.mxu0 0.0
      %4113 = vmatprep.subr.mxu0 0.0
      %4114 = vmatpush1.msra.mxu0 0.0
      %4115 = vmatprep.subr.mxu0 0.0
      %4116 = vmatpush1.msra.mxu0 0.0
      %4117 = vmatprep.subr.mxu0 0.0
      %4118 = vmatpush1.msra.mxu0 0.0
      %4119 = vmatprep.subr.mxu0 0.0
      %4120 = vmatpush1.msra.mxu0 0.0
      %4121 = vmatprep.subr.mxu0 0.0
      %4122 = vmatpush1.msra.mxu0 0.0
      %4123 = vmatprep.subr.mxu0 0.0
      %4124 = vmatpush1.msra.mxu0 0.0
      %4125 = vmatprep.subr.mxu0 0.0
      %4126 = vmatpush1.msra.mxu0 0.0
      %4127 = vmatprep.subr.mxu0 0.0
      %4128 = vmatpush1.msra.mxu0 0.0
      %4129 = vmatprep.subr.mxu0 0.0
      %4130 = vmatpush1.msra.mxu0 0.0
      %4131 = vmatprep.subr.mxu0 0.0
      %4132 = vmatpush1.msra.mxu0 0.0
      %4133 = vmatprep.subr.mxu0 0.0
      %4134 = vmatpush1.msra.mxu0 0.0
      %4135 = vmatprep.subr.mxu0 0.0
      %4136 = vmatpush1.msra.mxu0 0.0
      %4137 = vmatprep.subr.mxu0 0.0
      %4138 = vmatpush1.msra.mxu0 0.0
      %4139 = vmatprep.subr.mxu0 0.0
      %4140 = vmatpush1.msra.mxu0 0.0
      %4141 = vmatprep.subr.mxu0 0.0
      %4142 = vmatpush1.msra.mxu0 0.0
      %4143 = vmatprep.subr.mxu0 0.0
      %4144 = vmatpush1.msra.mxu0 0.0
      %4145 = vmatprep.subr.mxu0 0.0
      %4146 = vmatpush1.msra.mxu0 0.0
      %4147 = vmatprep.mubr.f32.mxu0 0.0
      %4148 = vmatmul.mubr.f32.gmra.mrb[0].mxu0 %v4033
      %v4149 = vpop.f32.mrb[0].mxu0
      %v4150 = vadd.f32 0.0, %v4149
      %v4151 = vpop.f32.mrb[0].mxu0
      %4152 = vmatprep.mubr.f32.mxu0 0.0
      %4153 = vmatmul.mubr.f32.gmra.mrb[0].mxu0 %v4035
      %v4154 = vpop.f32.mrb[0].mxu0
      %v4155 = vadd.f32 0.0, %v4154
      %v4156 = vpop.f32.mrb[0].mxu0
      %4157 = vmatprep.mubr.f32.mxu0 0.0
      %4158 = vmatmul.mubr.f32.gmra.mrb[0].mxu0 %v4037
      %v4159 = vpop.f32.mrb[0].mxu0
      %v4160 = vadd.f32 0.0, %v4159
      %v4161 = vpop.f32.mrb[0].mxu0
      %4162 = vmatprep.mubr.f32.mxu0 0.0
      %4163 = vmatmul.mubr.f32.gmra.mrb[0].mxu0 %v4039
      %v4164 = vpop.f32.mrb[0].mxu0
      %v4165 = vadd.f32 0.0, %v4164
      %v4166 = vpop.f32.mrb[0].mxu0
      %4167 = vmatprep.mubr.f32.mxu0 0.0
      %4168 = vmatmul.mubr.f32.gmra.mrb[0].mxu0 %v4041
      %v4169 = vpop.f32.mrb[0].mxu0
      %v4170 = vadd.f32 0.0, %v4169
      %v4171 = vpop.f32.mrb[0].mxu0
      %4172 = vmatprep.mubr.f32.mxu0 0.0
      %4173 = vmatmul.mubr.f32.gmra.mrb[0].mxu0 %v4043
      %v4174 = vpop.f32.mrb[0].mxu0
      %v4175 = vadd.f32 0.0, %v4174
      %v4176 = vpop.f32.mrb[0].mxu0
      %4177 = vmatprep.mubr.f32.mxu0 0.0
      %4178 = vmatmul.mubr.f32.gmra.mrb[0].mxu0 %v4045
      %v4179 = vpop.f32.mrb[0].mxu0
      %v4180 = vadd.f32 0.0, %v4179
      %v4181 = vpop.f32.mrb[0].mxu0
      %4182 = vmatprep.mubr.f32.mxu0 0.0
      %4183 = vmatmul.mubr.f32.gmra.mrb[0].mxu0 %v4047
      %v4184 = vpop.f32.mrb[0].mxu0
      %v4185 = vadd.f32 0.0, %v4184
      %v4186 = vpop.f32.mrb[0].mxu0
      %4187 = vmatprep.mubr.f32.mxu0 0.0
      %4188 = vmatmul.mubr.f32.gmra.mrb[0].mxu0 %v4049
      %v4189 = vpop.f32.mrb[0].mxu0
      %v4190 = vadd.f32 0.0, %v4189
      %v4191 = vpop.f32.mrb[0].mxu0
      %4192 = vmatprep.mubr.f32.mxu0 0.0
      %4193 = vmatmul.mubr.f32.gmra.mrb[0].mxu0 %v4051
      %v4194 = vpop.f32.mrb[0].mxu0
      %v4195 = vadd.f32 0.0, %v4194
      %v4196 = vpop.f32.mrb[0].mxu0
      %4197 = vmatprep.mubr.f32.mxu0 0.0
      %4198 = vmatmul.mubr.f32.gmra.mrb[0].mxu0 %v4053
      %v4199 = vpop.f32.mrb[0].mxu0
      %v4200 = vadd.f32 0.0, %v4199
      %v4201 = vpop.f32.mrb[0].mxu0
      %4202 = vmatprep.mubr.f32.mxu0 0.0
      %4203 = vmatmul.mubr.f32.gmra.mrb[0].mxu0 %v4055
      %v4204 = vpop.f32.mrb[0].mxu0
      %v4205 = vadd.f32 0.0, %v4204
      %v4206 = vpop.f32.mrb[0].mxu0
      %4207 = vmatprep.mubr.f32.mxu0 0.0
      %4208 = vmatmul.mubr.f32.gmra.mrb[0].mxu0 %v4057
      %v4209 = vpop.f32.mrb[0].mxu0
      %v4210 = vadd.f32 0.0, %v4209
      %v4211 = vpop.f32.mrb[0].mxu0
      %4212 = vmatprep.mubr.f32.mxu0 0.0
      %4213 = vmatmul.mubr.f32.gmra.mrb[0].mxu0 %v4059
      %v4214 = vpop.f32.mrb[0].mxu0
      %v4215 = vadd.f32 0.0, %v4214
      %v4216 = vpop.f32.mrb[0].mxu0
      %4217 = vmatprep.mubr.f32.mxu0 0.0
      %4218 = vmatmul.mubr.f32.gmra.mrb[0].mxu0 %v4061
      %v4219 = vpop.f32.mrb[0].mxu0
      %v4220 = vadd.f32 0.0, %v4219
      %v4221 = vpop.f32.mrb[0].mxu0
      %4222 = vmatprep.mubr.f32.mxu0 0.0
      %4223 = vmatmul.mubr.f32.gmra.mrb[0].mxu0 %v4063
      %v4224 = vpop.f32.mrb[0].mxu0
      %v4225 = vadd.f32 0.0, %v4224
      %v4226 = vpop.f32.mrb[0].mxu0
      %4227 = vmatprep.mubr.f32.mxu0 0.0
      %4228 = vmatmul.mubr.f32.gmra.mrb[0].mxu0 %v4065
      %v4229 = vpop.f32.mrb[0].mxu0
      %v4230 = vadd.f32 0.0, %v4229
      %v4231 = vpop.f32.mrb[0].mxu0
      %4232 = vmatprep.mubr.f32.mxu0 0.0
      %4233 = vmatmul.mubr.f32.gmra.mrb[0].mxu0 %v4067
      %v4234 = vpop.f32.mrb[0].mxu0
      %v4235 = vadd.f32 0.0, %v4234
      %v4236 = vpop.f32.mrb[0].mxu0
      %4237 = vmatprep.mubr.f32.mxu0 0.0
      %4238 = vmatmul.mubr.f32.gmra.mrb[0].mxu0 %v4069
      %v4239 = vpop.f32.mrb[0].mxu0
      %v4240 = vadd.f32 0.0, %v4239
      %v4241 = vpop.f32.mrb[0].mxu0
      %4242 = vmatprep.mubr.f32.mxu0 0.0
      %4243 = vmatmul.mubr.f32.gmra.mrb[0].mxu0 %v4071
      %v4244 = vpop.f32.mrb[0].mxu0
      %v4245 = vadd.f32 0.0, %v4244
      %v4246 = vpop.f32.mrb[0].mxu0
      %4247 = vmatprep.mubr.f32.mxu0 0.0
      %4248 = vmatmul.mubr.f32.gmra.mrb[0].mxu0 %v4073
      %v4249 = vpop.f32.mrb[0].mxu0
      %v4250 = vadd.f32 0.0, %v4249
      %v4251 = vpop.f32.mrb[0].mxu0
      %4252 = vmatprep.mubr.f32.mxu0 0.0
      %4253 = vmatmul.mubr.f32.gmra.mrb[0].mxu0 %v4075
      %v4254 = vpop.f32.mrb[0].mxu0
      %v4255 = vadd.f32 0.0, %v4254
      %v4256 = vpop.f32.mrb[0].mxu0
      %4257 = vmatprep.mubr.f32.mxu0 0.0
      %4258 = vmatmul.mubr.f32.gmra.mrb[0].mxu0 %v4077
      %v4259 = vpop.f32.mrb[0].mxu0
      %v4260 = vadd.f32 0.0, %v4259
      %v4261 = vpop.f32.mrb[0].mxu0
      %4262 = vmatprep.mubr.f32.mxu0 0.0
      %4263 = vmatmul.mubr.f32.gmra.mrb[0].mxu0 %v4079
      %v4264 = vpop.f32.mrb[0].mxu0
      %v4265 = vadd.f32 0.0, %v4264
      %v4266 = vpop.f32.mrb[0].mxu0
      %4267 = vmatprep.mubr.f32.mxu0 0.0
      %4268 = vmatmul.mubr.f32.gmra.mrb[0].mxu0 %v4081
      %v4269 = vpop.f32.mrb[0].mxu0
      %v4270 = vadd.f32 0.0, %v4269
      %v4271 = vpop.f32.mrb[0].mxu0
      %4272 = vdwg.mxu0
      %v4273 = vadd.f32 %v3569, %v4150
      %v4274 = vadd.f32 %v3570, %v4155
      %v4275 = vadd.f32 %v3571, %v4160
      %v4276 = vadd.f32 %v3572, %v4165
      %v4277 = vadd.f32 %v3573, %v4170
      %v4278 = vadd.f32 %v3574, %v4175
      %v4279 = vadd.f32 %v3575, %v4180
      %v4280 = vadd.f32 %v3576, %v4185
      %v4281 = vadd.f32 %v3577, %v4190
      %v4282 = vadd.f32 %v3578, %v4195
      %v4283 = vadd.f32 %v3579, %v4200
      %v4284 = vadd.f32 %v3580, %v4205
      %v4285 = vadd.f32 %v3581, %v4210
      %v4286 = vadd.f32 %v3582, %v4215
      %v4287 = vadd.f32 %v3583, %v4220
      %v4288 = vadd.f32 %v3584, %v4225
      %v4289 = vadd.f32 %v3585, %v4230
      %v4290 = vadd.f32 %v3586, %v4235
      %v4291 = vadd.f32 %v3587, %v4240
      %v4292 = vadd.f32 %v3588, %v4245
      %v4293 = vadd.f32 %v3589, %v4250
      %v4294 = vadd.f32 %v3590, %v4255
      %v4295 = vadd.f32 %v3591, %v4260
      %v4296 = vadd.f32 %v3592, %v4265
      %v4297 = vadd.f32 %v3593, %v4270
      %v4298 = vcombine.low %v812, %v430
      %v4300 = vunpack.c.l.s4 1983009808
      %v4301 = vunpack.c.0.s8 %v4300
      %v4302 = vlaneseq
      %v4303 = vshrl.u32 %v4302, 7
      %v4304 = vsub.s32 %v4301, %v4303
      %v4305 = vrot.slane %v4298, %v4304
      %v4306 = vcombine.low %v1856, %v4305
      %v4307 = vcombine.low %v446, %v813
      %v4309 = vunpack.c.l.s4 1983009808
      %v4310 = vunpack.c.0.s8 %v4309
      %v4311 = vlaneseq
      %v4312 = vshrl.u32 %v4311, 7
      %v4313 = vsub.s32 %v4310, %v4312
      %v4314 = vrot.slane %v4307, %v4313
      %v4315 = vcombine.low %v4314, %v1897
      %v4316 = vcombine.low %v814, %v496
      %v4318 = vunpack.c.l.s4 1983009808
      %v4319 = vunpack.c.0.s8 %v4318
      %v4320 = vlaneseq
      %v4321 = vshrl.u32 %v4320, 7
      %v4322 = vsub.s32 %v4319, %v4321
      %v4323 = vrot.slane %v4316, %v4322
      %v4324 = vcombine.low %v4323, %v1931
      %v4325 = vcombine.low %v512, %v815
      %v4327 = vunpack.c.l.s4 1983009808
      %v4328 = vunpack.c.0.s8 %v4327
      %v4329 = vlaneseq
      %v4330 = vshrl.u32 %v4329, 7
      %v4331 = vsub.s32 %v4328, %v4330
      %v4332 = vrot.slane %v4325, %v4331
      %v4333 = vcombine.low %v1941, %v4332
      %v4334 = vcombine.low %v816, %v562
      %v4336 = vunpack.c.l.s4 1983009808
      %v4337 = vunpack.c.0.s8 %v4336
      %v4338 = vlaneseq
      %v4339 = vshrl.u32 %v4338, 7
      %v4340 = vsub.s32 %v4337, %v4339
      %v4341 = vrot.slane %v4334, %v4340
      %v4342 = vcombine.low %v1975, %v4341
      %v4343 = vcombine.low %v578, %v817
      %v4345 = vunpack.c.l.s4 1983009808
      %v4346 = vunpack.c.0.s8 %v4345
      %v4347 = vlaneseq
      %v4348 = vshrl.u32 %v4347, 7
      %v4349 = vsub.s32 %v4346, %v4348
      %v4350 = vrot.slane %v4343, %v4349
      %v4351 = vcombine.low %v4350, %v2016
      %v4352 = vcombine.low %v818, %v628
      %v4354 = vunpack.c.l.s4 1983009808
      %v4355 = vunpack.c.0.s8 %v4354
      %v4356 = vlaneseq
      %v4357 = vshrl.u32 %v4356, 7
      %v4358 = vsub.s32 %v4355, %v4357
      %v4359 = vrot.slane %v4352, %v4358
      %v4360 = vcombine.low %v4359, %v2050
      %v4361 = vcombine.low %v644, %v819
      %v4363 = vunpack.c.l.s4 1983009808
      %v4364 = vunpack.c.0.s8 %v4363
      %v4365 = vlaneseq
      %v4366 = vshrl.u32 %v4365, 7
      %v4367 = vsub.s32 %v4364, %v4366
      %v4368 = vrot.slane %v4361, %v4367
      %v4369 = vcombine.low %v2060, %v4368
      %v4370 = vcombine.low %v820, %v694
      %v4372 = vunpack.c.l.s4 1983009808
      %v4373 = vunpack.c.0.s8 %v4372
      %v4374 = vlaneseq
      %v4375 = vshrl.u32 %v4374, 7
      %v4376 = vsub.s32 %v4373, %v4375
      %v4377 = vrot.slane %v4370, %v4376
      %v4378 = vcombine.low %v2094, %v4377
      %v4379 = vcombine.low %v710, %v821
      %v4381 = vunpack.c.l.s4 1983009808
      %v4382 = vunpack.c.0.s8 %v4381
      %v4383 = vlaneseq
      %v4384 = vshrl.u32 %v4383, 7
      %v4385 = vsub.s32 %v4382, %v4384
      %v4386 = vrot.slane %v4379, %v4385
      %v4387 = vcombine.low %v4386, %v2135
      %v4388 = vcombine.low %v822, %v760
      %v4390 = vunpack.c.l.s4 1983009808
      %v4391 = vunpack.c.0.s8 %v4390
      %v4392 = vlaneseq
      %v4393 = vshrl.u32 %v4392, 7
      %v4394 = vsub.s32 %v4391, %v4393
      %v4395 = vrot.slane %v4388, %v4394
      %v4396 = vcombine.low %v4395, %v2169
      %v4397 = vcombine.low %v776, %v823
      %v4399 = vunpack.c.l.s4 1983009808
      %v4400 = vunpack.c.0.s8 %v4399
      %v4401 = vlaneseq
      %v4402 = vshrl.u32 %v4401, 7
      %v4403 = vsub.s32 %v4400, %v4402
      %v4404 = vrot.slane %v4397, %v4403
      %v4405 = vcombine.low %v2179, %v4404
      %v4406 = vcombine.low %v824, %v3151
      %v4408 = vunpack.c.l.s4 1983009808
      %v4409 = vunpack.c.0.s8 %v4408
      %v4410 = vlaneseq
      %v4411 = vshrl.u32 %v4410, 7
      %v4412 = vsub.s32 %v4409, %v4411
      %v4413 = vrot.slane %v4406, %v4412
      %v4414 = vcombine.low %v2212, %v4413
      %v4415 = vcombine.low %v3150, %v3152
      %v4416 = vcombine.low %v3160, %v3168
      %v4418 = vunpack.c.l.s4 1983009808
      %v4419 = vunpack.c.0.s8 %v4418
      %v4420 = vlaneseq
      %v4421 = vshrl.u32 %v4420, 7
      %v4422 = vsub.s32 %v4419, %v4421
      %v4423 = vrot.slane %v4415, %v4422
      %v4425 = vunpack.c.l.s4 1983009808
      %v4426 = vunpack.c.0.s8 %v4425
      %v4427 = vlaneseq
      %v4428 = vshrl.u32 %v4427, 7
      %v4429 = vsub.s32 %v4426, %v4428
      %v4430 = vrot.slane %v4416, %v4429
      %v4431 = vcombine.low %v4423, %v4430
      %v4432 = vcombine.low %v3167, %v3594
      %v4434 = vunpack.c.l.s4 1983009808
      %v4435 = vunpack.c.0.s8 %v4434
      %v4436 = vlaneseq
      %v4437 = vshrl.u32 %v4436, 7
      %v4438 = vsub.s32 %v4435, %v4437
      %v4439 = vrot.slane %v4432, %v4438
      %v4440 = vsel %vm1556, %v4306, 0
      %v4442 = vsel %vm1556, %v4315, 0
      %v4444 = vsel %vm1556, %v4324, 0
      %v4446 = vsel %vm1556, %v4333, 0
      %v4448 = vsel %vm1556, %v4342, 0
      %v4450 = vsel %vm1556, %v4351, 0
      %v4452 = vsel %vm1556, %v4360, 0
      %v4454 = vsel %vm1556, %v4369, 0
      %v4456 = vsel %vm1556, %v4378, 0
      %v4458 = vsel %vm1556, %v4387, 0
      %v4460 = vsel %vm1556, %v4396, 0
      %v4462 = vsel %vm1556, %v4405, 0
      %v4464 = vsel %vm1556, %v4414, 0
      %v4466 = vsel %vm1556, %v4431, 0
      %v4468 = vsel %vm1556, %v4439, 0
      %4470 = vmatprep.subr.mxu0 0.0
      %4471 = vmatpush1.msra.mxu0 %v284
      %4472 = vmatprep.subr.mxu0 0.0
      %4473 = vmatpush1.msra.mxu0 0.0
      %4474 = vmatprep.subr.mxu0 0.0
      %4475 = vmatpush1.msra.mxu0 0.0
      %4476 = vmatprep.subr.mxu0 0.0
      %4477 = vmatpush1.msra.mxu0 0.0
      %4478 = vmatprep.subr.mxu0 0.0
      %4479 = vmatpush1.msra.mxu0 0.0
      %4480 = vmatprep.subr.mxu0 0.0
      %4481 = vmatpush1.msra.mxu0 0.0
      %4482 = vmatprep.subr.mxu0 0.0
      %4483 = vmatpush1.msra.mxu0 0.0
      %4484 = vmatprep.subr.mxu0 0.0
      %4485 = vmatpush1.msra.mxu0 0.0
      %4486 = vmatprep.subr.mxu0 0.0
      %4487 = vmatpush1.msra.mxu0 0.0
      %4488 = vmatprep.subr.mxu0 0.0
      %4489 = vmatpush1.msra.mxu0 0.0
      %4490 = vmatprep.subr.mxu0 0.0
      %4491 = vmatpush1.msra.mxu0 0.0
      %4492 = vmatprep.subr.mxu0 0.0
      %4493 = vmatpush1.msra.mxu0 0.0
      %4494 = vmatprep.subr.mxu0 0.0
      %4495 = vmatpush1.msra.mxu0 0.0
      %4496 = vmatprep.subr.mxu0 0.0
      %4497 = vmatpush1.msra.mxu0 0.0
      %4498 = vmatprep.subr.mxu0 0.0
      %4499 = vmatpush1.msra.mxu0 0.0
      %4500 = vmatprep.subr.mxu0 0.0
      %4501 = vmatpush1.msra.mxu0 0.0
      %4502 = vmatprep.subr.mxu0 0.0
      %4503 = vmatpush1.msra.mxu0 0.0
      %4504 = vmatprep.subr.mxu0 0.0
      %4505 = vmatpush1.msra.mxu0 0.0
      %4506 = vmatprep.subr.mxu0 0.0
      %4507 = vmatpush1.msra.mxu0 0.0
      %4508 = vmatprep.subr.mxu0 0.0
      %4509 = vmatpush1.msra.mxu0 0.0
      %4510 = vmatprep.subr.mxu0 0.0
      %4511 = vmatpush1.msra.mxu0 0.0
      %4512 = vmatprep.subr.mxu0 0.0
      %4513 = vmatpush1.msra.mxu0 0.0
      %4514 = vmatprep.subr.mxu0 0.0
      %4515 = vmatpush1.msra.mxu0 0.0
      %4516 = vmatprep.subr.mxu0 0.0
      %4517 = vmatpush1.msra.mxu0 0.0
      %4518 = vmatprep.subr.mxu0 0.0
      %4519 = vmatpush1.msra.mxu0 0.0
      %4520 = vmatprep.subr.mxu0 0.0
      %4521 = vmatpush1.msra.mxu0 0.0
      %4522 = vmatprep.subr.mxu0 0.0
      %4523 = vmatpush1.msra.mxu0 0.0
      %4524 = vmatprep.subr.mxu0 0.0
      %4525 = vmatpush1.msra.mxu0 0.0
      %4526 = vmatprep.subr.mxu0 0.0
      %4527 = vmatpush1.msra.mxu0 0.0
      %4528 = vmatprep.subr.mxu0 0.0
      %4529 = vmatpush1.msra.mxu0 0.0
      %4530 = vmatprep.subr.mxu0 0.0
      %4531 = vmatpush1.msra.mxu0 0.0
      %4532 = vmatprep.subr.mxu0 0.0
      %4533 = vmatpush1.msra.mxu0 0.0
      %4534 = vmatprep.mubr.f32.mxu0 0.0
      %4535 = vmatmul.mubr.f32.gmra.mrb[0].mxu0 %v2217
      %v4536 = vpop.f32.mrb[0].mxu0
      %v4537 = vadd.f32 0.0, %v4536
      %v4538 = vpop.f32.mrb[0].mxu0
      %4539 = vmatprep.mubr.f32.mxu0 0.0
      %4540 = vmatmul.mubr.f32.gmra.mrb[0].mxu0 %v4440
      %v4541 = vpop.f32.mrb[0].mxu0
      %v4542 = vadd.f32 0.0, %v4541
      %v4543 = vpop.f32.mrb[0].mxu0
      %4544 = vmatprep.mubr.f32.mxu0 0.0
      %4545 = vmatmul.mubr.f32.gmra.mrb[0].mxu0 %v2221
      %v4546 = vpop.f32.mrb[0].mxu0
      %v4547 = vadd.f32 0.0, %v4546
      %v4548 = vpop.f32.mrb[0].mxu0
      %4549 = vmatprep.mubr.f32.mxu0 0.0
      %4550 = vmatmul.mubr.f32.gmra.mrb[0].mxu0 %v4442
      %v4551 = vpop.f32.mrb[0].mxu0
      %v4552 = vadd.f32 0.0, %v4551
      %v4553 = vpop.f32.mrb[0].mxu0
      %4554 = vmatprep.mubr.f32.mxu0 0.0
      %4555 = vmatmul.mubr.f32.gmra.mrb[0].mxu0 %v2225
      %v4556 = vpop.f32.mrb[0].mxu0
      %v4557 = vadd.f32 0.0, %v4556
      %v4558 = vpop.f32.mrb[0].mxu0
      %4559 = vmatprep.mubr.f32.mxu0 0.0
      %4560 = vmatmul.mubr.f32.gmra.mrb[0].mxu0 %v4444
      %v4561 = vpop.f32.mrb[0].mxu0
      %v4562 = vadd.f32 0.0, %v4561
      %v4563 = vpop.f32.mrb[0].mxu0
      %4564 = vmatprep.mubr.f32.mxu0 0.0
      %4565 = vmatmul.mubr.f32.gmra.mrb[0].mxu0 %v4446
      %v4566 = vpop.f32.mrb[0].mxu0
      %v4567 = vadd.f32 0.0, %v4566
      %v4568 = vpop.f32.mrb[0].mxu0
      %4569 = vmatprep.mubr.f32.mxu0 0.0
      %4570 = vmatmul.mubr.f32.gmra.mrb[0].mxu0 %v2231
      %v4571 = vpop.f32.mrb[0].mxu0
      %v4572 = vadd.f32 0.0, %v4571
      %v4573 = vpop.f32.mrb[0].mxu0
      %4574 = vmatprep.mubr.f32.mxu0 0.0
      %4575 = vmatmul.mubr.f32.gmra.mrb[0].mxu0 %v4448
      %v4576 = vpop.f32.mrb[0].mxu0
      %v4577 = vadd.f32 0.0, %v4576
      %v4578 = vpop.f32.mrb[0].mxu0
      %4579 = vmatprep.mubr.f32.mxu0 0.0
      %4580 = vmatmul.mubr.f32.gmra.mrb[0].mxu0 %v2235
      %v4581 = vpop.f32.mrb[0].mxu0
      %v4582 = vadd.f32 0.0, %v4581
      %v4583 = vpop.f32.mrb[0].mxu0
      %4584 = vmatprep.mubr.f32.mxu0 0.0
      %4585 = vmatmul.mubr.f32.gmra.mrb[0].mxu0 %v4450
      %v4586 = vpop.f32.mrb[0].mxu0
      %v4587 = vadd.f32 0.0, %v4586
      %v4588 = vpop.f32.mrb[0].mxu0
      %4589 = vmatprep.mubr.f32.mxu0 0.0
      %4590 = vmatmul.mubr.f32.gmra.mrb[0].mxu0 %v2239
      %v4591 = vpop.f32.mrb[0].mxu0
      %v4592 = vadd.f32 0.0, %v4591
      %v4593 = vpop.f32.mrb[0].mxu0
      %4594 = vmatprep.mubr.f32.mxu0 0.0
      %4595 = vmatmul.mubr.f32.gmra.mrb[0].mxu0 %v4452
      %v4596 = vpop.f32.mrb[0].mxu0
      %v4597 = vadd.f32 0.0, %v4596
      %v4598 = vpop.f32.mrb[0].mxu0
      %4599 = vmatprep.mubr.f32.mxu0 0.0
      %4600 = vmatmul.mubr.f32.gmra.mrb[0].mxu0 %v4454
      %v4601 = vpop.f32.mrb[0].mxu0
      %v4602 = vadd.f32 0.0, %v4601
      %v4603 = vpop.f32.mrb[0].mxu0
      %4604 = vmatprep.mubr.f32.mxu0 0.0
      %4605 = vmatmul.mubr.f32.gmra.mrb[0].mxu0 %v2245
      %v4606 = vpop.f32.mrb[0].mxu0
      %v4607 = vadd.f32 0.0, %v4606
      %v4608 = vpop.f32.mrb[0].mxu0
      %4609 = vmatprep.mubr.f32.mxu0 0.0
      %4610 = vmatmul.mubr.f32.gmra.mrb[0].mxu0 %v4456
      %v4611 = vpop.f32.mrb[0].mxu0
      %v4612 = vadd.f32 0.0, %v4611
      %v4613 = vpop.f32.mrb[0].mxu0
      %4614 = vmatprep.mubr.f32.mxu0 0.0
      %4615 = vmatmul.mubr.f32.gmra.mrb[0].mxu0 %v2249
      %v4616 = vpop.f32.mrb[0].mxu0
      %v4617 = vadd.f32 0.0, %v4616
      %v4618 = vpop.f32.mrb[0].mxu0
      %4619 = vmatprep.mubr.f32.mxu0 0.0
      %4620 = vmatmul.mubr.f32.gmra.mrb[0].mxu0 %v4458
      %v4621 = vpop.f32.mrb[0].mxu0
      %v4622 = vadd.f32 0.0, %v4621
      %v4623 = vpop.f32.mrb[0].mxu0
      %4624 = vmatprep.mubr.f32.mxu0 0.0
      %4625 = vmatmul.mubr.f32.gmra.mrb[0].mxu0 %v2253
      %v4626 = vpop.f32.mrb[0].mxu0
      %v4627 = vadd.f32 0.0, %v4626
      %v4628 = vpop.f32.mrb[0].mxu0
      %4629 = vmatprep.mubr.f32.mxu0 0.0
      %4630 = vmatmul.mubr.f32.gmra.mrb[0].mxu0 %v4460
      %v4631 = vpop.f32.mrb[0].mxu0
      %v4632 = vadd.f32 0.0, %v4631
      %v4633 = vpop.f32.mrb[0].mxu0
      %4634 = vmatprep.mubr.f32.mxu0 0.0
      %4635 = vmatmul.mubr.f32.gmra.mrb[0].mxu0 %v4462
      %v4636 = vpop.f32.mrb[0].mxu0
      %v4637 = vadd.f32 0.0, %v4636
      %v4638 = vpop.f32.mrb[0].mxu0
      %4639 = vmatprep.mubr.f32.mxu0 0.0
      %4640 = vmatmul.mubr.f32.gmra.mrb[0].mxu0 %v2259
      %v4641 = vpop.f32.mrb[0].mxu0
      %v4642 = vadd.f32 0.0, %v4641
      %v4643 = vpop.f32.mrb[0].mxu0
      %4644 = vmatprep.mubr.f32.mxu0 0.0
      %4645 = vmatmul.mubr.f32.gmra.mrb[0].mxu0 %v4464
      %v4646 = vpop.f32.mrb[0].mxu0
      %v4647 = vadd.f32 0.0, %v4646
      %v4648 = vpop.f32.mrb[0].mxu0
      %4649 = vmatprep.mubr.f32.mxu0 0.0
      %4650 = vmatmul.mubr.f32.gmra.mrb[0].mxu0 %v4466
      %v4651 = vpop.f32.mrb[0].mxu0
      %v4652 = vadd.f32 0.0, %v4651
      %v4653 = vpop.f32.mrb[0].mxu0
      %4654 = vmatprep.mubr.f32.mxu0 0.0
      %4655 = vmatmul.mubr.f32.gmra.mrb[0].mxu0 %v4468
      %v4656 = vpop.f32.mrb[0].mxu0
      %v4657 = vadd.f32 0.0, %v4656
      %v4658 = vpop.f32.mrb[0].mxu0
      %4659 = vdwg.mxu0
      %v4660 = vadd.f32 %v4273, %v4537
      %v4661 = vadd.f32 %v4274, %v4542
      %v4662 = vadd.f32 %v4275, %v4547
      %v4663 = vadd.f32 %v4276, %v4552
      %v4664 = vadd.f32 %v4277, %v4557
      %v4665 = vadd.f32 %v4278, %v4562
      %v4666 = vadd.f32 %v4279, %v4567
      %v4667 = vadd.f32 %v4280, %v4572
      %v4668 = vadd.f32 %v4281, %v4577
      %v4669 = vadd.f32 %v4282, %v4582
      %v4670 = vadd.f32 %v4283, %v4587
      %v4671 = vadd.f32 %v4284, %v4592
      %v4672 = vadd.f32 %v4285, %v4597
      %v4673 = vadd.f32 %v4286, %v4602
      %v4674 = vadd.f32 %v4287, %v4607
      %v4675 = vadd.f32 %v4288, %v4612
      %v4676 = vadd.f32 %v4289, %v4617
      %v4677 = vadd.f32 %v4290, %v4622
      %v4678 = vadd.f32 %v4291, %v4627
      %v4679 = vadd.f32 %v4292, %v4632
      %v4680 = vadd.f32 %v4293, %v4637
      %v4681 = vadd.f32 %v4294, %v4642
      %v4682 = vadd.f32 %v4295, %v4647
      %v4683 = vadd.f32 %v4296, %v4652
      %v4684 = vadd.f32 %v4297, %v4657
      %v4687 = vcombine.high %v319, %v319
      %v4689 = vunpack.c.l.s4 1983009808
      %v4690 = vunpack.c.0.s8 %v4689
      %v4691 = vlaneseq
      %v4692 = vshrl.u32 %v4691, 7
      %v4693 = vsub.s32 %v4690, %v4692
      %v4694 = vrot.slane %v319, %v4693
      %v4696 = vunpack.c.l.s4 1983009808
      %v4697 = vunpack.c.0.s8 %v4696
      %v4698 = vlaneseq
      %v4699 = vshrl.u32 %v4698, 7
      %v4700 = vsub.s32 %v4697, %v4699
      %v4701 = vrot.slane %v4687, %v4700
      %v4702 = vcombine.high %v4694, %v4694
      %v4703 = vcombine.high %v4701, %v4701
      %v4704 = vcombine.high %v320, %v320
      %v4706 = vunpack.c.l.s4 1983009808
      %v4707 = vunpack.c.0.s8 %v4706
      %v4708 = vlaneseq
      %v4709 = vshrl.u32 %v4708, 7
      %v4710 = vsub.s32 %v4707, %v4709
      %v4711 = vrot.slane %v320, %v4710
      %v4713 = vunpack.c.l.s4 1983009808
      %v4714 = vunpack.c.0.s8 %v4713
      %v4715 = vlaneseq
      %v4716 = vshrl.u32 %v4715, 7
      %v4717 = vsub.s32 %v4714, %v4716
      %v4718 = vrot.slane %v4704, %v4717
      %v4719 = vcombine.high %v4711, %v4711
      %v4720 = vcombine.low %v1863, %v1873
      %v4721 = vcombine.low %v1880, %v1890
      %v4722 = vcombine.low %v1897, %v1907
      %v4723 = vcombine.low %v1914, %v1924
      %v4724 = vcombine.low %v1931, %v1941
      %v4725 = vcombine.low %v1948, %v1958
      %v4726 = vcombine.low %v1965, %v1975
      %v4727 = vcombine.low %v1982, %v1992
      %v4728 = vcombine.low %v1999, %v2009
      %v4729 = vcombine.low %v2016, %v2026
      %v4730 = vcombine.low %v2033, %v2043
      %v4731 = vcombine.low %v2050, %v2060
      %v4732 = vcombine.low %v2067, %v2077
      %v4733 = vcombine.low %v2084, %v2094
      %v4734 = vcombine.low %v2101, %v2111
      %v4735 = vcombine.low %v2118, %v2128
      %v4736 = vcombine.low %v2135, %v2145
      %v4737 = vcombine.low %v2152, %v2162
      %v4738 = vcombine.low %v2169, %v2179
      %v4739 = vcombine.low %v2186, %v2196
      %v4740 = vcombine.low %v2203, %v2212
      %v4741 = vcombine.low %v3143, %v3151
      %v4743 = vunpack.c.l.s4 1983009808
      %v4744 = vunpack.c.0.s8 %v4743
      %v4745 = vlaneseq
      %v4746 = vshrl.u32 %v4745, 7
      %v4747 = vsub.s32 %v4744, %v4746
      %v4748 = vrot.slane %v4741, %v4747
      %v4749 = vcombine.low %v4748, %v4423
      %v4750 = vcombine.low %v3167, %v4694
      %v4752 = vunpack.c.l.s4 1983009808
      %v4753 = vunpack.c.0.s8 %v4752
      %v4754 = vlaneseq
      %v4755 = vshrl.u32 %v4754, 7
      %v4756 = vsub.s32 %v4753, %v4755
      %v4757 = vrot.slane %v4750, %v4756
      %v4758 = vcombine.low %v4430, %v4757
      %v4759 = vcombine.low %v4702, %v4701
      %v4760 = vcombine.low %v4703, %v4711
      %v4762 = vunpack.c.l.s4 1983009808
      %v4763 = vunpack.c.0.s8 %v4762
      %v4764 = vlaneseq
      %v4765 = vshrl.u32 %v4764, 7
      %v4766 = vsub.s32 %v4763, %v4765
      %v4767 = vrot.slane %v4759, %v4766
      %v4769 = vunpack.c.l.s4 1983009808
      %v4770 = vunpack.c.0.s8 %v4769
      %v4771 = vlaneseq
      %v4772 = vshrl.u32 %v4771, 7
      %v4773 = vsub.s32 %v4770, %v4772
      %v4774 = vrot.slane %v4760, %v4773
      %v4775 = vcombine.low %v4767, %v4774
      %v4776 = vcombine.low %v4719, %v4718
      %v4778 = vunpack.c.l.s4 1983009808
      %v4779 = vunpack.c.0.s8 %v4778
      %v4780 = vlaneseq
      %v4781 = vshrl.u32 %v4780, 7
      %v4782 = vsub.s32 %v4779, %v4781
      %v4783 = vrot.slane %v4776, %v4782
      %v4784 = vsel %vm1556, %v4720, 0
      %v4786 = vsel %vm1556, %v4721, 0
      %v4788 = vsel %vm1556, %v4722, 0
      %v4790 = vsel %vm1556, %v4723, 0
      %v4792 = vsel %vm1556, %v4724, 0
      %v4794 = vsel %vm1556, %v4725, 0
      %v4796 = vsel %vm1556, %v4726, 0
      %v4798 = vsel %vm1556, %v4727, 0
      %v4800 = vsel %vm1556, %v4728, 0
      %v4802 = vsel %vm1556, %v4729, 0
      %v4804 = vsel %vm1556, %v4730, 0
      %v4806 = vsel %vm1556, %v4731, 0
      %v4808 = vsel %vm1556, %v4732, 0
      %v4810 = vsel %vm1556, %v4733, 0
      %v4812 = vsel %vm1556, %v4734, 0
      %v4814 = vsel %vm1556, %v4735, 0
      %v4816 = vsel %vm1556, %v4736, 0
      %v4818 = vsel %vm1556, %v4737, 0
      %v4820 = vsel %vm1556, %v4738, 0
      %v4822 = vsel %vm1556, %v4739, 0
      %v4824 = vsel %vm1556, %v4740, 0
      %v4826 = vsel %vm1556, %v4749, 0
      %v4828 = vsel %vm1556, %v4758, 0
      %v4830 = vsel %vm1556, %v4775, 0
      %v4832 = vsel %vm1556, %v4783, 0
      %4834 = vmatprep.subr.mxu0 0.0
      %4835 = vmatpush1.msra.mxu0 %v285
      %4836 = vmatprep.subr.mxu0 0.0
      %4837 = vmatpush1.msra.mxu0 0.0
      %4838 = vmatprep.subr.mxu0 0.0
      %4839 = vmatpush1.msra.mxu0 0.0
      %4840 = vmatprep.subr.mxu0 0.0
      %4841 = vmatpush1.msra.mxu0 0.0
      %4842 = vmatprep.subr.mxu0 0.0
      %4843 = vmatpush1.msra.mxu0 0.0
      %4844 = vmatprep.subr.mxu0 0.0
      %4845 = vmatpush1.msra.mxu0 0.0
      %4846 = vmatprep.subr.mxu0 0.0
      %4847 = vmatpush1.msra.mxu0 0.0
      %4848 = vmatprep.subr.mxu0 0.0
      %4849 = vmatpush1.msra.mxu0 0.0
      %4850 = vmatprep.subr.mxu0 0.0
      %4851 = vmatpush1.msra.mxu0 0.0
      %4852 = vmatprep.subr.mxu0 0.0
      %4853 = vmatpush1.msra.mxu0 0.0
      %4854 = vmatprep.subr.mxu0 0.0
      %4855 = vmatpush1.msra.mxu0 0.0
      %4856 = vmatprep.subr.mxu0 0.0
      %4857 = vmatpush1.msra.mxu0 0.0
      %4858 = vmatprep.subr.mxu0 0.0
      %4859 = vmatpush1.msra.mxu0 0.0
      %4860 = vmatprep.subr.mxu0 0.0
      %4861 = vmatpush1.msra.mxu0 0.0
      %4862 = vmatprep.subr.mxu0 0.0
      %4863 = vmatpush1.msra.mxu0 0.0
      %4864 = vmatprep.subr.mxu0 0.0
      %4865 = vmatpush1.msra.mxu0 0.0
      %4866 = vmatprep.subr.mxu0 0.0
      %4867 = vmatpush1.msra.mxu0 0.0
      %4868 = vmatprep.subr.mxu0 0.0
      %4869 = vmatpush1.msra.mxu0 0.0
      %4870 = vmatprep.subr.mxu0 0.0
      %4871 = vmatpush1.msra.mxu0 0.0
      %4872 = vmatprep.subr.mxu0 0.0
      %4873 = vmatpush1.msra.mxu0 0.0
      %4874 = vmatprep.subr.mxu0 0.0
      %4875 = vmatpush1.msra.mxu0 0.0
      %4876 = vmatprep.subr.mxu0 0.0
      %4877 = vmatpush1.msra.mxu0 0.0
      %4878 = vmatprep.subr.mxu0 0.0
      %4879 = vmatpush1.msra.mxu0 0.0
      %4880 = vmatprep.subr.mxu0 0.0
      %4881 = vmatpush1.msra.mxu0 0.0
      %4882 = vmatprep.subr.mxu0 0.0
      %4883 = vmatpush1.msra.mxu0 0.0
      %4884 = vmatprep.subr.mxu0 0.0
      %4885 = vmatpush1.msra.mxu0 0.0
      %4886 = vmatprep.subr.mxu0 0.0
      %4887 = vmatpush1.msra.mxu0 0.0
      %4888 = vmatprep.subr.mxu0 0.0
      %4889 = vmatpush1.msra.mxu0 0.0
      %4890 = vmatprep.subr.mxu0 0.0
      %4891 = vmatpush1.msra.mxu0 0.0
      %4892 = vmatprep.subr.mxu0 0.0
      %4893 = vmatpush1.msra.mxu0 0.0
      %4894 = vmatprep.subr.mxu0 0.0
      %4895 = vmatpush1.msra.mxu0 0.0
      %4896 = vmatprep.subr.mxu0 0.0
      %4897 = vmatpush1.msra.mxu0 0.0
      %4898 = vmatprep.mubr.f32.mxu0 0.0
      %4899 = vmatmul.mubr.f32.gmra.mrb[0].mxu0 %v4784
      %v4900 = vpop.f32.mrb[0].mxu0
      %v4901 = vadd.f32 0.0, %v4900
      %v4902 = vpop.f32.mrb[0].mxu0
      %4903 = vmatprep.mubr.f32.mxu0 0.0
      %4904 = vmatmul.mubr.f32.gmra.mrb[0].mxu0 %v4786
      %v4905 = vpop.f32.mrb[0].mxu0
      %v4906 = vadd.f32 0.0, %v4905
      %v4907 = vpop.f32.mrb[0].mxu0
      %4908 = vmatprep.mubr.f32.mxu0 0.0
      %4909 = vmatmul.mubr.f32.gmra.mrb[0].mxu0 %v4788
      %v4910 = vpop.f32.mrb[0].mxu0
      %v4911 = vadd.f32 0.0, %v4910
      %v4912 = vpop.f32.mrb[0].mxu0
      %4913 = vmatprep.mubr.f32.mxu0 0.0
      %4914 = vmatmul.mubr.f32.gmra.mrb[0].mxu0 %v4790
      %v4915 = vpop.f32.mrb[0].mxu0
      %v4916 = vadd.f32 0.0, %v4915
      %v4917 = vpop.f32.mrb[0].mxu0
      %4918 = vmatprep.mubr.f32.mxu0 0.0
      %4919 = vmatmul.mubr.f32.gmra.mrb[0].mxu0 %v4792
      %v4920 = vpop.f32.mrb[0].mxu0
      %v4921 = vadd.f32 0.0, %v4920
      %v4922 = vpop.f32.mrb[0].mxu0
      %4923 = vmatprep.mubr.f32.mxu0 0.0
      %4924 = vmatmul.mubr.f32.gmra.mrb[0].mxu0 %v4794
      %v4925 = vpop.f32.mrb[0].mxu0
      %v4926 = vadd.f32 0.0, %v4925
      %v4927 = vpop.f32.mrb[0].mxu0
      %4928 = vmatprep.mubr.f32.mxu0 0.0
      %4929 = vmatmul.mubr.f32.gmra.mrb[0].mxu0 %v4796
      %v4930 = vpop.f32.mrb[0].mxu0
      %v4931 = vadd.f32 0.0, %v4930
      %v4932 = vpop.f32.mrb[0].mxu0
      %4933 = vmatprep.mubr.f32.mxu0 0.0
      %4934 = vmatmul.mubr.f32.gmra.mrb[0].mxu0 %v4798
      %v4935 = vpop.f32.mrb[0].mxu0
      %v4936 = vadd.f32 0.0, %v4935
      %v4937 = vpop.f32.mrb[0].mxu0
      %4938 = vmatprep.mubr.f32.mxu0 0.0
      %4939 = vmatmul.mubr.f32.gmra.mrb[0].mxu0 %v4800
      %v4940 = vpop.f32.mrb[0].mxu0
      %v4941 = vadd.f32 0.0, %v4940
      %v4942 = vpop.f32.mrb[0].mxu0
      %4943 = vmatprep.mubr.f32.mxu0 0.0
      %4944 = vmatmul.mubr.f32.gmra.mrb[0].mxu0 %v4802
      %v4945 = vpop.f32.mrb[0].mxu0
      %v4946 = vadd.f32 0.0, %v4945
      %v4947 = vpop.f32.mrb[0].mxu0
      %4948 = vmatprep.mubr.f32.mxu0 0.0
      %4949 = vmatmul.mubr.f32.gmra.mrb[0].mxu0 %v4804
      %v4950 = vpop.f32.mrb[0].mxu0
      %v4951 = vadd.f32 0.0, %v4950
      %v4952 = vpop.f32.mrb[0].mxu0
      %4953 = vmatprep.mubr.f32.mxu0 0.0
      %4954 = vmatmul.mubr.f32.gmra.mrb[0].mxu0 %v4806
      %v4955 = vpop.f32.mrb[0].mxu0
      %v4956 = vadd.f32 0.0, %v4955
      %v4957 = vpop.f32.mrb[0].mxu0
      %4958 = vmatprep.mubr.f32.mxu0 0.0
      %4959 = vmatmul.mubr.f32.gmra.mrb[0].mxu0 %v4808
      %v4960 = vpop.f32.mrb[0].mxu0
      %v4961 = vadd.f32 0.0, %v4960
      %v4962 = vpop.f32.mrb[0].mxu0
      %4963 = vmatprep.mubr.f32.mxu0 0.0
      %4964 = vmatmul.mubr.f32.gmra.mrb[0].mxu0 %v4810
      %v4965 = vpop.f32.mrb[0].mxu0
      %v4966 = vadd.f32 0.0, %v4965
      %v4967 = vpop.f32.mrb[0].mxu0
      %4968 = vmatprep.mubr.f32.mxu0 0.0
      %4969 = vmatmul.mubr.f32.gmra.mrb[0].mxu0 %v4812
      %v4970 = vpop.f32.mrb[0].mxu0
      %v4971 = vadd.f32 0.0, %v4970
      %v4972 = vpop.f32.mrb[0].mxu0
      %4973 = vmatprep.mubr.f32.mxu0 0.0
      %4974 = vmatmul.mubr.f32.gmra.mrb[0].mxu0 %v4814
      %v4975 = vpop.f32.mrb[0].mxu0
      %v4976 = vadd.f32 0.0, %v4975
      %v4977 = vpop.f32.mrb[0].mxu0
      %4978 = vmatprep.mubr.f32.mxu0 0.0
      %4979 = vmatmul.mubr.f32.gmra.mrb[0].mxu0 %v4816
      %v4980 = vpop.f32.mrb[0].mxu0
      %v4981 = vadd.f32 0.0, %v4980
      %v4982 = vpop.f32.mrb[0].mxu0
      %4983 = vmatprep.mubr.f32.mxu0 0.0
      %4984 = vmatmul.mubr.f32.gmra.mrb[0].mxu0 %v4818
      %v4985 = vpop.f32.mrb[0].mxu0
      %v4986 = vadd.f32 0.0, %v4985
      %v4987 = vpop.f32.mrb[0].mxu0
      %4988 = vmatprep.mubr.f32.mxu0 0.0
      %4989 = vmatmul.mubr.f32.gmra.mrb[0].mxu0 %v4820
      %v4990 = vpop.f32.mrb[0].mxu0
      %v4991 = vadd.f32 0.0, %v4990
      %v4992 = vpop.f32.mrb[0].mxu0
      %4993 = vmatprep.mubr.f32.mxu0 0.0
      %4994 = vmatmul.mubr.f32.gmra.mrb[0].mxu0 %v4822
      %v4995 = vpop.f32.mrb[0].mxu0
      %v4996 = vadd.f32 0.0, %v4995
      %v4997 = vpop.f32.mrb[0].mxu0
      %4998 = vmatprep.mubr.f32.mxu0 0.0
      %4999 = vmatmul.mubr.f32.gmra.mrb[0].mxu0 %v4824
      %v5000 = vpop.f32.mrb[0].mxu0
      %v5001 = vadd.f32 0.0, %v5000
      %v5002 = vpop.f32.mrb[0].mxu0
      %5003 = vmatprep.mubr.f32.mxu0 0.0
      %5004 = vmatmul.mubr.f32.gmra.mrb[0].mxu0 %v4826
      %v5005 = vpop.f32.mrb[0].mxu0
      %v5006 = vadd.f32 0.0, %v5005
      %v5007 = vpop.f32.mrb[0].mxu0
      %5008 = vmatprep.mubr.f32.mxu0 0.0
      %5009 = vmatmul.mubr.f32.gmra.mrb[0].mxu0 %v4828
      %v5010 = vpop.f32.mrb[0].mxu0
      %v5011 = vadd.f32 0.0, %v5010
      %v5012 = vpop.f32.mrb[0].mxu0
      %5013 = vmatprep.mubr.f32.mxu0 0.0
      %5014 = vmatmul.mubr.f32.gmra.mrb[0].mxu0 %v4830
      %v5015 = vpop.f32.mrb[0].mxu0
      %v5016 = vadd.f32 0.0, %v5015
      %v5017 = vpop.f32.mrb[0].mxu0
      %5018 = vmatprep.mubr.f32.mxu0 0.0
      %5019 = vmatmul.mubr.f32.gmra.mrb[0].mxu0 %v4832
      %v5020 = vpop.f32.mrb[0].mxu0
      %v5021 = vadd.f32 0.0, %v5020
      %v5022 = vpop.f32.mrb[0].mxu0
      %5023 = vdwg.mxu0
      %v5024 = vadd.f32 %v4660, %v4901
      %v5025 = vadd.f32 %v4661, %v4906
      %v5026 = vadd.f32 %v4662, %v4911
      %v5027 = vadd.f32 %v4663, %v4916
      %v5028 = vadd.f32 %v4664, %v4921
      %v5029 = vadd.f32 %v4665, %v4926
      %v5030 = vadd.f32 %v4666, %v4931
      %v5031 = vadd.f32 %v4667, %v4936
      %v5032 = vadd.f32 %v4668, %v4941
      %v5033 = vadd.f32 %v4669, %v4946
      %v5034 = vadd.f32 %v4670, %v4951
      %v5035 = vadd.f32 %v4671, %v4956
      %v5036 = vadd.f32 %v4672, %v4961
      %v5037 = vadd.f32 %v4673, %v4966
      %v5038 = vadd.f32 %v4674, %v4971
      %v5039 = vadd.f32 %v4675, %v4976
      %v5040 = vadd.f32 %v4676, %v4981
      %v5041 = vadd.f32 %v4677, %v4986
      %v5042 = vadd.f32 %v4678, %v4991
      %v5043 = vadd.f32 %v4679, %v4996
      %v5044 = vadd.f32 %v4680, %v5001
      %v5045 = vadd.f32 %v4681, %v5006
      %v5046 = vadd.f32 %v4682, %v5011
      %v5047 = vadd.f32 %v4683, %v5016
      %v5048 = vadd.f32 %v4684, %v5021
      %v5049 = vcombine.high %v4718, %v4718
      %v5050 = vrot.slane %v4694, 7
      %v5051 = vrot.slane %v5050, 2
      %v5052 = vrot.slane %v4702, 7
      %v5053 = vsel %vm831, %v5051, %v5052
      %v5054 = vrot.slane %v5052, 2
      %v5055 = vrot.slane %v4701, 7
      %v5056 = vsel %vm831, %v5054, %v5055
      %v5057 = vrot.slane %v5055, 2
      %v5058 = vrot.slane %v4703, 7
      %v5059 = vsel %vm831, %v5057, %v5058
      %v5060 = vrot.slane %v5058, 2
      %v5061 = vrot.slane %v4711, 7
      %v5062 = vsel %vm831, %v5060, %v5061
      %v5063 = vrot.slane %v5061, 2
      %v5064 = vrot.slane %v4719, 7
      %v5065 = vsel %vm831, %v5063, %v5064
      %v5066 = vrot.slane %v5064, 2
      %v5067 = vrot.slane %v4718, 7
      %v5068 = vsel %vm831, %v5066, %v5067
      %v5069 = vrot.slane %v5067, 2
      %v5070 = vrot.slane %v5049, 7
      %v5071 = vsel %vm831, %v5069, %v5070
      %v5072 = vcombine.low %v1206, %v1216
      %v5073 = vcombine.low %v1223, %v1233
      %v5074 = vcombine.low %v1240, %v1250
      %v5075 = vcombine.low %v1257, %v1267
      %v5076 = vcombine.low %v1274, %v1284
      %v5077 = vcombine.low %v1291, %v1301
      %v5078 = vcombine.low %v1308, %v1318
      %v5079 = vcombine.low %v1325, %v1335
      %v5080 = vcombine.low %v1342, %v1352
      %v5081 = vcombine.low %v1359, %v1369
      %v5082 = vcombine.low %v1376, %v1386
      %v5083 = vcombine.low %v1393, %v1403
      %v5084 = vcombine.low %v1410, %v1420
      %v5085 = vcombine.low %v1427, %v1437
      %v5086 = vcombine.low %v1444, %v1454
      %v5087 = vcombine.low %v1461, %v1471
      %v5088 = vcombine.low %v1478, %v1488
      %v5089 = vcombine.low %v1495, %v1505
      %v5090 = vcombine.low %v1512, %v1522
      %v5091 = vcombine.low %v1529, %v1539
      %v5092 = vcombine.low %v1546, %v1555
      %v5093 = vcombine.low %v3598, %v3601
      %v5094 = vcombine.low %v3604, %v3607
      %v5096 = vunpack.c.l.s4 1983009808
      %v5097 = vunpack.c.0.s8 %v5096
      %v5098 = vlaneseq
      %v5099 = vshrl.u32 %v5098, 7
      %v5100 = vsub.s32 %v5097, %v5099
      %v5101 = vrot.slane %v5093, %v5100
      %v5103 = vunpack.c.l.s4 1983009808
      %v5104 = vunpack.c.0.s8 %v5103
      %v5105 = vlaneseq
      %v5106 = vshrl.u32 %v5105, 7
      %v5107 = vsub.s32 %v5104, %v5106
      %v5108 = vrot.slane %v5094, %v5107
      %v5109 = vcombine.low %v5101, %v5108
      %v5110 = vcombine.low %v3610, %v3613
      %v5111 = vcombine.low %v3616, %v5053
      %v5113 = vunpack.c.l.s4 1983009808
      %v5114 = vunpack.c.0.s8 %v5113
      %v5115 = vlaneseq
      %v5116 = vshrl.u32 %v5115, 7
      %v5117 = vsub.s32 %v5114, %v5116
      %v5118 = vrot.slane %v5110, %v5117
      %v5120 = vunpack.c.l.s4 1983009808
      %v5121 = vunpack.c.0.s8 %v5120
      %v5122 = vlaneseq
      %v5123 = vshrl.u32 %v5122, 7
      %v5124 = vsub.s32 %v5121, %v5123
      %v5125 = vrot.slane %v5111, %v5124
      %v5126 = vcombine.low %v5118, %v5125
      %v5127 = vcombine.low %v5056, %v5059
      %v5128 = vcombine.low %v5062, %v5065
      %v5130 = vunpack.c.l.s4 1983009808
      %v5131 = vunpack.c.0.s8 %v5130
      %v5132 = vlaneseq
      %v5133 = vshrl.u32 %v5132, 7
      %v5134 = vsub.s32 %v5131, %v5133
      %v5135 = vrot.slane %v5127, %v5134
      %v5137 = vunpack.c.l.s4 1983009808
      %v5138 = vunpack.c.0.s8 %v5137
      %v5139 = vlaneseq
      %v5140 = vshrl.u32 %v5139, 7
      %v5141 = vsub.s32 %v5138, %v5140
      %v5142 = vrot.slane %v5128, %v5141
      %v5143 = vcombine.low %v5135, %v5142
      %v5144 = vcombine.low %v5068, %v5071
      %v5146 = vunpack.c.l.s4 1983009808
      %v5147 = vunpack.c.0.s8 %v5146
      %v5148 = vlaneseq
      %v5149 = vshrl.u32 %v5148, 7
      %v5150 = vsub.s32 %v5147, %v5149
      %v5151 = vrot.slane %v5144, %v5150
      %v5152 = vsel %vm1556, %v5072, 0
      %v5154 = vsel %vm1556, %v5073, 0
      %v5156 = vsel %vm1556, %v5074, 0
      %v5158 = vsel %vm1556, %v5075, 0
      %v5160 = vsel %vm1556, %v5076, 0
      %v5162 = vsel %vm1556, %v5077, 0
      %v5164 = vsel %vm1556, %v5078, 0
      %v5166 = vsel %vm1556, %v5079, 0
      %v5168 = vsel %vm1556, %v5080, 0
      %v5170 = vsel %vm1556, %v5081, 0
      %v5172 = vsel %vm1556, %v5082, 0
      %v5174 = vsel %vm1556, %v5083, 0
      %v5176 = vsel %vm1556, %v5084, 0
      %v5178 = vsel %vm1556, %v5085, 0
      %v5180 = vsel %vm1556, %v5086, 0
      %v5182 = vsel %vm1556, %v5087, 0
      %v5184 = vsel %vm1556, %v5088, 0
      %v5186 = vsel %vm1556, %v5089, 0
      %v5188 = vsel %vm1556, %v5090, 0
      %v5190 = vsel %vm1556, %v5091, 0
      %v5192 = vsel %vm1556, %v5092, 0
      %v5194 = vsel %vm1556, %v5109, 0
      %v5196 = vsel %vm1556, %v5126, 0
      %v5198 = vsel %vm1556, %v5143, 0
      %v5200 = vsel %vm1556, %v5151, 0
      %5202 = vmatprep.subr.mxu0 0.0
      %5203 = vmatpush1.msra.mxu0 %v286
      %5204 = vmatprep.subr.mxu0 0.0
      %5205 = vmatpush1.msra.mxu0 0.0
      %5206 = vmatprep.subr.mxu0 0.0
      %5207 = vmatpush1.msra.mxu0 0.0
      %5208 = vmatprep.subr.mxu0 0.0
      %5209 = vmatpush1.msra.mxu0 0.0
      %5210 = vmatprep.subr.mxu0 0.0
      %5211 = vmatpush1.msra.mxu0 0.0
      %5212 = vmatprep.subr.mxu0 0.0
      %5213 = vmatpush1.msra.mxu0 0.0
      %5214 = vmatprep.subr.mxu0 0.0
      %5215 = vmatpush1.msra.mxu0 0.0
      %5216 = vmatprep.subr.mxu0 0.0
      %5217 = vmatpush1.msra.mxu0 0.0
      %5218 = vmatprep.subr.mxu0 0.0
      %5219 = vmatpush1.msra.mxu0 0.0
      %5220 = vmatprep.subr.mxu0 0.0
      %5221 = vmatpush1.msra.mxu0 0.0
      %5222 = vmatprep.subr.mxu0 0.0
      %5223 = vmatpush1.msra.mxu0 0.0
      %5224 = vmatprep.subr.mxu0 0.0
      %5225 = vmatpush1.msra.mxu0 0.0
      %5226 = vmatprep.subr.mxu0 0.0
      %5227 = vmatpush1.msra.mxu0 0.0
      %5228 = vmatprep.subr.mxu0 0.0
      %5229 = vmatpush1.msra.mxu0 0.0
      %5230 = vmatprep.subr.mxu0 0.0
      %5231 = vmatpush1.msra.mxu0 0.0
      %5232 = vmatprep.subr.mxu0 0.0
      %5233 = vmatpush1.msra.mxu0 0.0
      %5234 = vmatprep.subr.mxu0 0.0
      %5235 = vmatpush1.msra.mxu0 0.0
      %5236 = vmatprep.subr.mxu0 0.0
      %5237 = vmatpush1.msra.mxu0 0.0
      %5238 = vmatprep.subr.mxu0 0.0
      %5239 = vmatpush1.msra.mxu0 0.0
      %5240 = vmatprep.subr.mxu0 0.0
      %5241 = vmatpush1.msra.mxu0 0.0
      %5242 = vmatprep.subr.mxu0 0.0
      %5243 = vmatpush1.msra.mxu0 0.0
      %5244 = vmatprep.subr.mxu0 0.0
      %5245 = vmatpush1.msra.mxu0 0.0
      %5246 = vmatprep.subr.mxu0 0.0
      %5247 = vmatpush1.msra.mxu0 0.0
      %5248 = vmatprep.subr.mxu0 0.0
      %5249 = vmatpush1.msra.mxu0 0.0
      %5250 = vmatprep.subr.mxu0 0.0
      %5251 = vmatpush1.msra.mxu0 0.0
      %5252 = vmatprep.subr.mxu0 0.0
      %5253 = vmatpush1.msra.mxu0 0.0
      %5254 = vmatprep.subr.mxu0 0.0
      %5255 = vmatpush1.msra.mxu0 0.0
      %5256 = vmatprep.subr.mxu0 0.0
      %5257 = vmatpush1.msra.mxu0 0.0
      %5258 = vmatprep.subr.mxu0 0.0
      %5259 = vmatpush1.msra.mxu0 0.0
      %5260 = vmatprep.subr.mxu0 0.0
      %5261 = vmatpush1.msra.mxu0 0.0
      %5262 = vmatprep.subr.mxu0 0.0
      %5263 = vmatpush1.msra.mxu0 0.0
      %5264 = vmatprep.subr.mxu0 0.0
      %5265 = vmatpush1.msra.mxu0 0.0
      %5266 = vmatprep.mubr.f32.mxu0 0.0
      %5267 = vmatmul.mubr.f32.gmra.mrb[0].mxu0 %v5152
      %v5268 = vpop.f32.mrb[0].mxu0
      %v5269 = vadd.f32 0.0, %v5268
      %v5270 = vpop.f32.mrb[0].mxu0
      %5271 = vmatprep.mubr.f32.mxu0 0.0
      %5272 = vmatmul.mubr.f32.gmra.mrb[0].mxu0 %v5154
      %v5273 = vpop.f32.mrb[0].mxu0
      %v5274 = vadd.f32 0.0, %v5273
      %v5275 = vpop.f32.mrb[0].mxu0
      %5276 = vmatprep.mubr.f32.mxu0 0.0
      %5277 = vmatmul.mubr.f32.gmra.mrb[0].mxu0 %v5156
      %v5278 = vpop.f32.mrb[0].mxu0
      %v5279 = vadd.f32 0.0, %v5278
      %v5280 = vpop.f32.mrb[0].mxu0
      %5281 = vmatprep.mubr.f32.mxu0 0.0
      %5282 = vmatmul.mubr.f32.gmra.mrb[0].mxu0 %v5158
      %v5283 = vpop.f32.mrb[0].mxu0
      %v5284 = vadd.f32 0.0, %v5283
      %v5285 = vpop.f32.mrb[0].mxu0
      %5286 = vmatprep.mubr.f32.mxu0 0.0
      %5287 = vmatmul.mubr.f32.gmra.mrb[0].mxu0 %v5160
      %v5288 = vpop.f32.mrb[0].mxu0
      %v5289 = vadd.f32 0.0, %v5288
      %v5290 = vpop.f32.mrb[0].mxu0
      %5291 = vmatprep.mubr.f32.mxu0 0.0
      %5292 = vmatmul.mubr.f32.gmra.mrb[0].mxu0 %v5162
      %v5293 = vpop.f32.mrb[0].mxu0
      %v5294 = vadd.f32 0.0, %v5293
      %v5295 = vpop.f32.mrb[0].mxu0
      %5296 = vmatprep.mubr.f32.mxu0 0.0
      %5297 = vmatmul.mubr.f32.gmra.mrb[0].mxu0 %v5164
      %v5298 = vpop.f32.mrb[0].mxu0
      %v5299 = vadd.f32 0.0, %v5298
      %v5300 = vpop.f32.mrb[0].mxu0
      %5301 = vmatprep.mubr.f32.mxu0 0.0
      %5302 = vmatmul.mubr.f32.gmra.mrb[0].mxu0 %v5166
      %v5303 = vpop.f32.mrb[0].mxu0
      %v5304 = vadd.f32 0.0, %v5303
      %v5305 = vpop.f32.mrb[0].mxu0
      %5306 = vmatprep.mubr.f32.mxu0 0.0
      %5307 = vmatmul.mubr.f32.gmra.mrb[0].mxu0 %v5168
      %v5308 = vpop.f32.mrb[0].mxu0
      %v5309 = vadd.f32 0.0, %v5308
      %v5310 = vpop.f32.mrb[0].mxu0
      %5311 = vmatprep.mubr.f32.mxu0 0.0
      %5312 = vmatmul.mubr.f32.gmra.mrb[0].mxu0 %v5170
      %v5313 = vpop.f32.mrb[0].mxu0
      %v5314 = vadd.f32 0.0, %v5313
      %v5315 = vpop.f32.mrb[0].mxu0
      %5316 = vmatprep.mubr.f32.mxu0 0.0
      %5317 = vmatmul.mubr.f32.gmra.mrb[0].mxu0 %v5172
      %v5318 = vpop.f32.mrb[0].mxu0
      %v5319 = vadd.f32 0.0, %v5318
      %v5320 = vpop.f32.mrb[0].mxu0
      %5321 = vmatprep.mubr.f32.mxu0 0.0
      %5322 = vmatmul.mubr.f32.gmra.mrb[0].mxu0 %v5174
      %v5323 = vpop.f32.mrb[0].mxu0
      %v5324 = vadd.f32 0.0, %v5323
      %v5325 = vpop.f32.mrb[0].mxu0
      %5326 = vmatprep.mubr.f32.mxu0 0.0
      %5327 = vmatmul.mubr.f32.gmra.mrb[0].mxu0 %v5176
      %v5328 = vpop.f32.mrb[0].mxu0
      %v5329 = vadd.f32 0.0, %v5328
      %v5330 = vpop.f32.mrb[0].mxu0
      %5331 = vmatprep.mubr.f32.mxu0 0.0
      %5332 = vmatmul.mubr.f32.gmra.mrb[0].mxu0 %v5178
      %v5333 = vpop.f32.mrb[0].mxu0
      %v5334 = vadd.f32 0.0, %v5333
      %v5335 = vpop.f32.mrb[0].mxu0
      %5336 = vmatprep.mubr.f32.mxu0 0.0
      %5337 = vmatmul.mubr.f32.gmra.mrb[0].mxu0 %v5180
      %v5338 = vpop.f32.mrb[0].mxu0
      %v5339 = vadd.f32 0.0, %v5338
      %v5340 = vpop.f32.mrb[0].mxu0
      %5341 = vmatprep.mubr.f32.mxu0 0.0
      %5342 = vmatmul.mubr.f32.gmra.mrb[0].mxu0 %v5182
      %v5343 = vpop.f32.mrb[0].mxu0
      %v5344 = vadd.f32 0.0, %v5343
      %v5345 = vpop.f32.mrb[0].mxu0
      %5346 = vmatprep.mubr.f32.mxu0 0.0
      %5347 = vmatmul.mubr.f32.gmra.mrb[0].mxu0 %v5184
      %v5348 = vpop.f32.mrb[0].mxu0
      %v5349 = vadd.f32 0.0, %v5348
      %v5350 = vpop.f32.mrb[0].mxu0
      %5351 = vmatprep.mubr.f32.mxu0 0.0
      %5352 = vmatmul.mubr.f32.gmra.mrb[0].mxu0 %v5186
      %v5353 = vpop.f32.mrb[0].mxu0
      %v5354 = vadd.f32 0.0, %v5353
      %v5355 = vpop.f32.mrb[0].mxu0
      %5356 = vmatprep.mubr.f32.mxu0 0.0
      %5357 = vmatmul.mubr.f32.gmra.mrb[0].mxu0 %v5188
      %v5358 = vpop.f32.mrb[0].mxu0
      %v5359 = vadd.f32 0.0, %v5358
      %v5360 = vpop.f32.mrb[0].mxu0
      %5361 = vmatprep.mubr.f32.mxu0 0.0
      %5362 = vmatmul.mubr.f32.gmra.mrb[0].mxu0 %v5190
      %v5363 = vpop.f32.mrb[0].mxu0
      %v5364 = vadd.f32 0.0, %v5363
      %v5365 = vpop.f32.mrb[0].mxu0
      %5366 = vmatprep.mubr.f32.mxu0 0.0
      %5367 = vmatmul.mubr.f32.gmra.mrb[0].mxu0 %v5192
      %v5368 = vpop.f32.mrb[0].mxu0
      %v5369 = vadd.f32 0.0, %v5368
      %v5370 = vpop.f32.mrb[0].mxu0
      %5371 = vmatprep.mubr.f32.mxu0 0.0
      %5372 = vmatmul.mubr.f32.gmra.mrb[0].mxu0 %v5194
      %v5373 = vpop.f32.mrb[0].mxu0
      %v5374 = vadd.f32 0.0, %v5373
      %v5375 = vpop.f32.mrb[0].mxu0
      %5376 = vmatprep.mubr.f32.mxu0 0.0
      %5377 = vmatmul.mubr.f32.gmra.mrb[0].mxu0 %v5196
      %v5378 = vpop.f32.mrb[0].mxu0
      %v5379 = vadd.f32 0.0, %v5378
      %v5380 = vpop.f32.mrb[0].mxu0
      %5381 = vmatprep.mubr.f32.mxu0 0.0
      %5382 = vmatmul.mubr.f32.gmra.mrb[0].mxu0 %v5198
      %v5383 = vpop.f32.mrb[0].mxu0
      %v5384 = vadd.f32 0.0, %v5383
      %v5385 = vpop.f32.mrb[0].mxu0
      %5386 = vmatprep.mubr.f32.mxu0 0.0
      %5387 = vmatmul.mubr.f32.gmra.mrb[0].mxu0 %v5200
      %v5388 = vpop.f32.mrb[0].mxu0
      %v5389 = vadd.f32 0.0, %v5388
      %v5390 = vpop.f32.mrb[0].mxu0
      %5391 = vdwg.mxu0
      %v5392 = vadd.f32 %v5024, %v5269
      %v5393 = vadd.f32 %v5025, %v5274
      %v5394 = vadd.f32 %v5026, %v5279
      %v5395 = vadd.f32 %v5027, %v5284
      %v5396 = vadd.f32 %v5028, %v5289
      %v5397 = vadd.f32 %v5029, %v5294
      %v5398 = vadd.f32 %v5030, %v5299
      %v5399 = vadd.f32 %v5031, %v5304
      %v5400 = vadd.f32 %v5032, %v5309
      %v5401 = vadd.f32 %v5033, %v5314
      %v5402 = vadd.f32 %v5034, %v5319
      %v5403 = vadd.f32 %v5035, %v5324
      %v5404 = vadd.f32 %v5036, %v5329
      %v5405 = vadd.f32 %v5037, %v5334
      %v5406 = vadd.f32 %v5038, %v5339
      %v5407 = vadd.f32 %v5039, %v5344
      %v5408 = vadd.f32 %v5040, %v5349
      %v5409 = vadd.f32 %v5041, %v5354
      %v5410 = vadd.f32 %v5042, %v5359
      %v5411 = vadd.f32 %v5043, %v5364
      %v5412 = vadd.f32 %v5044, %v5369
      %v5413 = vadd.f32 %v5045, %v5374
      %v5414 = vadd.f32 %v5046, %v5379
      %v5415 = vadd.f32 %v5047, %v5384
      %v5416 = vadd.f32 %v5048, %v5389
      %v5417 = vcombine.low %v2536, %v2546
      %v5418 = vcombine.low %v2570, %v2580
      %v5419 = vcombine.low %v2604, %v2614
      %v5420 = vcombine.low %v2621, %v2631
      %v5421 = vcombine.low %v2655, %v2665
      %v5422 = vcombine.low %v2689, %v2699
      %v5423 = vcombine.low %v2723, %v2733
      %v5424 = vcombine.low %v2740, %v2750
      %v5425 = vcombine.low %v2774, %v2784
      %v5426 = vcombine.low %v2808, %v2818
      %v5427 = vcombine.low %v2842, %v2852
      %v5428 = vcombine.low %v2859, %v2868
      %v5429 = vcombine.low %v3594, %v4702
      %v5431 = vunpack.c.l.s4 1983009808
      %v5432 = vunpack.c.0.s8 %v5431
      %v5433 = vlaneseq
      %v5434 = vshrl.u32 %v5433, 7
      %v5435 = vsub.s32 %v5432, %v5434
      %v5436 = vrot.slane %v5429, %v5435
      %v5437 = vcombine.low %v3328, %v5436
      %v5438 = vcombine.low %v4701, %v4703
      %v5439 = vcombine.low %v4711, %v4719
      %v5441 = vunpack.c.l.s4 1983009808
      %v5442 = vunpack.c.0.s8 %v5441
      %v5443 = vlaneseq
      %v5444 = vshrl.u32 %v5443, 7
      %v5445 = vsub.s32 %v5442, %v5444
      %v5446 = vrot.slane %v5438, %v5445
      %v5448 = vunpack.c.l.s4 1983009808
      %v5449 = vunpack.c.0.s8 %v5448
      %v5450 = vlaneseq
      %v5451 = vshrl.u32 %v5450, 7
      %v5452 = vsub.s32 %v5449, %v5451
      %v5453 = vrot.slane %v5439, %v5452
      %v5454 = vcombine.low %v5446, %v5453
      %v5455 = vcombine.low %v4718, %v5049
      %v5457 = vunpack.c.l.s4 1983009808
      %v5458 = vunpack.c.0.s8 %v5457
      %v5459 = vlaneseq
      %v5460 = vshrl.u32 %v5459, 7
      %v5461 = vsub.s32 %v5458, %v5460
      %v5462 = vrot.slane %v5455, %v5461
      %v5463 = vsel %vm1556, %v5417, 0
      %v5465 = vsel %vm1556, %v5418, 0
      %v5467 = vsel %vm1556, %v5419, 0
      %v5469 = vsel %vm1556, %v5420, 0
      %v5471 = vsel %vm1556, %v5421, 0
      %v5473 = vsel %vm1556, %v5422, 0
      %v5475 = vsel %vm1556, %v5423, 0
      %v5477 = vsel %vm1556, %v5424, 0
      %v5479 = vsel %vm1556, %v5425, 0
      %v5481 = vsel %vm1556, %v5426, 0
      %v5483 = vsel %vm1556, %v5427, 0
      %v5485 = vsel %vm1556, %v5428, 0
      %v5487 = vsel %vm1556, %v5437, 0
      %v5489 = vsel %vm1556, %v5454, 0
      %v5491 = vsel %vm1556, %v5462, 0
      %5493 = vmatprep.subr.mxu0 0.0
      %5494 = vmatpush1.msra.mxu0 %v287
      %5495 = vmatprep.subr.mxu0 0.0
      %5496 = vmatpush1.msra.mxu0 0.0
      %5497 = vmatprep.subr.mxu0 0.0
      %5498 = vmatpush1.msra.mxu0 0.0
      %5499 = vmatprep.subr.mxu0 0.0
      %5500 = vmatpush1.msra.mxu0 0.0
      %5501 = vmatprep.subr.mxu0 0.0
      %5502 = vmatpush1.msra.mxu0 0.0
      %5503 = vmatprep.subr.mxu0 0.0
      %5504 = vmatpush1.msra.mxu0 0.0
      %5505 = vmatprep.subr.mxu0 0.0
      %5506 = vmatpush1.msra.mxu0 0.0
      %5507 = vmatprep.subr.mxu0 0.0
      %5508 = vmatpush1.msra.mxu0 0.0
      %5509 = vmatprep.subr.mxu0 0.0
      %5510 = vmatpush1.msra.mxu0 0.0
      %5511 = vmatprep.subr.mxu0 0.0
      %5512 = vmatpush1.msra.mxu0 0.0
      %5513 = vmatprep.subr.mxu0 0.0
      %5514 = vmatpush1.msra.mxu0 0.0
      %5515 = vmatprep.subr.mxu0 0.0
      %5516 = vmatpush1.msra.mxu0 0.0
      %5517 = vmatprep.subr.mxu0 0.0
      %5518 = vmatpush1.msra.mxu0 0.0
      %5519 = vmatprep.subr.mxu0 0.0
      %5520 = vmatpush1.msra.mxu0 0.0
      %5521 = vmatprep.subr.mxu0 0.0
      %5522 = vmatpush1.msra.mxu0 0.0
      %5523 = vmatprep.subr.mxu0 0.0
      %5524 = vmatpush1.msra.mxu0 0.0
      %5525 = vmatprep.subr.mxu0 0.0
      %5526 = vmatpush1.msra.mxu0 0.0
      %5527 = vmatprep.subr.mxu0 0.0
      %5528 = vmatpush1.msra.mxu0 0.0
      %5529 = vmatprep.subr.mxu0 0.0
      %5530 = vmatpush1.msra.mxu0 0.0
      %5531 = vmatprep.subr.mxu0 0.0
      %5532 = vmatpush1.msra.mxu0 0.0
      %5533 = vmatprep.subr.mxu0 0.0
      %5534 = vmatpush1.msra.mxu0 0.0
      %5535 = vmatprep.subr.mxu0 0.0
      %5536 = vmatpush1.msra.mxu0 0.0
      %5537 = vmatprep.subr.mxu0 0.0
      %5538 = vmatpush1.msra.mxu0 0.0
      %5539 = vmatprep.subr.mxu0 0.0
      %5540 = vmatpush1.msra.mxu0 0.0
      %5541 = vmatprep.subr.mxu0 0.0
      %5542 = vmatpush1.msra.mxu0 0.0
      %5543 = vmatprep.subr.mxu0 0.0
      %5544 = vmatpush1.msra.mxu0 0.0
      %5545 = vmatprep.subr.mxu0 0.0
      %5546 = vmatpush1.msra.mxu0 0.0
      %5547 = vmatprep.subr.mxu0 0.0
      %5548 = vmatpush1.msra.mxu0 0.0
      %5549 = vmatprep.subr.mxu0 0.0
      %5550 = vmatpush1.msra.mxu0 0.0
      %5551 = vmatprep.subr.mxu0 0.0
      %5552 = vmatpush1.msra.mxu0 0.0
      %5553 = vmatprep.subr.mxu0 0.0
      %5554 = vmatpush1.msra.mxu0 0.0
      %5555 = vmatprep.subr.mxu0 0.0
      %5556 = vmatpush1.msra.mxu0 0.0
      %5557 = vmatprep.mubr.f32.mxu0 0.0
      %5558 = vmatmul.mubr.f32.gmra.mrb[0].mxu0 %v3333
      %v5559 = vpop.f32.mrb[0].mxu0
      %v5560 = vadd.f32 0.0, %v5559
      %v5561 = vpop.f32.mrb[0].mxu0
      %5562 = vmatprep.mubr.f32.mxu0 0.0
      %5563 = vmatmul.mubr.f32.gmra.mrb[0].mxu0 %v5463
      %v5564 = vpop.f32.mrb[0].mxu0
      %v5565 = vadd.f32 0.0, %v5564
      %v5566 = vpop.f32.mrb[0].mxu0
      %5567 = vmatprep.mubr.f32.mxu0 0.0
      %5568 = vmatmul.mubr.f32.gmra.mrb[0].mxu0 %v3337
      %v5569 = vpop.f32.mrb[0].mxu0
      %v5570 = vadd.f32 0.0, %v5569
      %v5571 = vpop.f32.mrb[0].mxu0
      %5572 = vmatprep.mubr.f32.mxu0 0.0
      %5573 = vmatmul.mubr.f32.gmra.mrb[0].mxu0 %v5465
      %v5574 = vpop.f32.mrb[0].mxu0
      %v5575 = vadd.f32 0.0, %v5574
      %v5576 = vpop.f32.mrb[0].mxu0
      %5577 = vmatprep.mubr.f32.mxu0 0.0
      %5578 = vmatmul.mubr.f32.gmra.mrb[0].mxu0 %v3341
      %v5579 = vpop.f32.mrb[0].mxu0
      %v5580 = vadd.f32 0.0, %v5579
      %v5581 = vpop.f32.mrb[0].mxu0
      %5582 = vmatprep.mubr.f32.mxu0 0.0
      %5583 = vmatmul.mubr.f32.gmra.mrb[0].mxu0 %v5467
      %v5584 = vpop.f32.mrb[0].mxu0
      %v5585 = vadd.f32 0.0, %v5584
      %v5586 = vpop.f32.mrb[0].mxu0
      %5587 = vmatprep.mubr.f32.mxu0 0.0
      %5588 = vmatmul.mubr.f32.gmra.mrb[0].mxu0 %v5469
      %v5589 = vpop.f32.mrb[0].mxu0
      %v5590 = vadd.f32 0.0, %v5589
      %v5591 = vpop.f32.mrb[0].mxu0
      %5592 = vmatprep.mubr.f32.mxu0 0.0
      %5593 = vmatmul.mubr.f32.gmra.mrb[0].mxu0 %v3347
      %v5594 = vpop.f32.mrb[0].mxu0
      %v5595 = vadd.f32 0.0, %v5594
      %v5596 = vpop.f32.mrb[0].mxu0
      %5597 = vmatprep.mubr.f32.mxu0 0.0
      %5598 = vmatmul.mubr.f32.gmra.mrb[0].mxu0 %v5471
      %v5599 = vpop.f32.mrb[0].mxu0
      %v5600 = vadd.f32 0.0, %v5599
      %v5601 = vpop.f32.mrb[0].mxu0
      %5602 = vmatprep.mubr.f32.mxu0 0.0
      %5603 = vmatmul.mubr.f32.gmra.mrb[0].mxu0 %v3351
      %v5604 = vpop.f32.mrb[0].mxu0
      %v5605 = vadd.f32 0.0, %v5604
      %v5606 = vpop.f32.mrb[0].mxu0
      %5607 = vmatprep.mubr.f32.mxu0 0.0
      %5608 = vmatmul.mubr.f32.gmra.mrb[0].mxu0 %v5473
      %v5609 = vpop.f32.mrb[0].mxu0
      %v5610 = vadd.f32 0.0, %v5609
      %v5611 = vpop.f32.mrb[0].mxu0
      %5612 = vmatprep.mubr.f32.mxu0 0.0
      %5613 = vmatmul.mubr.f32.gmra.mrb[0].mxu0 %v3355
      %v5614 = vpop.f32.mrb[0].mxu0
      %v5615 = vadd.f32 0.0, %v5614
      %v5616 = vpop.f32.mrb[0].mxu0
      %5617 = vmatprep.mubr.f32.mxu0 0.0
      %5618 = vmatmul.mubr.f32.gmra.mrb[0].mxu0 %v5475
      %v5619 = vpop.f32.mrb[0].mxu0
      %v5620 = vadd.f32 0.0, %v5619
      %v5621 = vpop.f32.mrb[0].mxu0
      %5622 = vmatprep.mubr.f32.mxu0 0.0
      %5623 = vmatmul.mubr.f32.gmra.mrb[0].mxu0 %v5477
      %v5624 = vpop.f32.mrb[0].mxu0
      %v5625 = vadd.f32 0.0, %v5624
      %v5626 = vpop.f32.mrb[0].mxu0
      %5627 = vmatprep.mubr.f32.mxu0 0.0
      %5628 = vmatmul.mubr.f32.gmra.mrb[0].mxu0 %v3361
      %v5629 = vpop.f32.mrb[0].mxu0
      %v5630 = vadd.f32 0.0, %v5629
      %v5631 = vpop.f32.mrb[0].mxu0
      %5632 = vmatprep.mubr.f32.mxu0 0.0
      %5633 = vmatmul.mubr.f32.gmra.mrb[0].mxu0 %v5479
      %v5634 = vpop.f32.mrb[0].mxu0
      %v5635 = vadd.f32 0.0, %v5634
      %v5636 = vpop.f32.mrb[0].mxu0
      %5637 = vmatprep.mubr.f32.mxu0 0.0
      %5638 = vmatmul.mubr.f32.gmra.mrb[0].mxu0 %v3365
      %v5639 = vpop.f32.mrb[0].mxu0
      %v5640 = vadd.f32 0.0, %v5639
      %v5641 = vpop.f32.mrb[0].mxu0
      %5642 = vmatprep.mubr.f32.mxu0 0.0
      %5643 = vmatmul.mubr.f32.gmra.mrb[0].mxu0 %v5481
      %v5644 = vpop.f32.mrb[0].mxu0
      %v5645 = vadd.f32 0.0, %v5644
      %v5646 = vpop.f32.mrb[0].mxu0
      %5647 = vmatprep.mubr.f32.mxu0 0.0
      %5648 = vmatmul.mubr.f32.gmra.mrb[0].mxu0 %v3369
      %v5649 = vpop.f32.mrb[0].mxu0
      %v5650 = vadd.f32 0.0, %v5649
      %v5651 = vpop.f32.mrb[0].mxu0
      %5652 = vmatprep.mubr.f32.mxu0 0.0
      %5653 = vmatmul.mubr.f32.gmra.mrb[0].mxu0 %v5483
      %v5654 = vpop.f32.mrb[0].mxu0
      %v5655 = vadd.f32 0.0, %v5654
      %v5656 = vpop.f32.mrb[0].mxu0
      %5657 = vmatprep.mubr.f32.mxu0 0.0
      %5658 = vmatmul.mubr.f32.gmra.mrb[0].mxu0 %v5485
      %v5659 = vpop.f32.mrb[0].mxu0
      %v5660 = vadd.f32 0.0, %v5659
      %v5661 = vpop.f32.mrb[0].mxu0
      %5662 = vmatprep.mubr.f32.mxu0 0.0
      %5663 = vmatmul.mubr.f32.gmra.mrb[0].mxu0 %v3375
      %v5664 = vpop.f32.mrb[0].mxu0
      %v5665 = vadd.f32 0.0, %v5664
      %v5666 = vpop.f32.mrb[0].mxu0
      %5667 = vmatprep.mubr.f32.mxu0 0.0
      %5668 = vmatmul.mubr.f32.gmra.mrb[0].mxu0 %v5487
      %v5669 = vpop.f32.mrb[0].mxu0
      %v5670 = vadd.f32 0.0, %v5669
      %v5671 = vpop.f32.mrb[0].mxu0
      %5672 = vmatprep.mubr.f32.mxu0 0.0
      %5673 = vmatmul.mubr.f32.gmra.mrb[0].mxu0 %v5489
      %v5674 = vpop.f32.mrb[0].mxu0
      %v5675 = vadd.f32 0.0, %v5674
      %v5676 = vpop.f32.mrb[0].mxu0
      %5677 = vmatprep.mubr.f32.mxu0 0.0
      %5678 = vmatmul.mubr.f32.gmra.mrb[0].mxu0 %v5491
      %v5679 = vpop.f32.mrb[0].mxu0
      %v5680 = vadd.f32 0.0, %v5679
      %v5681 = vpop.f32.mrb[0].mxu0
      %5682 = vdwg.mxu0
      %v5683 = vadd.f32 %v5392, %v5560
      %v5684 = vadd.f32 %v5393, %v5565
      %v5685 = vadd.f32 %v5394, %v5570
      %v5686 = vadd.f32 %v5395, %v5575
      %v5687 = vadd.f32 %v5396, %v5580
      %v5688 = vadd.f32 %v5397, %v5585
      %v5689 = vadd.f32 %v5398, %v5590
      %v5690 = vadd.f32 %v5399, %v5595
      %v5691 = vadd.f32 %v5400, %v5600
      %v5692 = vadd.f32 %v5401, %v5605
      %v5693 = vadd.f32 %v5402, %v5610
      %v5694 = vadd.f32 %v5403, %v5615
      %v5695 = vadd.f32 %v5404, %v5620
      %v5696 = vadd.f32 %v5405, %v5625
      %v5697 = vadd.f32 %v5406, %v5630
      %v5698 = vadd.f32 %v5407, %v5635
      %v5699 = vadd.f32 %v5408, %v5640
      %v5700 = vadd.f32 %v5409, %v5645
      %v5701 = vadd.f32 %v5410, %v5650
      %v5702 = vadd.f32 %v5411, %v5655
      %v5703 = vadd.f32 %v5412, %v5660
      %v5704 = vadd.f32 %v5413, %v5665
      %v5705 = vadd.f32 %v5414, %v5670
      %v5706 = vadd.f32 %v5415, %v5675
      %v5707 = vadd.f32 %v5416, %v5680
      %v5709 = vlaneseq
      %v5710 = vshrl.u32 %v5709, 7
      %v5711 = vsub.s32 0, %v5710
      %v5712 = vrot.slane %v288, %v5711
      %v5714 = vadd.f32 %v5683, %v5712
      %v5715 = vadd.f32 %v5684, %v5712
      %v5716 = vadd.f32 %v5685, %v5712
      %v5717 = vadd.f32 %v5686, %v5712
      %v5718 = vadd.f32 %v5687, %v5712
      %v5719 = vadd.f32 %v5688, %v5712
      %v5720 = vadd.f32 %v5689, %v5712
      %v5721 = vadd.f32 %v5690, %v5712
      %v5722 = vadd.f32 %v5691, %v5712
      %v5723 = vadd.f32 %v5692, %v5712
      %v5724 = vadd.f32 %v5693, %v5712
      %v5725 = vadd.f32 %v5694, %v5712
      %v5726 = vadd.f32 %v5695, %v5712
      %v5727 = vadd.f32 %v5696, %v5712
      %v5728 = vadd.f32 %v5697, %v5712
      %v5729 = vadd.f32 %v5698, %v5712
      %v5730 = vadd.f32 %v5699, %v5712
      %v5731 = vadd.f32 %v5700, %v5712
      %v5732 = vadd.f32 %v5701, %v5712
      %v5733 = vadd.f32 %v5702, %v5712
      %v5734 = vadd.f32 %v5703, %v5712
      %v5735 = vadd.f32 %v5704, %v5712
      %v5736 = vadd.f32 %v5705, %v5712
      %v5737 = vadd.f32 %v5706, %v5712
      %v5738 = vadd.f32 %v5707, %v5712
      %v5739 = vmax.f32 %v5714, 0.0
      %v5740 = vmax.f32 %v5715, 0.0
      %v5741 = vmax.f32 %v5716, 0.0
      %v5742 = vmax.f32 %v5717, 0.0
      %v5743 = vmax.f32 %v5718, 0.0
      %v5744 = vmax.f32 %v5719, 0.0
      %v5745 = vmax.f32 %v5720, 0.0
      %v5746 = vmax.f32 %v5721, 0.0
      %v5747 = vmax.f32 %v5722, 0.0
      %v5748 = vmax.f32 %v5723, 0.0
      %v5749 = vmax.f32 %v5724, 0.0
      %v5750 = vmax.f32 %v5725, 0.0
      %v5751 = vmax.f32 %v5726, 0.0
      %v5752 = vmax.f32 %v5727, 0.0
      %v5753 = vmax.f32 %v5728, 0.0
      %v5754 = vmax.f32 %v5729, 0.0
      %v5755 = vmax.f32 %v5730, 0.0
      %v5756 = vmax.f32 %v5731, 0.0
      %v5757 = vmax.f32 %v5732, 0.0
      %v5758 = vmax.f32 %v5733, 0.0
      %v5759 = vmax.f32 %v5734, 0.0
      %v5760 = vmax.f32 %v5735, 0.0
      %v5761 = vmax.f32 %v5736, 0.0
      %v5762 = vmax.f32 %v5737, 0.0
      %v5763 = vmax.f32 %v5738, 0.0
      %v5789 = vcombine.high %v5739, %v5739
      %v5791 = vunpack.c.l.s4 1983009808
      %v5792 = vunpack.c.0.s8 %v5791
      %v5793 = vlaneseq
      %v5794 = vshrl.u32 %v5793, 7
      %v5795 = vsub.s32 %v5792, %v5794
      %v5796 = vrot.slane %v5739, %v5795
      %v5798 = vunpack.c.l.s4 1983009808
      %v5799 = vunpack.c.0.s8 %v5798
      %v5800 = vlaneseq
      %v5801 = vshrl.u32 %v5800, 7
      %v5802 = vsub.s32 %v5799, %v5801
      %v5803 = vrot.slane %v5789, %v5802
      %v5804 = vcombine.high %v5796, %v5796
      %v5805 = vcombine.high %v5803, %v5803
      %v5806 = vcombine.high %v5740, %v5740
      %v5808 = vunpack.c.l.s4 1983009808
      %v5809 = vunpack.c.0.s8 %v5808
      %v5810 = vlaneseq
      %v5811 = vshrl.u32 %v5810, 7
      %v5812 = vsub.s32 %v5809, %v5811
      %v5813 = vrot.slane %v5740, %v5812
      %v5815 = vunpack.c.l.s4 1983009808
      %v5816 = vunpack.c.0.s8 %v5815
      %v5817 = vlaneseq
      %v5818 = vshrl.u32 %v5817, 7
      %v5819 = vsub.s32 %v5816, %v5818
      %v5820 = vrot.slane %v5806, %v5819
      %v5821 = vcombine.high %v5813, %v5813
      %v5822 = vcombine.high %v5820, %v5820
      %v5823 = vcombine.high %v5741, %v5741
      %v5825 = vunpack.c.l.s4 1983009808
      %v5826 = vunpack.c.0.s8 %v5825
      %v5827 = vlaneseq
      %v5828 = vshrl.u32 %v5827, 7
      %v5829 = vsub.s32 %v5826, %v5828
      %v5830 = vrot.slane %v5741, %v5829
      %v5832 = vunpack.c.l.s4 1983009808
      %v5833 = vunpack.c.0.s8 %v5832
      %v5834 = vlaneseq
      %v5835 = vshrl.u32 %v5834, 7
      %v5836 = vsub.s32 %v5833, %v5835
      %v5837 = vrot.slane %v5823, %v5836
      %v5838 = vcombine.high %v5830, %v5830
      %v5839 = vcombine.high %v5837, %v5837
      %v5840 = vcombine.high %v5742, %v5742
      %v5842 = vunpack.c.l.s4 1983009808
      %v5843 = vunpack.c.0.s8 %v5842
      %v5844 = vlaneseq
      %v5845 = vshrl.u32 %v5844, 7
      %v5846 = vsub.s32 %v5843, %v5845
      %v5847 = vrot.slane %v5742, %v5846
      %v5849 = vunpack.c.l.s4 1983009808
      %v5850 = vunpack.c.0.s8 %v5849
      %v5851 = vlaneseq
      %v5852 = vshrl.u32 %v5851, 7
      %v5853 = vsub.s32 %v5850, %v5852
      %v5854 = vrot.slane %v5840, %v5853
      %v5855 = vcombine.high %v5847, %v5847
      %v5856 = vcombine.high %v5854, %v5854
      %v5857 = vcombine.high %v5743, %v5743
      %v5859 = vunpack.c.l.s4 1983009808
      %v5860 = vunpack.c.0.s8 %v5859
      %v5861 = vlaneseq
      %v5862 = vshrl.u32 %v5861, 7
      %v5863 = vsub.s32 %v5860, %v5862
      %v5864 = vrot.slane %v5743, %v5863
      %v5866 = vunpack.c.l.s4 1983009808
      %v5867 = vunpack.c.0.s8 %v5866
      %v5868 = vlaneseq
      %v5869 = vshrl.u32 %v5868, 7
      %v5870 = vsub.s32 %v5867, %v5869
      %v5871 = vrot.slane %v5857, %v5870
      %v5872 = vcombine.high %v5864, %v5864
      %v5873 = vcombine.high %v5871, %v5871
      %v5874 = vcombine.high %v5744, %v5744
      %v5876 = vunpack.c.l.s4 1983009808
      %v5877 = vunpack.c.0.s8 %v5876
      %v5878 = vlaneseq
      %v5879 = vshrl.u32 %v5878, 7
      %v5880 = vsub.s32 %v5877, %v5879
      %v5881 = vrot.slane %v5744, %v5880
      %v5883 = vunpack.c.l.s4 1983009808
      %v5884 = vunpack.c.0.s8 %v5883
      %v5885 = vlaneseq
      %v5886 = vshrl.u32 %v5885, 7
      %v5887 = vsub.s32 %v5884, %v5886
      %v5888 = vrot.slane %v5874, %v5887
      %v5889 = vcombine.high %v5881, %v5881
      %v5890 = vcombine.high %v5888, %v5888
      %v5891 = vcombine.high %v5745, %v5745
      %v5893 = vunpack.c.l.s4 1983009808
      %v5894 = vunpack.c.0.s8 %v5893
      %v5895 = vlaneseq
      %v5896 = vshrl.u32 %v5895, 7
      %v5897 = vsub.s32 %v5894, %v5896
      %v5898 = vrot.slane %v5745, %v5897
      %v5900 = vunpack.c.l.s4 1983009808
      %v5901 = vunpack.c.0.s8 %v5900
      %v5902 = vlaneseq
      %v5903 = vshrl.u32 %v5902, 7
      %v5904 = vsub.s32 %v5901, %v5903
      %v5905 = vrot.slane %v5891, %v5904
      %v5906 = vcombine.high %v5898, %v5898
      %v5907 = vcombine.high %v5905, %v5905
      %v5908 = vcombine.high %v5746, %v5746
      %v5910 = vunpack.c.l.s4 1983009808
      %v5911 = vunpack.c.0.s8 %v5910
      %v5912 = vlaneseq
      %v5913 = vshrl.u32 %v5912, 7
      %v5914 = vsub.s32 %v5911, %v5913
      %v5915 = vrot.slane %v5746, %v5914
      %v5917 = vunpack.c.l.s4 1983009808
      %v5918 = vunpack.c.0.s8 %v5917
      %v5919 = vlaneseq
      %v5920 = vshrl.u32 %v5919, 7
      %v5921 = vsub.s32 %v5918, %v5920
      %v5922 = vrot.slane %v5908, %v5921
      %v5923 = vcombine.high %v5915, %v5915
      %v5924 = vcombine.high %v5922, %v5922
      %v5925 = vcombine.high %v5747, %v5747
      %v5927 = vunpack.c.l.s4 1983009808
      %v5928 = vunpack.c.0.s8 %v5927
      %v5929 = vlaneseq
      %v5930 = vshrl.u32 %v5929, 7
      %v5931 = vsub.s32 %v5928, %v5930
      %v5932 = vrot.slane %v5747, %v5931
      %v5934 = vunpack.c.l.s4 1983009808
      %v5935 = vunpack.c.0.s8 %v5934
      %v5936 = vlaneseq
      %v5937 = vshrl.u32 %v5936, 7
      %v5938 = vsub.s32 %v5935, %v5937
      %v5939 = vrot.slane %v5925, %v5938
      %v5940 = vcombine.high %v5932, %v5932
      %v5941 = vcombine.high %v5939, %v5939
      %v5942 = vcombine.high %v5748, %v5748
      %v5944 = vunpack.c.l.s4 1983009808
      %v5945 = vunpack.c.0.s8 %v5944
      %v5946 = vlaneseq
      %v5947 = vshrl.u32 %v5946, 7
      %v5948 = vsub.s32 %v5945, %v5947
      %v5949 = vrot.slane %v5748, %v5948
      %v5951 = vunpack.c.l.s4 1983009808
      %v5952 = vunpack.c.0.s8 %v5951
      %v5953 = vlaneseq
      %v5954 = vshrl.u32 %v5953, 7
      %v5955 = vsub.s32 %v5952, %v5954
      %v5956 = vrot.slane %v5942, %v5955
      %v5957 = vcombine.high %v5949, %v5949
      %v5958 = vcombine.high %v5956, %v5956
      %v5959 = vcombine.high %v5749, %v5749
      %v5961 = vunpack.c.l.s4 1983009808
      %v5962 = vunpack.c.0.s8 %v5961
      %v5963 = vlaneseq
      %v5964 = vshrl.u32 %v5963, 7
      %v5965 = vsub.s32 %v5962, %v5964
      %v5966 = vrot.slane %v5749, %v5965
      %v5968 = vunpack.c.l.s4 1983009808
      %v5969 = vunpack.c.0.s8 %v5968
      %v5970 = vlaneseq
      %v5971 = vshrl.u32 %v5970, 7
      %v5972 = vsub.s32 %v5969, %v5971
      %v5973 = vrot.slane %v5959, %v5972
      %v5974 = vcombine.high %v5966, %v5966
      %v5975 = vcombine.high %v5973, %v5973
      %v5976 = vcombine.high %v5750, %v5750
      %v5978 = vunpack.c.l.s4 1983009808
      %v5979 = vunpack.c.0.s8 %v5978
      %v5980 = vlaneseq
      %v5981 = vshrl.u32 %v5980, 7
      %v5982 = vsub.s32 %v5979, %v5981
      %v5983 = vrot.slane %v5750, %v5982
      %v5985 = vunpack.c.l.s4 1983009808
      %v5986 = vunpack.c.0.s8 %v5985
      %v5987 = vlaneseq
      %v5988 = vshrl.u32 %v5987, 7
      %v5989 = vsub.s32 %v5986, %v5988
      %v5990 = vrot.slane %v5976, %v5989
      %v5991 = vcombine.high %v5983, %v5983
      %v5992 = vcombine.high %v5990, %v5990
      %v5993 = vcombine.high %v5751, %v5751
      %v5995 = vunpack.c.l.s4 1983009808
      %v5996 = vunpack.c.0.s8 %v5995
      %v5997 = vlaneseq
      %v5998 = vshrl.u32 %v5997, 7
      %v5999 = vsub.s32 %v5996, %v5998
      %v6000 = vrot.slane %v5751, %v5999
      %v6002 = vunpack.c.l.s4 1983009808
      %v6003 = vunpack.c.0.s8 %v6002
      %v6004 = vlaneseq
      %v6005 = vshrl.u32 %v6004, 7
      %v6006 = vsub.s32 %v6003, %v6005
      %v6007 = vrot.slane %v5993, %v6006
      %v6008 = vcombine.high %v6000, %v6000
      %v6009 = vcombine.high %v6007, %v6007
      %v6010 = vcombine.high %v5752, %v5752
      %v6012 = vunpack.c.l.s4 1983009808
      %v6013 = vunpack.c.0.s8 %v6012
      %v6014 = vlaneseq
      %v6015 = vshrl.u32 %v6014, 7
      %v6016 = vsub.s32 %v6013, %v6015
      %v6017 = vrot.slane %v5752, %v6016
      %v6019 = vunpack.c.l.s4 1983009808
      %v6020 = vunpack.c.0.s8 %v6019
      %v6021 = vlaneseq
      %v6022 = vshrl.u32 %v6021, 7
      %v6023 = vsub.s32 %v6020, %v6022
      %v6024 = vrot.slane %v6010, %v6023
      %v6025 = vcombine.high %v6017, %v6017
      %v6026 = vcombine.high %v6024, %v6024
      %v6027 = vcombine.high %v5753, %v5753
      %v6029 = vunpack.c.l.s4 1983009808
      %v6030 = vunpack.c.0.s8 %v6029
      %v6031 = vlaneseq
      %v6032 = vshrl.u32 %v6031, 7
      %v6033 = vsub.s32 %v6030, %v6032
      %v6034 = vrot.slane %v5753, %v6033
      %v6036 = vunpack.c.l.s4 1983009808
      %v6037 = vunpack.c.0.s8 %v6036
      %v6038 = vlaneseq
      %v6039 = vshrl.u32 %v6038, 7
      %v6040 = vsub.s32 %v6037, %v6039
      %v6041 = vrot.slane %v6027, %v6040
      %v6042 = vcombine.high %v6034, %v6034
      %v6043 = vcombine.high %v6041, %v6041
      %v6044 = vcombine.high %v5754, %v5754
      %v6046 = vunpack.c.l.s4 1983009808
      %v6047 = vunpack.c.0.s8 %v6046
      %v6048 = vlaneseq
      %v6049 = vshrl.u32 %v6048, 7
      %v6050 = vsub.s32 %v6047, %v6049
      %v6051 = vrot.slane %v5754, %v6050
      %v6053 = vunpack.c.l.s4 1983009808
      %v6054 = vunpack.c.0.s8 %v6053
      %v6055 = vlaneseq
      %v6056 = vshrl.u32 %v6055, 7
      %v6057 = vsub.s32 %v6054, %v6056
      %v6058 = vrot.slane %v6044, %v6057
      %v6059 = vcombine.high %v6051, %v6051
      %v6060 = vcombine.high %v6058, %v6058
      %v6061 = vcombine.high %v5755, %v5755
      %v6063 = vunpack.c.l.s4 1983009808
      %v6064 = vunpack.c.0.s8 %v6063
      %v6065 = vlaneseq
      %v6066 = vshrl.u32 %v6065, 7
      %v6067 = vsub.s32 %v6064, %v6066
      %v6068 = vrot.slane %v5755, %v6067
      %v6070 = vunpack.c.l.s4 1983009808
      %v6071 = vunpack.c.0.s8 %v6070
      %v6072 = vlaneseq
      %v6073 = vshrl.u32 %v6072, 7
      %v6074 = vsub.s32 %v6071, %v6073
      %v6075 = vrot.slane %v6061, %v6074
      %v6076 = vcombine.high %v6068, %v6068
      %v6077 = vcombine.high %v6075, %v6075
      %v6078 = vcombine.high %v5756, %v5756
      %v6080 = vunpack.c.l.s4 1983009808
      %v6081 = vunpack.c.0.s8 %v6080
      %v6082 = vlaneseq
      %v6083 = vshrl.u32 %v6082, 7
      %v6084 = vsub.s32 %v6081, %v6083
      %v6085 = vrot.slane %v5756, %v6084
      %v6087 = vunpack.c.l.s4 1983009808
      %v6088 = vunpack.c.0.s8 %v6087
      %v6089 = vlaneseq
      %v6090 = vshrl.u32 %v6089, 7
      %v6091 = vsub.s32 %v6088, %v6090
      %v6092 = vrot.slane %v6078, %v6091
      %v6093 = vcombine.high %v6085, %v6085
      %v6094 = vcombine.high %v6092, %v6092
      %v6095 = vcombine.high %v5757, %v5757
      %v6097 = vunpack.c.l.s4 1983009808
      %v6098 = vunpack.c.0.s8 %v6097
      %v6099 = vlaneseq
      %v6100 = vshrl.u32 %v6099, 7
      %v6101 = vsub.s32 %v6098, %v6100
      %v6102 = vrot.slane %v5757, %v6101
      %v6104 = vunpack.c.l.s4 1983009808
      %v6105 = vunpack.c.0.s8 %v6104
      %v6106 = vlaneseq
      %v6107 = vshrl.u32 %v6106, 7
      %v6108 = vsub.s32 %v6105, %v6107
      %v6109 = vrot.slane %v6095, %v6108
      %v6110 = vcombine.high %v6102, %v6102
      %v6111 = vcombine.high %v6109, %v6109
      %v6112 = vcombine.high %v5758, %v5758
      %v6114 = vunpack.c.l.s4 1983009808
      %v6115 = vunpack.c.0.s8 %v6114
      %v6116 = vlaneseq
      %v6117 = vshrl.u32 %v6116, 7
      %v6118 = vsub.s32 %v6115, %v6117
      %v6119 = vrot.slane %v5758, %v6118
      %v6121 = vunpack.c.l.s4 1983009808
      %v6122 = vunpack.c.0.s8 %v6121
      %v6123 = vlaneseq
      %v6124 = vshrl.u32 %v6123, 7
      %v6125 = vsub.s32 %v6122, %v6124
      %v6126 = vrot.slane %v6112, %v6125
      %v6127 = vcombine.high %v6119, %v6119
      %v6128 = vcombine.high %v6126, %v6126
      %v6129 = vcombine.high %v5759, %v5759
      %v6131 = vunpack.c.l.s4 1983009808
      %v6132 = vunpack.c.0.s8 %v6131
      %v6133 = vlaneseq
      %v6134 = vshrl.u32 %v6133, 7
      %v6135 = vsub.s32 %v6132, %v6134
      %v6136 = vrot.slane %v5759, %v6135
      %v6138 = vunpack.c.l.s4 1983009808
      %v6139 = vunpack.c.0.s8 %v6138
      %v6140 = vlaneseq
      %v6141 = vshrl.u32 %v6140, 7
      %v6142 = vsub.s32 %v6139, %v6141
      %v6143 = vrot.slane %v6129, %v6142
      %v6144 = vcombine.high %v6136, %v6136
      %v6145 = vcombine.high %v6143, %v6143
      %v6146 = vcombine.high %v5760, %v5760
      %v6148 = vunpack.c.l.s4 1983009808
      %v6149 = vunpack.c.0.s8 %v6148
      %v6150 = vlaneseq
      %v6151 = vshrl.u32 %v6150, 7
      %v6152 = vsub.s32 %v6149, %v6151
      %v6153 = vrot.slane %v5760, %v6152
      %v6155 = vunpack.c.l.s4 1983009808
      %v6156 = vunpack.c.0.s8 %v6155
      %v6157 = vlaneseq
      %v6158 = vshrl.u32 %v6157, 7
      %v6159 = vsub.s32 %v6156, %v6158
      %v6160 = vrot.slane %v6146, %v6159
      %v6161 = vcombine.high %v6153, %v6153
      %v6162 = vcombine.high %v6160, %v6160
      %v6163 = vcombine.high %v5761, %v5761
      %v6165 = vunpack.c.l.s4 1983009808
      %v6166 = vunpack.c.0.s8 %v6165
      %v6167 = vlaneseq
      %v6168 = vshrl.u32 %v6167, 7
      %v6169 = vsub.s32 %v6166, %v6168
      %v6170 = vrot.slane %v5761, %v6169
      %v6172 = vunpack.c.l.s4 1983009808
      %v6173 = vunpack.c.0.s8 %v6172
      %v6174 = vlaneseq
      %v6175 = vshrl.u32 %v6174, 7
      %v6176 = vsub.s32 %v6173, %v6175
      %v6177 = vrot.slane %v6163, %v6176
      %v6178 = vcombine.high %v6170, %v6170
      %v6179 = vcombine.high %v6177, %v6177
      %v6180 = vcombine.high %v5762, %v5762
      %v6182 = vunpack.c.l.s4 1983009808
      %v6183 = vunpack.c.0.s8 %v6182
      %v6184 = vlaneseq
      %v6185 = vshrl.u32 %v6184, 7
      %v6186 = vsub.s32 %v6183, %v6185
      %v6187 = vrot.slane %v5762, %v6186
      %v6189 = vunpack.c.l.s4 1983009808
      %v6190 = vunpack.c.0.s8 %v6189
      %v6191 = vlaneseq
      %v6192 = vshrl.u32 %v6191, 7
      %v6193 = vsub.s32 %v6190, %v6192
      %v6194 = vrot.slane %v6180, %v6193
      %v6195 = vcombine.high %v6187, %v6187
      %v6196 = vcombine.high %v6194, %v6194
      %v6198 = vunpack.c.l.s4 1983009808
      %v6199 = vunpack.c.0.s8 %v6198
      %v6200 = vlaneseq
      %v6201 = vshrl.u32 %v6200, 7
      %v6202 = vsub.s32 %v6199, %v6201
      %v6203 = vrot.slane %v5763, %v6202
      %v6204 = vcombine.high %v6203, %v6203
      %v6205 = vcombine.low %v5796, %v5804
      %v6206 = vcombine.low %v5803, %v5805
      %v6208 = vunpack.c.l.s4 1983009808
      %v6209 = vunpack.c.0.s8 %v6208
      %v6210 = vlaneseq
      %v6211 = vshrl.u32 %v6210, 7
      %v6212 = vsub.s32 %v6209, %v6211
      %v6213 = vrot.slane %v6205, %v6212
      %v6215 = vunpack.c.l.s4 1983009808
      %v6216 = vunpack.c.0.s8 %v6215
      %v6217 = vlaneseq
      %v6218 = vshrl.u32 %v6217, 7
      %v6219 = vsub.s32 %v6216, %v6218
      %v6220 = vrot.slane %v6206, %v6219
      %v6221 = vcombine.low %v6213, %v6220
      %v6222 = vcombine.low %v5813, %v5821
      %v6224 = vunpack.c.l.s4 1983009808
      %v6225 = vunpack.c.0.s8 %v6224
      %v6226 = vlaneseq
      %v6227 = vshrl.u32 %v6226, 7
      %v6228 = vsub.s32 %v6225, %v6227
      %v6229 = vrot.slane %v6222, %v6228
      %v6231 = vunpack.c.l.s4 1983009808
      %v6232 = vunpack.c.0.s8 %v6231
      %v6233 = vlaneseq
      %v6234 = vshrl.u32 %v6233, 7
      %v6235 = vsub.s32 %v6232, %v6234
      %v6236 = vrot.slane %v5820, %v6235
      %v6237 = vcombine.low %v6229, %v6236
      %v6238 = vcombine.low %v5822, %v5830
      %v6239 = vcombine.low %v5838, %v5837
      %v6241 = vunpack.c.l.s4 1983009808
      %v6242 = vunpack.c.0.s8 %v6241
      %v6243 = vlaneseq
      %v6244 = vshrl.u32 %v6243, 7
      %v6245 = vsub.s32 %v6242, %v6244
      %v6246 = vrot.slane %v6238, %v6245
      %v6248 = vunpack.c.l.s4 1983009808
      %v6249 = vunpack.c.0.s8 %v6248
      %v6250 = vlaneseq
      %v6251 = vshrl.u32 %v6250, 7
      %v6252 = vsub.s32 %v6249, %v6251
      %v6253 = vrot.slane %v6239, %v6252
      %v6254 = vcombine.low %v6246, %v6253
      %v6255 = vcombine.low %v5839, %v5847
      %v6257 = vunpack.c.l.s4 1983009808
      %v6258 = vunpack.c.0.s8 %v6257
      %v6259 = vlaneseq
      %v6260 = vshrl.u32 %v6259, 7
      %v6261 = vsub.s32 %v6258, %v6260
      %v6262 = vrot.slane %v6255, %v6261
      %v6264 = vunpack.c.l.s4 1983009808
      %v6265 = vunpack.c.0.s8 %v6264
      %v6266 = vlaneseq
      %v6267 = vshrl.u32 %v6266, 7
      %v6268 = vsub.s32 %v6265, %v6267
      %v6269 = vrot.slane %v5855, %v6268
      %v6270 = vcombine.low %v6262, %v6269
      %v6271 = vcombine.low %v5854, %v5856
      %v6272 = vcombine.low %v5864, %v5872
      %v6274 = vunpack.c.l.s4 1983009808
      %v6275 = vunpack.c.0.s8 %v6274
      %v6276 = vlaneseq
      %v6277 = vshrl.u32 %v6276, 7
      %v6278 = vsub.s32 %v6275, %v6277
      %v6279 = vrot.slane %v6271, %v6278
      %v6281 = vunpack.c.l.s4 1983009808
      %v6282 = vunpack.c.0.s8 %v6281
      %v6283 = vlaneseq
      %v6284 = vshrl.u32 %v6283, 7
      %v6285 = vsub.s32 %v6282, %v6284
      %v6286 = vrot.slane %v6272, %v6285
      %v6287 = vcombine.low %v6279, %v6286
      %v6288 = vcombine.low %v5871, %v5873
      %v6290 = vunpack.c.l.s4 1983009808
      %v6291 = vunpack.c.0.s8 %v6290
      %v6292 = vlaneseq
      %v6293 = vshrl.u32 %v6292, 7
      %v6294 = vsub.s32 %v6291, %v6293
      %v6295 = vrot.slane %v6288, %v6294
      %v6297 = vunpack.c.l.s4 1983009808
      %v6298 = vunpack.c.0.s8 %v6297
      %v6299 = vlaneseq
      %v6300 = vshrl.u32 %v6299, 7
      %v6301 = vsub.s32 %v6298, %v6300
      %v6302 = vrot.slane %v5881, %v6301
      %v6303 = vcombine.low %v6295, %v6302
      %v6304 = vcombine.low %v5889, %v5888
      %v6305 = vcombine.low %v5890, %v5898
      %v6307 = vunpack.c.l.s4 1983009808
      %v6308 = vunpack.c.0.s8 %v6307
      %v6309 = vlaneseq
      %v6310 = vshrl.u32 %v6309, 7
      %v6311 = vsub.s32 %v6308, %v6310
      %v6312 = vrot.slane %v6304, %v6311
      %v6314 = vunpack.c.l.s4 1983009808
      %v6315 = vunpack.c.0.s8 %v6314
      %v6316 = vlaneseq
      %v6317 = vshrl.u32 %v6316, 7
      %v6318 = vsub.s32 %v6315, %v6317
      %v6319 = vrot.slane %v6305, %v6318
      %v6320 = vcombine.low %v6312, %v6319
      %v6321 = vcombine.low %v5906, %v5905
      %v6323 = vunpack.c.l.s4 1983009808
      %v6324 = vunpack.c.0.s8 %v6323
      %v6325 = vlaneseq
      %v6326 = vshrl.u32 %v6325, 7
      %v6327 = vsub.s32 %v6324, %v6326
      %v6328 = vrot.slane %v6321, %v6327
      %v6330 = vunpack.c.l.s4 1983009808
      %v6331 = vunpack.c.0.s8 %v6330
      %v6332 = vlaneseq
      %v6333 = vshrl.u32 %v6332, 7
      %v6334 = vsub.s32 %v6331, %v6333
      %v6335 = vrot.slane %v5907, %v6334
      %v6336 = vcombine.low %v6328, %v6335
      %v6337 = vcombine.low %v5915, %v5923
      %v6338 = vcombine.low %v5922, %v5924
      %v6340 = vunpack.c.l.s4 1983009808
      %v6341 = vunpack.c.0.s8 %v6340
      %v6342 = vlaneseq
      %v6343 = vshrl.u32 %v6342, 7
      %v6344 = vsub.s32 %v6341, %v6343
      %v6345 = vrot.slane %v6337, %v6344
      %v6347 = vunpack.c.l.s4 1983009808
      %v6348 = vunpack.c.0.s8 %v6347
      %v6349 = vlaneseq
      %v6350 = vshrl.u32 %v6349, 7
      %v6351 = vsub.s32 %v6348, %v6350
      %v6352 = vrot.slane %v6338, %v6351
      %v6353 = vcombine.low %v6345, %v6352
      %v6354 = vcombine.low %v5932, %v5940
      %v6356 = vunpack.c.l.s4 1983009808
      %v6357 = vunpack.c.0.s8 %v6356
      %v6358 = vlaneseq
      %v6359 = vshrl.u32 %v6358, 7
      %v6360 = vsub.s32 %v6357, %v6359
      %v6361 = vrot.slane %v6354, %v6360
      %v6363 = vunpack.c.l.s4 1983009808
      %v6364 = vunpack.c.0.s8 %v6363
      %v6365 = vlaneseq
      %v6366 = vshrl.u32 %v6365, 7
      %v6367 = vsub.s32 %v6364, %v6366
      %v6368 = vrot.slane %v5939, %v6367
      %v6369 = vcombine.low %v6361, %v6368
      %v6370 = vcombine.low %v5941, %v5949
      %v6371 = vcombine.low %v5957, %v5956
      %v6373 = vunpack.c.l.s4 1983009808
      %v6374 = vunpack.c.0.s8 %v6373
      %v6375 = vlaneseq
      %v6376 = vshrl.u32 %v6375, 7
      %v6377 = vsub.s32 %v6374, %v6376
      %v6378 = vrot.slane %v6370, %v6377
      %v6380 = vunpack.c.l.s4 1983009808
      %v6381 = vunpack.c.0.s8 %v6380
      %v6382 = vlaneseq
      %v6383 = vshrl.u32 %v6382, 7
      %v6384 = vsub.s32 %v6381, %v6383
      %v6385 = vrot.slane %v6371, %v6384
      %v6386 = vcombine.low %v6378, %v6385
      %v6387 = vcombine.low %v5958, %v5966
      %v6389 = vunpack.c.l.s4 1983009808
      %v6390 = vunpack.c.0.s8 %v6389
      %v6391 = vlaneseq
      %v6392 = vshrl.u32 %v6391, 7
      %v6393 = vsub.s32 %v6390, %v6392
      %v6394 = vrot.slane %v6387, %v6393
      %v6396 = vunpack.c.l.s4 1983009808
      %v6397 = vunpack.c.0.s8 %v6396
      %v6398 = vlaneseq
      %v6399 = vshrl.u32 %v6398, 7
      %v6400 = vsub.s32 %v6397, %v6399
      %v6401 = vrot.slane %v5974, %v6400
      %v6402 = vcombine.low %v6394, %v6401
      %v6403 = vcombine.low %v5973, %v5975
      %v6404 = vcombine.low %v5983, %v5991
      %v6406 = vunpack.c.l.s4 1983009808
      %v6407 = vunpack.c.0.s8 %v6406
      %v6408 = vlaneseq
      %v6409 = vshrl.u32 %v6408, 7
      %v6410 = vsub.s32 %v6407, %v6409
      %v6411 = vrot.slane %v6403, %v6410
      %v6413 = vunpack.c.l.s4 1983009808
      %v6414 = vunpack.c.0.s8 %v6413
      %v6415 = vlaneseq
      %v6416 = vshrl.u32 %v6415, 7
      %v6417 = vsub.s32 %v6414, %v6416
      %v6418 = vrot.slane %v6404, %v6417
      %v6419 = vcombine.low %v6411, %v6418
      %v6420 = vcombine.low %v5990, %v5992
      %v6422 = vunpack.c.l.s4 1983009808
      %v6423 = vunpack.c.0.s8 %v6422
      %v6424 = vlaneseq
      %v6425 = vshrl.u32 %v6424, 7
      %v6426 = vsub.s32 %v6423, %v6425
      %v6427 = vrot.slane %v6420, %v6426
      %v6429 = vunpack.c.l.s4 1983009808
      %v6430 = vunpack.c.0.s8 %v6429
      %v6431 = vlaneseq
      %v6432 = vshrl.u32 %v6431, 7
      %v6433 = vsub.s32 %v6430, %v6432
      %v6434 = vrot.slane %v6000, %v6433
      %v6435 = vcombine.low %v6427, %v6434
      %v6436 = vcombine.low %v6008, %v6007
      %v6437 = vcombine.low %v6009, %v6017
      %v6439 = vunpack.c.l.s4 1983009808
      %v6440 = vunpack.c.0.s8 %v6439
      %v6441 = vlaneseq
      %v6442 = vshrl.u32 %v6441, 7
      %v6443 = vsub.s32 %v6440, %v6442
      %v6444 = vrot.slane %v6436, %v6443
      %v6446 = vunpack.c.l.s4 1983009808
      %v6447 = vunpack.c.0.s8 %v6446
      %v6448 = vlaneseq
      %v6449 = vshrl.u32 %v6448, 7
      %v6450 = vsub.s32 %v6447, %v6449
      %v6451 = vrot.slane %v6437, %v6450
      %v6452 = vcombine.low %v6444, %v6451
      %v6453 = vcombine.low %v6025, %v6024
      %v6455 = vunpack.c.l.s4 1983009808
      %v6456 = vunpack.c.0.s8 %v6455
      %v6457 = vlaneseq
      %v6458 = vshrl.u32 %v6457, 7
      %v6459 = vsub.s32 %v6456, %v6458
      %v6460 = vrot.slane %v6453, %v6459
      %v6462 = vunpack.c.l.s4 1983009808
      %v6463 = vunpack.c.0.s8 %v6462
      %v6464 = vlaneseq
      %v6465 = vshrl.u32 %v6464, 7
      %v6466 = vsub.s32 %v6463, %v6465
      %v6467 = vrot.slane %v6026, %v6466
      %v6468 = vcombine.low %v6460, %v6467
      %v6469 = vcombine.low %v6034, %v6042
      %v6470 = vcombine.low %v6041, %v6043
      %v6472 = vunpack.c.l.s4 1983009808
      %v6473 = vunpack.c.0.s8 %v6472
      %v6474 = vlaneseq
      %v6475 = vshrl.u32 %v6474, 7
      %v6476 = vsub.s32 %v6473, %v6475
      %v6477 = vrot.slane %v6469, %v6476
      %v6479 = vunpack.c.l.s4 1983009808
      %v6480 = vunpack.c.0.s8 %v6479
      %v6481 = vlaneseq
      %v6482 = vshrl.u32 %v6481, 7
      %v6483 = vsub.s32 %v6480, %v6482
      %v6484 = vrot.slane %v6470, %v6483
      %v6485 = vcombine.low %v6477, %v6484
      %v6486 = vcombine.low %v6051, %v6059
      %v6488 = vunpack.c.l.s4 1983009808
      %v6489 = vunpack.c.0.s8 %v6488
      %v6490 = vlaneseq
      %v6491 = vshrl.u32 %v6490, 7
      %v6492 = vsub.s32 %v6489, %v6491
      %v6493 = vrot.slane %v6486, %v6492
      %v6495 = vunpack.c.l.s4 1983009808
      %v6496 = vunpack.c.0.s8 %v6495
      %v6497 = vlaneseq
      %v6498 = vshrl.u32 %v6497, 7
      %v6499 = vsub.s32 %v6496, %v6498
      %v6500 = vrot.slane %v6058, %v6499
      %v6501 = vcombine.low %v6493, %v6500
      %v6502 = vcombine.low %v6060, %v6068
      %v6503 = vcombine.low %v6076, %v6075
      %v6505 = vunpack.c.l.s4 1983009808
      %v6506 = vunpack.c.0.s8 %v6505
      %v6507 = vlaneseq
      %v6508 = vshrl.u32 %v6507, 7
      %v6509 = vsub.s32 %v6506, %v6508
      %v6510 = vrot.slane %v6502, %v6509
      %v6512 = vunpack.c.l.s4 1983009808
      %v6513 = vunpack.c.0.s8 %v6512
      %v6514 = vlaneseq
      %v6515 = vshrl.u32 %v6514, 7
      %v6516 = vsub.s32 %v6513, %v6515
      %v6517 = vrot.slane %v6503, %v6516
      %v6518 = vcombine.low %v6510, %v6517
      %v6519 = vcombine.low %v6077, %v6085
      %v6521 = vunpack.c.l.s4 1983009808
      %v6522 = vunpack.c.0.s8 %v6521
      %v6523 = vlaneseq
      %v6524 = vshrl.u32 %v6523, 7
      %v6525 = vsub.s32 %v6522, %v6524
      %v6526 = vrot.slane %v6519, %v6525
      %v6528 = vunpack.c.l.s4 1983009808
      %v6529 = vunpack.c.0.s8 %v6528
      %v6530 = vlaneseq
      %v6531 = vshrl.u32 %v6530, 7
      %v6532 = vsub.s32 %v6529, %v6531
      %v6533 = vrot.slane %v6093, %v6532
      %v6534 = vcombine.low %v6526, %v6533
      %v6535 = vcombine.low %v6092, %v6094
      %v6536 = vcombine.low %v6102, %v6110
      %v6538 = vunpack.c.l.s4 1983009808
      %v6539 = vunpack.c.0.s8 %v6538
      %v6540 = vlaneseq
      %v6541 = vshrl.u32 %v6540, 7
      %v6542 = vsub.s32 %v6539, %v6541
      %v6543 = vrot.slane %v6535, %v6542
      %v6545 = vunpack.c.l.s4 1983009808
      %v6546 = vunpack.c.0.s8 %v6545
      %v6547 = vlaneseq
      %v6548 = vshrl.u32 %v6547, 7
      %v6549 = vsub.s32 %v6546, %v6548
      %v6550 = vrot.slane %v6536, %v6549
      %v6551 = vcombine.low %v6543, %v6550
      %v6552 = vcombine.low %v6109, %v6111
      %v6554 = vunpack.c.l.s4 1983009808
      %v6555 = vunpack.c.0.s8 %v6554
      %v6556 = vlaneseq
      %v6557 = vshrl.u32 %v6556, 7
      %v6558 = vsub.s32 %v6555, %v6557
      %v6559 = vrot.slane %v6552, %v6558
      %v6561 = vunpack.c.l.s4 1983009808
      %v6562 = vunpack.c.0.s8 %v6561
      %v6563 = vlaneseq
      %v6564 = vshrl.u32 %v6563, 7
      %v6565 = vsub.s32 %v6562, %v6564
      %v6566 = vrot.slane %v6119, %v6565
      %v6567 = vcombine.low %v6559, %v6566
      %v6568 = vcombine.low %v6127, %v6126
      %v6569 = vcombine.low %v6128, %v6136
      %v6571 = vunpack.c.l.s4 1983009808
      %v6572 = vunpack.c.0.s8 %v6571
      %v6573 = vlaneseq
      %v6574 = vshrl.u32 %v6573, 7
      %v6575 = vsub.s32 %v6572, %v6574
      %v6576 = vrot.slane %v6568, %v6575
      %v6578 = vunpack.c.l.s4 1983009808
      %v6579 = vunpack.c.0.s8 %v6578
      %v6580 = vlaneseq
      %v6581 = vshrl.u32 %v6580, 7
      %v6582 = vsub.s32 %v6579, %v6581
      %v6583 = vrot.slane %v6569, %v6582
      %v6584 = vcombine.low %v6576, %v6583
      %v6585 = vcombine.low %v6144, %v6143
      %v6587 = vunpack.c.l.s4 1983009808
      %v6588 = vunpack.c.0.s8 %v6587
      %v6589 = vlaneseq
      %v6590 = vshrl.u32 %v6589, 7
      %v6591 = vsub.s32 %v6588, %v6590
      %v6592 = vrot.slane %v6585, %v6591
      %v6594 = vunpack.c.l.s4 1983009808
      %v6595 = vunpack.c.0.s8 %v6594
      %v6596 = vlaneseq
      %v6597 = vshrl.u32 %v6596, 7
      %v6598 = vsub.s32 %v6595, %v6597
      %v6599 = vrot.slane %v6145, %v6598
      %v6600 = vcombine.low %v6592, %v6599
      %v6601 = vcombine.low %v6153, %v6161
      %v6602 = vcombine.low %v6160, %v6162
      %v6604 = vunpack.c.l.s4 1983009808
      %v6605 = vunpack.c.0.s8 %v6604
      %v6606 = vlaneseq
      %v6607 = vshrl.u32 %v6606, 7
      %v6608 = vsub.s32 %v6605, %v6607
      %v6609 = vrot.slane %v6601, %v6608
      %v6611 = vunpack.c.l.s4 1983009808
      %v6612 = vunpack.c.0.s8 %v6611
      %v6613 = vlaneseq
      %v6614 = vshrl.u32 %v6613, 7
      %v6615 = vsub.s32 %v6612, %v6614
      %v6616 = vrot.slane %v6602, %v6615
      %v6617 = vcombine.low %v6609, %v6616
      %v6618 = vcombine.low %v6170, %v6178
      %v6620 = vunpack.c.l.s4 1983009808
      %v6621 = vunpack.c.0.s8 %v6620
      %v6622 = vlaneseq
      %v6623 = vshrl.u32 %v6622, 7
      %v6624 = vsub.s32 %v6621, %v6623
      %v6625 = vrot.slane %v6618, %v6624
      %v6627 = vunpack.c.l.s4 1983009808
      %v6628 = vunpack.c.0.s8 %v6627
      %v6629 = vlaneseq
      %v6630 = vshrl.u32 %v6629, 7
      %v6631 = vsub.s32 %v6628, %v6630
      %v6632 = vrot.slane %v6177, %v6631
      %v6633 = vcombine.low %v6625, %v6632
      %v6634 = vcombine.low %v6179, %v6187
      %v6635 = vcombine.low %v6195, %v6194
      %v6637 = vunpack.c.l.s4 1983009808
      %v6638 = vunpack.c.0.s8 %v6637
      %v6639 = vlaneseq
      %v6640 = vshrl.u32 %v6639, 7
      %v6641 = vsub.s32 %v6638, %v6640
      %v6642 = vrot.slane %v6634, %v6641
      %v6644 = vunpack.c.l.s4 1983009808
      %v6645 = vunpack.c.0.s8 %v6644
      %v6646 = vlaneseq
      %v6647 = vshrl.u32 %v6646, 7
      %v6648 = vsub.s32 %v6645, %v6647
      %v6649 = vrot.slane %v6635, %v6648
      %v6650 = vcombine.low %v6642, %v6649
      %v6651 = vcombine.low %v6196, %v6203
      %v6653 = vunpack.c.l.s4 1983009808
      %v6654 = vunpack.c.0.s8 %v6653
      %v6655 = vlaneseq
      %v6656 = vshrl.u32 %v6655, 7
      %v6657 = vsub.s32 %v6654, %v6656
      %v6658 = vrot.slane %v6651, %v6657
      %v6660 = vunpack.c.l.s4 1983009808
      %v6661 = vunpack.c.0.s8 %v6660
      %v6662 = vlaneseq
      %v6663 = vshrl.u32 %v6662, 7
      %v6664 = vsub.s32 %v6661, %v6663
      %v6665 = vrot.slane %v6204, %v6664
      %v6666 = vcombine.low %v6658, %v6665
      %6695 = vst.msk [vmem:[#allocation2] sm:$0xff] %vm1556, %v6221
      %vm6696 = vcmask 62464
      %6697 = vst.msk [vmem:[#allocation2 + $0x8] sm:$0x3f] %vm6696, %v6237
      %6698 = vst.msk [vmem:[#allocation2 + $0x10] sm:$0xff] %vm1556, %v6254
      %6699 = vst.msk [vmem:[#allocation2 + $0x18] sm:$0x3f] %vm6696, %v6270
      %6700 = vst.msk [vmem:[#allocation2 + $0x20] sm:$0xff] %vm1556, %v6287
      %6701 = vst.msk [vmem:[#allocation2 + $0x28] sm:$0x3f] %vm6696, %v6303
      %6702 = vst.msk [vmem:[#allocation2 + $0x30] sm:$0xff] %vm1556, %v6320
      %6703 = vst.msk [vmem:[#allocation2 + $0x38] sm:$0x3f] %vm6696, %v6336
      %6704 = vst.msk [vmem:[#allocation2 + $0x40] sm:$0xff] %vm1556, %v6353
      %6705 = vst.msk [vmem:[#allocation2 + $0x48] sm:$0x3f] %vm6696, %v6369
      %6706 = vst.msk [vmem:[#allocation2 + $0x50] sm:$0xff] %vm1556, %v6386
      %6707 = vst.msk [vmem:[#allocation2 + $0x58] sm:$0x3f] %vm6696, %v6402
      %6708 = vst.msk [vmem:[#allocation2 + $0x60] sm:$0xff] %vm1556, %v6419
      %6709 = vst.msk [vmem:[#allocation2 + $0x68] sm:$0x3f] %vm6696, %v6435
      %6710 = vst.msk [vmem:[#allocation2 + $0x70] sm:$0xff] %vm1556, %v6452
      %6711 = vst.msk [vmem:[#allocation2 + $0x78] sm:$0x3f] %vm6696, %v6468
      %6712 = vst.msk [vmem:[#allocation2 + $0x80] sm:$0xff] %vm1556, %v6485
      %6713 = vst.msk [vmem:[#allocation2 + $0x88] sm:$0x3f] %vm6696, %v6501
      %6714 = vst.msk [vmem:[#allocation2 + $0x90] sm:$0xff] %vm1556, %v6518
      %6715 = vst.msk [vmem:[#allocation2 + $0x98] sm:$0x3f] %vm6696, %v6534
      %6716 = vst.msk [vmem:[#allocation2 + $0xa0] sm:$0xff] %vm1556, %v6551
      %6717 = vst.msk [vmem:[#allocation2 + $0xa8] sm:$0x3f] %vm6696, %v6567
      %6718 = vst.msk [vmem:[#allocation2 + $0xb0] sm:$0xff] %vm1556, %v6584
      %6719 = vst.msk [vmem:[#allocation2 + $0xb8] sm:$0x3f] %vm6696, %v6600
      %6720 = vst.msk [vmem:[#allocation2 + $0xc0] sm:$0xff] %vm1556, %v6617
      %6721 = vst.msk [vmem:[#allocation2 + $0xc8] sm:$0x3f] %vm6696, %v6633
      %6722 = vst.msk [vmem:[#allocation2 + $0xd0] sm:$0xff] %vm1556, %v6650
      %6723 = vst.msk [vmem:[#allocation2 + $0xd8] sm:$0x3f] %vm6696, %v6666
      %v6724 = vld [vmem:[%s3] sm:$0xff]
      %v6725 = vld [vmem:[%s3 + $0x8] sm:$0xff]
      %v6726 = vld [vmem:[%s3 + $0x10] sm:$0xff]
      %v6727 = vld [vmem:[%s3 + $0x18] sm:$0xff]
      %v6728 = vld [vmem:[%s3 + $0x20] sm:$0xff]
      %v6729 = vld [vmem:[%s3 + $0x28] sm:$0xff]
      %v6730 = vld [vmem:[%s3 + $0x30] sm:$0xff]
      %v6731 = vld [vmem:[%s3 + $0x38] sm:$0xff]
      %v6732 = vld [vmem:[%s3 + $0x40] sm:$0xff]
      %v6733 = vld [vmem:[%s4] sm:$0x1]
      %v6734 = vld [vmem:[#allocation2] sm:$0xff]
      %v6735 = vld [vmem:[#allocation2 + $0x8] sm:$0x3f]
      %v6736 = vld [vmem:[#allocation2 + $0x10] sm:$0xff]
      %v6737 = vld [vmem:[#allocation2 + $0x18] sm:$0x3f]
      %v6738 = vld [vmem:[#allocation2 + $0x20] sm:$0xff]
      %v6739 = vld [vmem:[#allocation2 + $0x28] sm:$0x3f]
      %v6740 = vld [vmem:[#allocation2 + $0x30] sm:$0xff]
      %v6741 = vld [vmem:[#allocation2 + $0x38] sm:$0x3f]
      %v6742 = vld [vmem:[#allocation2 + $0x40] sm:$0xff]
      %v6743 = vld [vmem:[#allocation2 + $0x48] sm:$0x3f]
      %v6744 = vld [vmem:[#allocation2 + $0x50] sm:$0xff]
      %v6745 = vld [vmem:[#allocation2 + $0x58] sm:$0x3f]
      %v6746 = vld [vmem:[#allocation2 + $0x60] sm:$0xff]
      %v6747 = vld [vmem:[#allocation2 + $0x68] sm:$0x3f]
      %v6748 = vld [vmem:[#allocation2 + $0x70] sm:$0xff]
      %v6749 = vld [vmem:[#allocation2 + $0x78] sm:$0x3f]
      %v6750 = vld [vmem:[#allocation2 + $0x80] sm:$0xff]
      %v6751 = vld [vmem:[#allocation2 + $0x88] sm:$0x3f]
      %v6752 = vld [vmem:[#allocation2 + $0x90] sm:$0xff]
      %v6753 = vld [vmem:[#allocation2 + $0x98] sm:$0x3f]
      %v6754 = vld [vmem:[#allocation2 + $0xa0] sm:$0xff]
      %v6755 = vld [vmem:[#allocation2 + $0xa8] sm:$0x3f]
      %v6756 = vld [vmem:[#allocation2 + $0xb0] sm:$0xff]
      %v6757 = vld [vmem:[#allocation2 + $0xb8] sm:$0x3f]
      %v6758 = vld [vmem:[#allocation2 + $0xc0] sm:$0xff]
      %v6759 = vld [vmem:[#allocation2 + $0xc8] sm:$0x3f]
      %v6760 = vld [vmem:[#allocation2 + $0xd0] sm:$0xff]
      %v6761 = vld [vmem:[#allocation2 + $0xd8] sm:$0x3f]
      %v6786 = vcombine.high %v6734, %v6734
      %v6787 = vcombine.high %v6736, %v6736
      %v6788 = vcombine.high %v6738, %v6738
      %v6789 = vcombine.high %v6740, %v6740
      %v6790 = vcombine.high %v6742, %v6742
      %v6791 = vcombine.high %v6744, %v6744
      %v6792 = vcombine.high %v6746, %v6746
      %v6793 = vcombine.high %v6748, %v6748
      %v6794 = vcombine.high %v6750, %v6750
      %v6795 = vcombine.high %v6752, %v6752
      %v6796 = vcombine.high %v6754, %v6754
      %v6797 = vcombine.high %v6756, %v6756
      %v6798 = vcombine.high %v6735, %v6735
      %v6799 = vcombine.high %v6737, %v6737
      %v6800 = vcombine.high %v6739, %v6739
      %v6801 = vcombine.high %v6741, %v6741
      %v6802 = vcombine.high %v6743, %v6743
      %v6803 = vcombine.high %v6745, %v6745
      %v6804 = vcombine.high %v6747, %v6747
      %v6805 = vcombine.high %v6749, %v6749
      %v6806 = vcombine.high %v6751, %v6751
      %v6807 = vcombine.high %v6753, %v6753
      %v6808 = vcombine.high %v6755, %v6755
      %v6809 = vcombine.high %v6757, %v6757
      %vm6810 = vcmask 1042432
      %vm6811 = vcmask 1046532
      %vm6812 = vmor %vm6810, %vm6811
      %v6813 = vrot.slane %v6734, 5
      %v6814 = vrot.slane %v6813, 4
      %v6815 = vrot.slane %v6786, 5
      %v6816 = vsel %vm6812, %v6814, %v6815
      %v6817 = vrot.slane %v6815, 4
      %v6818 = vrot.slane %v6735, 5
      %v6819 = vsel %vm6812, %v6817, %v6818
      %v6820 = vrot.slane %v6818, 4
      %v6821 = vrot.slane %v6798, 5
      %v6822 = vsel %vm6812, %v6820, %v6821
      %v6823 = vrot.slane %v6736, 5
      %v6824 = vrot.slane %v6823, 4
      %v6825 = vrot.slane %v6787, 5
      %v6826 = vsel %vm6812, %v6824, %v6825
      %v6827 = vrot.slane %v6825, 4
      %v6828 = vrot.slane %v6737, 5
      %v6829 = vsel %vm6812, %v6827, %v6828
      %v6830 = vrot.slane %v6828, 4
      %v6831 = vrot.slane %v6799, 5
      %v6832 = vsel %vm6812, %v6830, %v6831
      %v6833 = vrot.slane %v6738, 5
      %v6834 = vrot.slane %v6833, 4
      %v6835 = vrot.slane %v6788, 5
      %v6836 = vsel %vm6812, %v6834, %v6835
      %v6837 = vrot.slane %v6835, 4
      %v6838 = vrot.slane %v6739, 5
      %v6839 = vsel %vm6812, %v6837, %v6838
      %v6840 = vrot.slane %v6838, 4
      %v6841 = vrot.slane %v6800, 5
      %v6842 = vsel %vm6812, %v6840, %v6841
      %v6843 = vrot.slane %v6740, 5
      %v6844 = vrot.slane %v6843, 4
      %v6845 = vrot.slane %v6789, 5
      %v6846 = vsel %vm6812, %v6844, %v6845
      %v6847 = vrot.slane %v6845, 4
      %v6848 = vrot.slane %v6741, 5
      %v6849 = vsel %vm6812, %v6847, %v6848
      %v6850 = vrot.slane %v6848, 4
      %v6851 = vrot.slane %v6801, 5
      %v6852 = vsel %vm6812, %v6850, %v6851
      %v6853 = vrot.slane %v6742, 5
      %v6854 = vrot.slane %v6853, 4
      %v6855 = vrot.slane %v6790, 5
      %v6856 = vsel %vm6812, %v6854, %v6855
      %v6857 = vrot.slane %v6855, 4
      %v6858 = vrot.slane %v6743, 5
      %v6859 = vsel %vm6812, %v6857, %v6858
      %v6860 = vrot.slane %v6858, 4
      %v6861 = vrot.slane %v6802, 5
      %v6862 = vsel %vm6812, %v6860, %v6861
      %v6863 = vrot.slane %v6744, 5
      %v6864 = vrot.slane %v6863, 4
      %v6865 = vrot.slane %v6791, 5
      %v6866 = vsel %vm6812, %v6864, %v6865
      %v6867 = vrot.slane %v6865, 4
      %v6868 = vrot.slane %v6745, 5
      %v6869 = vsel %vm6812, %v6867, %v6868
      %v6870 = vrot.slane %v6868, 4
      %v6871 = vrot.slane %v6803, 5
      %v6872 = vsel %vm6812, %v6870, %v6871
      %v6873 = vrot.slane %v6746, 5
      %v6874 = vrot.slane %v6873, 4
      %v6875 = vrot.slane %v6792, 5
      %v6876 = vsel %vm6812, %v6874, %v6875
      %v6877 = vrot.slane %v6875, 4
      %v6878 = vrot.slane %v6747, 5
      %v6879 = vsel %vm6812, %v6877, %v6878
      %v6880 = vrot.slane %v6878, 4
      %v6881 = vrot.slane %v6804, 5
      %v6882 = vsel %vm6812, %v6880, %v6881
      %v6883 = vrot.slane %v6748, 5
      %v6884 = vrot.slane %v6883, 4
      %v6885 = vrot.slane %v6793, 5
      %v6886 = vsel %vm6812, %v6884, %v6885
      %v6887 = vrot.slane %v6885, 4
      %v6888 = vrot.slane %v6749, 5
      %v6889 = vsel %vm6812, %v6887, %v6888
      %v6890 = vrot.slane %v6888, 4
      %v6891 = vrot.slane %v6805, 5
      %v6892 = vsel %vm6812, %v6890, %v6891
      %v6893 = vrot.slane %v6750, 5
      %v6894 = vrot.slane %v6893, 4
      %v6895 = vrot.slane %v6794, 5
      %v6896 = vsel %vm6812, %v6894, %v6895
      %v6897 = vrot.slane %v6895, 4
      %v6898 = vrot.slane %v6751, 5
      %v6899 = vsel %vm6812, %v6897, %v6898
      %v6900 = vrot.slane %v6898, 4
      %v6901 = vrot.slane %v6806, 5
      %v6902 = vsel %vm6812, %v6900, %v6901
      %v6903 = vrot.slane %v6752, 5
      %v6904 = vrot.slane %v6903, 4
      %v6905 = vrot.slane %v6795, 5
      %v6906 = vsel %vm6812, %v6904, %v6905
      %v6907 = vrot.slane %v6905, 4
      %v6908 = vrot.slane %v6753, 5
      %v6909 = vsel %vm6812, %v6907, %v6908
      %v6910 = vrot.slane %v6908, 4
      %v6911 = vrot.slane %v6807, 5
      %v6912 = vsel %vm6812, %v6910, %v6911
      %v6913 = vrot.slane %v6754, 5
      %v6914 = vrot.slane %v6913, 4
      %v6915 = vrot.slane %v6796, 5
      %v6916 = vsel %vm6812, %v6914, %v6915
      %v6917 = vrot.slane %v6915, 4
      %v6918 = vrot.slane %v6755, 5
      %v6919 = vsel %vm6812, %v6917, %v6918
      %v6920 = vrot.slane %v6918, 4
      %v6921 = vrot.slane %v6808, 5
      %v6922 = vsel %vm6812, %v6920, %v6921
      %v6923 = vrot.slane %v6756, 5
      %v6924 = vrot.slane %v6923, 4
      %v6925 = vrot.slane %v6797, 5
      %v6926 = vsel %vm6812, %v6924, %v6925
      %v6927 = vrot.slane %v6925, 4
      %v6928 = vrot.slane %v6757, 5
      %v6929 = vsel %vm6812, %v6927, %v6928
      %v6930 = vrot.slane %v6928, 4
      %v6931 = vrot.slane %v6809, 5
      %v6932 = vsel %vm6812, %v6930, %v6931
      %v6933 = vcombine.low %v6816, %v6819
      %v6934 = vcombine.low %v6822, %v6826
      %v6935 = vcombine.low %v6829, %v6832
      %v6936 = vcombine.low %v6836, %v6839
      %v6937 = vcombine.low %v6842, %v6846
      %v6938 = vcombine.low %v6849, %v6852
      %v6939 = vcombine.low %v6856, %v6859
      %v6940 = vcombine.low %v6862, %v6866
      %v6941 = vcombine.low %v6869, %v6872
      %v6942 = vcombine.low %v6876, %v6879
      %v6943 = vcombine.low %v6882, %v6886
      %v6944 = vcombine.low %v6889, %v6892
      %v6945 = vcombine.low %v6896, %v6899
      %v6946 = vcombine.low %v6902, %v6906
      %v6947 = vcombine.low %v6909, %v6912
      %v6948 = vcombine.low %v6916, %v6919
      %v6949 = vcombine.low %v6922, %v6926
      %v6950 = vcombine.low %v6929, %v6932
      %v6951 = vsel %vm1556, %v6933, 0
      %v6953 = vsel %vm1556, %v6934, 0
      %v6955 = vsel %vm1556, %v6935, 0
      %v6957 = vsel %vm1556, %v6936, 0
      %v6959 = vsel %vm1556, %v6937, 0
      %v6961 = vsel %vm1556, %v6938, 0
      %v6963 = vsel %vm1556, %v6939, 0
      %v6965 = vsel %vm1556, %v6940, 0
      %v6967 = vsel %vm1556, %v6941, 0
      %v6969 = vsel %vm1556, %v6942, 0
      %v6971 = vsel %vm1556, %v6943, 0
      %v6973 = vsel %vm1556, %v6944, 0
      %v6975 = vsel %vm1556, %v6945, 0
      %v6977 = vsel %vm1556, %v6946, 0
      %v6979 = vsel %vm1556, %v6947, 0
      %v6981 = vsel %vm1556, %v6948, 0
      %v6983 = vsel %vm1556, %v6949, 0
      %v6985 = vsel %vm1556, %v6950, 0
      %6987 = vmatprep.subr.mxu0 0.0
      %6988 = vmatpush1.msra.mxu0 %v6725
      %6989 = vmatprep.subr.mxu0 0.0
      %6990 = vmatpush1.msra.mxu0 0.0
      %6991 = vmatprep.subr.mxu0 0.0
      %6992 = vmatpush1.msra.mxu0 0.0
      %6993 = vmatprep.subr.mxu0 0.0
      %6994 = vmatpush1.msra.mxu0 0.0
      %6995 = vmatprep.subr.mxu0 0.0
      %6996 = vmatpush1.msra.mxu0 0.0
      %6997 = vmatprep.subr.mxu0 0.0
      %6998 = vmatpush1.msra.mxu0 0.0
      %6999 = vmatprep.subr.mxu0 0.0
      %7000 = vmatpush1.msra.mxu0 0.0
      %7001 = vmatprep.subr.mxu0 0.0
      %7002 = vmatpush1.msra.mxu0 0.0
      %7003 = vmatprep.subr.mxu0 0.0
      %7004 = vmatpush1.msra.mxu0 0.0
      %7005 = vmatprep.subr.mxu0 0.0
      %7006 = vmatpush1.msra.mxu0 0.0
      %7007 = vmatprep.subr.mxu0 0.0
      %7008 = vmatpush1.msra.mxu0 0.0
      %7009 = vmatprep.subr.mxu0 0.0
      %7010 = vmatpush1.msra.mxu0 0.0
      %7011 = vmatprep.subr.mxu0 0.0
      %7012 = vmatpush1.msra.mxu0 0.0
      %7013 = vmatprep.subr.mxu0 0.0
      %7014 = vmatpush1.msra.mxu0 0.0
      %7015 = vmatprep.subr.mxu0 0.0
      %7016 = vmatpush1.msra.mxu0 0.0
      %7017 = vmatprep.subr.mxu0 0.0
      %7018 = vmatpush1.msra.mxu0 0.0
      %7019 = vmatprep.subr.mxu0 0.0
      %7020 = vmatpush1.msra.mxu0 0.0
      %7021 = vmatprep.subr.mxu0 0.0
      %7022 = vmatpush1.msra.mxu0 0.0
      %7023 = vmatprep.subr.mxu0 0.0
      %7024 = vmatpush1.msra.mxu0 0.0
      %7025 = vmatprep.subr.mxu0 0.0
      %7026 = vmatpush1.msra.mxu0 0.0
      %7027 = vmatprep.subr.mxu0 0.0
      %7028 = vmatpush1.msra.mxu0 0.0
      %7029 = vmatprep.subr.mxu0 0.0
      %7030 = vmatpush1.msra.mxu0 0.0
      %7031 = vmatprep.subr.mxu0 0.0
      %7032 = vmatpush1.msra.mxu0 0.0
      %7033 = vmatprep.subr.mxu0 0.0
      %7034 = vmatpush1.msra.mxu0 0.0
      %7035 = vmatprep.subr.mxu0 0.0
      %7036 = vmatpush1.msra.mxu0 0.0
      %7037 = vmatprep.subr.mxu0 0.0
      %7038 = vmatpush1.msra.mxu0 0.0
      %7039 = vmatprep.subr.mxu0 0.0
      %7040 = vmatpush1.msra.mxu0 0.0
      %7041 = vmatprep.subr.mxu0 0.0
      %7042 = vmatpush1.msra.mxu0 0.0
      %7043 = vmatprep.subr.mxu0 0.0
      %7044 = vmatpush1.msra.mxu0 0.0
      %7045 = vmatprep.subr.mxu0 0.0
      %7046 = vmatpush1.msra.mxu0 0.0
      %7047 = vmatprep.subr.mxu0 0.0
      %7048 = vmatpush1.msra.mxu0 0.0
      %7049 = vmatprep.subr.mxu0 0.0
      %7050 = vmatpush1.msra.mxu0 0.0
      %7051 = vmatprep.mubr.f32.mxu0 0.0
      %7052 = vmatmul.mubr.f32.gmra.mrb[0].mxu0 %v6951
      %v7053 = vpop.f32.mrb[0].mxu0
      %v7054 = vadd.f32 0.0, %v7053
      %v7055 = vpop.f32.mrb[0].mxu0
      %7056 = vmatprep.mubr.f32.mxu0 0.0
      %7057 = vmatmul.mubr.f32.gmra.mrb[0].mxu0 %v6953
      %v7058 = vpop.f32.mrb[0].mxu0
      %v7059 = vadd.f32 0.0, %v7058
      %v7060 = vpop.f32.mrb[0].mxu0
      %7061 = vmatprep.mubr.f32.mxu0 0.0
      %7062 = vmatmul.mubr.f32.gmra.mrb[0].mxu0 %v6955
      %v7063 = vpop.f32.mrb[0].mxu0
      %v7064 = vadd.f32 0.0, %v7063
      %v7065 = vpop.f32.mrb[0].mxu0
      %7066 = vmatprep.mubr.f32.mxu0 0.0
      %7067 = vmatmul.mubr.f32.gmra.mrb[0].mxu0 %v6957
      %v7068 = vpop.f32.mrb[0].mxu0
      %v7069 = vadd.f32 0.0, %v7068
      %v7070 = vpop.f32.mrb[0].mxu0
      %7071 = vmatprep.mubr.f32.mxu0 0.0
      %7072 = vmatmul.mubr.f32.gmra.mrb[0].mxu0 %v6959
      %v7073 = vpop.f32.mrb[0].mxu0
      %v7074 = vadd.f32 0.0, %v7073
      %v7075 = vpop.f32.mrb[0].mxu0
      %7076 = vmatprep.mubr.f32.mxu0 0.0
      %7077 = vmatmul.mubr.f32.gmra.mrb[0].mxu0 %v6961
      %v7078 = vpop.f32.mrb[0].mxu0
      %v7079 = vadd.f32 0.0, %v7078
      %v7080 = vpop.f32.mrb[0].mxu0
      %7081 = vmatprep.mubr.f32.mxu0 0.0
      %7082 = vmatmul.mubr.f32.gmra.mrb[0].mxu0 %v6963
      %v7083 = vpop.f32.mrb[0].mxu0
      %v7084 = vadd.f32 0.0, %v7083
      %v7085 = vpop.f32.mrb[0].mxu0
      %7086 = vmatprep.mubr.f32.mxu0 0.0
      %7087 = vmatmul.mubr.f32.gmra.mrb[0].mxu0 %v6965
      %v7088 = vpop.f32.mrb[0].mxu0
      %v7089 = vadd.f32 0.0, %v7088
      %v7090 = vpop.f32.mrb[0].mxu0
      %7091 = vmatprep.mubr.f32.mxu0 0.0
      %7092 = vmatmul.mubr.f32.gmra.mrb[0].mxu0 %v6967
      %v7093 = vpop.f32.mrb[0].mxu0
      %v7094 = vadd.f32 0.0, %v7093
      %v7095 = vpop.f32.mrb[0].mxu0
      %7096 = vmatprep.mubr.f32.mxu0 0.0
      %7097 = vmatmul.mubr.f32.gmra.mrb[0].mxu0 %v6969
      %v7098 = vpop.f32.mrb[0].mxu0
      %v7099 = vadd.f32 0.0, %v7098
      %v7100 = vpop.f32.mrb[0].mxu0
      %7101 = vmatprep.mubr.f32.mxu0 0.0
      %7102 = vmatmul.mubr.f32.gmra.mrb[0].mxu0 %v6971
      %v7103 = vpop.f32.mrb[0].mxu0
      %v7104 = vadd.f32 0.0, %v7103
      %v7105 = vpop.f32.mrb[0].mxu0
      %7106 = vmatprep.mubr.f32.mxu0 0.0
      %7107 = vmatmul.mubr.f32.gmra.mrb[0].mxu0 %v6973
      %v7108 = vpop.f32.mrb[0].mxu0
      %v7109 = vadd.f32 0.0, %v7108
      %v7110 = vpop.f32.mrb[0].mxu0
      %7111 = vmatprep.mubr.f32.mxu0 0.0
      %7112 = vmatmul.mubr.f32.gmra.mrb[0].mxu0 %v6975
      %v7113 = vpop.f32.mrb[0].mxu0
      %v7114 = vadd.f32 0.0, %v7113
      %v7115 = vpop.f32.mrb[0].mxu0
      %7116 = vmatprep.mubr.f32.mxu0 0.0
      %7117 = vmatmul.mubr.f32.gmra.mrb[0].mxu0 %v6977
      %v7118 = vpop.f32.mrb[0].mxu0
      %v7119 = vadd.f32 0.0, %v7118
      %v7120 = vpop.f32.mrb[0].mxu0
      %7121 = vmatprep.mubr.f32.mxu0 0.0
      %7122 = vmatmul.mubr.f32.gmra.mrb[0].mxu0 %v6979
      %v7123 = vpop.f32.mrb[0].mxu0
      %v7124 = vadd.f32 0.0, %v7123
      %v7125 = vpop.f32.mrb[0].mxu0
      %7126 = vmatprep.mubr.f32.mxu0 0.0
      %7127 = vmatmul.mubr.f32.gmra.mrb[0].mxu0 %v6981
      %v7128 = vpop.f32.mrb[0].mxu0
      %v7129 = vadd.f32 0.0, %v7128
      %v7130 = vpop.f32.mrb[0].mxu0
      %7131 = vmatprep.mubr.f32.mxu0 0.0
      %7132 = vmatmul.mubr.f32.gmra.mrb[0].mxu0 %v6983
      %v7133 = vpop.f32.mrb[0].mxu0
      %v7134 = vadd.f32 0.0, %v7133
      %v7135 = vpop.f32.mrb[0].mxu0
      %7136 = vmatprep.mubr.f32.mxu0 0.0
      %7137 = vmatmul.mubr.f32.gmra.mrb[0].mxu0 %v6985
      %v7138 = vpop.f32.mrb[0].mxu0
      %v7139 = vadd.f32 0.0, %v7138
      %v7140 = vpop.f32.mrb[0].mxu0
      %7141 = vdwg.mxu0
      %v7142 = vcombine.low %v6734, %v6786
      %v7143 = vcombine.low %v6735, %v6736
      %v7144 = vcombine.low %v6787, %v6737
      %v7145 = vcombine.low %v6738, %v6788
      %v7146 = vcombine.low %v6739, %v6740
      %v7147 = vcombine.low %v6789, %v6741
      %v7148 = vcombine.low %v6742, %v6790
      %v7149 = vcombine.low %v6743, %v6744
      %v7150 = vcombine.low %v6791, %v6745
      %v7151 = vcombine.low %v6746, %v6792
      %v7152 = vcombine.low %v6747, %v6748
      %v7153 = vcombine.low %v6793, %v6749
      %v7154 = vcombine.low %v6750, %v6794
      %v7155 = vcombine.low %v6751, %v6752
      %v7156 = vcombine.low %v6795, %v6753
      %v7157 = vcombine.low %v6754, %v6796
      %v7158 = vcombine.low %v6755, %v6756
      %v7159 = vcombine.low %v6797, %v6757
      %v7160 = vsel %vm1556, %v7142, 0
      %v7162 = vsel %vm1556, %v7143, 0
      %v7164 = vsel %vm1556, %v7144, 0
      %v7166 = vsel %vm1556, %v7145, 0
      %v7168 = vsel %vm1556, %v7146, 0
      %v7170 = vsel %vm1556, %v7147, 0
      %v7172 = vsel %vm1556, %v7148, 0
      %v7174 = vsel %vm1556, %v7149, 0
      %v7176 = vsel %vm1556, %v7150, 0
      %v7178 = vsel %vm1556, %v7151, 0
      %v7180 = vsel %vm1556, %v7152, 0
      %v7182 = vsel %vm1556, %v7153, 0
      %v7184 = vsel %vm1556, %v7154, 0
      %v7186 = vsel %vm1556, %v7155, 0
      %v7188 = vsel %vm1556, %v7156, 0
      %v7190 = vsel %vm1556, %v7157, 0
      %v7192 = vsel %vm1556, %v7158, 0
      %v7194 = vsel %vm1556, %v7159, 0
      %7196 = vmatprep.subr.mxu0 0.0
      %7197 = vmatpush1.msra.mxu0 %v6724
      %7198 = vmatprep.subr.mxu0 0.0
      %7199 = vmatpush1.msra.mxu0 0.0
      %7200 = vmatprep.subr.mxu0 0.0
      %7201 = vmatpush1.msra.mxu0 0.0
      %7202 = vmatprep.subr.mxu0 0.0
      %7203 = vmatpush1.msra.mxu0 0.0
      %7204 = vmatprep.subr.mxu0 0.0
      %7205 = vmatpush1.msra.mxu0 0.0
      %7206 = vmatprep.subr.mxu0 0.0
      %7207 = vmatpush1.msra.mxu0 0.0
      %7208 = vmatprep.subr.mxu0 0.0
      %7209 = vmatpush1.msra.mxu0 0.0
      %7210 = vmatprep.subr.mxu0 0.0
      %7211 = vmatpush1.msra.mxu0 0.0
      %7212 = vmatprep.subr.mxu0 0.0
      %7213 = vmatpush1.msra.mxu0 0.0
      %7214 = vmatprep.subr.mxu0 0.0
      %7215 = vmatpush1.msra.mxu0 0.0
      %7216 = vmatprep.subr.mxu0 0.0
      %7217 = vmatpush1.msra.mxu0 0.0
      %7218 = vmatprep.subr.mxu0 0.0
      %7219 = vmatpush1.msra.mxu0 0.0
      %7220 = vmatprep.subr.mxu0 0.0
      %7221 = vmatpush1.msra.mxu0 0.0
      %7222 = vmatprep.subr.mxu0 0.0
      %7223 = vmatpush1.msra.mxu0 0.0
      %7224 = vmatprep.subr.mxu0 0.0
      %7225 = vmatpush1.msra.mxu0 0.0
      %7226 = vmatprep.subr.mxu0 0.0
      %7227 = vmatpush1.msra.mxu0 0.0
      %7228 = vmatprep.subr.mxu0 0.0
      %7229 = vmatpush1.msra.mxu0 0.0
      %7230 = vmatprep.subr.mxu0 0.0
      %7231 = vmatpush1.msra.mxu0 0.0
      %7232 = vmatprep.subr.mxu0 0.0
      %7233 = vmatpush1.msra.mxu0 0.0
      %7234 = vmatprep.subr.mxu0 0.0
      %7235 = vmatpush1.msra.mxu0 0.0
      %7236 = vmatprep.subr.mxu0 0.0
      %7237 = vmatpush1.msra.mxu0 0.0
      %7238 = vmatprep.subr.mxu0 0.0
      %7239 = vmatpush1.msra.mxu0 0.0
      %7240 = vmatprep.subr.mxu0 0.0
      %7241 = vmatpush1.msra.mxu0 0.0
      %7242 = vmatprep.subr.mxu0 0.0
      %7243 = vmatpush1.msra.mxu0 0.0
      %7244 = vmatprep.subr.mxu0 0.0
      %7245 = vmatpush1.msra.mxu0 0.0
      %7246 = vmatprep.subr.mxu0 0.0
      %7247 = vmatpush1.msra.mxu0 0.0
      %7248 = vmatprep.subr.mxu0 0.0
      %7249 = vmatpush1.msra.mxu0 0.0
      %7250 = vmatprep.subr.mxu0 0.0
      %7251 = vmatpush1.msra.mxu0 0.0
      %7252 = vmatprep.subr.mxu0 0.0
      %7253 = vmatpush1.msra.mxu0 0.0
      %7254 = vmatprep.subr.mxu0 0.0
      %7255 = vmatpush1.msra.mxu0 0.0
      %7256 = vmatprep.subr.mxu0 0.0
      %7257 = vmatpush1.msra.mxu0 0.0
      %7258 = vmatprep.subr.mxu0 0.0
      %7259 = vmatpush1.msra.mxu0 0.0
      %7260 = vmatprep.mubr.f32.mxu0 0.0
      %7261 = vmatmul.mubr.f32.gmra.mrb[0].mxu0 %v7160
      %v7262 = vpop.f32.mrb[0].mxu0
      %v7263 = vadd.f32 %v7054, %v7262
      %v7264 = vpop.f32.mrb[0].mxu0
      %7265 = vmatprep.mubr.f32.mxu0 0.0
      %7266 = vmatmul.mubr.f32.gmra.mrb[0].mxu0 %v7162
      %v7267 = vpop.f32.mrb[0].mxu0
      %v7268 = vadd.f32 %v7059, %v7267
      %v7269 = vpop.f32.mrb[0].mxu0
      %7270 = vmatprep.mubr.f32.mxu0 0.0
      %7271 = vmatmul.mubr.f32.gmra.mrb[0].mxu0 %v7164
      %v7272 = vpop.f32.mrb[0].mxu0
      %v7273 = vadd.f32 %v7064, %v7272
      %v7274 = vpop.f32.mrb[0].mxu0
      %7275 = vmatprep.mubr.f32.mxu0 0.0
      %7276 = vmatmul.mubr.f32.gmra.mrb[0].mxu0 %v7166
      %v7277 = vpop.f32.mrb[0].mxu0
      %v7278 = vadd.f32 %v7069, %v7277
      %v7279 = vpop.f32.mrb[0].mxu0
      %7280 = vmatprep.mubr.f32.mxu0 0.0
      %7281 = vmatmul.mubr.f32.gmra.mrb[0].mxu0 %v7168
      %v7282 = vpop.f32.mrb[0].mxu0
      %v7283 = vadd.f32 %v7074, %v7282
      %v7284 = vpop.f32.mrb[0].mxu0
      %7285 = vmatprep.mubr.f32.mxu0 0.0
      %7286 = vmatmul.mubr.f32.gmra.mrb[0].mxu0 %v7170
      %v7287 = vpop.f32.mrb[0].mxu0
      %v7288 = vadd.f32 %v7079, %v7287
      %v7289 = vpop.f32.mrb[0].mxu0
      %7290 = vmatprep.mubr.f32.mxu0 0.0
      %7291 = vmatmul.mubr.f32.gmra.mrb[0].mxu0 %v7172
      %v7292 = vpop.f32.mrb[0].mxu0
      %v7293 = vadd.f32 %v7084, %v7292
      %v7294 = vpop.f32.mrb[0].mxu0
      %7295 = vmatprep.mubr.f32.mxu0 0.0
      %7296 = vmatmul.mubr.f32.gmra.mrb[0].mxu0 %v7174
      %v7297 = vpop.f32.mrb[0].mxu0
      %v7298 = vadd.f32 %v7089, %v7297
      %v7299 = vpop.f32.mrb[0].mxu0
      %7300 = vmatprep.mubr.f32.mxu0 0.0
      %7301 = vmatmul.mubr.f32.gmra.mrb[0].mxu0 %v7176
      %v7302 = vpop.f32.mrb[0].mxu0
      %v7303 = vadd.f32 %v7094, %v7302
      %v7304 = vpop.f32.mrb[0].mxu0
      %7305 = vmatprep.mubr.f32.mxu0 0.0
      %7306 = vmatmul.mubr.f32.gmra.mrb[0].mxu0 %v7178
      %v7307 = vpop.f32.mrb[0].mxu0
      %v7308 = vadd.f32 %v7099, %v7307
      %v7309 = vpop.f32.mrb[0].mxu0
      %7310 = vmatprep.mubr.f32.mxu0 0.0
      %7311 = vmatmul.mubr.f32.gmra.mrb[0].mxu0 %v7180
      %v7312 = vpop.f32.mrb[0].mxu0
      %v7313 = vadd.f32 %v7104, %v7312
      %v7314 = vpop.f32.mrb[0].mxu0
      %7315 = vmatprep.mubr.f32.mxu0 0.0
      %7316 = vmatmul.mubr.f32.gmra.mrb[0].mxu0 %v7182
      %v7317 = vpop.f32.mrb[0].mxu0
      %v7318 = vadd.f32 %v7109, %v7317
      %v7319 = vpop.f32.mrb[0].mxu0
      %7320 = vmatprep.mubr.f32.mxu0 0.0
      %7321 = vmatmul.mubr.f32.gmra.mrb[0].mxu0 %v7184
      %v7322 = vpop.f32.mrb[0].mxu0
      %v7323 = vadd.f32 %v7114, %v7322
      %v7324 = vpop.f32.mrb[0].mxu0
      %7325 = vmatprep.mubr.f32.mxu0 0.0
      %7326 = vmatmul.mubr.f32.gmra.mrb[0].mxu0 %v7186
      %v7327 = vpop.f32.mrb[0].mxu0
      %v7328 = vadd.f32 %v7119, %v7327
      %v7329 = vpop.f32.mrb[0].mxu0
      %7330 = vmatprep.mubr.f32.mxu0 0.0
      %7331 = vmatmul.mubr.f32.gmra.mrb[0].mxu0 %v7188
      %v7332 = vpop.f32.mrb[0].mxu0
      %v7333 = vadd.f32 %v7124, %v7332
      %v7334 = vpop.f32.mrb[0].mxu0
      %7335 = vmatprep.mubr.f32.mxu0 0.0
      %7336 = vmatmul.mubr.f32.gmra.mrb[0].mxu0 %v7190
      %v7337 = vpop.f32.mrb[0].mxu0
      %v7338 = vadd.f32 %v7129, %v7337
      %v7339 = vpop.f32.mrb[0].mxu0
      %7340 = vmatprep.mubr.f32.mxu0 0.0
      %7341 = vmatmul.mubr.f32.gmra.mrb[0].mxu0 %v7192
      %v7342 = vpop.f32.mrb[0].mxu0
      %v7343 = vadd.f32 %v7134, %v7342
      %v7344 = vpop.f32.mrb[0].mxu0
      %7345 = vmatprep.mubr.f32.mxu0 0.0
      %7346 = vmatmul.mubr.f32.gmra.mrb[0].mxu0 %v7194
      %v7347 = vpop.f32.mrb[0].mxu0
      %v7348 = vadd.f32 %v7139, %v7347
      %v7349 = vpop.f32.mrb[0].mxu0
      %7350 = vdwg.mxu0
      %vm7351 = vcmask 1041408
      %vm7352 = vcmask 1045508
      %vm7353 = vmor %vm7351, %vm7352
      %v7354 = vrot.slane %v6734, 6
      %v7355 = vrot.slane %v7354, 4
      %v7356 = vrot.slane %v6786, 6
      %v7357 = vsel %vm7353, %v7355, %v7356
      %v7358 = vrot.slane %v7356, 4
      %v7359 = vrot.slane %v6735, 6
      %v7360 = vsel %vm7353, %v7358, %v7359
      %v7361 = vrot.slane %v7359, 4
      %v7362 = vrot.slane %v6798, 6
      %v7363 = vsel %vm7353, %v7361, %v7362
      %v7364 = vrot.slane %v6736, 6
      %v7365 = vrot.slane %v7364, 4
      %v7366 = vrot.slane %v6787, 6
      %v7367 = vsel %vm7353, %v7365, %v7366
      %v7368 = vrot.slane %v7366, 4
      %v7369 = vrot.slane %v6737, 6
      %v7370 = vsel %vm7353, %v7368, %v7369
      %v7371 = vrot.slane %v7369, 4
      %v7372 = vrot.slane %v6799, 6
      %v7373 = vsel %vm7353, %v7371, %v7372
      %v7374 = vrot.slane %v6738, 6
      %v7375 = vrot.slane %v7374, 4
      %v7376 = vrot.slane %v6788, 6
      %v7377 = vsel %vm7353, %v7375, %v7376
      %v7378 = vrot.slane %v7376, 4
      %v7379 = vrot.slane %v6739, 6
      %v7380 = vsel %vm7353, %v7378, %v7379
      %v7381 = vrot.slane %v7379, 4
      %v7382 = vrot.slane %v6800, 6
      %v7383 = vsel %vm7353, %v7381, %v7382
      %v7384 = vrot.slane %v6740, 6
      %v7385 = vrot.slane %v7384, 4
      %v7386 = vrot.slane %v6789, 6
      %v7387 = vsel %vm7353, %v7385, %v7386
      %v7388 = vrot.slane %v7386, 4
      %v7389 = vrot.slane %v6741, 6
      %v7390 = vsel %vm7353, %v7388, %v7389
      %v7391 = vrot.slane %v7389, 4
      %v7392 = vrot.slane %v6801, 6
      %v7393 = vsel %vm7353, %v7391, %v7392
      %v7394 = vrot.slane %v6742, 6
      %v7395 = vrot.slane %v7394, 4
      %v7396 = vrot.slane %v6790, 6
      %v7397 = vsel %vm7353, %v7395, %v7396
      %v7398 = vrot.slane %v7396, 4
      %v7399 = vrot.slane %v6743, 6
      %v7400 = vsel %vm7353, %v7398, %v7399
      %v7401 = vrot.slane %v7399, 4
      %v7402 = vrot.slane %v6802, 6
      %v7403 = vsel %vm7353, %v7401, %v7402
      %v7404 = vrot.slane %v6744, 6
      %v7405 = vrot.slane %v7404, 4
      %v7406 = vrot.slane %v6791, 6
      %v7407 = vsel %vm7353, %v7405, %v7406
      %v7408 = vrot.slane %v7406, 4
      %v7409 = vrot.slane %v6745, 6
      %v7410 = vsel %vm7353, %v7408, %v7409
      %v7411 = vrot.slane %v7409, 4
      %v7412 = vrot.slane %v6803, 6
      %v7413 = vsel %vm7353, %v7411, %v7412
      %v7414 = vrot.slane %v6746, 6
      %v7415 = vrot.slane %v7414, 4
      %v7416 = vrot.slane %v6792, 6
      %v7417 = vsel %vm7353, %v7415, %v7416
      %v7418 = vrot.slane %v7416, 4
      %v7419 = vrot.slane %v6747, 6
      %v7420 = vsel %vm7353, %v7418, %v7419
      %v7421 = vrot.slane %v7419, 4
      %v7422 = vrot.slane %v6804, 6
      %v7423 = vsel %vm7353, %v7421, %v7422
      %v7424 = vrot.slane %v6748, 6
      %v7425 = vrot.slane %v7424, 4
      %v7426 = vrot.slane %v6793, 6
      %v7427 = vsel %vm7353, %v7425, %v7426
      %v7428 = vrot.slane %v7426, 4
      %v7429 = vrot.slane %v6749, 6
      %v7430 = vsel %vm7353, %v7428, %v7429
      %v7431 = vrot.slane %v7429, 4
      %v7432 = vrot.slane %v6805, 6
      %v7433 = vsel %vm7353, %v7431, %v7432
      %v7434 = vrot.slane %v6750, 6
      %v7435 = vrot.slane %v7434, 4
      %v7436 = vrot.slane %v6794, 6
      %v7437 = vsel %vm7353, %v7435, %v7436
      %v7438 = vrot.slane %v7436, 4
      %v7439 = vrot.slane %v6751, 6
      %v7440 = vsel %vm7353, %v7438, %v7439
      %v7441 = vrot.slane %v7439, 4
      %v7442 = vrot.slane %v6806, 6
      %v7443 = vsel %vm7353, %v7441, %v7442
      %v7444 = vrot.slane %v6752, 6
      %v7445 = vrot.slane %v7444, 4
      %v7446 = vrot.slane %v6795, 6
      %v7447 = vsel %vm7353, %v7445, %v7446
      %v7448 = vrot.slane %v7446, 4
      %v7449 = vrot.slane %v6753, 6
      %v7450 = vsel %vm7353, %v7448, %v7449
      %v7451 = vrot.slane %v7449, 4
      %v7452 = vrot.slane %v6807, 6
      %v7453 = vsel %vm7353, %v7451, %v7452
      %v7454 = vrot.slane %v6754, 6
      %v7455 = vrot.slane %v7454, 4
      %v7456 = vrot.slane %v6796, 6
      %v7457 = vsel %vm7353, %v7455, %v7456
      %v7458 = vrot.slane %v7456, 4
      %v7459 = vrot.slane %v6755, 6
      %v7460 = vsel %vm7353, %v7458, %v7459
      %v7461 = vrot.slane %v7459, 4
      %v7462 = vrot.slane %v6808, 6
      %v7463 = vsel %vm7353, %v7461, %v7462
      %v7464 = vrot.slane %v6756, 6
      %v7465 = vrot.slane %v7464, 4
      %v7466 = vrot.slane %v6797, 6
      %v7467 = vsel %vm7353, %v7465, %v7466
      %v7468 = vrot.slane %v7466, 4
      %v7469 = vrot.slane %v6757, 6
      %v7470 = vsel %vm7353, %v7468, %v7469
      %v7471 = vrot.slane %v7469, 4
      %v7472 = vrot.slane %v6809, 6
      %v7473 = vsel %vm7353, %v7471, %v7472
      %v7474 = vcombine.low %v7357, %v7360
      %v7475 = vcombine.low %v7363, %v7367
      %v7476 = vcombine.low %v7370, %v7373
      %v7477 = vcombine.low %v7377, %v7380
      %v7478 = vcombine.low %v7383, %v7387
      %v7479 = vcombine.low %v7390, %v7393
      %v7480 = vcombine.low %v7397, %v7400
      %v7481 = vcombine.low %v7403, %v7407
      %v7482 = vcombine.low %v7410, %v7413
      %v7483 = vcombine.low %v7417, %v7420
      %v7484 = vcombine.low %v7423, %v7427
      %v7485 = vcombine.low %v7430, %v7433
      %v7486 = vcombine.low %v7437, %v7440
      %v7487 = vcombine.low %v7443, %v7447
      %v7488 = vcombine.low %v7450, %v7453
      %v7489 = vcombine.low %v7457, %v7460
      %v7490 = vcombine.low %v7463, %v7467
      %v7491 = vcombine.low %v7470, %v7473
      %v7492 = vsel %vm1556, %v7474, 0
      %v7494 = vsel %vm1556, %v7475, 0
      %v7496 = vsel %vm1556, %v7476, 0
      %v7498 = vsel %vm1556, %v7477, 0
      %v7500 = vsel %vm1556, %v7478, 0
      %v7502 = vsel %vm1556, %v7479, 0
      %v7504 = vsel %vm1556, %v7480, 0
      %v7506 = vsel %vm1556, %v7481, 0
      %v7508 = vsel %vm1556, %v7482, 0
      %v7510 = vsel %vm1556, %v7483, 0
      %v7512 = vsel %vm1556, %v7484, 0
      %v7514 = vsel %vm1556, %v7485, 0
      %v7516 = vsel %vm1556, %v7486, 0
      %v7518 = vsel %vm1556, %v7487, 0
      %v7520 = vsel %vm1556, %v7488, 0
      %v7522 = vsel %vm1556, %v7489, 0
      %v7524 = vsel %vm1556, %v7490, 0
      %v7526 = vsel %vm1556, %v7491, 0
      %7528 = vmatprep.subr.mxu0 0.0
      %7529 = vmatpush1.msra.mxu0 %v6726
      %7530 = vmatprep.subr.mxu0 0.0
      %7531 = vmatpush1.msra.mxu0 0.0
      %7532 = vmatprep.subr.mxu0 0.0
      %7533 = vmatpush1.msra.mxu0 0.0
      %7534 = vmatprep.subr.mxu0 0.0
      %7535 = vmatpush1.msra.mxu0 0.0
      %7536 = vmatprep.subr.mxu0 0.0
      %7537 = vmatpush1.msra.mxu0 0.0
      %7538 = vmatprep.subr.mxu0 0.0
      %7539 = vmatpush1.msra.mxu0 0.0
      %7540 = vmatprep.subr.mxu0 0.0
      %7541 = vmatpush1.msra.mxu0 0.0
      %7542 = vmatprep.subr.mxu0 0.0
      %7543 = vmatpush1.msra.mxu0 0.0
      %7544 = vmatprep.subr.mxu0 0.0
      %7545 = vmatpush1.msra.mxu0 0.0
      %7546 = vmatprep.subr.mxu0 0.0
      %7547 = vmatpush1.msra.mxu0 0.0
      %7548 = vmatprep.subr.mxu0 0.0
      %7549 = vmatpush1.msra.mxu0 0.0
      %7550 = vmatprep.subr.mxu0 0.0
      %7551 = vmatpush1.msra.mxu0 0.0
      %7552 = vmatprep.subr.mxu0 0.0
      %7553 = vmatpush1.msra.mxu0 0.0
      %7554 = vmatprep.subr.mxu0 0.0
      %7555 = vmatpush1.msra.mxu0 0.0
      %7556 = vmatprep.subr.mxu0 0.0
      %7557 = vmatpush1.msra.mxu0 0.0
      %7558 = vmatprep.subr.mxu0 0.0
      %7559 = vmatpush1.msra.mxu0 0.0
      %7560 = vmatprep.subr.mxu0 0.0
      %7561 = vmatpush1.msra.mxu0 0.0
      %7562 = vmatprep.subr.mxu0 0.0
      %7563 = vmatpush1.msra.mxu0 0.0
      %7564 = vmatprep.subr.mxu0 0.0
      %7565 = vmatpush1.msra.mxu0 0.0
      %7566 = vmatprep.subr.mxu0 0.0
      %7567 = vmatpush1.msra.mxu0 0.0
      %7568 = vmatprep.subr.mxu0 0.0
      %7569 = vmatpush1.msra.mxu0 0.0
      %7570 = vmatprep.subr.mxu0 0.0
      %7571 = vmatpush1.msra.mxu0 0.0
      %7572 = vmatprep.subr.mxu0 0.0
      %7573 = vmatpush1.msra.mxu0 0.0
      %7574 = vmatprep.subr.mxu0 0.0
      %7575 = vmatpush1.msra.mxu0 0.0
      %7576 = vmatprep.subr.mxu0 0.0
      %7577 = vmatpush1.msra.mxu0 0.0
      %7578 = vmatprep.subr.mxu0 0.0
      %7579 = vmatpush1.msra.mxu0 0.0
      %7580 = vmatprep.subr.mxu0 0.0
      %7581 = vmatpush1.msra.mxu0 0.0
      %7582 = vmatprep.subr.mxu0 0.0
      %7583 = vmatpush1.msra.mxu0 0.0
      %7584 = vmatprep.subr.mxu0 0.0
      %7585 = vmatpush1.msra.mxu0 0.0
      %7586 = vmatprep.subr.mxu0 0.0
      %7587 = vmatpush1.msra.mxu0 0.0
      %7588 = vmatprep.subr.mxu0 0.0
      %7589 = vmatpush1.msra.mxu0 0.0
      %7590 = vmatprep.subr.mxu0 0.0
      %7591 = vmatpush1.msra.mxu0 0.0
      %7592 = vmatprep.mubr.f32.mxu0 0.0
      %7593 = vmatmul.mubr.f32.gmra.mrb[0].mxu0 %v7492
      %v7594 = vpop.f32.mrb[0].mxu0
      %v7595 = vadd.f32 0.0, %v7594
      %v7596 = vpop.f32.mrb[0].mxu0
      %7597 = vmatprep.mubr.f32.mxu0 0.0
      %7598 = vmatmul.mubr.f32.gmra.mrb[0].mxu0 %v7494
      %v7599 = vpop.f32.mrb[0].mxu0
      %v7600 = vadd.f32 0.0, %v7599
      %v7601 = vpop.f32.mrb[0].mxu0
      %7602 = vmatprep.mubr.f32.mxu0 0.0
      %7603 = vmatmul.mubr.f32.gmra.mrb[0].mxu0 %v7496
      %v7604 = vpop.f32.mrb[0].mxu0
      %v7605 = vadd.f32 0.0, %v7604
      %v7606 = vpop.f32.mrb[0].mxu0
      %7607 = vmatprep.mubr.f32.mxu0 0.0
      %7608 = vmatmul.mubr.f32.gmra.mrb[0].mxu0 %v7498
      %v7609 = vpop.f32.mrb[0].mxu0
      %v7610 = vadd.f32 0.0, %v7609
      %v7611 = vpop.f32.mrb[0].mxu0
      %7612 = vmatprep.mubr.f32.mxu0 0.0
      %7613 = vmatmul.mubr.f32.gmra.mrb[0].mxu0 %v7500
      %v7614 = vpop.f32.mrb[0].mxu0
      %v7615 = vadd.f32 0.0, %v7614
      %v7616 = vpop.f32.mrb[0].mxu0
      %7617 = vmatprep.mubr.f32.mxu0 0.0
      %7618 = vmatmul.mubr.f32.gmra.mrb[0].mxu0 %v7502
      %v7619 = vpop.f32.mrb[0].mxu0
      %v7620 = vadd.f32 0.0, %v7619
      %v7621 = vpop.f32.mrb[0].mxu0
      %7622 = vmatprep.mubr.f32.mxu0 0.0
      %7623 = vmatmul.mubr.f32.gmra.mrb[0].mxu0 %v7504
      %v7624 = vpop.f32.mrb[0].mxu0
      %v7625 = vadd.f32 0.0, %v7624
      %v7626 = vpop.f32.mrb[0].mxu0
      %7627 = vmatprep.mubr.f32.mxu0 0.0
      %7628 = vmatmul.mubr.f32.gmra.mrb[0].mxu0 %v7506
      %v7629 = vpop.f32.mrb[0].mxu0
      %v7630 = vadd.f32 0.0, %v7629
      %v7631 = vpop.f32.mrb[0].mxu0
      %7632 = vmatprep.mubr.f32.mxu0 0.0
      %7633 = vmatmul.mubr.f32.gmra.mrb[0].mxu0 %v7508
      %v7634 = vpop.f32.mrb[0].mxu0
      %v7635 = vadd.f32 0.0, %v7634
      %v7636 = vpop.f32.mrb[0].mxu0
      %7637 = vmatprep.mubr.f32.mxu0 0.0
      %7638 = vmatmul.mubr.f32.gmra.mrb[0].mxu0 %v7510
      %v7639 = vpop.f32.mrb[0].mxu0
      %v7640 = vadd.f32 0.0, %v7639
      %v7641 = vpop.f32.mrb[0].mxu0
      %7642 = vmatprep.mubr.f32.mxu0 0.0
      %7643 = vmatmul.mubr.f32.gmra.mrb[0].mxu0 %v7512
      %v7644 = vpop.f32.mrb[0].mxu0
      %v7645 = vadd.f32 0.0, %v7644
      %v7646 = vpop.f32.mrb[0].mxu0
      %7647 = vmatprep.mubr.f32.mxu0 0.0
      %7648 = vmatmul.mubr.f32.gmra.mrb[0].mxu0 %v7514
      %v7649 = vpop.f32.mrb[0].mxu0
      %v7650 = vadd.f32 0.0, %v7649
      %v7651 = vpop.f32.mrb[0].mxu0
      %7652 = vmatprep.mubr.f32.mxu0 0.0
      %7653 = vmatmul.mubr.f32.gmra.mrb[0].mxu0 %v7516
      %v7654 = vpop.f32.mrb[0].mxu0
      %v7655 = vadd.f32 0.0, %v7654
      %v7656 = vpop.f32.mrb[0].mxu0
      %7657 = vmatprep.mubr.f32.mxu0 0.0
      %7658 = vmatmul.mubr.f32.gmra.mrb[0].mxu0 %v7518
      %v7659 = vpop.f32.mrb[0].mxu0
      %v7660 = vadd.f32 0.0, %v7659
      %v7661 = vpop.f32.mrb[0].mxu0
      %7662 = vmatprep.mubr.f32.mxu0 0.0
      %7663 = vmatmul.mubr.f32.gmra.mrb[0].mxu0 %v7520
      %v7664 = vpop.f32.mrb[0].mxu0
      %v7665 = vadd.f32 0.0, %v7664
      %v7666 = vpop.f32.mrb[0].mxu0
      %7667 = vmatprep.mubr.f32.mxu0 0.0
      %7668 = vmatmul.mubr.f32.gmra.mrb[0].mxu0 %v7522
      %v7669 = vpop.f32.mrb[0].mxu0
      %v7670 = vadd.f32 0.0, %v7669
      %v7671 = vpop.f32.mrb[0].mxu0
      %7672 = vmatprep.mubr.f32.mxu0 0.0
      %7673 = vmatmul.mubr.f32.gmra.mrb[0].mxu0 %v7524
      %v7674 = vpop.f32.mrb[0].mxu0
      %v7675 = vadd.f32 0.0, %v7674
      %v7676 = vpop.f32.mrb[0].mxu0
      %7677 = vmatprep.mubr.f32.mxu0 0.0
      %7678 = vmatmul.mubr.f32.gmra.mrb[0].mxu0 %v7526
      %v7679 = vpop.f32.mrb[0].mxu0
      %v7680 = vadd.f32 0.0, %v7679
      %v7681 = vpop.f32.mrb[0].mxu0
      %7682 = vdwg.mxu0
      %v7683 = vadd.f32 %v7263, %v7595
      %v7684 = vadd.f32 %v7268, %v7600
      %v7685 = vadd.f32 %v7273, %v7605
      %v7686 = vadd.f32 %v7278, %v7610
      %v7687 = vadd.f32 %v7283, %v7615
      %v7688 = vadd.f32 %v7288, %v7620
      %v7689 = vadd.f32 %v7293, %v7625
      %v7690 = vadd.f32 %v7298, %v7630
      %v7691 = vadd.f32 %v7303, %v7635
      %v7692 = vadd.f32 %v7308, %v7640
      %v7693 = vadd.f32 %v7313, %v7645
      %v7694 = vadd.f32 %v7318, %v7650
      %v7695 = vadd.f32 %v7323, %v7655
      %v7696 = vadd.f32 %v7328, %v7660
      %v7697 = vadd.f32 %v7333, %v7665
      %v7698 = vadd.f32 %v7338, %v7670
      %v7699 = vadd.f32 %v7343, %v7675
      %v7700 = vadd.f32 %v7348, %v7680
      %v7703 = vcombine.high %v6758, %v6758
      %v7704 = vcombine.low %v6736, %v6787
      %v7705 = vcombine.low %v6737, %v6738
      %v7706 = vcombine.low %v6788, %v6739
      %v7707 = vcombine.low %v6740, %v6789
      %v7708 = vcombine.low %v6741, %v6742
      %v7709 = vcombine.low %v6790, %v6743
      %v7710 = vcombine.low %v6744, %v6791
      %v7711 = vcombine.low %v6745, %v6746
      %v7712 = vcombine.low %v6792, %v6747
      %v7713 = vcombine.low %v6748, %v6793
      %v7714 = vcombine.low %v6749, %v6750
      %v7715 = vcombine.low %v6794, %v6751
      %v7716 = vcombine.low %v6752, %v6795
      %v7717 = vcombine.low %v6753, %v6754
      %v7718 = vcombine.low %v6796, %v6755
      %v7719 = vcombine.low %v6756, %v6797
      %v7720 = vcombine.low %v6757, %v6758
      %v7721 = vcombine.low %v7703, %v6759
      %v7722 = vsel %vm1556, %v7704, 0
      %v7724 = vsel %vm1556, %v7705, 0
      %v7726 = vsel %vm1556, %v7706, 0
      %v7728 = vsel %vm1556, %v7707, 0
      %v7730 = vsel %vm1556, %v7708, 0
      %v7732 = vsel %vm1556, %v7709, 0
      %v7734 = vsel %vm1556, %v7710, 0
      %v7736 = vsel %vm1556, %v7711, 0
      %v7738 = vsel %vm1556, %v7712, 0
      %v7740 = vsel %vm1556, %v7713, 0
      %v7742 = vsel %vm1556, %v7714, 0
      %v7744 = vsel %vm1556, %v7715, 0
      %v7746 = vsel %vm1556, %v7716, 0
      %v7748 = vsel %vm1556, %v7717, 0
      %v7750 = vsel %vm1556, %v7718, 0
      %v7752 = vsel %vm1556, %v7719, 0
      %v7754 = vsel %vm1556, %v7720, 0
      %v7756 = vsel %vm1556, %v7721, 0
      %7758 = vmatprep.subr.mxu0 0.0
      %7759 = vmatpush1.msra.mxu0 %v6727
      %7760 = vmatprep.subr.mxu0 0.0
      %7761 = vmatpush1.msra.mxu0 0.0
      %7762 = vmatprep.subr.mxu0 0.0
      %7763 = vmatpush1.msra.mxu0 0.0
      %7764 = vmatprep.subr.mxu0 0.0
      %7765 = vmatpush1.msra.mxu0 0.0
      %7766 = vmatprep.subr.mxu0 0.0
      %7767 = vmatpush1.msra.mxu0 0.0
      %7768 = vmatprep.subr.mxu0 0.0
      %7769 = vmatpush1.msra.mxu0 0.0
      %7770 = vmatprep.subr.mxu0 0.0
      %7771 = vmatpush1.msra.mxu0 0.0
      %7772 = vmatprep.subr.mxu0 0.0
      %7773 = vmatpush1.msra.mxu0 0.0
      %7774 = vmatprep.subr.mxu0 0.0
      %7775 = vmatpush1.msra.mxu0 0.0
      %7776 = vmatprep.subr.mxu0 0.0
      %7777 = vmatpush1.msra.mxu0 0.0
      %7778 = vmatprep.subr.mxu0 0.0
      %7779 = vmatpush1.msra.mxu0 0.0
      %7780 = vmatprep.subr.mxu0 0.0
      %7781 = vmatpush1.msra.mxu0 0.0
      %7782 = vmatprep.subr.mxu0 0.0
      %7783 = vmatpush1.msra.mxu0 0.0
      %7784 = vmatprep.subr.mxu0 0.0
      %7785 = vmatpush1.msra.mxu0 0.0
      %7786 = vmatprep.subr.mxu0 0.0
      %7787 = vmatpush1.msra.mxu0 0.0
      %7788 = vmatprep.subr.mxu0 0.0
      %7789 = vmatpush1.msra.mxu0 0.0
      %7790 = vmatprep.subr.mxu0 0.0
      %7791 = vmatpush1.msra.mxu0 0.0
      %7792 = vmatprep.subr.mxu0 0.0
      %7793 = vmatpush1.msra.mxu0 0.0
      %7794 = vmatprep.subr.mxu0 0.0
      %7795 = vmatpush1.msra.mxu0 0.0
      %7796 = vmatprep.subr.mxu0 0.0
      %7797 = vmatpush1.msra.mxu0 0.0
      %7798 = vmatprep.subr.mxu0 0.0
      %7799 = vmatpush1.msra.mxu0 0.0
      %7800 = vmatprep.subr.mxu0 0.0
      %7801 = vmatpush1.msra.mxu0 0.0
      %7802 = vmatprep.subr.mxu0 0.0
      %7803 = vmatpush1.msra.mxu0 0.0
      %7804 = vmatprep.subr.mxu0 0.0
      %7805 = vmatpush1.msra.mxu0 0.0
      %7806 = vmatprep.subr.mxu0 0.0
      %7807 = vmatpush1.msra.mxu0 0.0
      %7808 = vmatprep.subr.mxu0 0.0
      %7809 = vmatpush1.msra.mxu0 0.0
      %7810 = vmatprep.subr.mxu0 0.0
      %7811 = vmatpush1.msra.mxu0 0.0
      %7812 = vmatprep.subr.mxu0 0.0
      %7813 = vmatpush1.msra.mxu0 0.0
      %7814 = vmatprep.subr.mxu0 0.0
      %7815 = vmatpush1.msra.mxu0 0.0
      %7816 = vmatprep.subr.mxu0 0.0
      %7817 = vmatpush1.msra.mxu0 0.0
      %7818 = vmatprep.subr.mxu0 0.0
      %7819 = vmatpush1.msra.mxu0 0.0
      %7820 = vmatprep.subr.mxu0 0.0
      %7821 = vmatpush1.msra.mxu0 0.0
      %7822 = vmatprep.mubr.f32.mxu0 0.0
      %7823 = vmatmul.mubr.f32.gmra.mrb[0].mxu0 %v7722
      %v7824 = vpop.f32.mrb[0].mxu0
      %v7825 = vadd.f32 0.0, %v7824
      %v7826 = vpop.f32.mrb[0].mxu0
      %7827 = vmatprep.mubr.f32.mxu0 0.0
      %7828 = vmatmul.mubr.f32.gmra.mrb[0].mxu0 %v7724
      %v7829 = vpop.f32.mrb[0].mxu0
      %v7830 = vadd.f32 0.0, %v7829
      %v7831 = vpop.f32.mrb[0].mxu0
      %7832 = vmatprep.mubr.f32.mxu0 0.0
      %7833 = vmatmul.mubr.f32.gmra.mrb[0].mxu0 %v7726
      %v7834 = vpop.f32.mrb[0].mxu0
      %v7835 = vadd.f32 0.0, %v7834
      %v7836 = vpop.f32.mrb[0].mxu0
      %7837 = vmatprep.mubr.f32.mxu0 0.0
      %7838 = vmatmul.mubr.f32.gmra.mrb[0].mxu0 %v7728
      %v7839 = vpop.f32.mrb[0].mxu0
      %v7840 = vadd.f32 0.0, %v7839
      %v7841 = vpop.f32.mrb[0].mxu0
      %7842 = vmatprep.mubr.f32.mxu0 0.0
      %7843 = vmatmul.mubr.f32.gmra.mrb[0].mxu0 %v7730
      %v7844 = vpop.f32.mrb[0].mxu0
      %v7845 = vadd.f32 0.0, %v7844
      %v7846 = vpop.f32.mrb[0].mxu0
      %7847 = vmatprep.mubr.f32.mxu0 0.0
      %7848 = vmatmul.mubr.f32.gmra.mrb[0].mxu0 %v7732
      %v7849 = vpop.f32.mrb[0].mxu0
      %v7850 = vadd.f32 0.0, %v7849
      %v7851 = vpop.f32.mrb[0].mxu0
      %7852 = vmatprep.mubr.f32.mxu0 0.0
      %7853 = vmatmul.mubr.f32.gmra.mrb[0].mxu0 %v7734
      %v7854 = vpop.f32.mrb[0].mxu0
      %v7855 = vadd.f32 0.0, %v7854
      %v7856 = vpop.f32.mrb[0].mxu0
      %7857 = vmatprep.mubr.f32.mxu0 0.0
      %7858 = vmatmul.mubr.f32.gmra.mrb[0].mxu0 %v7736
      %v7859 = vpop.f32.mrb[0].mxu0
      %v7860 = vadd.f32 0.0, %v7859
      %v7861 = vpop.f32.mrb[0].mxu0
      %7862 = vmatprep.mubr.f32.mxu0 0.0
      %7863 = vmatmul.mubr.f32.gmra.mrb[0].mxu0 %v7738
      %v7864 = vpop.f32.mrb[0].mxu0
      %v7865 = vadd.f32 0.0, %v7864
      %v7866 = vpop.f32.mrb[0].mxu0
      %7867 = vmatprep.mubr.f32.mxu0 0.0
      %7868 = vmatmul.mubr.f32.gmra.mrb[0].mxu0 %v7740
      %v7869 = vpop.f32.mrb[0].mxu0
      %v7870 = vadd.f32 0.0, %v7869
      %v7871 = vpop.f32.mrb[0].mxu0
      %7872 = vmatprep.mubr.f32.mxu0 0.0
      %7873 = vmatmul.mubr.f32.gmra.mrb[0].mxu0 %v7742
      %v7874 = vpop.f32.mrb[0].mxu0
      %v7875 = vadd.f32 0.0, %v7874
      %v7876 = vpop.f32.mrb[0].mxu0
      %7877 = vmatprep.mubr.f32.mxu0 0.0
      %7878 = vmatmul.mubr.f32.gmra.mrb[0].mxu0 %v7744
      %v7879 = vpop.f32.mrb[0].mxu0
      %v7880 = vadd.f32 0.0, %v7879
      %v7881 = vpop.f32.mrb[0].mxu0
      %7882 = vmatprep.mubr.f32.mxu0 0.0
      %7883 = vmatmul.mubr.f32.gmra.mrb[0].mxu0 %v7746
      %v7884 = vpop.f32.mrb[0].mxu0
      %v7885 = vadd.f32 0.0, %v7884
      %v7886 = vpop.f32.mrb[0].mxu0
      %7887 = vmatprep.mubr.f32.mxu0 0.0
      %7888 = vmatmul.mubr.f32.gmra.mrb[0].mxu0 %v7748
      %v7889 = vpop.f32.mrb[0].mxu0
      %v7890 = vadd.f32 0.0, %v7889
      %v7891 = vpop.f32.mrb[0].mxu0
      %7892 = vmatprep.mubr.f32.mxu0 0.0
      %7893 = vmatmul.mubr.f32.gmra.mrb[0].mxu0 %v7750
      %v7894 = vpop.f32.mrb[0].mxu0
      %v7895 = vadd.f32 0.0, %v7894
      %v7896 = vpop.f32.mrb[0].mxu0
      %7897 = vmatprep.mubr.f32.mxu0 0.0
      %7898 = vmatmul.mubr.f32.gmra.mrb[0].mxu0 %v7752
      %v7899 = vpop.f32.mrb[0].mxu0
      %v7900 = vadd.f32 0.0, %v7899
      %v7901 = vpop.f32.mrb[0].mxu0
      %7902 = vmatprep.mubr.f32.mxu0 0.0
      %7903 = vmatmul.mubr.f32.gmra.mrb[0].mxu0 %v7754
      %v7904 = vpop.f32.mrb[0].mxu0
      %v7905 = vadd.f32 0.0, %v7904
      %v7906 = vpop.f32.mrb[0].mxu0
      %7907 = vmatprep.mubr.f32.mxu0 0.0
      %7908 = vmatmul.mubr.f32.gmra.mrb[0].mxu0 %v7756
      %v7909 = vpop.f32.mrb[0].mxu0
      %v7910 = vadd.f32 0.0, %v7909
      %v7911 = vpop.f32.mrb[0].mxu0
      %7912 = vdwg.mxu0
      %v7913 = vadd.f32 %v7683, %v7825
      %v7914 = vadd.f32 %v7684, %v7830
      %v7915 = vadd.f32 %v7685, %v7835
      %v7916 = vadd.f32 %v7686, %v7840
      %v7917 = vadd.f32 %v7687, %v7845
      %v7918 = vadd.f32 %v7688, %v7850
      %v7919 = vadd.f32 %v7689, %v7855
      %v7920 = vadd.f32 %v7690, %v7860
      %v7921 = vadd.f32 %v7691, %v7865
      %v7922 = vadd.f32 %v7692, %v7870
      %v7923 = vadd.f32 %v7693, %v7875
      %v7924 = vadd.f32 %v7694, %v7880
      %v7925 = vadd.f32 %v7695, %v7885
      %v7926 = vadd.f32 %v7696, %v7890
      %v7927 = vadd.f32 %v7697, %v7895
      %v7928 = vadd.f32 %v7698, %v7900
      %v7929 = vadd.f32 %v7699, %v7905
      %v7930 = vadd.f32 %v7700, %v7910
      %v7931 = vcombine.high %v6759, %v6759
      %v7932 = vrot.slane %v6758, 5
      %v7933 = vrot.slane %v7932, 4
      %v7934 = vrot.slane %v7703, 5
      %v7935 = vsel %vm6812, %v7933, %v7934
      %v7936 = vrot.slane %v7934, 4
      %v7937 = vrot.slane %v6759, 5
      %v7938 = vsel %vm6812, %v7936, %v7937
      %v7939 = vrot.slane %v7937, 4
      %v7940 = vrot.slane %v7931, 5
      %v7941 = vsel %vm6812, %v7939, %v7940
      %v7942 = vcombine.low %v6826, %v6829
      %v7943 = vcombine.low %v6832, %v6836
      %v7944 = vcombine.low %v6839, %v6842
      %v7945 = vcombine.low %v6846, %v6849
      %v7946 = vcombine.low %v6852, %v6856
      %v7947 = vcombine.low %v6859, %v6862
      %v7948 = vcombine.low %v6866, %v6869
      %v7949 = vcombine.low %v6872, %v6876
      %v7950 = vcombine.low %v6879, %v6882
      %v7951 = vcombine.low %v6886, %v6889
      %v7952 = vcombine.low %v6892, %v6896
      %v7953 = vcombine.low %v6899, %v6902
      %v7954 = vcombine.low %v6906, %v6909
      %v7955 = vcombine.low %v6912, %v6916
      %v7956 = vcombine.low %v6919, %v6922
      %v7957 = vcombine.low %v6926, %v6929
      %v7958 = vcombine.low %v6932, %v7935
      %v7959 = vcombine.low %v7938, %v7941
      %v7960 = vsel %vm1556, %v7942, 0
      %v7962 = vsel %vm1556, %v7943, 0
      %v7964 = vsel %vm1556, %v7944, 0
      %v7966 = vsel %vm1556, %v7945, 0
      %v7968 = vsel %vm1556, %v7946, 0
      %v7970 = vsel %vm1556, %v7947, 0
      %v7972 = vsel %vm1556, %v7948, 0
      %v7974 = vsel %vm1556, %v7949, 0
      %v7976 = vsel %vm1556, %v7950, 0
      %v7978 = vsel %vm1556, %v7951, 0
      %v7980 = vsel %vm1556, %v7952, 0
      %v7982 = vsel %vm1556, %v7953, 0
      %v7984 = vsel %vm1556, %v7954, 0
      %v7986 = vsel %vm1556, %v7955, 0
      %v7988 = vsel %vm1556, %v7956, 0
      %v7990 = vsel %vm1556, %v7957, 0
      %v7992 = vsel %vm1556, %v7958, 0
      %v7994 = vsel %vm1556, %v7959, 0
      %7996 = vmatprep.subr.mxu0 0.0
      %7997 = vmatpush1.msra.mxu0 %v6728
      %7998 = vmatprep.subr.mxu0 0.0
      %7999 = vmatpush1.msra.mxu0 0.0
      %8000 = vmatprep.subr.mxu0 0.0
      %8001 = vmatpush1.msra.mxu0 0.0
      %8002 = vmatprep.subr.mxu0 0.0
      %8003 = vmatpush1.msra.mxu0 0.0
      %8004 = vmatprep.subr.mxu0 0.0
      %8005 = vmatpush1.msra.mxu0 0.0
      %8006 = vmatprep.subr.mxu0 0.0
      %8007 = vmatpush1.msra.mxu0 0.0
      %8008 = vmatprep.subr.mxu0 0.0
      %8009 = vmatpush1.msra.mxu0 0.0
      %8010 = vmatprep.subr.mxu0 0.0
      %8011 = vmatpush1.msra.mxu0 0.0
      %8012 = vmatprep.subr.mxu0 0.0
      %8013 = vmatpush1.msra.mxu0 0.0
      %8014 = vmatprep.subr.mxu0 0.0
      %8015 = vmatpush1.msra.mxu0 0.0
      %8016 = vmatprep.subr.mxu0 0.0
      %8017 = vmatpush1.msra.mxu0 0.0
      %8018 = vmatprep.subr.mxu0 0.0
      %8019 = vmatpush1.msra.mxu0 0.0
      %8020 = vmatprep.subr.mxu0 0.0
      %8021 = vmatpush1.msra.mxu0 0.0
      %8022 = vmatprep.subr.mxu0 0.0
      %8023 = vmatpush1.msra.mxu0 0.0
      %8024 = vmatprep.subr.mxu0 0.0
      %8025 = vmatpush1.msra.mxu0 0.0
      %8026 = vmatprep.subr.mxu0 0.0
      %8027 = vmatpush1.msra.mxu0 0.0
      %8028 = vmatprep.subr.mxu0 0.0
      %8029 = vmatpush1.msra.mxu0 0.0
      %8030 = vmatprep.subr.mxu0 0.0
      %8031 = vmatpush1.msra.mxu0 0.0
      %8032 = vmatprep.subr.mxu0 0.0
      %8033 = vmatpush1.msra.mxu0 0.0
      %8034 = vmatprep.subr.mxu0 0.0
      %8035 = vmatpush1.msra.mxu0 0.0
      %8036 = vmatprep.subr.mxu0 0.0
      %8037 = vmatpush1.msra.mxu0 0.0
      %8038 = vmatprep.subr.mxu0 0.0
      %8039 = vmatpush1.msra.mxu0 0.0
      %8040 = vmatprep.subr.mxu0 0.0
      %8041 = vmatpush1.msra.mxu0 0.0
      %8042 = vmatprep.subr.mxu0 0.0
      %8043 = vmatpush1.msra.mxu0 0.0
      %8044 = vmatprep.subr.mxu0 0.0
      %8045 = vmatpush1.msra.mxu0 0.0
      %8046 = vmatprep.subr.mxu0 0.0
      %8047 = vmatpush1.msra.mxu0 0.0
      %8048 = vmatprep.subr.mxu0 0.0
      %8049 = vmatpush1.msra.mxu0 0.0
      %8050 = vmatprep.subr.mxu0 0.0
      %8051 = vmatpush1.msra.mxu0 0.0
      %8052 = vmatprep.subr.mxu0 0.0
      %8053 = vmatpush1.msra.mxu0 0.0
      %8054 = vmatprep.subr.mxu0 0.0
      %8055 = vmatpush1.msra.mxu0 0.0
      %8056 = vmatprep.subr.mxu0 0.0
      %8057 = vmatpush1.msra.mxu0 0.0
      %8058 = vmatprep.subr.mxu0 0.0
      %8059 = vmatpush1.msra.mxu0 0.0
      %8060 = vmatprep.mubr.f32.mxu0 0.0
      %8061 = vmatmul.mubr.f32.gmra.mrb[0].mxu0 %v7960
      %v8062 = vpop.f32.mrb[0].mxu0
      %v8063 = vadd.f32 0.0, %v8062
      %v8064 = vpop.f32.mrb[0].mxu0
      %8065 = vmatprep.mubr.f32.mxu0 0.0
      %8066 = vmatmul.mubr.f32.gmra.mrb[0].mxu0 %v7962
      %v8067 = vpop.f32.mrb[0].mxu0
      %v8068 = vadd.f32 0.0, %v8067
      %v8069 = vpop.f32.mrb[0].mxu0
      %8070 = vmatprep.mubr.f32.mxu0 0.0
      %8071 = vmatmul.mubr.f32.gmra.mrb[0].mxu0 %v7964
      %v8072 = vpop.f32.mrb[0].mxu0
      %v8073 = vadd.f32 0.0, %v8072
      %v8074 = vpop.f32.mrb[0].mxu0
      %8075 = vmatprep.mubr.f32.mxu0 0.0
      %8076 = vmatmul.mubr.f32.gmra.mrb[0].mxu0 %v7966
      %v8077 = vpop.f32.mrb[0].mxu0
      %v8078 = vadd.f32 0.0, %v8077
      %v8079 = vpop.f32.mrb[0].mxu0
      %8080 = vmatprep.mubr.f32.mxu0 0.0
      %8081 = vmatmul.mubr.f32.gmra.mrb[0].mxu0 %v7968
      %v8082 = vpop.f32.mrb[0].mxu0
      %v8083 = vadd.f32 0.0, %v8082
      %v8084 = vpop.f32.mrb[0].mxu0
      %8085 = vmatprep.mubr.f32.mxu0 0.0
      %8086 = vmatmul.mubr.f32.gmra.mrb[0].mxu0 %v7970
      %v8087 = vpop.f32.mrb[0].mxu0
      %v8088 = vadd.f32 0.0, %v8087
      %v8089 = vpop.f32.mrb[0].mxu0
      %8090 = vmatprep.mubr.f32.mxu0 0.0
      %8091 = vmatmul.mubr.f32.gmra.mrb[0].mxu0 %v7972
      %v8092 = vpop.f32.mrb[0].mxu0
      %v8093 = vadd.f32 0.0, %v8092
      %v8094 = vpop.f32.mrb[0].mxu0
      %8095 = vmatprep.mubr.f32.mxu0 0.0
      %8096 = vmatmul.mubr.f32.gmra.mrb[0].mxu0 %v7974
      %v8097 = vpop.f32.mrb[0].mxu0
      %v8098 = vadd.f32 0.0, %v8097
      %v8099 = vpop.f32.mrb[0].mxu0
      %8100 = vmatprep.mubr.f32.mxu0 0.0
      %8101 = vmatmul.mubr.f32.gmra.mrb[0].mxu0 %v7976
      %v8102 = vpop.f32.mrb[0].mxu0
      %v8103 = vadd.f32 0.0, %v8102
      %v8104 = vpop.f32.mrb[0].mxu0
      %8105 = vmatprep.mubr.f32.mxu0 0.0
      %8106 = vmatmul.mubr.f32.gmra.mrb[0].mxu0 %v7978
      %v8107 = vpop.f32.mrb[0].mxu0
      %v8108 = vadd.f32 0.0, %v8107
      %v8109 = vpop.f32.mrb[0].mxu0
      %8110 = vmatprep.mubr.f32.mxu0 0.0
      %8111 = vmatmul.mubr.f32.gmra.mrb[0].mxu0 %v7980
      %v8112 = vpop.f32.mrb[0].mxu0
      %v8113 = vadd.f32 0.0, %v8112
      %v8114 = vpop.f32.mrb[0].mxu0
      %8115 = vmatprep.mubr.f32.mxu0 0.0
      %8116 = vmatmul.mubr.f32.gmra.mrb[0].mxu0 %v7982
      %v8117 = vpop.f32.mrb[0].mxu0
      %v8118 = vadd.f32 0.0, %v8117
      %v8119 = vpop.f32.mrb[0].mxu0
      %8120 = vmatprep.mubr.f32.mxu0 0.0
      %8121 = vmatmul.mubr.f32.gmra.mrb[0].mxu0 %v7984
      %v8122 = vpop.f32.mrb[0].mxu0
      %v8123 = vadd.f32 0.0, %v8122
      %v8124 = vpop.f32.mrb[0].mxu0
      %8125 = vmatprep.mubr.f32.mxu0 0.0
      %8126 = vmatmul.mubr.f32.gmra.mrb[0].mxu0 %v7986
      %v8127 = vpop.f32.mrb[0].mxu0
      %v8128 = vadd.f32 0.0, %v8127
      %v8129 = vpop.f32.mrb[0].mxu0
      %8130 = vmatprep.mubr.f32.mxu0 0.0
      %8131 = vmatmul.mubr.f32.gmra.mrb[0].mxu0 %v7988
      %v8132 = vpop.f32.mrb[0].mxu0
      %v8133 = vadd.f32 0.0, %v8132
      %v8134 = vpop.f32.mrb[0].mxu0
      %8135 = vmatprep.mubr.f32.mxu0 0.0
      %8136 = vmatmul.mubr.f32.gmra.mrb[0].mxu0 %v7990
      %v8137 = vpop.f32.mrb[0].mxu0
      %v8138 = vadd.f32 0.0, %v8137
      %v8139 = vpop.f32.mrb[0].mxu0
      %8140 = vmatprep.mubr.f32.mxu0 0.0
      %8141 = vmatmul.mubr.f32.gmra.mrb[0].mxu0 %v7992
      %v8142 = vpop.f32.mrb[0].mxu0
      %v8143 = vadd.f32 0.0, %v8142
      %v8144 = vpop.f32.mrb[0].mxu0
      %8145 = vmatprep.mubr.f32.mxu0 0.0
      %8146 = vmatmul.mubr.f32.gmra.mrb[0].mxu0 %v7994
      %v8147 = vpop.f32.mrb[0].mxu0
      %v8148 = vadd.f32 0.0, %v8147
      %v8149 = vpop.f32.mrb[0].mxu0
      %8150 = vdwg.mxu0
      %v8151 = vadd.f32 %v7913, %v8063
      %v8152 = vadd.f32 %v7914, %v8068
      %v8153 = vadd.f32 %v7915, %v8073
      %v8154 = vadd.f32 %v7916, %v8078
      %v8155 = vadd.f32 %v7917, %v8083
      %v8156 = vadd.f32 %v7918, %v8088
      %v8157 = vadd.f32 %v7919, %v8093
      %v8158 = vadd.f32 %v7920, %v8098
      %v8159 = vadd.f32 %v7921, %v8103
      %v8160 = vadd.f32 %v7922, %v8108
      %v8161 = vadd.f32 %v7923, %v8113
      %v8162 = vadd.f32 %v7924, %v8118
      %v8163 = vadd.f32 %v7925, %v8123
      %v8164 = vadd.f32 %v7926, %v8128
      %v8165 = vadd.f32 %v7927, %v8133
      %v8166 = vadd.f32 %v7928, %v8138
      %v8167 = vadd.f32 %v7929, %v8143
      %v8168 = vadd.f32 %v7930, %v8148
      %v8169 = vrot.slane %v6758, 6
      %v8170 = vrot.slane %v8169, 4
      %v8171 = vrot.slane %v7703, 6
      %v8172 = vsel %vm7353, %v8170, %v8171
      %v8173 = vrot.slane %v8171, 4
      %v8174 = vrot.slane %v6759, 6
      %v8175 = vsel %vm7353, %v8173, %v8174
      %v8176 = vrot.slane %v8174, 4
      %v8177 = vrot.slane %v7931, 6
      %v8178 = vsel %vm7353, %v8176, %v8177
      %v8179 = vcombine.low %v7367, %v7370
      %v8180 = vcombine.low %v7373, %v7377
      %v8181 = vcombine.low %v7380, %v7383
      %v8182 = vcombine.low %v7387, %v7390
      %v8183 = vcombine.low %v7393, %v7397
      %v8184 = vcombine.low %v7400, %v7403
      %v8185 = vcombine.low %v7407, %v7410
      %v8186 = vcombine.low %v7413, %v7417
      %v8187 = vcombine.low %v7420, %v7423
      %v8188 = vcombine.low %v7427, %v7430
      %v8189 = vcombine.low %v7433, %v7437
      %v8190 = vcombine.low %v7440, %v7443
      %v8191 = vcombine.low %v7447, %v7450
      %v8192 = vcombine.low %v7453, %v7457
      %v8193 = vcombine.low %v7460, %v7463
      %v8194 = vcombine.low %v7467, %v7470
      %v8195 = vcombine.low %v7473, %v8172
      %v8196 = vcombine.low %v8175, %v8178
      %v8197 = vsel %vm1556, %v8179, 0
      %v8199 = vsel %vm1556, %v8180, 0
      %v8201 = vsel %vm1556, %v8181, 0
      %v8203 = vsel %vm1556, %v8182, 0
      %v8205 = vsel %vm1556, %v8183, 0
      %v8207 = vsel %vm1556, %v8184, 0
      %v8209 = vsel %vm1556, %v8185, 0
      %v8211 = vsel %vm1556, %v8186, 0
      %v8213 = vsel %vm1556, %v8187, 0
      %v8215 = vsel %vm1556, %v8188, 0
      %v8217 = vsel %vm1556, %v8189, 0
      %v8219 = vsel %vm1556, %v8190, 0
      %v8221 = vsel %vm1556, %v8191, 0
      %v8223 = vsel %vm1556, %v8192, 0
      %v8225 = vsel %vm1556, %v8193, 0
      %v8227 = vsel %vm1556, %v8194, 0
      %v8229 = vsel %vm1556, %v8195, 0
      %v8231 = vsel %vm1556, %v8196, 0
      %8233 = vmatprep.subr.mxu0 0.0
      %8234 = vmatpush1.msra.mxu0 %v6729
      %8235 = vmatprep.subr.mxu0 0.0
      %8236 = vmatpush1.msra.mxu0 0.0
      %8237 = vmatprep.subr.mxu0 0.0
      %8238 = vmatpush1.msra.mxu0 0.0
      %8239 = vmatprep.subr.mxu0 0.0
      %8240 = vmatpush1.msra.mxu0 0.0
      %8241 = vmatprep.subr.mxu0 0.0
      %8242 = vmatpush1.msra.mxu0 0.0
      %8243 = vmatprep.subr.mxu0 0.0
      %8244 = vmatpush1.msra.mxu0 0.0
      %8245 = vmatprep.subr.mxu0 0.0
      %8246 = vmatpush1.msra.mxu0 0.0
      %8247 = vmatprep.subr.mxu0 0.0
      %8248 = vmatpush1.msra.mxu0 0.0
      %8249 = vmatprep.subr.mxu0 0.0
      %8250 = vmatpush1.msra.mxu0 0.0
      %8251 = vmatprep.subr.mxu0 0.0
      %8252 = vmatpush1.msra.mxu0 0.0
      %8253 = vmatprep.subr.mxu0 0.0
      %8254 = vmatpush1.msra.mxu0 0.0
      %8255 = vmatprep.subr.mxu0 0.0
      %8256 = vmatpush1.msra.mxu0 0.0
      %8257 = vmatprep.subr.mxu0 0.0
      %8258 = vmatpush1.msra.mxu0 0.0
      %8259 = vmatprep.subr.mxu0 0.0
      %8260 = vmatpush1.msra.mxu0 0.0
      %8261 = vmatprep.subr.mxu0 0.0
      %8262 = vmatpush1.msra.mxu0 0.0
      %8263 = vmatprep.subr.mxu0 0.0
      %8264 = vmatpush1.msra.mxu0 0.0
      %8265 = vmatprep.subr.mxu0 0.0
      %8266 = vmatpush1.msra.mxu0 0.0
      %8267 = vmatprep.subr.mxu0 0.0
      %8268 = vmatpush1.msra.mxu0 0.0
      %8269 = vmatprep.subr.mxu0 0.0
      %8270 = vmatpush1.msra.mxu0 0.0
      %8271 = vmatprep.subr.mxu0 0.0
      %8272 = vmatpush1.msra.mxu0 0.0
      %8273 = vmatprep.subr.mxu0 0.0
      %8274 = vmatpush1.msra.mxu0 0.0
      %8275 = vmatprep.subr.mxu0 0.0
      %8276 = vmatpush1.msra.mxu0 0.0
      %8277 = vmatprep.subr.mxu0 0.0
      %8278 = vmatpush1.msra.mxu0 0.0
      %8279 = vmatprep.subr.mxu0 0.0
      %8280 = vmatpush1.msra.mxu0 0.0
      %8281 = vmatprep.subr.mxu0 0.0
      %8282 = vmatpush1.msra.mxu0 0.0
      %8283 = vmatprep.subr.mxu0 0.0
      %8284 = vmatpush1.msra.mxu0 0.0
      %8285 = vmatprep.subr.mxu0 0.0
      %8286 = vmatpush1.msra.mxu0 0.0
      %8287 = vmatprep.subr.mxu0 0.0
      %8288 = vmatpush1.msra.mxu0 0.0
      %8289 = vmatprep.subr.mxu0 0.0
      %8290 = vmatpush1.msra.mxu0 0.0
      %8291 = vmatprep.subr.mxu0 0.0
      %8292 = vmatpush1.msra.mxu0 0.0
      %8293 = vmatprep.subr.mxu0 0.0
      %8294 = vmatpush1.msra.mxu0 0.0
      %8295 = vmatprep.subr.mxu0 0.0
      %8296 = vmatpush1.msra.mxu0 0.0
      %8297 = vmatprep.mubr.f32.mxu0 0.0
      %8298 = vmatmul.mubr.f32.gmra.mrb[0].mxu0 %v8197
      %v8299 = vpop.f32.mrb[0].mxu0
      %v8300 = vadd.f32 0.0, %v8299
      %v8301 = vpop.f32.mrb[0].mxu0
      %8302 = vmatprep.mubr.f32.mxu0 0.0
      %8303 = vmatmul.mubr.f32.gmra.mrb[0].mxu0 %v8199
      %v8304 = vpop.f32.mrb[0].mxu0
      %v8305 = vadd.f32 0.0, %v8304
      %v8306 = vpop.f32.mrb[0].mxu0
      %8307 = vmatprep.mubr.f32.mxu0 0.0
      %8308 = vmatmul.mubr.f32.gmra.mrb[0].mxu0 %v8201
      %v8309 = vpop.f32.mrb[0].mxu0
      %v8310 = vadd.f32 0.0, %v8309
      %v8311 = vpop.f32.mrb[0].mxu0
      %8312 = vmatprep.mubr.f32.mxu0 0.0
      %8313 = vmatmul.mubr.f32.gmra.mrb[0].mxu0 %v8203
      %v8314 = vpop.f32.mrb[0].mxu0
      %v8315 = vadd.f32 0.0, %v8314
      %v8316 = vpop.f32.mrb[0].mxu0
      %8317 = vmatprep.mubr.f32.mxu0 0.0
      %8318 = vmatmul.mubr.f32.gmra.mrb[0].mxu0 %v8205
      %v8319 = vpop.f32.mrb[0].mxu0
      %v8320 = vadd.f32 0.0, %v8319
      %v8321 = vpop.f32.mrb[0].mxu0
      %8322 = vmatprep.mubr.f32.mxu0 0.0
      %8323 = vmatmul.mubr.f32.gmra.mrb[0].mxu0 %v8207
      %v8324 = vpop.f32.mrb[0].mxu0
      %v8325 = vadd.f32 0.0, %v8324
      %v8326 = vpop.f32.mrb[0].mxu0
      %8327 = vmatprep.mubr.f32.mxu0 0.0
      %8328 = vmatmul.mubr.f32.gmra.mrb[0].mxu0 %v8209
      %v8329 = vpop.f32.mrb[0].mxu0
      %v8330 = vadd.f32 0.0, %v8329
      %v8331 = vpop.f32.mrb[0].mxu0
      %8332 = vmatprep.mubr.f32.mxu0 0.0
      %8333 = vmatmul.mubr.f32.gmra.mrb[0].mxu0 %v8211
      %v8334 = vpop.f32.mrb[0].mxu0
      %v8335 = vadd.f32 0.0, %v8334
      %v8336 = vpop.f32.mrb[0].mxu0
      %8337 = vmatprep.mubr.f32.mxu0 0.0
      %8338 = vmatmul.mubr.f32.gmra.mrb[0].mxu0 %v8213
      %v8339 = vpop.f32.mrb[0].mxu0
      %v8340 = vadd.f32 0.0, %v8339
      %v8341 = vpop.f32.mrb[0].mxu0
      %8342 = vmatprep.mubr.f32.mxu0 0.0
      %8343 = vmatmul.mubr.f32.gmra.mrb[0].mxu0 %v8215
      %v8344 = vpop.f32.mrb[0].mxu0
      %v8345 = vadd.f32 0.0, %v8344
      %v8346 = vpop.f32.mrb[0].mxu0
      %8347 = vmatprep.mubr.f32.mxu0 0.0
      %8348 = vmatmul.mubr.f32.gmra.mrb[0].mxu0 %v8217
      %v8349 = vpop.f32.mrb[0].mxu0
      %v8350 = vadd.f32 0.0, %v8349
      %v8351 = vpop.f32.mrb[0].mxu0
      %8352 = vmatprep.mubr.f32.mxu0 0.0
      %8353 = vmatmul.mubr.f32.gmra.mrb[0].mxu0 %v8219
      %v8354 = vpop.f32.mrb[0].mxu0
      %v8355 = vadd.f32 0.0, %v8354
      %v8356 = vpop.f32.mrb[0].mxu0
      %8357 = vmatprep.mubr.f32.mxu0 0.0
      %8358 = vmatmul.mubr.f32.gmra.mrb[0].mxu0 %v8221
      %v8359 = vpop.f32.mrb[0].mxu0
      %v8360 = vadd.f32 0.0, %v8359
      %v8361 = vpop.f32.mrb[0].mxu0
      %8362 = vmatprep.mubr.f32.mxu0 0.0
      %8363 = vmatmul.mubr.f32.gmra.mrb[0].mxu0 %v8223
      %v8364 = vpop.f32.mrb[0].mxu0
      %v8365 = vadd.f32 0.0, %v8364
      %v8366 = vpop.f32.mrb[0].mxu0
      %8367 = vmatprep.mubr.f32.mxu0 0.0
      %8368 = vmatmul.mubr.f32.gmra.mrb[0].mxu0 %v8225
      %v8369 = vpop.f32.mrb[0].mxu0
      %v8370 = vadd.f32 0.0, %v8369
      %v8371 = vpop.f32.mrb[0].mxu0
      %8372 = vmatprep.mubr.f32.mxu0 0.0
      %8373 = vmatmul.mubr.f32.gmra.mrb[0].mxu0 %v8227
      %v8374 = vpop.f32.mrb[0].mxu0
      %v8375 = vadd.f32 0.0, %v8374
      %v8376 = vpop.f32.mrb[0].mxu0
      %8377 = vmatprep.mubr.f32.mxu0 0.0
      %8378 = vmatmul.mubr.f32.gmra.mrb[0].mxu0 %v8229
      %v8379 = vpop.f32.mrb[0].mxu0
      %v8380 = vadd.f32 0.0, %v8379
      %v8381 = vpop.f32.mrb[0].mxu0
      %8382 = vmatprep.mubr.f32.mxu0 0.0
      %8383 = vmatmul.mubr.f32.gmra.mrb[0].mxu0 %v8231
      %v8384 = vpop.f32.mrb[0].mxu0
      %v8385 = vadd.f32 0.0, %v8384
      %v8386 = vpop.f32.mrb[0].mxu0
      %8387 = vdwg.mxu0
      %v8388 = vadd.f32 %v8151, %v8300
      %v8389 = vadd.f32 %v8152, %v8305
      %v8390 = vadd.f32 %v8153, %v8310
      %v8391 = vadd.f32 %v8154, %v8315
      %v8392 = vadd.f32 %v8155, %v8320
      %v8393 = vadd.f32 %v8156, %v8325
      %v8394 = vadd.f32 %v8157, %v8330
      %v8395 = vadd.f32 %v8158, %v8335
      %v8396 = vadd.f32 %v8159, %v8340
      %v8397 = vadd.f32 %v8160, %v8345
      %v8398 = vadd.f32 %v8161, %v8350
      %v8399 = vadd.f32 %v8162, %v8355
      %v8400 = vadd.f32 %v8163, %v8360
      %v8401 = vadd.f32 %v8164, %v8365
      %v8402 = vadd.f32 %v8165, %v8370
      %v8403 = vadd.f32 %v8166, %v8375
      %v8404 = vadd.f32 %v8167, %v8380
      %v8405 = vadd.f32 %v8168, %v8385
      %v8408 = vcombine.high %v6760, %v6760
      %v8409 = vcombine.low %v6758, %v7703
      %v8410 = vcombine.low %v6759, %v6760
      %v8411 = vcombine.low %v8408, %v6761
      %v8412 = vsel %vm1556, %v8409, 0
      %v8414 = vsel %vm1556, %v8410, 0
      %v8416 = vsel %vm1556, %v8411, 0
      %8418 = vmatprep.subr.mxu0 0.0
      %8419 = vmatpush1.msra.mxu0 %v6730
      %8420 = vmatprep.subr.mxu0 0.0
      %8421 = vmatpush1.msra.mxu0 0.0
      %8422 = vmatprep.subr.mxu0 0.0
      %8423 = vmatpush1.msra.mxu0 0.0
      %8424 = vmatprep.subr.mxu0 0.0
      %8425 = vmatpush1.msra.mxu0 0.0
      %8426 = vmatprep.subr.mxu0 0.0
      %8427 = vmatpush1.msra.mxu0 0.0
      %8428 = vmatprep.subr.mxu0 0.0
      %8429 = vmatpush1.msra.mxu0 0.0
      %8430 = vmatprep.subr.mxu0 0.0
      %8431 = vmatpush1.msra.mxu0 0.0
      %8432 = vmatprep.subr.mxu0 0.0
      %8433 = vmatpush1.msra.mxu0 0.0
      %8434 = vmatprep.subr.mxu0 0.0
      %8435 = vmatpush1.msra.mxu0 0.0
      %8436 = vmatprep.subr.mxu0 0.0
      %8437 = vmatpush1.msra.mxu0 0.0
      %8438 = vmatprep.subr.mxu0 0.0
      %8439 = vmatpush1.msra.mxu0 0.0
      %8440 = vmatprep.subr.mxu0 0.0
      %8441 = vmatpush1.msra.mxu0 0.0
      %8442 = vmatprep.subr.mxu0 0.0
      %8443 = vmatpush1.msra.mxu0 0.0
      %8444 = vmatprep.subr.mxu0 0.0
      %8445 = vmatpush1.msra.mxu0 0.0
      %8446 = vmatprep.subr.mxu0 0.0
      %8447 = vmatpush1.msra.mxu0 0.0
      %8448 = vmatprep.subr.mxu0 0.0
      %8449 = vmatpush1.msra.mxu0 0.0
      %8450 = vmatprep.subr.mxu0 0.0
      %8451 = vmatpush1.msra.mxu0 0.0
      %8452 = vmatprep.subr.mxu0 0.0
      %8453 = vmatpush1.msra.mxu0 0.0
      %8454 = vmatprep.subr.mxu0 0.0
      %8455 = vmatpush1.msra.mxu0 0.0
      %8456 = vmatprep.subr.mxu0 0.0
      %8457 = vmatpush1.msra.mxu0 0.0
      %8458 = vmatprep.subr.mxu0 0.0
      %8459 = vmatpush1.msra.mxu0 0.0
      %8460 = vmatprep.subr.mxu0 0.0
      %8461 = vmatpush1.msra.mxu0 0.0
      %8462 = vmatprep.subr.mxu0 0.0
      %8463 = vmatpush1.msra.mxu0 0.0
      %8464 = vmatprep.subr.mxu0 0.0
      %8465 = vmatpush1.msra.mxu0 0.0
      %8466 = vmatprep.subr.mxu0 0.0
      %8467 = vmatpush1.msra.mxu0 0.0
      %8468 = vmatprep.subr.mxu0 0.0
      %8469 = vmatpush1.msra.mxu0 0.0
      %8470 = vmatprep.subr.mxu0 0.0
      %8471 = vmatpush1.msra.mxu0 0.0
      %8472 = vmatprep.subr.mxu0 0.0
      %8473 = vmatpush1.msra.mxu0 0.0
      %8474 = vmatprep.subr.mxu0 0.0
      %8475 = vmatpush1.msra.mxu0 0.0
      %8476 = vmatprep.subr.mxu0 0.0
      %8477 = vmatpush1.msra.mxu0 0.0
      %8478 = vmatprep.subr.mxu0 0.0
      %8479 = vmatpush1.msra.mxu0 0.0
      %8480 = vmatprep.subr.mxu0 0.0
      %8481 = vmatpush1.msra.mxu0 0.0
      %8482 = vmatprep.mubr.f32.mxu0 0.0
      %8483 = vmatmul.mubr.f32.gmra.mrb[0].mxu0 %v7166
      %v8484 = vpop.f32.mrb[0].mxu0
      %v8485 = vadd.f32 0.0, %v8484
      %v8486 = vpop.f32.mrb[0].mxu0
      %8487 = vmatprep.mubr.f32.mxu0 0.0
      %8488 = vmatmul.mubr.f32.gmra.mrb[0].mxu0 %v7168
      %v8489 = vpop.f32.mrb[0].mxu0
      %v8490 = vadd.f32 0.0, %v8489
      %v8491 = vpop.f32.mrb[0].mxu0
      %8492 = vmatprep.mubr.f32.mxu0 0.0
      %8493 = vmatmul.mubr.f32.gmra.mrb[0].mxu0 %v7170
      %v8494 = vpop.f32.mrb[0].mxu0
      %v8495 = vadd.f32 0.0, %v8494
      %v8496 = vpop.f32.mrb[0].mxu0
      %8497 = vmatprep.mubr.f32.mxu0 0.0
      %8498 = vmatmul.mubr.f32.gmra.mrb[0].mxu0 %v7172
      %v8499 = vpop.f32.mrb[0].mxu0
      %v8500 = vadd.f32 0.0, %v8499
      %v8501 = vpop.f32.mrb[0].mxu0
      %8502 = vmatprep.mubr.f32.mxu0 0.0
      %8503 = vmatmul.mubr.f32.gmra.mrb[0].mxu0 %v7174
      %v8504 = vpop.f32.mrb[0].mxu0
      %v8505 = vadd.f32 0.0, %v8504
      %v8506 = vpop.f32.mrb[0].mxu0
      %8507 = vmatprep.mubr.f32.mxu0 0.0
      %8508 = vmatmul.mubr.f32.gmra.mrb[0].mxu0 %v7176
      %v8509 = vpop.f32.mrb[0].mxu0
      %v8510 = vadd.f32 0.0, %v8509
      %v8511 = vpop.f32.mrb[0].mxu0
      %8512 = vmatprep.mubr.f32.mxu0 0.0
      %8513 = vmatmul.mubr.f32.gmra.mrb[0].mxu0 %v7178
      %v8514 = vpop.f32.mrb[0].mxu0
      %v8515 = vadd.f32 0.0, %v8514
      %v8516 = vpop.f32.mrb[0].mxu0
      %8517 = vmatprep.mubr.f32.mxu0 0.0
      %8518 = vmatmul.mubr.f32.gmra.mrb[0].mxu0 %v7180
      %v8519 = vpop.f32.mrb[0].mxu0
      %v8520 = vadd.f32 0.0, %v8519
      %v8521 = vpop.f32.mrb[0].mxu0
      %8522 = vmatprep.mubr.f32.mxu0 0.0
      %8523 = vmatmul.mubr.f32.gmra.mrb[0].mxu0 %v7182
      %v8524 = vpop.f32.mrb[0].mxu0
      %v8525 = vadd.f32 0.0, %v8524
      %v8526 = vpop.f32.mrb[0].mxu0
      %8527 = vmatprep.mubr.f32.mxu0 0.0
      %8528 = vmatmul.mubr.f32.gmra.mrb[0].mxu0 %v7184
      %v8529 = vpop.f32.mrb[0].mxu0
      %v8530 = vadd.f32 0.0, %v8529
      %v8531 = vpop.f32.mrb[0].mxu0
      %8532 = vmatprep.mubr.f32.mxu0 0.0
      %8533 = vmatmul.mubr.f32.gmra.mrb[0].mxu0 %v7186
      %v8534 = vpop.f32.mrb[0].mxu0
      %v8535 = vadd.f32 0.0, %v8534
      %v8536 = vpop.f32.mrb[0].mxu0
      %8537 = vmatprep.mubr.f32.mxu0 0.0
      %8538 = vmatmul.mubr.f32.gmra.mrb[0].mxu0 %v7188
      %v8539 = vpop.f32.mrb[0].mxu0
      %v8540 = vadd.f32 0.0, %v8539
      %v8541 = vpop.f32.mrb[0].mxu0
      %8542 = vmatprep.mubr.f32.mxu0 0.0
      %8543 = vmatmul.mubr.f32.gmra.mrb[0].mxu0 %v7190
      %v8544 = vpop.f32.mrb[0].mxu0
      %v8545 = vadd.f32 0.0, %v8544
      %v8546 = vpop.f32.mrb[0].mxu0
      %8547 = vmatprep.mubr.f32.mxu0 0.0
      %8548 = vmatmul.mubr.f32.gmra.mrb[0].mxu0 %v7192
      %v8549 = vpop.f32.mrb[0].mxu0
      %v8550 = vadd.f32 0.0, %v8549
      %v8551 = vpop.f32.mrb[0].mxu0
      %8552 = vmatprep.mubr.f32.mxu0 0.0
      %8553 = vmatmul.mubr.f32.gmra.mrb[0].mxu0 %v7194
      %v8554 = vpop.f32.mrb[0].mxu0
      %v8555 = vadd.f32 0.0, %v8554
      %v8556 = vpop.f32.mrb[0].mxu0
      %8557 = vmatprep.mubr.f32.mxu0 0.0
      %8558 = vmatmul.mubr.f32.gmra.mrb[0].mxu0 %v8412
      %v8559 = vpop.f32.mrb[0].mxu0
      %v8560 = vadd.f32 0.0, %v8559
      %v8561 = vpop.f32.mrb[0].mxu0
      %8562 = vmatprep.mubr.f32.mxu0 0.0
      %8563 = vmatmul.mubr.f32.gmra.mrb[0].mxu0 %v8414
      %v8564 = vpop.f32.mrb[0].mxu0
      %v8565 = vadd.f32 0.0, %v8564
      %v8566 = vpop.f32.mrb[0].mxu0
      %8567 = vmatprep.mubr.f32.mxu0 0.0
      %8568 = vmatmul.mubr.f32.gmra.mrb[0].mxu0 %v8416
      %v8569 = vpop.f32.mrb[0].mxu0
      %v8570 = vadd.f32 0.0, %v8569
      %v8571 = vpop.f32.mrb[0].mxu0
      %8572 = vdwg.mxu0
      %v8573 = vadd.f32 %v8388, %v8485
      %v8574 = vadd.f32 %v8389, %v8490
      %v8575 = vadd.f32 %v8390, %v8495
      %v8576 = vadd.f32 %v8391, %v8500
      %v8577 = vadd.f32 %v8392, %v8505
      %v8578 = vadd.f32 %v8393, %v8510
      %v8579 = vadd.f32 %v8394, %v8515
      %v8580 = vadd.f32 %v8395, %v8520
      %v8581 = vadd.f32 %v8396, %v8525
      %v8582 = vadd.f32 %v8397, %v8530
      %v8583 = vadd.f32 %v8398, %v8535
      %v8584 = vadd.f32 %v8399, %v8540
      %v8585 = vadd.f32 %v8400, %v8545
      %v8586 = vadd.f32 %v8401, %v8550
      %v8587 = vadd.f32 %v8402, %v8555
      %v8588 = vadd.f32 %v8403, %v8560
      %v8589 = vadd.f32 %v8404, %v8565
      %v8590 = vadd.f32 %v8405, %v8570
      %v8591 = vcombine.high %v6761, %v6761
      %v8592 = vrot.slane %v6760, 5
      %v8593 = vrot.slane %v8592, 4
      %v8594 = vrot.slane %v8408, 5
      %v8595 = vsel %vm6812, %v8593, %v8594
      %v8596 = vrot.slane %v8594, 4
      %v8597 = vrot.slane %v6761, 5
      %v8598 = vsel %vm6812, %v8596, %v8597
      %v8599 = vrot.slane %v8597, 4
      %v8600 = vrot.slane %v8591, 5
      %v8601 = vsel %vm6812, %v8599, %v8600
      %v8602 = vcombine.low %v7935, %v7938
      %v8603 = vcombine.low %v7941, %v8595
      %v8604 = vcombine.low %v8598, %v8601
      %v8605 = vsel %vm1556, %v8602, 0
      %v8607 = vsel %vm1556, %v8603, 0
      %v8609 = vsel %vm1556, %v8604, 0
      %8611 = vmatprep.subr.mxu0 0.0
      %8612 = vmatpush1.msra.mxu0 %v6731
      %8613 = vmatprep.subr.mxu0 0.0
      %8614 = vmatpush1.msra.mxu0 0.0
      %8615 = vmatprep.subr.mxu0 0.0
      %8616 = vmatpush1.msra.mxu0 0.0
      %8617 = vmatprep.subr.mxu0 0.0
      %8618 = vmatpush1.msra.mxu0 0.0
      %8619 = vmatprep.subr.mxu0 0.0
      %8620 = vmatpush1.msra.mxu0 0.0
      %8621 = vmatprep.subr.mxu0 0.0
      %8622 = vmatpush1.msra.mxu0 0.0
      %8623 = vmatprep.subr.mxu0 0.0
      %8624 = vmatpush1.msra.mxu0 0.0
      %8625 = vmatprep.subr.mxu0 0.0
      %8626 = vmatpush1.msra.mxu0 0.0
      %8627 = vmatprep.subr.mxu0 0.0
      %8628 = vmatpush1.msra.mxu0 0.0
      %8629 = vmatprep.subr.mxu0 0.0
      %8630 = vmatpush1.msra.mxu0 0.0
      %8631 = vmatprep.subr.mxu0 0.0
      %8632 = vmatpush1.msra.mxu0 0.0
      %8633 = vmatprep.subr.mxu0 0.0
      %8634 = vmatpush1.msra.mxu0 0.0
      %8635 = vmatprep.subr.mxu0 0.0
      %8636 = vmatpush1.msra.mxu0 0.0
      %8637 = vmatprep.subr.mxu0 0.0
      %8638 = vmatpush1.msra.mxu0 0.0
      %8639 = vmatprep.subr.mxu0 0.0
      %8640 = vmatpush1.msra.mxu0 0.0
      %8641 = vmatprep.subr.mxu0 0.0
      %8642 = vmatpush1.msra.mxu0 0.0
      %8643 = vmatprep.subr.mxu0 0.0
      %8644 = vmatpush1.msra.mxu0 0.0
      %8645 = vmatprep.subr.mxu0 0.0
      %8646 = vmatpush1.msra.mxu0 0.0
      %8647 = vmatprep.subr.mxu0 0.0
      %8648 = vmatpush1.msra.mxu0 0.0
      %8649 = vmatprep.subr.mxu0 0.0
      %8650 = vmatpush1.msra.mxu0 0.0
      %8651 = vmatprep.subr.mxu0 0.0
      %8652 = vmatpush1.msra.mxu0 0.0
      %8653 = vmatprep.subr.mxu0 0.0
      %8654 = vmatpush1.msra.mxu0 0.0
      %8655 = vmatprep.subr.mxu0 0.0
      %8656 = vmatpush1.msra.mxu0 0.0
      %8657 = vmatprep.subr.mxu0 0.0
      %8658 = vmatpush1.msra.mxu0 0.0
      %8659 = vmatprep.subr.mxu0 0.0
      %8660 = vmatpush1.msra.mxu0 0.0
      %8661 = vmatprep.subr.mxu0 0.0
      %8662 = vmatpush1.msra.mxu0 0.0
      %8663 = vmatprep.subr.mxu0 0.0
      %8664 = vmatpush1.msra.mxu0 0.0
      %8665 = vmatprep.subr.mxu0 0.0
      %8666 = vmatpush1.msra.mxu0 0.0
      %8667 = vmatprep.subr.mxu0 0.0
      %8668 = vmatpush1.msra.mxu0 0.0
      %8669 = vmatprep.subr.mxu0 0.0
      %8670 = vmatpush1.msra.mxu0 0.0
      %8671 = vmatprep.subr.mxu0 0.0
      %8672 = vmatpush1.msra.mxu0 0.0
      %8673 = vmatprep.subr.mxu0 0.0
      %8674 = vmatpush1.msra.mxu0 0.0
      %8675 = vmatprep.mubr.f32.mxu0 0.0
      %8676 = vmatmul.mubr.f32.gmra.mrb[0].mxu0 %v6957
      %v8677 = vpop.f32.mrb[0].mxu0
      %v8678 = vadd.f32 0.0, %v8677
      %v8679 = vpop.f32.mrb[0].mxu0
      %8680 = vmatprep.mubr.f32.mxu0 0.0
      %8681 = vmatmul.mubr.f32.gmra.mrb[0].mxu0 %v6959
      %v8682 = vpop.f32.mrb[0].mxu0
      %v8683 = vadd.f32 0.0, %v8682
      %v8684 = vpop.f32.mrb[0].mxu0
      %8685 = vmatprep.mubr.f32.mxu0 0.0
      %8686 = vmatmul.mubr.f32.gmra.mrb[0].mxu0 %v6961
      %v8687 = vpop.f32.mrb[0].mxu0
      %v8688 = vadd.f32 0.0, %v8687
      %v8689 = vpop.f32.mrb[0].mxu0
      %8690 = vmatprep.mubr.f32.mxu0 0.0
      %8691 = vmatmul.mubr.f32.gmra.mrb[0].mxu0 %v6963
      %v8692 = vpop.f32.mrb[0].mxu0
      %v8693 = vadd.f32 0.0, %v8692
      %v8694 = vpop.f32.mrb[0].mxu0
      %8695 = vmatprep.mubr.f32.mxu0 0.0
      %8696 = vmatmul.mubr.f32.gmra.mrb[0].mxu0 %v6965
      %v8697 = vpop.f32.mrb[0].mxu0
      %v8698 = vadd.f32 0.0, %v8697
      %v8699 = vpop.f32.mrb[0].mxu0
      %8700 = vmatprep.mubr.f32.mxu0 0.0
      %8701 = vmatmul.mubr.f32.gmra.mrb[0].mxu0 %v6967
      %v8702 = vpop.f32.mrb[0].mxu0
      %v8703 = vadd.f32 0.0, %v8702
      %v8704 = vpop.f32.mrb[0].mxu0
      %8705 = vmatprep.mubr.f32.mxu0 0.0
      %8706 = vmatmul.mubr.f32.gmra.mrb[0].mxu0 %v6969
      %v8707 = vpop.f32.mrb[0].mxu0
      %v8708 = vadd.f32 0.0, %v8707
      %v8709 = vpop.f32.mrb[0].mxu0
      %8710 = vmatprep.mubr.f32.mxu0 0.0
      %8711 = vmatmul.mubr.f32.gmra.mrb[0].mxu0 %v6971
      %v8712 = vpop.f32.mrb[0].mxu0
      %v8713 = vadd.f32 0.0, %v8712
      %v8714 = vpop.f32.mrb[0].mxu0
      %8715 = vmatprep.mubr.f32.mxu0 0.0
      %8716 = vmatmul.mubr.f32.gmra.mrb[0].mxu0 %v6973
      %v8717 = vpop.f32.mrb[0].mxu0
      %v8718 = vadd.f32 0.0, %v8717
      %v8719 = vpop.f32.mrb[0].mxu0
      %8720 = vmatprep.mubr.f32.mxu0 0.0
      %8721 = vmatmul.mubr.f32.gmra.mrb[0].mxu0 %v6975
      %v8722 = vpop.f32.mrb[0].mxu0
      %v8723 = vadd.f32 0.0, %v8722
      %v8724 = vpop.f32.mrb[0].mxu0
      %8725 = vmatprep.mubr.f32.mxu0 0.0
      %8726 = vmatmul.mubr.f32.gmra.mrb[0].mxu0 %v6977
      %v8727 = vpop.f32.mrb[0].mxu0
      %v8728 = vadd.f32 0.0, %v8727
      %v8729 = vpop.f32.mrb[0].mxu0
      %8730 = vmatprep.mubr.f32.mxu0 0.0
      %8731 = vmatmul.mubr.f32.gmra.mrb[0].mxu0 %v6979
      %v8732 = vpop.f32.mrb[0].mxu0
      %v8733 = vadd.f32 0.0, %v8732
      %v8734 = vpop.f32.mrb[0].mxu0
      %8735 = vmatprep.mubr.f32.mxu0 0.0
      %8736 = vmatmul.mubr.f32.gmra.mrb[0].mxu0 %v6981
      %v8737 = vpop.f32.mrb[0].mxu0
      %v8738 = vadd.f32 0.0, %v8737
      %v8739 = vpop.f32.mrb[0].mxu0
      %8740 = vmatprep.mubr.f32.mxu0 0.0
      %8741 = vmatmul.mubr.f32.gmra.mrb[0].mxu0 %v6983
      %v8742 = vpop.f32.mrb[0].mxu0
      %v8743 = vadd.f32 0.0, %v8742
      %v8744 = vpop.f32.mrb[0].mxu0
      %8745 = vmatprep.mubr.f32.mxu0 0.0
      %8746 = vmatmul.mubr.f32.gmra.mrb[0].mxu0 %v6985
      %v8747 = vpop.f32.mrb[0].mxu0
      %v8748 = vadd.f32 0.0, %v8747
      %v8749 = vpop.f32.mrb[0].mxu0
      %8750 = vmatprep.mubr.f32.mxu0 0.0
      %8751 = vmatmul.mubr.f32.gmra.mrb[0].mxu0 %v8605
      %v8752 = vpop.f32.mrb[0].mxu0
      %v8753 = vadd.f32 0.0, %v8752
      %v8754 = vpop.f32.mrb[0].mxu0
      %8755 = vmatprep.mubr.f32.mxu0 0.0
      %8756 = vmatmul.mubr.f32.gmra.mrb[0].mxu0 %v8607
      %v8757 = vpop.f32.mrb[0].mxu0
      %v8758 = vadd.f32 0.0, %v8757
      %v8759 = vpop.f32.mrb[0].mxu0
      %8760 = vmatprep.mubr.f32.mxu0 0.0
      %8761 = vmatmul.mubr.f32.gmra.mrb[0].mxu0 %v8609
      %v8762 = vpop.f32.mrb[0].mxu0
      %v8763 = vadd.f32 0.0, %v8762
      %v8764 = vpop.f32.mrb[0].mxu0
      %8765 = vdwg.mxu0
      %v8766 = vadd.f32 %v8573, %v8678
      %v8767 = vadd.f32 %v8574, %v8683
      %v8768 = vadd.f32 %v8575, %v8688
      %v8769 = vadd.f32 %v8576, %v8693
      %v8770 = vadd.f32 %v8577, %v8698
      %v8771 = vadd.f32 %v8578, %v8703
      %v8772 = vadd.f32 %v8579, %v8708
      %v8773 = vadd.f32 %v8580, %v8713
      %v8774 = vadd.f32 %v8581, %v8718
      %v8775 = vadd.f32 %v8582, %v8723
      %v8776 = vadd.f32 %v8583, %v8728
      %v8777 = vadd.f32 %v8584, %v8733
      %v8778 = vadd.f32 %v8585, %v8738
      %v8779 = vadd.f32 %v8586, %v8743
      %v8780 = vadd.f32 %v8587, %v8748
      %v8781 = vadd.f32 %v8588, %v8753
      %v8782 = vadd.f32 %v8589, %v8758
      %v8783 = vadd.f32 %v8590, %v8763
      %v8784 = vrot.slane %v6760, 6
      %v8785 = vrot.slane %v8784, 4
      %v8786 = vrot.slane %v8408, 6
      %v8787 = vsel %vm7353, %v8785, %v8786
      %v8788 = vrot.slane %v8786, 4
      %v8789 = vrot.slane %v6761, 6
      %v8790 = vsel %vm7353, %v8788, %v8789
      %v8791 = vrot.slane %v8789, 4
      %v8792 = vrot.slane %v8591, 6
      %v8793 = vsel %vm7353, %v8791, %v8792
      %v8794 = vcombine.low %v8172, %v8175
      %v8795 = vcombine.low %v8178, %v8787
      %v8796 = vcombine.low %v8790, %v8793
      %v8797 = vsel %vm1556, %v8794, 0
      %v8799 = vsel %vm1556, %v8795, 0
      %v8801 = vsel %vm1556, %v8796, 0
      %8803 = vmatprep.subr.mxu0 0.0
      %8804 = vmatpush1.msra.mxu0 %v6732
      %8805 = vmatprep.subr.mxu0 0.0
      %8806 = vmatpush1.msra.mxu0 0.0
      %8807 = vmatprep.subr.mxu0 0.0
      %8808 = vmatpush1.msra.mxu0 0.0
      %8809 = vmatprep.subr.mxu0 0.0
      %8810 = vmatpush1.msra.mxu0 0.0
      %8811 = vmatprep.subr.mxu0 0.0
      %8812 = vmatpush1.msra.mxu0 0.0
      %8813 = vmatprep.subr.mxu0 0.0
      %8814 = vmatpush1.msra.mxu0 0.0
      %8815 = vmatprep.subr.mxu0 0.0
      %8816 = vmatpush1.msra.mxu0 0.0
      %8817 = vmatprep.subr.mxu0 0.0
      %8818 = vmatpush1.msra.mxu0 0.0
      %8819 = vmatprep.subr.mxu0 0.0
      %8820 = vmatpush1.msra.mxu0 0.0
      %8821 = vmatprep.subr.mxu0 0.0
      %8822 = vmatpush1.msra.mxu0 0.0
      %8823 = vmatprep.subr.mxu0 0.0
      %8824 = vmatpush1.msra.mxu0 0.0
      %8825 = vmatprep.subr.mxu0 0.0
      %8826 = vmatpush1.msra.mxu0 0.0
      %8827 = vmatprep.subr.mxu0 0.0
      %8828 = vmatpush1.msra.mxu0 0.0
      %8829 = vmatprep.subr.mxu0 0.0
      %8830 = vmatpush1.msra.mxu0 0.0
      %8831 = vmatprep.subr.mxu0 0.0
      %8832 = vmatpush1.msra.mxu0 0.0
      %8833 = vmatprep.subr.mxu0 0.0
      %8834 = vmatpush1.msra.mxu0 0.0
      %8835 = vmatprep.subr.mxu0 0.0
      %8836 = vmatpush1.msra.mxu0 0.0
      %8837 = vmatprep.subr.mxu0 0.0
      %8838 = vmatpush1.msra.mxu0 0.0
      %8839 = vmatprep.subr.mxu0 0.0
      %8840 = vmatpush1.msra.mxu0 0.0
      %8841 = vmatprep.subr.mxu0 0.0
      %8842 = vmatpush1.msra.mxu0 0.0
      %8843 = vmatprep.subr.mxu0 0.0
      %8844 = vmatpush1.msra.mxu0 0.0
      %8845 = vmatprep.subr.mxu0 0.0
      %8846 = vmatpush1.msra.mxu0 0.0
      %8847 = vmatprep.subr.mxu0 0.0
      %8848 = vmatpush1.msra.mxu0 0.0
      %8849 = vmatprep.subr.mxu0 0.0
      %8850 = vmatpush1.msra.mxu0 0.0
      %8851 = vmatprep.subr.mxu0 0.0
      %8852 = vmatpush1.msra.mxu0 0.0
      %8853 = vmatprep.subr.mxu0 0.0
      %8854 = vmatpush1.msra.mxu0 0.0
      %8855 = vmatprep.subr.mxu0 0.0
      %8856 = vmatpush1.msra.mxu0 0.0
      %8857 = vmatprep.subr.mxu0 0.0
      %8858 = vmatpush1.msra.mxu0 0.0
      %8859 = vmatprep.subr.mxu0 0.0
      %8860 = vmatpush1.msra.mxu0 0.0
      %8861 = vmatprep.subr.mxu0 0.0
      %8862 = vmatpush1.msra.mxu0 0.0
      %8863 = vmatprep.subr.mxu0 0.0
      %8864 = vmatpush1.msra.mxu0 0.0
      %8865 = vmatprep.subr.mxu0 0.0
      %8866 = vmatpush1.msra.mxu0 0.0
      %8867 = vmatprep.mubr.f32.mxu0 0.0
      %8868 = vmatmul.mubr.f32.gmra.mrb[0].mxu0 %v7498
      %v8869 = vpop.f32.mrb[0].mxu0
      %v8870 = vadd.f32 0.0, %v8869
      %v8871 = vpop.f32.mrb[0].mxu0
      %8872 = vmatprep.mubr.f32.mxu0 0.0
      %8873 = vmatmul.mubr.f32.gmra.mrb[0].mxu0 %v7500
      %v8874 = vpop.f32.mrb[0].mxu0
      %v8875 = vadd.f32 0.0, %v8874
      %v8876 = vpop.f32.mrb[0].mxu0
      %8877 = vmatprep.mubr.f32.mxu0 0.0
      %8878 = vmatmul.mubr.f32.gmra.mrb[0].mxu0 %v7502
      %v8879 = vpop.f32.mrb[0].mxu0
      %v8880 = vadd.f32 0.0, %v8879
      %v8881 = vpop.f32.mrb[0].mxu0
      %8882 = vmatprep.mubr.f32.mxu0 0.0
      %8883 = vmatmul.mubr.f32.gmra.mrb[0].mxu0 %v7504
      %v8884 = vpop.f32.mrb[0].mxu0
      %v8885 = vadd.f32 0.0, %v8884
      %v8886 = vpop.f32.mrb[0].mxu0
      %8887 = vmatprep.mubr.f32.mxu0 0.0
      %8888 = vmatmul.mubr.f32.gmra.mrb[0].mxu0 %v7506
      %v8889 = vpop.f32.mrb[0].mxu0
      %v8890 = vadd.f32 0.0, %v8889
      %v8891 = vpop.f32.mrb[0].mxu0
      %8892 = vmatprep.mubr.f32.mxu0 0.0
      %8893 = vmatmul.mubr.f32.gmra.mrb[0].mxu0 %v7508
      %v8894 = vpop.f32.mrb[0].mxu0
      %v8895 = vadd.f32 0.0, %v8894
      %v8896 = vpop.f32.mrb[0].mxu0
      %8897 = vmatprep.mubr.f32.mxu0 0.0
      %8898 = vmatmul.mubr.f32.gmra.mrb[0].mxu0 %v7510
      %v8899 = vpop.f32.mrb[0].mxu0
      %v8900 = vadd.f32 0.0, %v8899
      %v8901 = vpop.f32.mrb[0].mxu0
      %8902 = vmatprep.mubr.f32.mxu0 0.0
      %8903 = vmatmul.mubr.f32.gmra.mrb[0].mxu0 %v7512
      %v8904 = vpop.f32.mrb[0].mxu0
      %v8905 = vadd.f32 0.0, %v8904
      %v8906 = vpop.f32.mrb[0].mxu0
      %8907 = vmatprep.mubr.f32.mxu0 0.0
      %8908 = vmatmul.mubr.f32.gmra.mrb[0].mxu0 %v7514
      %v8909 = vpop.f32.mrb[0].mxu0
      %v8910 = vadd.f32 0.0, %v8909
      %v8911 = vpop.f32.mrb[0].mxu0
      %8912 = vmatprep.mubr.f32.mxu0 0.0
      %8913 = vmatmul.mubr.f32.gmra.mrb[0].mxu0 %v7516
      %v8914 = vpop.f32.mrb[0].mxu0
      %v8915 = vadd.f32 0.0, %v8914
      %v8916 = vpop.f32.mrb[0].mxu0
      %8917 = vmatprep.mubr.f32.mxu0 0.0
      %8918 = vmatmul.mubr.f32.gmra.mrb[0].mxu0 %v7518
      %v8919 = vpop.f32.mrb[0].mxu0
      %v8920 = vadd.f32 0.0, %v8919
      %v8921 = vpop.f32.mrb[0].mxu0
      %8922 = vmatprep.mubr.f32.mxu0 0.0
      %8923 = vmatmul.mubr.f32.gmra.mrb[0].mxu0 %v7520
      %v8924 = vpop.f32.mrb[0].mxu0
      %v8925 = vadd.f32 0.0, %v8924
      %v8926 = vpop.f32.mrb[0].mxu0
      %8927 = vmatprep.mubr.f32.mxu0 0.0
      %8928 = vmatmul.mubr.f32.gmra.mrb[0].mxu0 %v7522
      %v8929 = vpop.f32.mrb[0].mxu0
      %v8930 = vadd.f32 0.0, %v8929
      %v8931 = vpop.f32.mrb[0].mxu0
      %8932 = vmatprep.mubr.f32.mxu0 0.0
      %8933 = vmatmul.mubr.f32.gmra.mrb[0].mxu0 %v7524
      %v8934 = vpop.f32.mrb[0].mxu0
      %v8935 = vadd.f32 0.0, %v8934
      %v8936 = vpop.f32.mrb[0].mxu0
      %8937 = vmatprep.mubr.f32.mxu0 0.0
      %8938 = vmatmul.mubr.f32.gmra.mrb[0].mxu0 %v7526
      %v8939 = vpop.f32.mrb[0].mxu0
      %v8940 = vadd.f32 0.0, %v8939
      %v8941 = vpop.f32.mrb[0].mxu0
      %8942 = vmatprep.mubr.f32.mxu0 0.0
      %8943 = vmatmul.mubr.f32.gmra.mrb[0].mxu0 %v8797
      %v8944 = vpop.f32.mrb[0].mxu0
      %v8945 = vadd.f32 0.0, %v8944
      %v8946 = vpop.f32.mrb[0].mxu0
      %8947 = vmatprep.mubr.f32.mxu0 0.0
      %8948 = vmatmul.mubr.f32.gmra.mrb[0].mxu0 %v8799
      %v8949 = vpop.f32.mrb[0].mxu0
      %v8950 = vadd.f32 0.0, %v8949
      %v8951 = vpop.f32.mrb[0].mxu0
      %8952 = vmatprep.mubr.f32.mxu0 0.0
      %8953 = vmatmul.mubr.f32.gmra.mrb[0].mxu0 %v8801
      %v8954 = vpop.f32.mrb[0].mxu0
      %v8955 = vadd.f32 0.0, %v8954
      %v8956 = vpop.f32.mrb[0].mxu0
      %8957 = vdwg.mxu0
      %v8958 = vadd.f32 %v8766, %v8870
      %v8959 = vadd.f32 %v8767, %v8875
      %v8960 = vadd.f32 %v8768, %v8880
      %v8961 = vadd.f32 %v8769, %v8885
      %v8962 = vadd.f32 %v8770, %v8890
      %v8963 = vadd.f32 %v8771, %v8895
      %v8964 = vadd.f32 %v8772, %v8900
      %v8965 = vadd.f32 %v8773, %v8905
      %v8966 = vadd.f32 %v8774, %v8910
      %v8967 = vadd.f32 %v8775, %v8915
      %v8968 = vadd.f32 %v8776, %v8920
      %v8969 = vadd.f32 %v8777, %v8925
      %v8970 = vadd.f32 %v8778, %v8930
      %v8971 = vadd.f32 %v8779, %v8935
      %v8972 = vadd.f32 %v8780, %v8940
      %v8973 = vadd.f32 %v8781, %v8945
      %v8974 = vadd.f32 %v8782, %v8950
      %v8975 = vadd.f32 %v8783, %v8955
      %v8977 = vlaneseq
      %v8978 = vshrl.u32 %v8977, 7
      %v8979 = vsub.s32 0, %v8978
      %v8980 = vrot.slane %v6733, %v8979
      %v8982 = vadd.f32 %v8958, %v8980
      %v8983 = vadd.f32 %v8959, %v8980
      %v8984 = vadd.f32 %v8960, %v8980
      %v8985 = vadd.f32 %v8961, %v8980
      %v8986 = vadd.f32 %v8962, %v8980
      %v8987 = vadd.f32 %v8963, %v8980
      %v8988 = vadd.f32 %v8964, %v8980
      %v8989 = vadd.f32 %v8965, %v8980
      %v8990 = vadd.f32 %v8966, %v8980
      %v8991 = vadd.f32 %v8967, %v8980
      %v8992 = vadd.f32 %v8968, %v8980
      %v8993 = vadd.f32 %v8969, %v8980
      %v8994 = vadd.f32 %v8970, %v8980
      %v8995 = vadd.f32 %v8971, %v8980
      %v8996 = vadd.f32 %v8972, %v8980
      %v8997 = vadd.f32 %v8973, %v8980
      %v8998 = vadd.f32 %v8974, %v8980
      %v8999 = vadd.f32 %v8975, %v8980
      %v9000 = vmax.f32 %v8982, 0.0
      %v9001 = vmax.f32 %v8983, 0.0
      %v9002 = vmax.f32 %v8984, 0.0
      %v9003 = vmax.f32 %v8985, 0.0
      %v9004 = vmax.f32 %v8986, 0.0
      %v9005 = vmax.f32 %v8987, 0.0
      %v9006 = vmax.f32 %v8988, 0.0
      %v9007 = vmax.f32 %v8989, 0.0
      %v9008 = vmax.f32 %v8990, 0.0
      %v9009 = vmax.f32 %v8991, 0.0
      %v9010 = vmax.f32 %v8992, 0.0
      %v9011 = vmax.f32 %v8993, 0.0
      %v9012 = vmax.f32 %v8994, 0.0
      %v9013 = vmax.f32 %v8995, 0.0
      %v9014 = vmax.f32 %v8996, 0.0
      %v9015 = vmax.f32 %v8997, 0.0
      %v9016 = vmax.f32 %v8998, 0.0
      %v9017 = vmax.f32 %v8999, 0.0
      %v9036 = vcombine.high %v9000, %v9000
      %v9037 = vcombine.high %v9001, %v9001
      %v9038 = vcombine.high %v9002, %v9002
      %v9039 = vcombine.high %v9003, %v9003
      %v9040 = vcombine.high %v9004, %v9004
      %v9041 = vcombine.high %v9005, %v9005
      %v9042 = vcombine.high %v9006, %v9006
      %v9043 = vcombine.high %v9007, %v9007
      %v9044 = vcombine.high %v9008, %v9008
      %v9045 = vcombine.high %v9009, %v9009
      %v9046 = vcombine.high %v9010, %v9010
      %v9047 = vcombine.high %v9011, %v9011
      %v9048 = vcombine.high %v9012, %v9012
      %v9049 = vcombine.high %v9013, %v9013
      %v9050 = vcombine.high %v9014, %v9014
      %v9051 = vcombine.high %v9015, %v9015
      %v9052 = vcombine.high %v9016, %v9016
      %v9053 = vcombine.high %v9017, %v9017
      %v9060 = vcombine.low %v9000, %v9036
      %v9061 = vcombine.low %v9037, %v9002
      %v9062 = vcombine.low %v9003, %v9039
      %v9063 = vcombine.low %v9040, %v9005
      %v9064 = vcombine.low %v9006, %v9042
      %v9065 = vcombine.low %v9043, %v9008
      %v9066 = vcombine.low %v9009, %v9045
      %v9067 = vcombine.low %v9046, %v9011
      %v9068 = vcombine.low %v9012, %v9048
      %v9069 = vcombine.low %v9049, %v9014
      %v9070 = vcombine.low %v9015, %v9051
      %v9071 = vcombine.low %v9052, %v9017
      %9084 = vst.msk [vmem:[#allocation3] sm:$0xff] %vm1556, %v9060
      %vm9085 = vcmask 60416
      %9086 = vst.msk [vmem:[#allocation3 + $0x8] sm:$0xf] %vm9085, %v9001
      %9087 = vst.msk [vmem:[#allocation3 + $0x10] sm:$0xff] %vm1556, %v9061
      %9088 = vst.msk [vmem:[#allocation3 + $0x18] sm:$0xf] %vm9085, %v9038
      %9089 = vst.msk [vmem:[#allocation3 + $0x20] sm:$0xff] %vm1556, %v9062
      %9090 = vst.msk [vmem:[#allocation3 + $0x28] sm:$0xf] %vm9085, %v9004
      %9091 = vst.msk [vmem:[#allocation3 + $0x30] sm:$0xff] %vm1556, %v9063
      %9092 = vst.msk [vmem:[#allocation3 + $0x38] sm:$0xf] %vm9085, %v9041
      %9093 = vst.msk [vmem:[#allocation3 + $0x40] sm:$0xff] %vm1556, %v9064
      %9094 = vst.msk [vmem:[#allocation3 + $0x48] sm:$0xf] %vm9085, %v9007
      %9095 = vst.msk [vmem:[#allocation3 + $0x50] sm:$0xff] %vm1556, %v9065
      %9096 = vst.msk [vmem:[#allocation3 + $0x58] sm:$0xf] %vm9085, %v9044
      %9097 = vst.msk [vmem:[#allocation3 + $0x60] sm:$0xff] %vm1556, %v9066
      %9098 = vst.msk [vmem:[#allocation3 + $0x68] sm:$0xf] %vm9085, %v9010
      %9099 = vst.msk [vmem:[#allocation3 + $0x70] sm:$0xff] %vm1556, %v9067
      %9100 = vst.msk [vmem:[#allocation3 + $0x78] sm:$0xf] %vm9085, %v9047
      %9101 = vst.msk [vmem:[#allocation3 + $0x80] sm:$0xff] %vm1556, %v9068
      %9102 = vst.msk [vmem:[#allocation3 + $0x88] sm:$0xf] %vm9085, %v9013
      %9103 = vst.msk [vmem:[#allocation3 + $0x90] sm:$0xff] %vm1556, %v9069
      %9104 = vst.msk [vmem:[#allocation3 + $0x98] sm:$0xf] %vm9085, %v9050
      %9105 = vst.msk [vmem:[#allocation3 + $0xa0] sm:$0xff] %vm1556, %v9070
      %9106 = vst.msk [vmem:[#allocation3 + $0xa8] sm:$0xf] %vm9085, %v9016
      %9107 = vst.msk [vmem:[#allocation3 + $0xb0] sm:$0xff] %vm1556, %v9071
      %9108 = vst.msk [vmem:[#allocation3 + $0xb8] sm:$0xf] %vm9085, %v9053
      %v9109 = vld [vmem:[%s5] sm:$0xff]
      %v9110 = vld [vmem:[%s5 + $0x8] sm:$0xff]
      %v9111 = vld [vmem:[%s5 + $0x10] sm:$0xff]
      %v9112 = vld [vmem:[%s5 + $0x18] sm:$0xff]
      %v9113 = vld [vmem:[%s5 + $0x20] sm:$0xff]
      %v9114 = vld [vmem:[%s5 + $0x28] sm:$0xff]
      %v9115 = vld [vmem:[%s5 + $0x30] sm:$0xff]
      %v9116 = vld [vmem:[%s5 + $0x38] sm:$0xff]
      %v9117 = vld [vmem:[%s5 + $0x40] sm:$0xff]
      %v9118 = vld [vmem:[%s6] sm:$0x1]
      %v9119 = vld [vmem:[#allocation3] sm:$0xff]
      %v9120 = vld [vmem:[#allocation3 + $0x8] sm:$0xf]
      %v9121 = vld [vmem:[#allocation3 + $0x10] sm:$0xff]
      %v9122 = vld [vmem:[#allocation3 + $0x18] sm:$0xf]
      %v9123 = vld [vmem:[#allocation3 + $0x20] sm:$0xff]
      %v9124 = vld [vmem:[#allocation3 + $0x28] sm:$0xf]
      %v9125 = vld [vmem:[#allocation3 + $0x30] sm:$0xff]
      %v9126 = vld [vmem:[#allocation3 + $0x38] sm:$0xf]
      %v9127 = vld [vmem:[#allocation3 + $0x40] sm:$0xff]
      %v9128 = vld [vmem:[#allocation3 + $0x48] sm:$0xf]
      %v9129 = vld [vmem:[#allocation3 + $0x50] sm:$0xff]
      %v9130 = vld [vmem:[#allocation3 + $0x58] sm:$0xf]
      %v9131 = vld [vmem:[#allocation3 + $0x60] sm:$0xff]
      %v9132 = vld [vmem:[#allocation3 + $0x68] sm:$0xf]
      %v9133 = vld [vmem:[#allocation3 + $0x70] sm:$0xff]
      %v9134 = vld [vmem:[#allocation3 + $0x78] sm:$0xf]
      %v9135 = vld [vmem:[#allocation3 + $0x80] sm:$0xff]
      %v9136 = vld [vmem:[#allocation3 + $0x88] sm:$0xf]
      %v9137 = vld [vmem:[#allocation3 + $0x90] sm:$0xff]
      %v9138 = vld [vmem:[#allocation3 + $0x98] sm:$0xf]
      %v9139 = vld [vmem:[#allocation3 + $0xa0] sm:$0xff]
      %v9140 = vld [vmem:[#allocation3 + $0xa8] sm:$0xf]
      %v9141 = vld [vmem:[#allocation3 + $0xb0] sm:$0xff]
      %v9142 = vld [vmem:[#allocation3 + $0xb8] sm:$0xf]
      %v9163 = vcombine.high %v9119, %v9119
      %v9165 = vunpack.c.l.s4 1983009808
      %v9166 = vunpack.c.0.s8 %v9165
      %v9167 = vlaneseq
      %v9168 = vshrl.u32 %v9167, 7
      %v9169 = vsub.s32 %v9166, %v9168
      %v9170 = vrot.slane %v9119, %v9169
      %v9172 = vunpack.c.l.s4 1983009808
      %v9173 = vunpack.c.0.s8 %v9172
      %v9174 = vlaneseq
      %v9175 = vshrl.u32 %v9174, 7
      %v9176 = vsub.s32 %v9173, %v9175
      %v9177 = vrot.slane %v9163, %v9176
      %v9178 = vcombine.high %v9170, %v9170
      %v9179 = vcombine.high %v9177, %v9177
      %v9181 = vunpack.c.l.s4 1983009808
      %v9182 = vunpack.c.0.s8 %v9181
      %v9183 = vlaneseq
      %v9184 = vshrl.u32 %v9183, 7
      %v9185 = vsub.s32 %v9182, %v9184
      %v9186 = vrot.slane %v9120, %v9185
      %v9187 = vcombine.high %v9121, %v9121
      %v9189 = vunpack.c.l.s4 1983009808
      %v9190 = vunpack.c.0.s8 %v9189
      %v9191 = vlaneseq
      %v9192 = vshrl.u32 %v9191, 7
      %v9193 = vsub.s32 %v9190, %v9192
      %v9194 = vrot.slane %v9121, %v9193
      %v9196 = vunpack.c.l.s4 1983009808
      %v9197 = vunpack.c.0.s8 %v9196
      %v9198 = vlaneseq
      %v9199 = vshrl.u32 %v9198, 7
      %v9200 = vsub.s32 %v9197, %v9199
      %v9201 = vrot.slane %v9187, %v9200
      %v9202 = vcombine.high %v9194, %v9194
      %v9203 = vcombine.high %v9201, %v9201
      %v9205 = vunpack.c.l.s4 1983009808
      %v9206 = vunpack.c.0.s8 %v9205
      %v9207 = vlaneseq
      %v9208 = vshrl.u32 %v9207, 7
      %v9209 = vsub.s32 %v9206, %v9208
      %v9210 = vrot.slane %v9122, %v9209
      %v9211 = vcombine.high %v9123, %v9123
      %v9213 = vunpack.c.l.s4 1983009808
      %v9214 = vunpack.c.0.s8 %v9213
      %v9215 = vlaneseq
      %v9216 = vshrl.u32 %v9215, 7
      %v9217 = vsub.s32 %v9214, %v9216
      %v9218 = vrot.slane %v9123, %v9217
      %v9220 = vunpack.c.l.s4 1983009808
      %v9221 = vunpack.c.0.s8 %v9220
      %v9222 = vlaneseq
      %v9223 = vshrl.u32 %v9222, 7
      %v9224 = vsub.s32 %v9221, %v9223
      %v9225 = vrot.slane %v9211, %v9224
      %v9226 = vcombine.high %v9218, %v9218
      %v9227 = vcombine.high %v9225, %v9225
      %v9229 = vunpack.c.l.s4 1983009808
      %v9230 = vunpack.c.0.s8 %v9229
      %v9231 = vlaneseq
      %v9232 = vshrl.u32 %v9231, 7
      %v9233 = vsub.s32 %v9230, %v9232
      %v9234 = vrot.slane %v9124, %v9233
      %v9235 = vcombine.high %v9125, %v9125
      %v9237 = vunpack.c.l.s4 1983009808
      %v9238 = vunpack.c.0.s8 %v9237
      %v9239 = vlaneseq
      %v9240 = vshrl.u32 %v9239, 7
      %v9241 = vsub.s32 %v9238, %v9240
      %v9242 = vrot.slane %v9125, %v9241
      %v9244 = vunpack.c.l.s4 1983009808
      %v9245 = vunpack.c.0.s8 %v9244
      %v9246 = vlaneseq
      %v9247 = vshrl.u32 %v9246, 7
      %v9248 = vsub.s32 %v9245, %v9247
      %v9249 = vrot.slane %v9235, %v9248
      %v9250 = vcombine.high %v9242, %v9242
      %v9251 = vcombine.high %v9249, %v9249
      %v9253 = vunpack.c.l.s4 1983009808
      %v9254 = vunpack.c.0.s8 %v9253
      %v9255 = vlaneseq
      %v9256 = vshrl.u32 %v9255, 7
      %v9257 = vsub.s32 %v9254, %v9256
      %v9258 = vrot.slane %v9126, %v9257
      %v9259 = vcombine.high %v9127, %v9127
      %v9261 = vunpack.c.l.s4 1983009808
      %v9262 = vunpack.c.0.s8 %v9261
      %v9263 = vlaneseq
      %v9264 = vshrl.u32 %v9263, 7
      %v9265 = vsub.s32 %v9262, %v9264
      %v9266 = vrot.slane %v9127, %v9265
      %v9268 = vunpack.c.l.s4 1983009808
      %v9269 = vunpack.c.0.s8 %v9268
      %v9270 = vlaneseq
      %v9271 = vshrl.u32 %v9270, 7
      %v9272 = vsub.s32 %v9269, %v9271
      %v9273 = vrot.slane %v9259, %v9272
      %v9274 = vcombine.high %v9266, %v9266
      %v9275 = vcombine.high %v9273, %v9273
      %v9277 = vunpack.c.l.s4 1983009808
      %v9278 = vunpack.c.0.s8 %v9277
      %v9279 = vlaneseq
      %v9280 = vshrl.u32 %v9279, 7
      %v9281 = vsub.s32 %v9278, %v9280
      %v9282 = vrot.slane %v9128, %v9281
      %v9283 = vcombine.high %v9129, %v9129
      %v9285 = vunpack.c.l.s4 1983009808
      %v9286 = vunpack.c.0.s8 %v9285
      %v9287 = vlaneseq
      %v9288 = vshrl.u32 %v9287, 7
      %v9289 = vsub.s32 %v9286, %v9288
      %v9290 = vrot.slane %v9129, %v9289
      %v9292 = vunpack.c.l.s4 1983009808
      %v9293 = vunpack.c.0.s8 %v9292
      %v9294 = vlaneseq
      %v9295 = vshrl.u32 %v9294, 7
      %v9296 = vsub.s32 %v9293, %v9295
      %v9297 = vrot.slane %v9283, %v9296
      %v9298 = vcombine.high %v9290, %v9290
      %v9299 = vcombine.high %v9297, %v9297
      %v9301 = vunpack.c.l.s4 1983009808
      %v9302 = vunpack.c.0.s8 %v9301
      %v9303 = vlaneseq
      %v9304 = vshrl.u32 %v9303, 7
      %v9305 = vsub.s32 %v9302, %v9304
      %v9306 = vrot.slane %v9130, %v9305
      %v9307 = vcombine.high %v9131, %v9131
      %v9309 = vunpack.c.l.s4 1983009808
      %v9310 = vunpack.c.0.s8 %v9309
      %v9311 = vlaneseq
      %v9312 = vshrl.u32 %v9311, 7
      %v9313 = vsub.s32 %v9310, %v9312
      %v9314 = vrot.slane %v9131, %v9313
      %v9316 = vunpack.c.l.s4 1983009808
      %v9317 = vunpack.c.0.s8 %v9316
      %v9318 = vlaneseq
      %v9319 = vshrl.u32 %v9318, 7
      %v9320 = vsub.s32 %v9317, %v9319
      %v9321 = vrot.slane %v9307, %v9320
      %v9322 = vcombine.high %v9314, %v9314
      %v9323 = vcombine.high %v9321, %v9321
      %v9325 = vunpack.c.l.s4 1983009808
      %v9326 = vunpack.c.0.s8 %v9325
      %v9327 = vlaneseq
      %v9328 = vshrl.u32 %v9327, 7
      %v9329 = vsub.s32 %v9326, %v9328
      %v9330 = vrot.slane %v9132, %v9329
      %v9331 = vcombine.high %v9133, %v9133
      %v9333 = vunpack.c.l.s4 1983009808
      %v9334 = vunpack.c.0.s8 %v9333
      %v9335 = vlaneseq
      %v9336 = vshrl.u32 %v9335, 7
      %v9337 = vsub.s32 %v9334, %v9336
      %v9338 = vrot.slane %v9133, %v9337
      %v9340 = vunpack.c.l.s4 1983009808
      %v9341 = vunpack.c.0.s8 %v9340
      %v9342 = vlaneseq
      %v9343 = vshrl.u32 %v9342, 7
      %v9344 = vsub.s32 %v9341, %v9343
      %v9345 = vrot.slane %v9331, %v9344
      %v9346 = vcombine.high %v9338, %v9338
      %v9347 = vcombine.high %v9345, %v9345
      %v9349 = vunpack.c.l.s4 1983009808
      %v9350 = vunpack.c.0.s8 %v9349
      %v9351 = vlaneseq
      %v9352 = vshrl.u32 %v9351, 7
      %v9353 = vsub.s32 %v9350, %v9352
      %v9354 = vrot.slane %v9134, %v9353
      %v9355 = vcombine.high %v9135, %v9135
      %v9357 = vunpack.c.l.s4 1983009808
      %v9358 = vunpack.c.0.s8 %v9357
      %v9359 = vlaneseq
      %v9360 = vshrl.u32 %v9359, 7
      %v9361 = vsub.s32 %v9358, %v9360
      %v9362 = vrot.slane %v9135, %v9361
      %v9364 = vunpack.c.l.s4 1983009808
      %v9365 = vunpack.c.0.s8 %v9364
      %v9366 = vlaneseq
      %v9367 = vshrl.u32 %v9366, 7
      %v9368 = vsub.s32 %v9365, %v9367
      %v9369 = vrot.slane %v9355, %v9368
      %v9370 = vcombine.high %v9362, %v9362
      %v9371 = vcombine.high %v9369, %v9369
      %v9373 = vunpack.c.l.s4 1983009808
      %v9374 = vunpack.c.0.s8 %v9373
      %v9375 = vlaneseq
      %v9376 = vshrl.u32 %v9375, 7
      %v9377 = vsub.s32 %v9374, %v9376
      %v9378 = vrot.slane %v9136, %v9377
      %v9379 = vcombine.high %v9137, %v9137
      %v9381 = vunpack.c.l.s4 1983009808
      %v9382 = vunpack.c.0.s8 %v9381
      %v9383 = vlaneseq
      %v9384 = vshrl.u32 %v9383, 7
      %v9385 = vsub.s32 %v9382, %v9384
      %v9386 = vrot.slane %v9137, %v9385
      %v9388 = vunpack.c.l.s4 1983009808
      %v9389 = vunpack.c.0.s8 %v9388
      %v9390 = vlaneseq
      %v9391 = vshrl.u32 %v9390, 7
      %v9392 = vsub.s32 %v9389, %v9391
      %v9393 = vrot.slane %v9379, %v9392
      %v9394 = vcombine.high %v9386, %v9386
      %v9395 = vcombine.high %v9393, %v9393
      %v9397 = vunpack.c.l.s4 1983009808
      %v9398 = vunpack.c.0.s8 %v9397
      %v9399 = vlaneseq
      %v9400 = vshrl.u32 %v9399, 7
      %v9401 = vsub.s32 %v9398, %v9400
      %v9402 = vrot.slane %v9138, %v9401
      %v9403 = vcombine.high %v9186, %v9186
      %v9404 = vcombine.high %v9210, %v9210
      %v9405 = vcombine.high %v9234, %v9234
      %v9406 = vcombine.high %v9258, %v9258
      %v9407 = vcombine.high %v9282, %v9282
      %v9408 = vcombine.high %v9306, %v9306
      %v9409 = vcombine.high %v9330, %v9330
      %v9410 = vcombine.high %v9354, %v9354
      %v9411 = vcombine.high %v9378, %v9378
      %v9412 = vcombine.high %v9402, %v9402
      %v9413 = vrot.slane %v9170, 7
      %v9414 = vrot.slane %v9413, 2
      %v9415 = vrot.slane %v9178, 7
      %v9416 = vsel %vm831, %v9414, %v9415
      %v9417 = vrot.slane %v9415, 2
      %v9418 = vrot.slane %v9177, 7
      %v9419 = vsel %vm831, %v9417, %v9418
      %v9420 = vrot.slane %v9418, 2
      %v9421 = vrot.slane %v9179, 7
      %v9422 = vsel %vm831, %v9420, %v9421
      %v9423 = vrot.slane %v9421, 2
      %v9424 = vrot.slane %v9186, 7
      %v9425 = vsel %vm831, %v9423, %v9424
      %v9426 = vrot.slane %v9424, 2
      %v9427 = vrot.slane %v9403, 7
      %v9428 = vsel %vm831, %v9426, %v9427
      %v9429 = vrot.slane %v9194, 7
      %v9430 = vrot.slane %v9429, 2
      %v9431 = vrot.slane %v9202, 7
      %v9432 = vsel %vm831, %v9430, %v9431
      %v9433 = vrot.slane %v9431, 2
      %v9434 = vrot.slane %v9201, 7
      %v9435 = vsel %vm831, %v9433, %v9434
      %v9436 = vrot.slane %v9434, 2
      %v9437 = vrot.slane %v9203, 7
      %v9438 = vsel %vm831, %v9436, %v9437
      %v9439 = vrot.slane %v9437, 2
      %v9440 = vrot.slane %v9210, 7
      %v9441 = vsel %vm831, %v9439, %v9440
      %v9442 = vrot.slane %v9440, 2
      %v9443 = vrot.slane %v9404, 7
      %v9444 = vsel %vm831, %v9442, %v9443
      %v9445 = vrot.slane %v9218, 7
      %v9446 = vrot.slane %v9445, 2
      %v9447 = vrot.slane %v9226, 7
      %v9448 = vsel %vm831, %v9446, %v9447
      %v9449 = vrot.slane %v9447, 2
      %v9450 = vrot.slane %v9225, 7
      %v9451 = vsel %vm831, %v9449, %v9450
      %v9452 = vrot.slane %v9450, 2
      %v9453 = vrot.slane %v9227, 7
      %v9454 = vsel %vm831, %v9452, %v9453
      %v9455 = vrot.slane %v9453, 2
      %v9456 = vrot.slane %v9234, 7
      %v9457 = vsel %vm831, %v9455, %v9456
      %v9458 = vrot.slane %v9456, 2
      %v9459 = vrot.slane %v9405, 7
      %v9460 = vsel %vm831, %v9458, %v9459
      %v9461 = vrot.slane %v9242, 7
      %v9462 = vrot.slane %v9461, 2
      %v9463 = vrot.slane %v9250, 7
      %v9464 = vsel %vm831, %v9462, %v9463
      %v9465 = vrot.slane %v9463, 2
      %v9466 = vrot.slane %v9249, 7
      %v9467 = vsel %vm831, %v9465, %v9466
      %v9468 = vrot.slane %v9466, 2
      %v9469 = vrot.slane %v9251, 7
      %v9470 = vsel %vm831, %v9468, %v9469
      %v9471 = vrot.slane %v9469, 2
      %v9472 = vrot.slane %v9258, 7
      %v9473 = vsel %vm831, %v9471, %v9472
      %v9474 = vrot.slane %v9472, 2
      %v9475 = vrot.slane %v9406, 7
      %v9476 = vsel %vm831, %v9474, %v9475
      %v9477 = vrot.slane %v9266, 7
      %v9478 = vrot.slane %v9477, 2
      %v9479 = vrot.slane %v9274, 7
      %v9480 = vsel %vm831, %v9478, %v9479
      %v9481 = vrot.slane %v9479, 2
      %v9482 = vrot.slane %v9273, 7
      %v9483 = vsel %vm831, %v9481, %v9482
      %v9484 = vrot.slane %v9482, 2
      %v9485 = vrot.slane %v9275, 7
      %v9486 = vsel %vm831, %v9484, %v9485
      %v9487 = vrot.slane %v9485, 2
      %v9488 = vrot.slane %v9282, 7
      %v9489 = vsel %vm831, %v9487, %v9488
      %v9490 = vrot.slane %v9488, 2
      %v9491 = vrot.slane %v9407, 7
      %v9492 = vsel %vm831, %v9490, %v9491
      %v9493 = vrot.slane %v9290, 7
      %v9494 = vrot.slane %v9493, 2
      %v9495 = vrot.slane %v9298, 7
      %v9496 = vsel %vm831, %v9494, %v9495
      %v9497 = vrot.slane %v9495, 2
      %v9498 = vrot.slane %v9297, 7
      %v9499 = vsel %vm831, %v9497, %v9498
      %v9500 = vrot.slane %v9498, 2
      %v9501 = vrot.slane %v9299, 7
      %v9502 = vsel %vm831, %v9500, %v9501
      %v9503 = vrot.slane %v9501, 2
      %v9504 = vrot.slane %v9306, 7
      %v9505 = vsel %vm831, %v9503, %v9504
      %v9506 = vrot.slane %v9504, 2
      %v9507 = vrot.slane %v9408, 7
      %v9508 = vsel %vm831, %v9506, %v9507
      %v9509 = vrot.slane %v9314, 7
      %v9510 = vrot.slane %v9509, 2
      %v9511 = vrot.slane %v9322, 7
      %v9512 = vsel %vm831, %v9510, %v9511
      %v9513 = vrot.slane %v9511, 2
      %v9514 = vrot.slane %v9321, 7
      %v9515 = vsel %vm831, %v9513, %v9514
      %v9516 = vrot.slane %v9514, 2
      %v9517 = vrot.slane %v9323, 7
      %v9518 = vsel %vm831, %v9516, %v9517
      %v9519 = vrot.slane %v9517, 2
      %v9520 = vrot.slane %v9330, 7
      %v9521 = vsel %vm831, %v9519, %v9520
      %v9522 = vrot.slane %v9520, 2
      %v9523 = vrot.slane %v9409, 7
      %v9524 = vsel %vm831, %v9522, %v9523
      %v9525 = vrot.slane %v9338, 7
      %v9526 = vrot.slane %v9525, 2
      %v9527 = vrot.slane %v9346, 7
      %v9528 = vsel %vm831, %v9526, %v9527
      %v9529 = vrot.slane %v9527, 2
      %v9530 = vrot.slane %v9345, 7
      %v9531 = vsel %vm831, %v9529, %v9530
      %v9532 = vrot.slane %v9530, 2
      %v9533 = vrot.slane %v9347, 7
      %v9534 = vsel %vm831, %v9532, %v9533
      %v9535 = vrot.slane %v9533, 2
      %v9536 = vrot.slane %v9354, 7
      %v9537 = vsel %vm831, %v9535, %v9536
      %v9538 = vrot.slane %v9536, 2
      %v9539 = vrot.slane %v9410, 7
      %v9540 = vsel %vm831, %v9538, %v9539
      %v9541 = vrot.slane %v9362, 7
      %v9542 = vrot.slane %v9541, 2
      %v9543 = vrot.slane %v9370, 7
      %v9544 = vsel %vm831, %v9542, %v9543
      %v9545 = vrot.slane %v9543, 2
      %v9546 = vrot.slane %v9369, 7
      %v9547 = vsel %vm831, %v9545, %v9546
      %v9548 = vrot.slane %v9546, 2
      %v9549 = vrot.slane %v9371, 7
      %v9550 = vsel %vm831, %v9548, %v9549
      %v9551 = vrot.slane %v9549, 2
      %v9552 = vrot.slane %v9378, 7
      %v9553 = vsel %vm831, %v9551, %v9552
      %v9554 = vrot.slane %v9552, 2
      %v9555 = vrot.slane %v9411, 7
      %v9556 = vsel %vm831, %v9554, %v9555
      %v9557 = vrot.slane %v9386, 7
      %v9558 = vrot.slane %v9557, 2
      %v9559 = vrot.slane %v9394, 7
      %v9560 = vsel %vm831, %v9558, %v9559
      %v9561 = vrot.slane %v9559, 2
      %v9562 = vrot.slane %v9393, 7
      %v9563 = vsel %vm831, %v9561, %v9562
      %v9564 = vrot.slane %v9562, 2
      %v9565 = vrot.slane %v9395, 7
      %v9566 = vsel %vm831, %v9564, %v9565
      %v9567 = vrot.slane %v9565, 2
      %v9568 = vrot.slane %v9402, 7
      %v9569 = vsel %vm831, %v9567, %v9568
      %v9570 = vrot.slane %v9568, 2
      %v9571 = vrot.slane %v9412, 7
      %v9572 = vsel %vm831, %v9570, %v9571
      %v9573 = vcombine.low %v9416, %v9419
      %v9574 = vcombine.low %v9422, %v9425
      %v9576 = vunpack.c.l.s4 1983009808
      %v9577 = vunpack.c.0.s8 %v9576
      %v9578 = vlaneseq
      %v9579 = vshrl.u32 %v9578, 7
      %v9580 = vsub.s32 %v9577, %v9579
      %v9581 = vrot.slane %v9573, %v9580
      %v9583 = vunpack.c.l.s4 1983009808
      %v9584 = vunpack.c.0.s8 %v9583
      %v9585 = vlaneseq
      %v9586 = vshrl.u32 %v9585, 7
      %v9587 = vsub.s32 %v9584, %v9586
      %v9588 = vrot.slane %v9574, %v9587
      %v9589 = vcombine.low %v9581, %v9588
      %v9590 = vcombine.low %v9428, %v9432
      %v9591 = vcombine.low %v9435, %v9438
      %v9593 = vunpack.c.l.s4 1983009808
      %v9594 = vunpack.c.0.s8 %v9593
      %v9595 = vlaneseq
      %v9596 = vshrl.u32 %v9595, 7
      %v9597 = vsub.s32 %v9594, %v9596
      %v9598 = vrot.slane %v9590, %v9597
      %v9600 = vunpack.c.l.s4 1983009808
      %v9601 = vunpack.c.0.s8 %v9600
      %v9602 = vlaneseq
      %v9603 = vshrl.u32 %v9602, 7
      %v9604 = vsub.s32 %v9601, %v9603
      %v9605 = vrot.slane %v9591, %v9604
      %v9606 = vcombine.low %v9598, %v9605
      %v9607 = vcombine.low %v9441, %v9444
      %v9608 = vcombine.low %v9448, %v9451
      %v9610 = vunpack.c.l.s4 1983009808
      %v9611 = vunpack.c.0.s8 %v9610
      %v9612 = vlaneseq
      %v9613 = vshrl.u32 %v9612, 7
      %v9614 = vsub.s32 %v9611, %v9613
      %v9615 = vrot.slane %v9607, %v9614
      %v9617 = vunpack.c.l.s4 1983009808
      %v9618 = vunpack.c.0.s8 %v9617
      %v9619 = vlaneseq
      %v9620 = vshrl.u32 %v9619, 7
      %v9621 = vsub.s32 %v9618, %v9620
      %v9622 = vrot.slane %v9608, %v9621
      %v9623 = vcombine.low %v9615, %v9622
      %v9624 = vcombine.low %v9454, %v9457
      %v9625 = vcombine.low %v9460, %v9464
      %v9627 = vunpack.c.l.s4 1983009808
      %v9628 = vunpack.c.0.s8 %v9627
      %v9629 = vlaneseq
      %v9630 = vshrl.u32 %v9629, 7
      %v9631 = vsub.s32 %v9628, %v9630
      %v9632 = vrot.slane %v9624, %v9631
      %v9634 = vunpack.c.l.s4 1983009808
      %v9635 = vunpack.c.0.s8 %v9634
      %v9636 = vlaneseq
      %v9637 = vshrl.u32 %v9636, 7
      %v9638 = vsub.s32 %v9635, %v9637
      %v9639 = vrot.slane %v9625, %v9638
      %v9640 = vcombine.low %v9632, %v9639
      %v9641 = vcombine.low %v9467, %v9470
      %v9642 = vcombine.low %v9473, %v9476
      %v9644 = vunpack.c.l.s4 1983009808
      %v9645 = vunpack.c.0.s8 %v9644
      %v9646 = vlaneseq
      %v9647 = vshrl.u32 %v9646, 7
      %v9648 = vsub.s32 %v9645, %v9647
      %v9649 = vrot.slane %v9641, %v9648
      %v9651 = vunpack.c.l.s4 1983009808
      %v9652 = vunpack.c.0.s8 %v9651
      %v9653 = vlaneseq
      %v9654 = vshrl.u32 %v9653, 7
      %v9655 = vsub.s32 %v9652, %v9654
      %v9656 = vrot.slane %v9642, %v9655
      %v9657 = vcombine.low %v9649, %v9656
      %v9658 = vcombine.low %v9480, %v9483
      %v9659 = vcombine.low %v9486, %v9489
      %v9661 = vunpack.c.l.s4 1983009808
      %v9662 = vunpack.c.0.s8 %v9661
      %v9663 = vlaneseq
      %v9664 = vshrl.u32 %v9663, 7
      %v9665 = vsub.s32 %v9662, %v9664
      %v9666 = vrot.slane %v9658, %v9665
      %v9668 = vunpack.c.l.s4 1983009808
      %v9669 = vunpack.c.0.s8 %v9668
      %v9670 = vlaneseq
      %v9671 = vshrl.u32 %v9670, 7
      %v9672 = vsub.s32 %v9669, %v9671
      %v9673 = vrot.slane %v9659, %v9672
      %v9674 = vcombine.low %v9666, %v9673
      %v9675 = vcombine.low %v9492, %v9496
      %v9676 = vcombine.low %v9499, %v9502
      %v9678 = vunpack.c.l.s4 1983009808
      %v9679 = vunpack.c.0.s8 %v9678
      %v9680 = vlaneseq
      %v9681 = vshrl.u32 %v9680, 7
      %v9682 = vsub.s32 %v9679, %v9681
      %v9683 = vrot.slane %v9675, %v9682
      %v9685 = vunpack.c.l.s4 1983009808
      %v9686 = vunpack.c.0.s8 %v9685
      %v9687 = vlaneseq
      %v9688 = vshrl.u32 %v9687, 7
      %v9689 = vsub.s32 %v9686, %v9688
      %v9690 = vrot.slane %v9676, %v9689
      %v9691 = vcombine.low %v9683, %v9690
      %v9692 = vcombine.low %v9505, %v9508
      %v9693 = vcombine.low %v9512, %v9515
      %v9695 = vunpack.c.l.s4 1983009808
      %v9696 = vunpack.c.0.s8 %v9695
      %v9697 = vlaneseq
      %v9698 = vshrl.u32 %v9697, 7
      %v9699 = vsub.s32 %v9696, %v9698
      %v9700 = vrot.slane %v9692, %v9699
      %v9702 = vunpack.c.l.s4 1983009808
      %v9703 = vunpack.c.0.s8 %v9702
      %v9704 = vlaneseq
      %v9705 = vshrl.u32 %v9704, 7
      %v9706 = vsub.s32 %v9703, %v9705
      %v9707 = vrot.slane %v9693, %v9706
      %v9708 = vcombine.low %v9700, %v9707
      %v9709 = vcombine.low %v9518, %v9521
      %v9710 = vcombine.low %v9524, %v9528
      %v9712 = vunpack.c.l.s4 1983009808
      %v9713 = vunpack.c.0.s8 %v9712
      %v9714 = vlaneseq
      %v9715 = vshrl.u32 %v9714, 7
      %v9716 = vsub.s32 %v9713, %v9715
      %v9717 = vrot.slane %v9709, %v9716
      %v9719 = vunpack.c.l.s4 1983009808
      %v9720 = vunpack.c.0.s8 %v9719
      %v9721 = vlaneseq
      %v9722 = vshrl.u32 %v9721, 7
      %v9723 = vsub.s32 %v9720, %v9722
      %v9724 = vrot.slane %v9710, %v9723
      %v9725 = vcombine.low %v9717, %v9724
      %v9726 = vcombine.low %v9531, %v9534
      %v9727 = vcombine.low %v9537, %v9540
      %v9729 = vunpack.c.l.s4 1983009808
      %v9730 = vunpack.c.0.s8 %v9729
      %v9731 = vlaneseq
      %v9732 = vshrl.u32 %v9731, 7
      %v9733 = vsub.s32 %v9730, %v9732
      %v9734 = vrot.slane %v9726, %v9733
      %v9736 = vunpack.c.l.s4 1983009808
      %v9737 = vunpack.c.0.s8 %v9736
      %v9738 = vlaneseq
      %v9739 = vshrl.u32 %v9738, 7
      %v9740 = vsub.s32 %v9737, %v9739
      %v9741 = vrot.slane %v9727, %v9740
      %v9742 = vcombine.low %v9734, %v9741
      %v9743 = vcombine.low %v9544, %v9547
      %v9744 = vcombine.low %v9550, %v9553
      %v9746 = vunpack.c.l.s4 1983009808
      %v9747 = vunpack.c.0.s8 %v9746
      %v9748 = vlaneseq
      %v9749 = vshrl.u32 %v9748, 7
      %v9750 = vsub.s32 %v9747, %v9749
      %v9751 = vrot.slane %v9743, %v9750
      %v9753 = vunpack.c.l.s4 1983009808
      %v9754 = vunpack.c.0.s8 %v9753
      %v9755 = vlaneseq
      %v9756 = vshrl.u32 %v9755, 7
      %v9757 = vsub.s32 %v9754, %v9756
      %v9758 = vrot.slane %v9744, %v9757
      %v9759 = vcombine.low %v9751, %v9758
      %v9760 = vcombine.low %v9556, %v9560
      %v9761 = vcombine.low %v9563, %v9566
      %v9763 = vunpack.c.l.s4 1983009808
      %v9764 = vunpack.c.0.s8 %v9763
      %v9765 = vlaneseq
      %v9766 = vshrl.u32 %v9765, 7
      %v9767 = vsub.s32 %v9764, %v9766
      %v9768 = vrot.slane %v9760, %v9767
      %v9770 = vunpack.c.l.s4 1983009808
      %v9771 = vunpack.c.0.s8 %v9770
      %v9772 = vlaneseq
      %v9773 = vshrl.u32 %v9772, 7
      %v9774 = vsub.s32 %v9771, %v9773
      %v9775 = vrot.slane %v9761, %v9774
      %v9776 = vcombine.low %v9768, %v9775
      %v9777 = vcombine.low %v9569, %v9572
      %v9779 = vunpack.c.l.s4 1983009808
      %v9780 = vunpack.c.0.s8 %v9779
      %v9781 = vlaneseq
      %v9782 = vshrl.u32 %v9781, 7
      %v9783 = vsub.s32 %v9780, %v9782
      %v9784 = vrot.slane %v9777, %v9783
      %v9785 = vsel %vm1556, %v9589, 0
      %v9787 = vsel %vm1556, %v9606, 0
      %v9789 = vsel %vm1556, %v9623, 0
      %v9791 = vsel %vm1556, %v9640, 0
      %v9793 = vsel %vm1556, %v9657, 0
      %v9795 = vsel %vm1556, %v9674, 0
      %v9797 = vsel %vm1556, %v9691, 0
      %v9799 = vsel %vm1556, %v9708, 0
      %v9801 = vsel %vm1556, %v9725, 0
      %v9803 = vsel %vm1556, %v9742, 0
      %v9805 = vsel %vm1556, %v9759, 0
      %v9807 = vsel %vm1556, %v9776, 0
      %v9809 = vsel %vm1556, %v9784, 0
      %9811 = vmatprep.subr.mxu0 0.0
      %9812 = vmatpush1.msra.mxu0 %v9110
      %9813 = vmatprep.subr.mxu0 0.0
      %9814 = vmatpush1.msra.mxu0 0.0
      %9815 = vmatprep.subr.mxu0 0.0
      %9816 = vmatpush1.msra.mxu0 0.0
      %9817 = vmatprep.subr.mxu0 0.0
      %9818 = vmatpush1.msra.mxu0 0.0
      %9819 = vmatprep.subr.mxu0 0.0
      %9820 = vmatpush1.msra.mxu0 0.0
      %9821 = vmatprep.subr.mxu0 0.0
      %9822 = vmatpush1.msra.mxu0 0.0
      %9823 = vmatprep.subr.mxu0 0.0
      %9824 = vmatpush1.msra.mxu0 0.0
      %9825 = vmatprep.subr.mxu0 0.0
      %9826 = vmatpush1.msra.mxu0 0.0
      %9827 = vmatprep.subr.mxu0 0.0
      %9828 = vmatpush1.msra.mxu0 0.0
      %9829 = vmatprep.subr.mxu0 0.0
      %9830 = vmatpush1.msra.mxu0 0.0
      %9831 = vmatprep.subr.mxu0 0.0
      %9832 = vmatpush1.msra.mxu0 0.0
      %9833 = vmatprep.subr.mxu0 0.0
      %9834 = vmatpush1.msra.mxu0 0.0
      %9835 = vmatprep.subr.mxu0 0.0
      %9836 = vmatpush1.msra.mxu0 0.0
      %9837 = vmatprep.subr.mxu0 0.0
      %9838 = vmatpush1.msra.mxu0 0.0
      %9839 = vmatprep.subr.mxu0 0.0
      %9840 = vmatpush1.msra.mxu0 0.0
      %9841 = vmatprep.subr.mxu0 0.0
      %9842 = vmatpush1.msra.mxu0 0.0
      %9843 = vmatprep.subr.mxu0 0.0
      %9844 = vmatpush1.msra.mxu0 0.0
      %9845 = vmatprep.subr.mxu0 0.0
      %9846 = vmatpush1.msra.mxu0 0.0
      %9847 = vmatprep.subr.mxu0 0.0
      %9848 = vmatpush1.msra.mxu0 0.0
      %9849 = vmatprep.subr.mxu0 0.0
      %9850 = vmatpush1.msra.mxu0 0.0
      %9851 = vmatprep.subr.mxu0 0.0
      %9852 = vmatpush1.msra.mxu0 0.0
      %9853 = vmatprep.subr.mxu0 0.0
      %9854 = vmatpush1.msra.mxu0 0.0
      %9855 = vmatprep.subr.mxu0 0.0
      %9856 = vmatpush1.msra.mxu0 0.0
      %9857 = vmatprep.subr.mxu0 0.0
      %9858 = vmatpush1.msra.mxu0 0.0
      %9859 = vmatprep.subr.mxu0 0.0
      %9860 = vmatpush1.msra.mxu0 0.0
      %9861 = vmatprep.subr.mxu0 0.0
      %9862 = vmatpush1.msra.mxu0 0.0
      %9863 = vmatprep.subr.mxu0 0.0
      %9864 = vmatpush1.msra.mxu0 0.0
      %9865 = vmatprep.subr.mxu0 0.0
      %9866 = vmatpush1.msra.mxu0 0.0
      %9867 = vmatprep.subr.mxu0 0.0
      %9868 = vmatpush1.msra.mxu0 0.0
      %9869 = vmatprep.subr.mxu0 0.0
      %9870 = vmatpush1.msra.mxu0 0.0
      %9871 = vmatprep.subr.mxu0 0.0
      %9872 = vmatpush1.msra.mxu0 0.0
      %9873 = vmatprep.subr.mxu0 0.0
      %9874 = vmatpush1.msra.mxu0 0.0
      %9875 = vmatprep.mubr.f32.mxu0 0.0
      %9876 = vmatmul.mubr.f32.gmra.mrb[0].mxu0 %v9785
      %v9877 = vpop.f32.mrb[0].mxu0
      %v9878 = vadd.f32 0.0, %v9877
      %v9879 = vpop.f32.mrb[0].mxu0
      %9880 = vmatprep.mubr.f32.mxu0 0.0
      %9881 = vmatmul.mubr.f32.gmra.mrb[0].mxu0 %v9787
      %v9882 = vpop.f32.mrb[0].mxu0
      %v9883 = vadd.f32 0.0, %v9882
      %v9884 = vpop.f32.mrb[0].mxu0
      %9885 = vmatprep.mubr.f32.mxu0 0.0
      %9886 = vmatmul.mubr.f32.gmra.mrb[0].mxu0 %v9789
      %v9887 = vpop.f32.mrb[0].mxu0
      %v9888 = vadd.f32 0.0, %v9887
      %v9889 = vpop.f32.mrb[0].mxu0
      %9890 = vmatprep.mubr.f32.mxu0 0.0
      %9891 = vmatmul.mubr.f32.gmra.mrb[0].mxu0 %v9791
      %v9892 = vpop.f32.mrb[0].mxu0
      %v9893 = vadd.f32 0.0, %v9892
      %v9894 = vpop.f32.mrb[0].mxu0
      %9895 = vmatprep.mubr.f32.mxu0 0.0
      %9896 = vmatmul.mubr.f32.gmra.mrb[0].mxu0 %v9793
      %v9897 = vpop.f32.mrb[0].mxu0
      %v9898 = vadd.f32 0.0, %v9897
      %v9899 = vpop.f32.mrb[0].mxu0
      %9900 = vmatprep.mubr.f32.mxu0 0.0
      %9901 = vmatmul.mubr.f32.gmra.mrb[0].mxu0 %v9795
      %v9902 = vpop.f32.mrb[0].mxu0
      %v9903 = vadd.f32 0.0, %v9902
      %v9904 = vpop.f32.mrb[0].mxu0
      %9905 = vmatprep.mubr.f32.mxu0 0.0
      %9906 = vmatmul.mubr.f32.gmra.mrb[0].mxu0 %v9797
      %v9907 = vpop.f32.mrb[0].mxu0
      %v9908 = vadd.f32 0.0, %v9907
      %v9909 = vpop.f32.mrb[0].mxu0
      %9910 = vmatprep.mubr.f32.mxu0 0.0
      %9911 = vmatmul.mubr.f32.gmra.mrb[0].mxu0 %v9799
      %v9912 = vpop.f32.mrb[0].mxu0
      %v9913 = vadd.f32 0.0, %v9912
      %v9914 = vpop.f32.mrb[0].mxu0
      %9915 = vmatprep.mubr.f32.mxu0 0.0
      %9916 = vmatmul.mubr.f32.gmra.mrb[0].mxu0 %v9801
      %v9917 = vpop.f32.mrb[0].mxu0
      %v9918 = vadd.f32 0.0, %v9917
      %v9919 = vpop.f32.mrb[0].mxu0
      %9920 = vmatprep.mubr.f32.mxu0 0.0
      %9921 = vmatmul.mubr.f32.gmra.mrb[0].mxu0 %v9803
      %v9922 = vpop.f32.mrb[0].mxu0
      %v9923 = vadd.f32 0.0, %v9922
      %v9924 = vpop.f32.mrb[0].mxu0
      %9925 = vmatprep.mubr.f32.mxu0 0.0
      %9926 = vmatmul.mubr.f32.gmra.mrb[0].mxu0 %v9805
      %v9927 = vpop.f32.mrb[0].mxu0
      %v9928 = vadd.f32 0.0, %v9927
      %v9929 = vpop.f32.mrb[0].mxu0
      %9930 = vmatprep.mubr.f32.mxu0 0.0
      %9931 = vmatmul.mubr.f32.gmra.mrb[0].mxu0 %v9807
      %v9932 = vpop.f32.mrb[0].mxu0
      %v9933 = vadd.f32 0.0, %v9932
      %v9934 = vpop.f32.mrb[0].mxu0
      %9935 = vmatprep.mubr.f32.mxu0 0.0
      %9936 = vmatmul.mubr.f32.gmra.mrb[0].mxu0 %v9809
      %v9937 = vpop.f32.mrb[0].mxu0
      %v9938 = vadd.f32 0.0, %v9937
      %v9939 = vpop.f32.mrb[0].mxu0
      %9940 = vdwg.mxu0
      %v9941 = vcombine.low %v9170, %v9178
      %v9942 = vcombine.low %v9177, %v9179
      %v9944 = vunpack.c.l.s4 1983009808
      %v9945 = vunpack.c.0.s8 %v9944
      %v9946 = vlaneseq
      %v9947 = vshrl.u32 %v9946, 7
      %v9948 = vsub.s32 %v9945, %v9947
      %v9949 = vrot.slane %v9941, %v9948
      %v9951 = vunpack.c.l.s4 1983009808
      %v9952 = vunpack.c.0.s8 %v9951
      %v9953 = vlaneseq
      %v9954 = vshrl.u32 %v9953, 7
      %v9955 = vsub.s32 %v9952, %v9954
      %v9956 = vrot.slane %v9942, %v9955
      %v9957 = vcombine.low %v9949, %v9956
      %v9958 = vcombine.low %v9186, %v9194
      %v9959 = vcombine.low %v9202, %v9201
      %v9961 = vunpack.c.l.s4 1983009808
      %v9962 = vunpack.c.0.s8 %v9961
      %v9963 = vlaneseq
      %v9964 = vshrl.u32 %v9963, 7
      %v9965 = vsub.s32 %v9962, %v9964
      %v9966 = vrot.slane %v9958, %v9965
      %v9968 = vunpack.c.l.s4 1983009808
      %v9969 = vunpack.c.0.s8 %v9968
      %v9970 = vlaneseq
      %v9971 = vshrl.u32 %v9970, 7
      %v9972 = vsub.s32 %v9969, %v9971
      %v9973 = vrot.slane %v9959, %v9972
      %v9974 = vcombine.low %v9966, %v9973
      %v9975 = vcombine.low %v9203, %v9210
      %v9976 = vcombine.low %v9218, %v9226
      %v9978 = vunpack.c.l.s4 1983009808
      %v9979 = vunpack.c.0.s8 %v9978
      %v9980 = vlaneseq
      %v9981 = vshrl.u32 %v9980, 7
      %v9982 = vsub.s32 %v9979, %v9981
      %v9983 = vrot.slane %v9975, %v9982
      %v9985 = vunpack.c.l.s4 1983009808
      %v9986 = vunpack.c.0.s8 %v9985
      %v9987 = vlaneseq
      %v9988 = vshrl.u32 %v9987, 7
      %v9989 = vsub.s32 %v9986, %v9988
      %v9990 = vrot.slane %v9976, %v9989
      %v9991 = vcombine.low %v9983, %v9990
      %v9992 = vcombine.low %v9225, %v9227
      %v9993 = vcombine.low %v9234, %v9242
      %v9995 = vunpack.c.l.s4 1983009808
      %v9996 = vunpack.c.0.s8 %v9995
      %v9997 = vlaneseq
      %v9998 = vshrl.u32 %v9997, 7
      %v9999 = vsub.s32 %v9996, %v9998
      %v10000 = vrot.slane %v9992, %v9999
      %v10002 = vunpack.c.l.s4 1983009808
      %v10003 = vunpack.c.0.s8 %v10002
      %v10004 = vlaneseq
      %v10005 = vshrl.u32 %v10004, 7
      %v10006 = vsub.s32 %v10003, %v10005
      %v10007 = vrot.slane %v9993, %v10006
      %v10008 = vcombine.low %v10000, %v10007
      %v10009 = vcombine.low %v9250, %v9249
      %v10010 = vcombine.low %v9251, %v9258
      %v10012 = vunpack.c.l.s4 1983009808
      %v10013 = vunpack.c.0.s8 %v10012
      %v10014 = vlaneseq
      %v10015 = vshrl.u32 %v10014, 7
      %v10016 = vsub.s32 %v10013, %v10015
      %v10017 = vrot.slane %v10009, %v10016
      %v10019 = vunpack.c.l.s4 1983009808
      %v10020 = vunpack.c.0.s8 %v10019
      %v10021 = vlaneseq
      %v10022 = vshrl.u32 %v10021, 7
      %v10023 = vsub.s32 %v10020, %v10022
      %v10024 = vrot.slane %v10010, %v10023
      %v10025 = vcombine.low %v10017, %v10024
      %v10026 = vcombine.low %v9266, %v9274
      %v10027 = vcombine.low %v9273, %v9275
      %v10029 = vunpack.c.l.s4 1983009808
      %v10030 = vunpack.c.0.s8 %v10029
      %v10031 = vlaneseq
      %v10032 = vshrl.u32 %v10031, 7
      %v10033 = vsub.s32 %v10030, %v10032
      %v10034 = vrot.slane %v10026, %v10033
      %v10036 = vunpack.c.l.s4 1983009808
      %v10037 = vunpack.c.0.s8 %v10036
      %v10038 = vlaneseq
      %v10039 = vshrl.u32 %v10038, 7
      %v10040 = vsub.s32 %v10037, %v10039
      %v10041 = vrot.slane %v10027, %v10040
      %v10042 = vcombine.low %v10034, %v10041
      %v10043 = vcombine.low %v9282, %v9290
      %v10044 = vcombine.low %v9298, %v9297
      %v10046 = vunpack.c.l.s4 1983009808
      %v10047 = vunpack.c.0.s8 %v10046
      %v10048 = vlaneseq
      %v10049 = vshrl.u32 %v10048, 7
      %v10050 = vsub.s32 %v10047, %v10049
      %v10051 = vrot.slane %v10043, %v10050
      %v10053 = vunpack.c.l.s4 1983009808
      %v10054 = vunpack.c.0.s8 %v10053
      %v10055 = vlaneseq
      %v10056 = vshrl.u32 %v10055, 7
      %v10057 = vsub.s32 %v10054, %v10056
      %v10058 = vrot.slane %v10044, %v10057
      %v10059 = vcombine.low %v10051, %v10058
      %v10060 = vcombine.low %v9299, %v9306
      %v10061 = vcombine.low %v9314, %v9322
      %v10063 = vunpack.c.l.s4 1983009808
      %v10064 = vunpack.c.0.s8 %v10063
      %v10065 = vlaneseq
      %v10066 = vshrl.u32 %v10065, 7
      %v10067 = vsub.s32 %v10064, %v10066
      %v10068 = vrot.slane %v10060, %v10067
      %v10070 = vunpack.c.l.s4 1983009808
      %v10071 = vunpack.c.0.s8 %v10070
      %v10072 = vlaneseq
      %v10073 = vshrl.u32 %v10072, 7
      %v10074 = vsub.s32 %v10071, %v10073
      %v10075 = vrot.slane %v10061, %v10074
      %v10076 = vcombine.low %v10068, %v10075
      %v10077 = vcombine.low %v9321, %v9323
      %v10078 = vcombine.low %v9330, %v9338
      %v10080 = vunpack.c.l.s4 1983009808
      %v10081 = vunpack.c.0.s8 %v10080
      %v10082 = vlaneseq
      %v10083 = vshrl.u32 %v10082, 7
      %v10084 = vsub.s32 %v10081, %v10083
      %v10085 = vrot.slane %v10077, %v10084
      %v10087 = vunpack.c.l.s4 1983009808
      %v10088 = vunpack.c.0.s8 %v10087
      %v10089 = vlaneseq
      %v10090 = vshrl.u32 %v10089, 7
      %v10091 = vsub.s32 %v10088, %v10090
      %v10092 = vrot.slane %v10078, %v10091
      %v10093 = vcombine.low %v10085, %v10092
      %v10094 = vcombine.low %v9346, %v9345
      %v10095 = vcombine.low %v9347, %v9354
      %v10097 = vunpack.c.l.s4 1983009808
      %v10098 = vunpack.c.0.s8 %v10097
      %v10099 = vlaneseq
      %v10100 = vshrl.u32 %v10099, 7
      %v10101 = vsub.s32 %v10098, %v10100
      %v10102 = vrot.slane %v10094, %v10101
      %v10104 = vunpack.c.l.s4 1983009808
      %v10105 = vunpack.c.0.s8 %v10104
      %v10106 = vlaneseq
      %v10107 = vshrl.u32 %v10106, 7
      %v10108 = vsub.s32 %v10105, %v10107
      %v10109 = vrot.slane %v10095, %v10108
      %v10110 = vcombine.low %v10102, %v10109
      %v10111 = vcombine.low %v9362, %v9370
      %v10112 = vcombine.low %v9369, %v9371
      %v10114 = vunpack.c.l.s4 1983009808
      %v10115 = vunpack.c.0.s8 %v10114
      %v10116 = vlaneseq
      %v10117 = vshrl.u32 %v10116, 7
      %v10118 = vsub.s32 %v10115, %v10117
      %v10119 = vrot.slane %v10111, %v10118
      %v10121 = vunpack.c.l.s4 1983009808
      %v10122 = vunpack.c.0.s8 %v10121
      %v10123 = vlaneseq
      %v10124 = vshrl.u32 %v10123, 7
      %v10125 = vsub.s32 %v10122, %v10124
      %v10126 = vrot.slane %v10112, %v10125
      %v10127 = vcombine.low %v10119, %v10126
      %v10128 = vcombine.low %v9378, %v9386
      %v10129 = vcombine.low %v9394, %v9393
      %v10131 = vunpack.c.l.s4 1983009808
      %v10132 = vunpack.c.0.s8 %v10131
      %v10133 = vlaneseq
      %v10134 = vshrl.u32 %v10133, 7
      %v10135 = vsub.s32 %v10132, %v10134
      %v10136 = vrot.slane %v10128, %v10135
      %v10138 = vunpack.c.l.s4 1983009808
      %v10139 = vunpack.c.0.s8 %v10138
      %v10140 = vlaneseq
      %v10141 = vshrl.u32 %v10140, 7
      %v10142 = vsub.s32 %v10139, %v10141
      %v10143 = vrot.slane %v10129, %v10142
      %v10144 = vcombine.low %v10136, %v10143
      %v10145 = vcombine.low %v9395, %v9402
      %v10147 = vunpack.c.l.s4 1983009808
      %v10148 = vunpack.c.0.s8 %v10147
      %v10149 = vlaneseq
      %v10150 = vshrl.u32 %v10149, 7
      %v10151 = vsub.s32 %v10148, %v10150
      %v10152 = vrot.slane %v10145, %v10151
      %v10153 = vsel %vm1556, %v9957, 0
      %v10155 = vsel %vm1556, %v9974, 0
      %v10157 = vsel %vm1556, %v9991, 0
      %v10159 = vsel %vm1556, %v10008, 0
      %v10161 = vsel %vm1556, %v10025, 0
      %v10163 = vsel %vm1556, %v10042, 0
      %v10165 = vsel %vm1556, %v10059, 0
      %v10167 = vsel %vm1556, %v10076, 0
      %v10169 = vsel %vm1556, %v10093, 0
      %v10171 = vsel %vm1556, %v10110, 0
      %v10173 = vsel %vm1556, %v10127, 0
      %v10175 = vsel %vm1556, %v10144, 0
      %v10177 = vsel %vm1556, %v10152, 0
      %10179 = vmatprep.subr.mxu0 0.0
      %10180 = vmatpush1.msra.mxu0 %v9109
      %10181 = vmatprep.subr.mxu0 0.0
      %10182 = vmatpush1.msra.mxu0 0.0
      %10183 = vmatprep.subr.mxu0 0.0
      %10184 = vmatpush1.msra.mxu0 0.0
      %10185 = vmatprep.subr.mxu0 0.0
      %10186 = vmatpush1.msra.mxu0 0.0
      %10187 = vmatprep.subr.mxu0 0.0
      %10188 = vmatpush1.msra.mxu0 0.0
      %10189 = vmatprep.subr.mxu0 0.0
      %10190 = vmatpush1.msra.mxu0 0.0
      %10191 = vmatprep.subr.mxu0 0.0
      %10192 = vmatpush1.msra.mxu0 0.0
      %10193 = vmatprep.subr.mxu0 0.0
      %10194 = vmatpush1.msra.mxu0 0.0
      %10195 = vmatprep.subr.mxu0 0.0
      %10196 = vmatpush1.msra.mxu0 0.0
      %10197 = vmatprep.subr.mxu0 0.0
      %10198 = vmatpush1.msra.mxu0 0.0
      %10199 = vmatprep.subr.mxu0 0.0
      %10200 = vmatpush1.msra.mxu0 0.0
      %10201 = vmatprep.subr.mxu0 0.0
      %10202 = vmatpush1.msra.mxu0 0.0
      %10203 = vmatprep.subr.mxu0 0.0
      %10204 = vmatpush1.msra.mxu0 0.0
      %10205 = vmatprep.subr.mxu0 0.0
      %10206 = vmatpush1.msra.mxu0 0.0
      %10207 = vmatprep.subr.mxu0 0.0
      %10208 = vmatpush1.msra.mxu0 0.0
      %10209 = vmatprep.subr.mxu0 0.0
      %10210 = vmatpush1.msra.mxu0 0.0
      %10211 = vmatprep.subr.mxu0 0.0
      %10212 = vmatpush1.msra.mxu0 0.0
      %10213 = vmatprep.subr.mxu0 0.0
      %10214 = vmatpush1.msra.mxu0 0.0
      %10215 = vmatprep.subr.mxu0 0.0
      %10216 = vmatpush1.msra.mxu0 0.0
      %10217 = vmatprep.subr.mxu0 0.0
      %10218 = vmatpush1.msra.mxu0 0.0
      %10219 = vmatprep.subr.mxu0 0.0
      %10220 = vmatpush1.msra.mxu0 0.0
      %10221 = vmatprep.subr.mxu0 0.0
      %10222 = vmatpush1.msra.mxu0 0.0
      %10223 = vmatprep.subr.mxu0 0.0
      %10224 = vmatpush1.msra.mxu0 0.0
      %10225 = vmatprep.subr.mxu0 0.0
      %10226 = vmatpush1.msra.mxu0 0.0
      %10227 = vmatprep.subr.mxu0 0.0
      %10228 = vmatpush1.msra.mxu0 0.0
      %10229 = vmatprep.subr.mxu0 0.0
      %10230 = vmatpush1.msra.mxu0 0.0
      %10231 = vmatprep.subr.mxu0 0.0
      %10232 = vmatpush1.msra.mxu0 0.0
      %10233 = vmatprep.subr.mxu0 0.0
      %10234 = vmatpush1.msra.mxu0 0.0
      %10235 = vmatprep.subr.mxu0 0.0
      %10236 = vmatpush1.msra.mxu0 0.0
      %10237 = vmatprep.subr.mxu0 0.0
      %10238 = vmatpush1.msra.mxu0 0.0
      %10239 = vmatprep.subr.mxu0 0.0
      %10240 = vmatpush1.msra.mxu0 0.0
      %10241 = vmatprep.subr.mxu0 0.0
      %10242 = vmatpush1.msra.mxu0 0.0
      %10243 = vmatprep.mubr.f32.mxu0 0.0
      %10244 = vmatmul.mubr.f32.gmra.mrb[0].mxu0 %v10153
      %v10245 = vpop.f32.mrb[0].mxu0
      %v10246 = vadd.f32 %v9878, %v10245
      %v10247 = vpop.f32.mrb[0].mxu0
      %10248 = vmatprep.mubr.f32.mxu0 0.0
      %10249 = vmatmul.mubr.f32.gmra.mrb[0].mxu0 %v10155
      %v10250 = vpop.f32.mrb[0].mxu0
      %v10251 = vadd.f32 %v9883, %v10250
      %v10252 = vpop.f32.mrb[0].mxu0
      %10253 = vmatprep.mubr.f32.mxu0 0.0
      %10254 = vmatmul.mubr.f32.gmra.mrb[0].mxu0 %v10157
      %v10255 = vpop.f32.mrb[0].mxu0
      %v10256 = vadd.f32 %v9888, %v10255
      %v10257 = vpop.f32.mrb[0].mxu0
      %10258 = vmatprep.mubr.f32.mxu0 0.0
      %10259 = vmatmul.mubr.f32.gmra.mrb[0].mxu0 %v10159
      %v10260 = vpop.f32.mrb[0].mxu0
      %v10261 = vadd.f32 %v9893, %v10260
      %v10262 = vpop.f32.mrb[0].mxu0
      %10263 = vmatprep.mubr.f32.mxu0 0.0
      %10264 = vmatmul.mubr.f32.gmra.mrb[0].mxu0 %v10161
      %v10265 = vpop.f32.mrb[0].mxu0
      %v10266 = vadd.f32 %v9898, %v10265
      %v10267 = vpop.f32.mrb[0].mxu0
      %10268 = vmatprep.mubr.f32.mxu0 0.0
      %10269 = vmatmul.mubr.f32.gmra.mrb[0].mxu0 %v10163
      %v10270 = vpop.f32.mrb[0].mxu0
      %v10271 = vadd.f32 %v9903, %v10270
      %v10272 = vpop.f32.mrb[0].mxu0
      %10273 = vmatprep.mubr.f32.mxu0 0.0
      %10274 = vmatmul.mubr.f32.gmra.mrb[0].mxu0 %v10165
      %v10275 = vpop.f32.mrb[0].mxu0
      %v10276 = vadd.f32 %v9908, %v10275
      %v10277 = vpop.f32.mrb[0].mxu0
      %10278 = vmatprep.mubr.f32.mxu0 0.0
      %10279 = vmatmul.mubr.f32.gmra.mrb[0].mxu0 %v10167
      %v10280 = vpop.f32.mrb[0].mxu0
      %v10281 = vadd.f32 %v9913, %v10280
      %v10282 = vpop.f32.mrb[0].mxu0
      %10283 = vmatprep.mubr.f32.mxu0 0.0
      %10284 = vmatmul.mubr.f32.gmra.mrb[0].mxu0 %v10169
      %v10285 = vpop.f32.mrb[0].mxu0
      %v10286 = vadd.f32 %v9918, %v10285
      %v10287 = vpop.f32.mrb[0].mxu0
      %10288 = vmatprep.mubr.f32.mxu0 0.0
      %10289 = vmatmul.mubr.f32.gmra.mrb[0].mxu0 %v10171
      %v10290 = vpop.f32.mrb[0].mxu0
      %v10291 = vadd.f32 %v9923, %v10290
      %v10292 = vpop.f32.mrb[0].mxu0
      %10293 = vmatprep.mubr.f32.mxu0 0.0
      %10294 = vmatmul.mubr.f32.gmra.mrb[0].mxu0 %v10173
      %v10295 = vpop.f32.mrb[0].mxu0
      %v10296 = vadd.f32 %v9928, %v10295
      %v10297 = vpop.f32.mrb[0].mxu0
      %10298 = vmatprep.mubr.f32.mxu0 0.0
      %10299 = vmatmul.mubr.f32.gmra.mrb[0].mxu0 %v10175
      %v10300 = vpop.f32.mrb[0].mxu0
      %v10301 = vadd.f32 %v9933, %v10300
      %v10302 = vpop.f32.mrb[0].mxu0
      %10303 = vmatprep.mubr.f32.mxu0 0.0
      %10304 = vmatmul.mubr.f32.gmra.mrb[0].mxu0 %v10177
      %v10305 = vpop.f32.mrb[0].mxu0
      %v10306 = vadd.f32 %v9938, %v10305
      %v10307 = vpop.f32.mrb[0].mxu0
      %10308 = vdwg.mxu0
      %v10309 = vcombine.low %v9178, %v9177
      %v10310 = vcombine.low %v9179, %v9186
      %v10312 = vunpack.c.l.s4 1983009808
      %v10313 = vunpack.c.0.s8 %v10312
      %v10314 = vlaneseq
      %v10315 = vshrl.u32 %v10314, 7
      %v10316 = vsub.s32 %v10313, %v10315
      %v10317 = vrot.slane %v10309, %v10316
      %v10319 = vunpack.c.l.s4 1983009808
      %v10320 = vunpack.c.0.s8 %v10319
      %v10321 = vlaneseq
      %v10322 = vshrl.u32 %v10321, 7
      %v10323 = vsub.s32 %v10320, %v10322
      %v10324 = vrot.slane %v10310, %v10323
      %v10325 = vcombine.low %v10317, %v10324
      %v10326 = vcombine.low %v9403, %v9202
      %v10327 = vcombine.low %v9201, %v9203
      %v10329 = vunpack.c.l.s4 1983009808
      %v10330 = vunpack.c.0.s8 %v10329
      %v10331 = vlaneseq
      %v10332 = vshrl.u32 %v10331, 7
      %v10333 = vsub.s32 %v10330, %v10332
      %v10334 = vrot.slane %v10326, %v10333
      %v10336 = vunpack.c.l.s4 1983009808
      %v10337 = vunpack.c.0.s8 %v10336
      %v10338 = vlaneseq
      %v10339 = vshrl.u32 %v10338, 7
      %v10340 = vsub.s32 %v10337, %v10339
      %v10341 = vrot.slane %v10327, %v10340
      %v10342 = vcombine.low %v10334, %v10341
      %v10343 = vcombine.low %v9210, %v9404
      %v10344 = vcombine.low %v9226, %v9225
      %v10346 = vunpack.c.l.s4 1983009808
      %v10347 = vunpack.c.0.s8 %v10346
      %v10348 = vlaneseq
      %v10349 = vshrl.u32 %v10348, 7
      %v10350 = vsub.s32 %v10347, %v10349
      %v10351 = vrot.slane %v10343, %v10350
      %v10353 = vunpack.c.l.s4 1983009808
      %v10354 = vunpack.c.0.s8 %v10353
      %v10355 = vlaneseq
      %v10356 = vshrl.u32 %v10355, 7
      %v10357 = vsub.s32 %v10354, %v10356
      %v10358 = vrot.slane %v10344, %v10357
      %v10359 = vcombine.low %v10351, %v10358
      %v10360 = vcombine.low %v9227, %v9234
      %v10361 = vcombine.low %v9405, %v9250
      %v10363 = vunpack.c.l.s4 1983009808
      %v10364 = vunpack.c.0.s8 %v10363
      %v10365 = vlaneseq
      %v10366 = vshrl.u32 %v10365, 7
      %v10367 = vsub.s32 %v10364, %v10366
      %v10368 = vrot.slane %v10360, %v10367
      %v10370 = vunpack.c.l.s4 1983009808
      %v10371 = vunpack.c.0.s8 %v10370
      %v10372 = vlaneseq
      %v10373 = vshrl.u32 %v10372, 7
      %v10374 = vsub.s32 %v10371, %v10373
      %v10375 = vrot.slane %v10361, %v10374
      %v10376 = vcombine.low %v10368, %v10375
      %v10377 = vcombine.low %v9249, %v9251
      %v10378 = vcombine.low %v9258, %v9406
      %v10380 = vunpack.c.l.s4 1983009808
      %v10381 = vunpack.c.0.s8 %v10380
      %v10382 = vlaneseq
      %v10383 = vshrl.u32 %v10382, 7
      %v10384 = vsub.s32 %v10381, %v10383
      %v10385 = vrot.slane %v10377, %v10384
      %v10387 = vunpack.c.l.s4 1983009808
      %v10388 = vunpack.c.0.s8 %v10387
      %v10389 = vlaneseq
      %v10390 = vshrl.u32 %v10389, 7
      %v10391 = vsub.s32 %v10388, %v10390
      %v10392 = vrot.slane %v10378, %v10391
      %v10393 = vcombine.low %v10385, %v10392
      %v10394 = vcombine.low %v9274, %v9273
      %v10395 = vcombine.low %v9275, %v9282
      %v10397 = vunpack.c.l.s4 1983009808
      %v10398 = vunpack.c.0.s8 %v10397
      %v10399 = vlaneseq
      %v10400 = vshrl.u32 %v10399, 7
      %v10401 = vsub.s32 %v10398, %v10400
      %v10402 = vrot.slane %v10394, %v10401
      %v10404 = vunpack.c.l.s4 1983009808
      %v10405 = vunpack.c.0.s8 %v10404
      %v10406 = vlaneseq
      %v10407 = vshrl.u32 %v10406, 7
      %v10408 = vsub.s32 %v10405, %v10407
      %v10409 = vrot.slane %v10395, %v10408
      %v10410 = vcombine.low %v10402, %v10409
      %v10411 = vcombine.low %v9407, %v9298
      %v10412 = vcombine.low %v9297, %v9299
      %v10414 = vunpack.c.l.s4 1983009808
      %v10415 = vunpack.c.0.s8 %v10414
      %v10416 = vlaneseq
      %v10417 = vshrl.u32 %v10416, 7
      %v10418 = vsub.s32 %v10415, %v10417
      %v10419 = vrot.slane %v10411, %v10418
      %v10421 = vunpack.c.l.s4 1983009808
      %v10422 = vunpack.c.0.s8 %v10421
      %v10423 = vlaneseq
      %v10424 = vshrl.u32 %v10423, 7
      %v10425 = vsub.s32 %v10422, %v10424
      %v10426 = vrot.slane %v10412, %v10425
      %v10427 = vcombine.low %v10419, %v10426
      %v10428 = vcombine.low %v9306, %v9408
      %v10429 = vcombine.low %v9322, %v9321
      %v10431 = vunpack.c.l.s4 1983009808
      %v10432 = vunpack.c.0.s8 %v10431
      %v10433 = vlaneseq
      %v10434 = vshrl.u32 %v10433, 7
      %v10435 = vsub.s32 %v10432, %v10434
      %v10436 = vrot.slane %v10428, %v10435
      %v10438 = vunpack.c.l.s4 1983009808
      %v10439 = vunpack.c.0.s8 %v10438
      %v10440 = vlaneseq
      %v10441 = vshrl.u32 %v10440, 7
      %v10442 = vsub.s32 %v10439, %v10441
      %v10443 = vrot.slane %v10429, %v10442
      %v10444 = vcombine.low %v10436, %v10443
      %v10445 = vcombine.low %v9323, %v9330
      %v10446 = vcombine.low %v9409, %v9346
      %v10448 = vunpack.c.l.s4 1983009808
      %v10449 = vunpack.c.0.s8 %v10448
      %v10450 = vlaneseq
      %v10451 = vshrl.u32 %v10450, 7
      %v10452 = vsub.s32 %v10449, %v10451
      %v10453 = vrot.slane %v10445, %v10452
      %v10455 = vunpack.c.l.s4 1983009808
      %v10456 = vunpack.c.0.s8 %v10455
      %v10457 = vlaneseq
      %v10458 = vshrl.u32 %v10457, 7
      %v10459 = vsub.s32 %v10456, %v10458
      %v10460 = vrot.slane %v10446, %v10459
      %v10461 = vcombine.low %v10453, %v10460
      %v10462 = vcombine.low %v9345, %v9347
      %v10463 = vcombine.low %v9354, %v9410
      %v10465 = vunpack.c.l.s4 1983009808
      %v10466 = vunpack.c.0.s8 %v10465
      %v10467 = vlaneseq
      %v10468 = vshrl.u32 %v10467, 7
      %v10469 = vsub.s32 %v10466, %v10468
      %v10470 = vrot.slane %v10462, %v10469
      %v10472 = vunpack.c.l.s4 1983009808
      %v10473 = vunpack.c.0.s8 %v10472
      %v10474 = vlaneseq
      %v10475 = vshrl.u32 %v10474, 7
      %v10476 = vsub.s32 %v10473, %v10475
      %v10477 = vrot.slane %v10463, %v10476
      %v10478 = vcombine.low %v10470, %v10477
      %v10479 = vcombine.low %v9370, %v9369
      %v10480 = vcombine.low %v9371, %v9378
      %v10482 = vunpack.c.l.s4 1983009808
      %v10483 = vunpack.c.0.s8 %v10482
      %v10484 = vlaneseq
      %v10485 = vshrl.u32 %v10484, 7
      %v10486 = vsub.s32 %v10483, %v10485
      %v10487 = vrot.slane %v10479, %v10486
      %v10489 = vunpack.c.l.s4 1983009808
      %v10490 = vunpack.c.0.s8 %v10489
      %v10491 = vlaneseq
      %v10492 = vshrl.u32 %v10491, 7
      %v10493 = vsub.s32 %v10490, %v10492
      %v10494 = vrot.slane %v10480, %v10493
      %v10495 = vcombine.low %v10487, %v10494
      %v10496 = vcombine.low %v9411, %v9394
      %v10497 = vcombine.low %v9393, %v9395
      %v10499 = vunpack.c.l.s4 1983009808
      %v10500 = vunpack.c.0.s8 %v10499
      %v10501 = vlaneseq
      %v10502 = vshrl.u32 %v10501, 7
      %v10503 = vsub.s32 %v10500, %v10502
      %v10504 = vrot.slane %v10496, %v10503
      %v10506 = vunpack.c.l.s4 1983009808
      %v10507 = vunpack.c.0.s8 %v10506
      %v10508 = vlaneseq
      %v10509 = vshrl.u32 %v10508, 7
      %v10510 = vsub.s32 %v10507, %v10509
      %v10511 = vrot.slane %v10497, %v10510
      %v10512 = vcombine.low %v10504, %v10511
      %v10513 = vcombine.low %v9402, %v9412
      %v10515 = vunpack.c.l.s4 1983009808
      %v10516 = vunpack.c.0.s8 %v10515
      %v10517 = vlaneseq
      %v10518 = vshrl.u32 %v10517, 7
      %v10519 = vsub.s32 %v10516, %v10518
      %v10520 = vrot.slane %v10513, %v10519
      %v10521 = vsel %vm1556, %v10325, 0
      %v10523 = vsel %vm1556, %v10342, 0
      %v10525 = vsel %vm1556, %v10359, 0
      %v10527 = vsel %vm1556, %v10376, 0
      %v10529 = vsel %vm1556, %v10393, 0
      %v10531 = vsel %vm1556, %v10410, 0
      %v10533 = vsel %vm1556, %v10427, 0
      %v10535 = vsel %vm1556, %v10444, 0
      %v10537 = vsel %vm1556, %v10461, 0
      %v10539 = vsel %vm1556, %v10478, 0
      %v10541 = vsel %vm1556, %v10495, 0
      %v10543 = vsel %vm1556, %v10512, 0
      %v10545 = vsel %vm1556, %v10520, 0
      %10547 = vmatprep.subr.mxu0 0.0
      %10548 = vmatpush1.msra.mxu0 %v9111
      %10549 = vmatprep.subr.mxu0 0.0
      %10550 = vmatpush1.msra.mxu0 0.0
      %10551 = vmatprep.subr.mxu0 0.0
      %10552 = vmatpush1.msra.mxu0 0.0
      %10553 = vmatprep.subr.mxu0 0.0
      %10554 = vmatpush1.msra.mxu0 0.0
      %10555 = vmatprep.subr.mxu0 0.0
      %10556 = vmatpush1.msra.mxu0 0.0
      %10557 = vmatprep.subr.mxu0 0.0
      %10558 = vmatpush1.msra.mxu0 0.0
      %10559 = vmatprep.subr.mxu0 0.0
      %10560 = vmatpush1.msra.mxu0 0.0
      %10561 = vmatprep.subr.mxu0 0.0
      %10562 = vmatpush1.msra.mxu0 0.0
      %10563 = vmatprep.subr.mxu0 0.0
      %10564 = vmatpush1.msra.mxu0 0.0
      %10565 = vmatprep.subr.mxu0 0.0
      %10566 = vmatpush1.msra.mxu0 0.0
      %10567 = vmatprep.subr.mxu0 0.0
      %10568 = vmatpush1.msra.mxu0 0.0
      %10569 = vmatprep.subr.mxu0 0.0
      %10570 = vmatpush1.msra.mxu0 0.0
      %10571 = vmatprep.subr.mxu0 0.0
      %10572 = vmatpush1.msra.mxu0 0.0
      %10573 = vmatprep.subr.mxu0 0.0
      %10574 = vmatpush1.msra.mxu0 0.0
      %10575 = vmatprep.subr.mxu0 0.0
      %10576 = vmatpush1.msra.mxu0 0.0
      %10577 = vmatprep.subr.mxu0 0.0
      %10578 = vmatpush1.msra.mxu0 0.0
      %10579 = vmatprep.subr.mxu0 0.0
      %10580 = vmatpush1.msra.mxu0 0.0
      %10581 = vmatprep.subr.mxu0 0.0
      %10582 = vmatpush1.msra.mxu0 0.0
      %10583 = vmatprep.subr.mxu0 0.0
      %10584 = vmatpush1.msra.mxu0 0.0
      %10585 = vmatprep.subr.mxu0 0.0
      %10586 = vmatpush1.msra.mxu0 0.0
      %10587 = vmatprep.subr.mxu0 0.0
      %10588 = vmatpush1.msra.mxu0 0.0
      %10589 = vmatprep.subr.mxu0 0.0
      %10590 = vmatpush1.msra.mxu0 0.0
      %10591 = vmatprep.subr.mxu0 0.0
      %10592 = vmatpush1.msra.mxu0 0.0
      %10593 = vmatprep.subr.mxu0 0.0
      %10594 = vmatpush1.msra.mxu0 0.0
      %10595 = vmatprep.subr.mxu0 0.0
      %10596 = vmatpush1.msra.mxu0 0.0
      %10597 = vmatprep.subr.mxu0 0.0
      %10598 = vmatpush1.msra.mxu0 0.0
      %10599 = vmatprep.subr.mxu0 0.0
      %10600 = vmatpush1.msra.mxu0 0.0
      %10601 = vmatprep.subr.mxu0 0.0
      %10602 = vmatpush1.msra.mxu0 0.0
      %10603 = vmatprep.subr.mxu0 0.0
      %10604 = vmatpush1.msra.mxu0 0.0
      %10605 = vmatprep.subr.mxu0 0.0
      %10606 = vmatpush1.msra.mxu0 0.0
      %10607 = vmatprep.subr.mxu0 0.0
      %10608 = vmatpush1.msra.mxu0 0.0
      %10609 = vmatprep.subr.mxu0 0.0
      %10610 = vmatpush1.msra.mxu0 0.0
      %10611 = vmatprep.mubr.f32.mxu0 0.0
      %10612 = vmatmul.mubr.f32.gmra.mrb[0].mxu0 %v10521
      %v10613 = vpop.f32.mrb[0].mxu0
      %v10614 = vadd.f32 0.0, %v10613
      %v10615 = vpop.f32.mrb[0].mxu0
      %10616 = vmatprep.mubr.f32.mxu0 0.0
      %10617 = vmatmul.mubr.f32.gmra.mrb[0].mxu0 %v10523
      %v10618 = vpop.f32.mrb[0].mxu0
      %v10619 = vadd.f32 0.0, %v10618
      %v10620 = vpop.f32.mrb[0].mxu0
      %10621 = vmatprep.mubr.f32.mxu0 0.0
      %10622 = vmatmul.mubr.f32.gmra.mrb[0].mxu0 %v10525
      %v10623 = vpop.f32.mrb[0].mxu0
      %v10624 = vadd.f32 0.0, %v10623
      %v10625 = vpop.f32.mrb[0].mxu0
      %10626 = vmatprep.mubr.f32.mxu0 0.0
      %10627 = vmatmul.mubr.f32.gmra.mrb[0].mxu0 %v10527
      %v10628 = vpop.f32.mrb[0].mxu0
      %v10629 = vadd.f32 0.0, %v10628
      %v10630 = vpop.f32.mrb[0].mxu0
      %10631 = vmatprep.mubr.f32.mxu0 0.0
      %10632 = vmatmul.mubr.f32.gmra.mrb[0].mxu0 %v10529
      %v10633 = vpop.f32.mrb[0].mxu0
      %v10634 = vadd.f32 0.0, %v10633
      %v10635 = vpop.f32.mrb[0].mxu0
      %10636 = vmatprep.mubr.f32.mxu0 0.0
      %10637 = vmatmul.mubr.f32.gmra.mrb[0].mxu0 %v10531
      %v10638 = vpop.f32.mrb[0].mxu0
      %v10639 = vadd.f32 0.0, %v10638
      %v10640 = vpop.f32.mrb[0].mxu0
      %10641 = vmatprep.mubr.f32.mxu0 0.0
      %10642 = vmatmul.mubr.f32.gmra.mrb[0].mxu0 %v10533
      %v10643 = vpop.f32.mrb[0].mxu0
      %v10644 = vadd.f32 0.0, %v10643
      %v10645 = vpop.f32.mrb[0].mxu0
      %10646 = vmatprep.mubr.f32.mxu0 0.0
      %10647 = vmatmul.mubr.f32.gmra.mrb[0].mxu0 %v10535
      %v10648 = vpop.f32.mrb[0].mxu0
      %v10649 = vadd.f32 0.0, %v10648
      %v10650 = vpop.f32.mrb[0].mxu0
      %10651 = vmatprep.mubr.f32.mxu0 0.0
      %10652 = vmatmul.mubr.f32.gmra.mrb[0].mxu0 %v10537
      %v10653 = vpop.f32.mrb[0].mxu0
      %v10654 = vadd.f32 0.0, %v10653
      %v10655 = vpop.f32.mrb[0].mxu0
      %10656 = vmatprep.mubr.f32.mxu0 0.0
      %10657 = vmatmul.mubr.f32.gmra.mrb[0].mxu0 %v10539
      %v10658 = vpop.f32.mrb[0].mxu0
      %v10659 = vadd.f32 0.0, %v10658
      %v10660 = vpop.f32.mrb[0].mxu0
      %10661 = vmatprep.mubr.f32.mxu0 0.0
      %10662 = vmatmul.mubr.f32.gmra.mrb[0].mxu0 %v10541
      %v10663 = vpop.f32.mrb[0].mxu0
      %v10664 = vadd.f32 0.0, %v10663
      %v10665 = vpop.f32.mrb[0].mxu0
      %10666 = vmatprep.mubr.f32.mxu0 0.0
      %10667 = vmatmul.mubr.f32.gmra.mrb[0].mxu0 %v10543
      %v10668 = vpop.f32.mrb[0].mxu0
      %v10669 = vadd.f32 0.0, %v10668
      %v10670 = vpop.f32.mrb[0].mxu0
      %10671 = vmatprep.mubr.f32.mxu0 0.0
      %10672 = vmatmul.mubr.f32.gmra.mrb[0].mxu0 %v10545
      %v10673 = vpop.f32.mrb[0].mxu0
      %v10674 = vadd.f32 0.0, %v10673
      %v10675 = vpop.f32.mrb[0].mxu0
      %10676 = vdwg.mxu0
      %v10677 = vadd.f32 %v10246, %v10614
      %v10678 = vadd.f32 %v10251, %v10619
      %v10679 = vadd.f32 %v10256, %v10624
      %v10680 = vadd.f32 %v10261, %v10629
      %v10681 = vadd.f32 %v10266, %v10634
      %v10682 = vadd.f32 %v10271, %v10639
      %v10683 = vadd.f32 %v10276, %v10644
      %v10684 = vadd.f32 %v10281, %v10649
      %v10685 = vadd.f32 %v10286, %v10654
      %v10686 = vadd.f32 %v10291, %v10659
      %v10687 = vadd.f32 %v10296, %v10664
      %v10688 = vadd.f32 %v10301, %v10669
      %v10689 = vadd.f32 %v10306, %v10674
      %v10692 = vcombine.high %v9139, %v9139
      %v10694 = vunpack.c.l.s4 1983009808
      %v10695 = vunpack.c.0.s8 %v10694
      %v10696 = vlaneseq
      %v10697 = vshrl.u32 %v10696, 7
      %v10698 = vsub.s32 %v10695, %v10697
      %v10699 = vrot.slane %v9139, %v10698
      %v10701 = vunpack.c.l.s4 1983009808
      %v10702 = vunpack.c.0.s8 %v10701
      %v10703 = vlaneseq
      %v10704 = vshrl.u32 %v10703, 7
      %v10705 = vsub.s32 %v10702, %v10704
      %v10706 = vrot.slane %v10692, %v10705
      %v10707 = vcombine.high %v10699, %v10699
      %v10708 = vcombine.high %v10706, %v10706
      %v10710 = vunpack.c.l.s4 1983009808
      %v10711 = vunpack.c.0.s8 %v10710
      %v10712 = vlaneseq
      %v10713 = vshrl.u32 %v10712, 7
      %v10714 = vsub.s32 %v10711, %v10713
      %v10715 = vrot.slane %v9140, %v10714
      %v10716 = vcombine.low %v9194, %v9202
      %v10718 = vunpack.c.l.s4 1983009808
      %v10719 = vunpack.c.0.s8 %v10718
      %v10720 = vlaneseq
      %v10721 = vshrl.u32 %v10720, 7
      %v10722 = vsub.s32 %v10719, %v10721
      %v10723 = vrot.slane %v10716, %v10722
      %v10724 = vcombine.low %v10723, %v10341
      %v10725 = vcombine.low %v9210, %v9218
      %v10727 = vunpack.c.l.s4 1983009808
      %v10728 = vunpack.c.0.s8 %v10727
      %v10729 = vlaneseq
      %v10730 = vshrl.u32 %v10729, 7
      %v10731 = vsub.s32 %v10728, %v10730
      %v10732 = vrot.slane %v10725, %v10731
      %v10733 = vcombine.low %v10732, %v10358
      %v10734 = vcombine.low %v9242, %v9250
      %v10736 = vunpack.c.l.s4 1983009808
      %v10737 = vunpack.c.0.s8 %v10736
      %v10738 = vlaneseq
      %v10739 = vshrl.u32 %v10738, 7
      %v10740 = vsub.s32 %v10737, %v10739
      %v10741 = vrot.slane %v10734, %v10740
      %v10742 = vcombine.low %v10368, %v10741
      %v10743 = vcombine.low %v9258, %v9266
      %v10745 = vunpack.c.l.s4 1983009808
      %v10746 = vunpack.c.0.s8 %v10745
      %v10747 = vlaneseq
      %v10748 = vshrl.u32 %v10747, 7
      %v10749 = vsub.s32 %v10746, %v10748
      %v10750 = vrot.slane %v10743, %v10749
      %v10751 = vcombine.low %v10385, %v10750
      %v10752 = vcombine.low %v9290, %v9298
      %v10754 = vunpack.c.l.s4 1983009808
      %v10755 = vunpack.c.0.s8 %v10754
      %v10756 = vlaneseq
      %v10757 = vshrl.u32 %v10756, 7
      %v10758 = vsub.s32 %v10755, %v10757
      %v10759 = vrot.slane %v10752, %v10758
      %v10760 = vcombine.low %v10759, %v10426
      %v10761 = vcombine.low %v9306, %v9314
      %v10763 = vunpack.c.l.s4 1983009808
      %v10764 = vunpack.c.0.s8 %v10763
      %v10765 = vlaneseq
      %v10766 = vshrl.u32 %v10765, 7
      %v10767 = vsub.s32 %v10764, %v10766
      %v10768 = vrot.slane %v10761, %v10767
      %v10769 = vcombine.low %v10768, %v10443
      %v10770 = vcombine.low %v9338, %v9346
      %v10772 = vunpack.c.l.s4 1983009808
      %v10773 = vunpack.c.0.s8 %v10772
      %v10774 = vlaneseq
      %v10775 = vshrl.u32 %v10774, 7
      %v10776 = vsub.s32 %v10773, %v10775
      %v10777 = vrot.slane %v10770, %v10776
      %v10778 = vcombine.low %v10453, %v10777
      %v10779 = vcombine.low %v9354, %v9362
      %v10781 = vunpack.c.l.s4 1983009808
      %v10782 = vunpack.c.0.s8 %v10781
      %v10783 = vlaneseq
      %v10784 = vshrl.u32 %v10783, 7
      %v10785 = vsub.s32 %v10782, %v10784
      %v10786 = vrot.slane %v10779, %v10785
      %v10787 = vcombine.low %v10470, %v10786
      %v10788 = vcombine.low %v9386, %v9394
      %v10790 = vunpack.c.l.s4 1983009808
      %v10791 = vunpack.c.0.s8 %v10790
      %v10792 = vlaneseq
      %v10793 = vshrl.u32 %v10792, 7
      %v10794 = vsub.s32 %v10791, %v10793
      %v10795 = vrot.slane %v10788, %v10794
      %v10796 = vcombine.low %v10795, %v10511
      %v10797 = vcombine.low %v9402, %v10699
      %v10798 = vcombine.low %v10707, %v10706
      %v10800 = vunpack.c.l.s4 1983009808
      %v10801 = vunpack.c.0.s8 %v10800
      %v10802 = vlaneseq
      %v10803 = vshrl.u32 %v10802, 7
      %v10804 = vsub.s32 %v10801, %v10803
      %v10805 = vrot.slane %v10797, %v10804
      %v10807 = vunpack.c.l.s4 1983009808
      %v10808 = vunpack.c.0.s8 %v10807
      %v10809 = vlaneseq
      %v10810 = vshrl.u32 %v10809, 7
      %v10811 = vsub.s32 %v10808, %v10810
      %v10812 = vrot.slane %v10798, %v10811
      %v10813 = vcombine.low %v10805, %v10812
      %v10814 = vcombine.low %v10708, %v10715
      %v10816 = vunpack.c.l.s4 1983009808
      %v10817 = vunpack.c.0.s8 %v10816
      %v10818 = vlaneseq
      %v10819 = vshrl.u32 %v10818, 7
      %v10820 = vsub.s32 %v10817, %v10819
      %v10821 = vrot.slane %v10814, %v10820
      %v10822 = vsel %vm1556, %v10724, 0
      %v10824 = vsel %vm1556, %v10733, 0
      %v10826 = vsel %vm1556, %v10742, 0
      %v10828 = vsel %vm1556, %v10751, 0
      %v10830 = vsel %vm1556, %v10760, 0
      %v10832 = vsel %vm1556, %v10769, 0
      %v10834 = vsel %vm1556, %v10778, 0
      %v10836 = vsel %vm1556, %v10787, 0
      %v10838 = vsel %vm1556, %v10796, 0
      %v10840 = vsel %vm1556, %v10813, 0
      %v10842 = vsel %vm1556, %v10821, 0
      %10844 = vmatprep.subr.mxu0 0.0
      %10845 = vmatpush1.msra.mxu0 %v9112
      %10846 = vmatprep.subr.mxu0 0.0
      %10847 = vmatpush1.msra.mxu0 0.0
      %10848 = vmatprep.subr.mxu0 0.0
      %10849 = vmatpush1.msra.mxu0 0.0
      %10850 = vmatprep.subr.mxu0 0.0
      %10851 = vmatpush1.msra.mxu0 0.0
      %10852 = vmatprep.subr.mxu0 0.0
      %10853 = vmatpush1.msra.mxu0 0.0
      %10854 = vmatprep.subr.mxu0 0.0
      %10855 = vmatpush1.msra.mxu0 0.0
      %10856 = vmatprep.subr.mxu0 0.0
      %10857 = vmatpush1.msra.mxu0 0.0
      %10858 = vmatprep.subr.mxu0 0.0
      %10859 = vmatpush1.msra.mxu0 0.0
      %10860 = vmatprep.subr.mxu0 0.0
      %10861 = vmatpush1.msra.mxu0 0.0
      %10862 = vmatprep.subr.mxu0 0.0
      %10863 = vmatpush1.msra.mxu0 0.0
      %10864 = vmatprep.subr.mxu0 0.0
      %10865 = vmatpush1.msra.mxu0 0.0
      %10866 = vmatprep.subr.mxu0 0.0
      %10867 = vmatpush1.msra.mxu0 0.0
      %10868 = vmatprep.subr.mxu0 0.0
      %10869 = vmatpush1.msra.mxu0 0.0
      %10870 = vmatprep.subr.mxu0 0.0
      %10871 = vmatpush1.msra.mxu0 0.0
      %10872 = vmatprep.subr.mxu0 0.0
      %10873 = vmatpush1.msra.mxu0 0.0
      %10874 = vmatprep.subr.mxu0 0.0
      %10875 = vmatpush1.msra.mxu0 0.0
      %10876 = vmatprep.subr.mxu0 0.0
      %10877 = vmatpush1.msra.mxu0 0.0
      %10878 = vmatprep.subr.mxu0 0.0
      %10879 = vmatpush1.msra.mxu0 0.0
      %10880 = vmatprep.subr.mxu0 0.0
      %10881 = vmatpush1.msra.mxu0 0.0
      %10882 = vmatprep.subr.mxu0 0.0
      %10883 = vmatpush1.msra.mxu0 0.0
      %10884 = vmatprep.subr.mxu0 0.0
      %10885 = vmatpush1.msra.mxu0 0.0
      %10886 = vmatprep.subr.mxu0 0.0
      %10887 = vmatpush1.msra.mxu0 0.0
      %10888 = vmatprep.subr.mxu0 0.0
      %10889 = vmatpush1.msra.mxu0 0.0
      %10890 = vmatprep.subr.mxu0 0.0
      %10891 = vmatpush1.msra.mxu0 0.0
      %10892 = vmatprep.subr.mxu0 0.0
      %10893 = vmatpush1.msra.mxu0 0.0
      %10894 = vmatprep.subr.mxu0 0.0
      %10895 = vmatpush1.msra.mxu0 0.0
      %10896 = vmatprep.subr.mxu0 0.0
      %10897 = vmatpush1.msra.mxu0 0.0
      %10898 = vmatprep.subr.mxu0 0.0
      %10899 = vmatpush1.msra.mxu0 0.0
      %10900 = vmatprep.subr.mxu0 0.0
      %10901 = vmatpush1.msra.mxu0 0.0
      %10902 = vmatprep.subr.mxu0 0.0
      %10903 = vmatpush1.msra.mxu0 0.0
      %10904 = vmatprep.subr.mxu0 0.0
      %10905 = vmatpush1.msra.mxu0 0.0
      %10906 = vmatprep.subr.mxu0 0.0
      %10907 = vmatpush1.msra.mxu0 0.0
      %10908 = vmatprep.mubr.f32.mxu0 0.0
      %10909 = vmatmul.mubr.f32.gmra.mrb[0].mxu0 %v10822
      %v10910 = vpop.f32.mrb[0].mxu0
      %v10911 = vadd.f32 0.0, %v10910
      %v10912 = vpop.f32.mrb[0].mxu0
      %10913 = vmatprep.mubr.f32.mxu0 0.0
      %10914 = vmatmul.mubr.f32.gmra.mrb[0].mxu0 %v10824
      %v10915 = vpop.f32.mrb[0].mxu0
      %v10916 = vadd.f32 0.0, %v10915
      %v10917 = vpop.f32.mrb[0].mxu0
      %10918 = vmatprep.mubr.f32.mxu0 0.0
      %10919 = vmatmul.mubr.f32.gmra.mrb[0].mxu0 %v10826
      %v10920 = vpop.f32.mrb[0].mxu0
      %v10921 = vadd.f32 0.0, %v10920
      %v10922 = vpop.f32.mrb[0].mxu0
      %10923 = vmatprep.mubr.f32.mxu0 0.0
      %10924 = vmatmul.mubr.f32.gmra.mrb[0].mxu0 %v10828
      %v10925 = vpop.f32.mrb[0].mxu0
      %v10926 = vadd.f32 0.0, %v10925
      %v10927 = vpop.f32.mrb[0].mxu0
      %10928 = vmatprep.mubr.f32.mxu0 0.0
      %10929 = vmatmul.mubr.f32.gmra.mrb[0].mxu0 %v10531
      %v10930 = vpop.f32.mrb[0].mxu0
      %v10931 = vadd.f32 0.0, %v10930
      %v10932 = vpop.f32.mrb[0].mxu0
      %10933 = vmatprep.mubr.f32.mxu0 0.0
      %10934 = vmatmul.mubr.f32.gmra.mrb[0].mxu0 %v10830
      %v10935 = vpop.f32.mrb[0].mxu0
      %v10936 = vadd.f32 0.0, %v10935
      %v10937 = vpop.f32.mrb[0].mxu0
      %10938 = vmatprep.mubr.f32.mxu0 0.0
      %10939 = vmatmul.mubr.f32.gmra.mrb[0].mxu0 %v10832
      %v10940 = vpop.f32.mrb[0].mxu0
      %v10941 = vadd.f32 0.0, %v10940
      %v10942 = vpop.f32.mrb[0].mxu0
      %10943 = vmatprep.mubr.f32.mxu0 0.0
      %10944 = vmatmul.mubr.f32.gmra.mrb[0].mxu0 %v10834
      %v10945 = vpop.f32.mrb[0].mxu0
      %v10946 = vadd.f32 0.0, %v10945
      %v10947 = vpop.f32.mrb[0].mxu0
      %10948 = vmatprep.mubr.f32.mxu0 0.0
      %10949 = vmatmul.mubr.f32.gmra.mrb[0].mxu0 %v10836
      %v10950 = vpop.f32.mrb[0].mxu0
      %v10951 = vadd.f32 0.0, %v10950
      %v10952 = vpop.f32.mrb[0].mxu0
      %10953 = vmatprep.mubr.f32.mxu0 0.0
      %10954 = vmatmul.mubr.f32.gmra.mrb[0].mxu0 %v10541
      %v10955 = vpop.f32.mrb[0].mxu0
      %v10956 = vadd.f32 0.0, %v10955
      %v10957 = vpop.f32.mrb[0].mxu0
      %10958 = vmatprep.mubr.f32.mxu0 0.0
      %10959 = vmatmul.mubr.f32.gmra.mrb[0].mxu0 %v10838
      %v10960 = vpop.f32.mrb[0].mxu0
      %v10961 = vadd.f32 0.0, %v10960
      %v10962 = vpop.f32.mrb[0].mxu0
      %10963 = vmatprep.mubr.f32.mxu0 0.0
      %10964 = vmatmul.mubr.f32.gmra.mrb[0].mxu0 %v10840
      %v10965 = vpop.f32.mrb[0].mxu0
      %v10966 = vadd.f32 0.0, %v10965
      %v10967 = vpop.f32.mrb[0].mxu0
      %10968 = vmatprep.mubr.f32.mxu0 0.0
      %10969 = vmatmul.mubr.f32.gmra.mrb[0].mxu0 %v10842
      %v10970 = vpop.f32.mrb[0].mxu0
      %v10971 = vadd.f32 0.0, %v10970
      %v10972 = vpop.f32.mrb[0].mxu0
      %10973 = vdwg.mxu0
      %v10974 = vadd.f32 %v10677, %v10911
      %v10975 = vadd.f32 %v10678, %v10916
      %v10976 = vadd.f32 %v10679, %v10921
      %v10977 = vadd.f32 %v10680, %v10926
      %v10978 = vadd.f32 %v10681, %v10931
      %v10979 = vadd.f32 %v10682, %v10936
      %v10980 = vadd.f32 %v10683, %v10941
      %v10981 = vadd.f32 %v10684, %v10946
      %v10982 = vadd.f32 %v10685, %v10951
      %v10983 = vadd.f32 %v10686, %v10956
      %v10984 = vadd.f32 %v10687, %v10961
      %v10985 = vadd.f32 %v10688, %v10966
      %v10986 = vadd.f32 %v10689, %v10971
      %v10987 = vcombine.high %v10715, %v10715
      %v10988 = vrot.slane %v10699, 7
      %v10989 = vrot.slane %v10988, 2
      %v10990 = vrot.slane %v10707, 7
      %v10991 = vsel %vm831, %v10989, %v10990
      %v10992 = vrot.slane %v10990, 2
      %v10993 = vrot.slane %v10706, 7
      %v10994 = vsel %vm831, %v10992, %v10993
      %v10995 = vrot.slane %v10993, 2
      %v10996 = vrot.slane %v10708, 7
      %v10997 = vsel %vm831, %v10995, %v10996
      %v10998 = vrot.slane %v10996, 2
      %v10999 = vrot.slane %v10715, 7
      %v11000 = vsel %vm831, %v10998, %v10999
      %v11001 = vrot.slane %v10999, 2
      %v11002 = vrot.slane %v10987, 7
      %v11003 = vsel %vm831, %v11001, %v11002
      %v11004 = vcombine.low %v9432, %v9435
      %v11005 = vcombine.low %v9438, %v9441
      %v11007 = vunpack.c.l.s4 1983009808
      %v11008 = vunpack.c.0.s8 %v11007
      %v11009 = vlaneseq
      %v11010 = vshrl.u32 %v11009, 7
      %v11011 = vsub.s32 %v11008, %v11010
      %v11012 = vrot.slane %v11004, %v11011
      %v11014 = vunpack.c.l.s4 1983009808
      %v11015 = vunpack.c.0.s8 %v11014
      %v11016 = vlaneseq
      %v11017 = vshrl.u32 %v11016, 7
      %v11018 = vsub.s32 %v11015, %v11017
      %v11019 = vrot.slane %v11005, %v11018
      %v11020 = vcombine.low %v11012, %v11019
      %v11021 = vcombine.low %v9444, %v9448
      %v11022 = vcombine.low %v9451, %v9454
      %v11024 = vunpack.c.l.s4 1983009808
      %v11025 = vunpack.c.0.s8 %v11024
      %v11026 = vlaneseq
      %v11027 = vshrl.u32 %v11026, 7
      %v11028 = vsub.s32 %v11025, %v11027
      %v11029 = vrot.slane %v11021, %v11028
      %v11031 = vunpack.c.l.s4 1983009808
      %v11032 = vunpack.c.0.s8 %v11031
      %v11033 = vlaneseq
      %v11034 = vshrl.u32 %v11033, 7
      %v11035 = vsub.s32 %v11032, %v11034
      %v11036 = vrot.slane %v11022, %v11035
      %v11037 = vcombine.low %v11029, %v11036
      %v11038 = vcombine.low %v9457, %v9460
      %v11039 = vcombine.low %v9464, %v9467
      %v11041 = vunpack.c.l.s4 1983009808
      %v11042 = vunpack.c.0.s8 %v11041
      %v11043 = vlaneseq
      %v11044 = vshrl.u32 %v11043, 7
      %v11045 = vsub.s32 %v11042, %v11044
      %v11046 = vrot.slane %v11038, %v11045
      %v11048 = vunpack.c.l.s4 1983009808
      %v11049 = vunpack.c.0.s8 %v11048
      %v11050 = vlaneseq
      %v11051 = vshrl.u32 %v11050, 7
      %v11052 = vsub.s32 %v11049, %v11051
      %v11053 = vrot.slane %v11039, %v11052
      %v11054 = vcombine.low %v11046, %v11053
      %v11055 = vcombine.low %v9470, %v9473
      %v11056 = vcombine.low %v9476, %v9480
      %v11058 = vunpack.c.l.s4 1983009808
      %v11059 = vunpack.c.0.s8 %v11058
      %v11060 = vlaneseq
      %v11061 = vshrl.u32 %v11060, 7
      %v11062 = vsub.s32 %v11059, %v11061
      %v11063 = vrot.slane %v11055, %v11062
      %v11065 = vunpack.c.l.s4 1983009808
      %v11066 = vunpack.c.0.s8 %v11065
      %v11067 = vlaneseq
      %v11068 = vshrl.u32 %v11067, 7
      %v11069 = vsub.s32 %v11066, %v11068
      %v11070 = vrot.slane %v11056, %v11069
      %v11071 = vcombine.low %v11063, %v11070
      %v11072 = vcombine.low %v9483, %v9486
      %v11073 = vcombine.low %v9489, %v9492
      %v11075 = vunpack.c.l.s4 1983009808
      %v11076 = vunpack.c.0.s8 %v11075
      %v11077 = vlaneseq
      %v11078 = vshrl.u32 %v11077, 7
      %v11079 = vsub.s32 %v11076, %v11078
      %v11080 = vrot.slane %v11072, %v11079
      %v11082 = vunpack.c.l.s4 1983009808
      %v11083 = vunpack.c.0.s8 %v11082
      %v11084 = vlaneseq
      %v11085 = vshrl.u32 %v11084, 7
      %v11086 = vsub.s32 %v11083, %v11085
      %v11087 = vrot.slane %v11073, %v11086
      %v11088 = vcombine.low %v11080, %v11087
      %v11089 = vcombine.low %v9496, %v9499
      %v11090 = vcombine.low %v9502, %v9505
      %v11092 = vunpack.c.l.s4 1983009808
      %v11093 = vunpack.c.0.s8 %v11092
      %v11094 = vlaneseq
      %v11095 = vshrl.u32 %v11094, 7
      %v11096 = vsub.s32 %v11093, %v11095
      %v11097 = vrot.slane %v11089, %v11096
      %v11099 = vunpack.c.l.s4 1983009808
      %v11100 = vunpack.c.0.s8 %v11099
      %v11101 = vlaneseq
      %v11102 = vshrl.u32 %v11101, 7
      %v11103 = vsub.s32 %v11100, %v11102
      %v11104 = vrot.slane %v11090, %v11103
      %v11105 = vcombine.low %v11097, %v11104
      %v11106 = vcombine.low %v9508, %v9512
      %v11107 = vcombine.low %v9515, %v9518
      %v11109 = vunpack.c.l.s4 1983009808
      %v11110 = vunpack.c.0.s8 %v11109
      %v11111 = vlaneseq
      %v11112 = vshrl.u32 %v11111, 7
      %v11113 = vsub.s32 %v11110, %v11112
      %v11114 = vrot.slane %v11106, %v11113
      %v11116 = vunpack.c.l.s4 1983009808
      %v11117 = vunpack.c.0.s8 %v11116
      %v11118 = vlaneseq
      %v11119 = vshrl.u32 %v11118, 7
      %v11120 = vsub.s32 %v11117, %v11119
      %v11121 = vrot.slane %v11107, %v11120
      %v11122 = vcombine.low %v11114, %v11121
      %v11123 = vcombine.low %v9521, %v9524
      %v11124 = vcombine.low %v9528, %v9531
      %v11126 = vunpack.c.l.s4 1983009808
      %v11127 = vunpack.c.0.s8 %v11126
      %v11128 = vlaneseq
      %v11129 = vshrl.u32 %v11128, 7
      %v11130 = vsub.s32 %v11127, %v11129
      %v11131 = vrot.slane %v11123, %v11130
      %v11133 = vunpack.c.l.s4 1983009808
      %v11134 = vunpack.c.0.s8 %v11133
      %v11135 = vlaneseq
      %v11136 = vshrl.u32 %v11135, 7
      %v11137 = vsub.s32 %v11134, %v11136
      %v11138 = vrot.slane %v11124, %v11137
      %v11139 = vcombine.low %v11131, %v11138
      %v11140 = vcombine.low %v9534, %v9537
      %v11141 = vcombine.low %v9540, %v9544
      %v11143 = vunpack.c.l.s4 1983009808
      %v11144 = vunpack.c.0.s8 %v11143
      %v11145 = vlaneseq
      %v11146 = vshrl.u32 %v11145, 7
      %v11147 = vsub.s32 %v11144, %v11146
      %v11148 = vrot.slane %v11140, %v11147
      %v11150 = vunpack.c.l.s4 1983009808
      %v11151 = vunpack.c.0.s8 %v11150
      %v11152 = vlaneseq
      %v11153 = vshrl.u32 %v11152, 7
      %v11154 = vsub.s32 %v11151, %v11153
      %v11155 = vrot.slane %v11141, %v11154
      %v11156 = vcombine.low %v11148, %v11155
      %v11157 = vcombine.low %v9547, %v9550
      %v11158 = vcombine.low %v9553, %v9556
      %v11160 = vunpack.c.l.s4 1983009808
      %v11161 = vunpack.c.0.s8 %v11160
      %v11162 = vlaneseq
      %v11163 = vshrl.u32 %v11162, 7
      %v11164 = vsub.s32 %v11161, %v11163
      %v11165 = vrot.slane %v11157, %v11164
      %v11167 = vunpack.c.l.s4 1983009808
      %v11168 = vunpack.c.0.s8 %v11167
      %v11169 = vlaneseq
      %v11170 = vshrl.u32 %v11169, 7
      %v11171 = vsub.s32 %v11168, %v11170
      %v11172 = vrot.slane %v11158, %v11171
      %v11173 = vcombine.low %v11165, %v11172
      %v11174 = vcombine.low %v9560, %v9563
      %v11175 = vcombine.low %v9566, %v9569
      %v11177 = vunpack.c.l.s4 1983009808
      %v11178 = vunpack.c.0.s8 %v11177
      %v11179 = vlaneseq
      %v11180 = vshrl.u32 %v11179, 7
      %v11181 = vsub.s32 %v11178, %v11180
      %v11182 = vrot.slane %v11174, %v11181
      %v11184 = vunpack.c.l.s4 1983009808
      %v11185 = vunpack.c.0.s8 %v11184
      %v11186 = vlaneseq
      %v11187 = vshrl.u32 %v11186, 7
      %v11188 = vsub.s32 %v11185, %v11187
      %v11189 = vrot.slane %v11175, %v11188
      %v11190 = vcombine.low %v11182, %v11189
      %v11191 = vcombine.low %v9572, %v10991
      %v11192 = vcombine.low %v10994, %v10997
      %v11194 = vunpack.c.l.s4 1983009808
      %v11195 = vunpack.c.0.s8 %v11194
      %v11196 = vlaneseq
      %v11197 = vshrl.u32 %v11196, 7
      %v11198 = vsub.s32 %v11195, %v11197
      %v11199 = vrot.slane %v11191, %v11198
      %v11201 = vunpack.c.l.s4 1983009808
      %v11202 = vunpack.c.0.s8 %v11201
      %v11203 = vlaneseq
      %v11204 = vshrl.u32 %v11203, 7
      %v11205 = vsub.s32 %v11202, %v11204
      %v11206 = vrot.slane %v11192, %v11205
      %v11207 = vcombine.low %v11199, %v11206
      %v11208 = vcombine.low %v11000, %v11003
      %v11210 = vunpack.c.l.s4 1983009808
      %v11211 = vunpack.c.0.s8 %v11210
      %v11212 = vlaneseq
      %v11213 = vshrl.u32 %v11212, 7
      %v11214 = vsub.s32 %v11211, %v11213
      %v11215 = vrot.slane %v11208, %v11214
      %v11216 = vsel %vm1556, %v11020, 0
      %v11218 = vsel %vm1556, %v11037, 0
      %v11220 = vsel %vm1556, %v11054, 0
      %v11222 = vsel %vm1556, %v11071, 0
      %v11224 = vsel %vm1556, %v11088, 0
      %v11226 = vsel %vm1556, %v11105, 0
      %v11228 = vsel %vm1556, %v11122, 0
      %v11230 = vsel %vm1556, %v11139, 0
      %v11232 = vsel %vm1556, %v11156, 0
      %v11234 = vsel %vm1556, %v11173, 0
      %v11236 = vsel %vm1556, %v11190, 0
      %v11238 = vsel %vm1556, %v11207, 0
      %v11240 = vsel %vm1556, %v11215, 0
      %11242 = vmatprep.subr.mxu0 0.0
      %11243 = vmatpush1.msra.mxu0 %v9113
      %11244 = vmatprep.subr.mxu0 0.0
      %11245 = vmatpush1.msra.mxu0 0.0
      %11246 = vmatprep.subr.mxu0 0.0
      %11247 = vmatpush1.msra.mxu0 0.0
      %11248 = vmatprep.subr.mxu0 0.0
      %11249 = vmatpush1.msra.mxu0 0.0
      %11250 = vmatprep.subr.mxu0 0.0
      %11251 = vmatpush1.msra.mxu0 0.0
      %11252 = vmatprep.subr.mxu0 0.0
      %11253 = vmatpush1.msra.mxu0 0.0
      %11254 = vmatprep.subr.mxu0 0.0
      %11255 = vmatpush1.msra.mxu0 0.0
      %11256 = vmatprep.subr.mxu0 0.0
      %11257 = vmatpush1.msra.mxu0 0.0
      %11258 = vmatprep.subr.mxu0 0.0
      %11259 = vmatpush1.msra.mxu0 0.0
      %11260 = vmatprep.subr.mxu0 0.0
      %11261 = vmatpush1.msra.mxu0 0.0
      %11262 = vmatprep.subr.mxu0 0.0
      %11263 = vmatpush1.msra.mxu0 0.0
      %11264 = vmatprep.subr.mxu0 0.0
      %11265 = vmatpush1.msra.mxu0 0.0
      %11266 = vmatprep.subr.mxu0 0.0
      %11267 = vmatpush1.msra.mxu0 0.0
      %11268 = vmatprep.subr.mxu0 0.0
      %11269 = vmatpush1.msra.mxu0 0.0
      %11270 = vmatprep.subr.mxu0 0.0
      %11271 = vmatpush1.msra.mxu0 0.0
      %11272 = vmatprep.subr.mxu0 0.0
      %11273 = vmatpush1.msra.mxu0 0.0
      %11274 = vmatprep.subr.mxu0 0.0
      %11275 = vmatpush1.msra.mxu0 0.0
      %11276 = vmatprep.subr.mxu0 0.0
      %11277 = vmatpush1.msra.mxu0 0.0
      %11278 = vmatprep.subr.mxu0 0.0
      %11279 = vmatpush1.msra.mxu0 0.0
      %11280 = vmatprep.subr.mxu0 0.0
      %11281 = vmatpush1.msra.mxu0 0.0
      %11282 = vmatprep.subr.mxu0 0.0
      %11283 = vmatpush1.msra.mxu0 0.0
      %11284 = vmatprep.subr.mxu0 0.0
      %11285 = vmatpush1.msra.mxu0 0.0
      %11286 = vmatprep.subr.mxu0 0.0
      %11287 = vmatpush1.msra.mxu0 0.0
      %11288 = vmatprep.subr.mxu0 0.0
      %11289 = vmatpush1.msra.mxu0 0.0
      %11290 = vmatprep.subr.mxu0 0.0
      %11291 = vmatpush1.msra.mxu0 0.0
      %11292 = vmatprep.subr.mxu0 0.0
      %11293 = vmatpush1.msra.mxu0 0.0
      %11294 = vmatprep.subr.mxu0 0.0
      %11295 = vmatpush1.msra.mxu0 0.0
      %11296 = vmatprep.subr.mxu0 0.0
      %11297 = vmatpush1.msra.mxu0 0.0
      %11298 = vmatprep.subr.mxu0 0.0
      %11299 = vmatpush1.msra.mxu0 0.0
      %11300 = vmatprep.subr.mxu0 0.0
      %11301 = vmatpush1.msra.mxu0 0.0
      %11302 = vmatprep.subr.mxu0 0.0
      %11303 = vmatpush1.msra.mxu0 0.0
      %11304 = vmatprep.subr.mxu0 0.0
      %11305 = vmatpush1.msra.mxu0 0.0
      %11306 = vmatprep.mubr.f32.mxu0 0.0
      %11307 = vmatmul.mubr.f32.gmra.mrb[0].mxu0 %v11216
      %v11308 = vpop.f32.mrb[0].mxu0
      %v11309 = vadd.f32 0.0, %v11308
      %v11310 = vpop.f32.mrb[0].mxu0
      %11311 = vmatprep.mubr.f32.mxu0 0.0
      %11312 = vmatmul.mubr.f32.gmra.mrb[0].mxu0 %v11218
      %v11313 = vpop.f32.mrb[0].mxu0
      %v11314 = vadd.f32 0.0, %v11313
      %v11315 = vpop.f32.mrb[0].mxu0
      %11316 = vmatprep.mubr.f32.mxu0 0.0
      %11317 = vmatmul.mubr.f32.gmra.mrb[0].mxu0 %v11220
      %v11318 = vpop.f32.mrb[0].mxu0
      %v11319 = vadd.f32 0.0, %v11318
      %v11320 = vpop.f32.mrb[0].mxu0
      %11321 = vmatprep.mubr.f32.mxu0 0.0
      %11322 = vmatmul.mubr.f32.gmra.mrb[0].mxu0 %v11222
      %v11323 = vpop.f32.mrb[0].mxu0
      %v11324 = vadd.f32 0.0, %v11323
      %v11325 = vpop.f32.mrb[0].mxu0
      %11326 = vmatprep.mubr.f32.mxu0 0.0
      %11327 = vmatmul.mubr.f32.gmra.mrb[0].mxu0 %v11224
      %v11328 = vpop.f32.mrb[0].mxu0
      %v11329 = vadd.f32 0.0, %v11328
      %v11330 = vpop.f32.mrb[0].mxu0
      %11331 = vmatprep.mubr.f32.mxu0 0.0
      %11332 = vmatmul.mubr.f32.gmra.mrb[0].mxu0 %v11226
      %v11333 = vpop.f32.mrb[0].mxu0
      %v11334 = vadd.f32 0.0, %v11333
      %v11335 = vpop.f32.mrb[0].mxu0
      %11336 = vmatprep.mubr.f32.mxu0 0.0
      %11337 = vmatmul.mubr.f32.gmra.mrb[0].mxu0 %v11228
      %v11338 = vpop.f32.mrb[0].mxu0
      %v11339 = vadd.f32 0.0, %v11338
      %v11340 = vpop.f32.mrb[0].mxu0
      %11341 = vmatprep.mubr.f32.mxu0 0.0
      %11342 = vmatmul.mubr.f32.gmra.mrb[0].mxu0 %v11230
      %v11343 = vpop.f32.mrb[0].mxu0
      %v11344 = vadd.f32 0.0, %v11343
      %v11345 = vpop.f32.mrb[0].mxu0
      %11346 = vmatprep.mubr.f32.mxu0 0.0
      %11347 = vmatmul.mubr.f32.gmra.mrb[0].mxu0 %v11232
      %v11348 = vpop.f32.mrb[0].mxu0
      %v11349 = vadd.f32 0.0, %v11348
      %v11350 = vpop.f32.mrb[0].mxu0
      %11351 = vmatprep.mubr.f32.mxu0 0.0
      %11352 = vmatmul.mubr.f32.gmra.mrb[0].mxu0 %v11234
      %v11353 = vpop.f32.mrb[0].mxu0
      %v11354 = vadd.f32 0.0, %v11353
      %v11355 = vpop.f32.mrb[0].mxu0
      %11356 = vmatprep.mubr.f32.mxu0 0.0
      %11357 = vmatmul.mubr.f32.gmra.mrb[0].mxu0 %v11236
      %v11358 = vpop.f32.mrb[0].mxu0
      %v11359 = vadd.f32 0.0, %v11358
      %v11360 = vpop.f32.mrb[0].mxu0
      %11361 = vmatprep.mubr.f32.mxu0 0.0
      %11362 = vmatmul.mubr.f32.gmra.mrb[0].mxu0 %v11238
      %v11363 = vpop.f32.mrb[0].mxu0
      %v11364 = vadd.f32 0.0, %v11363
      %v11365 = vpop.f32.mrb[0].mxu0
      %11366 = vmatprep.mubr.f32.mxu0 0.0
      %11367 = vmatmul.mubr.f32.gmra.mrb[0].mxu0 %v11240
      %v11368 = vpop.f32.mrb[0].mxu0
      %v11369 = vadd.f32 0.0, %v11368
      %v11370 = vpop.f32.mrb[0].mxu0
      %11371 = vdwg.mxu0
      %v11372 = vadd.f32 %v10974, %v11309
      %v11373 = vadd.f32 %v10975, %v11314
      %v11374 = vadd.f32 %v10976, %v11319
      %v11375 = vadd.f32 %v10977, %v11324
      %v11376 = vadd.f32 %v10978, %v11329
      %v11377 = vadd.f32 %v10979, %v11334
      %v11378 = vadd.f32 %v10980, %v11339
      %v11379 = vadd.f32 %v10981, %v11344
      %v11380 = vadd.f32 %v10982, %v11349
      %v11381 = vadd.f32 %v10983, %v11354
      %v11382 = vadd.f32 %v10984, %v11359
      %v11383 = vadd.f32 %v10985, %v11364
      %v11384 = vadd.f32 %v10986, %v11369
      %v11385 = vcombine.low %v9973, %v9983
      %v11386 = vcombine.low %v9404, %v9226
      %v11388 = vunpack.c.l.s4 1983009808
      %v11389 = vunpack.c.0.s8 %v11388
      %v11390 = vlaneseq
      %v11391 = vshrl.u32 %v11390, 7
      %v11392 = vsub.s32 %v11389, %v11391
      %v11393 = vrot.slane %v11386, %v11392
      %v11394 = vcombine.low %v11393, %v10000
      %v11395 = vcombine.low %v9234, %v9405
      %v11397 = vunpack.c.l.s4 1983009808
      %v11398 = vunpack.c.0.s8 %v11397
      %v11399 = vlaneseq
      %v11400 = vshrl.u32 %v11399, 7
      %v11401 = vsub.s32 %v11398, %v11400
      %v11402 = vrot.slane %v11395, %v11401
      %v11403 = vcombine.low %v11402, %v10017
      %v11404 = vcombine.low %v9406, %v9274
      %v11406 = vunpack.c.l.s4 1983009808
      %v11407 = vunpack.c.0.s8 %v11406
      %v11408 = vlaneseq
      %v11409 = vshrl.u32 %v11408, 7
      %v11410 = vsub.s32 %v11407, %v11409
      %v11411 = vrot.slane %v11404, %v11410
      %v11412 = vcombine.low %v10024, %v11411
      %v11413 = vcombine.low %v9282, %v9407
      %v11415 = vunpack.c.l.s4 1983009808
      %v11416 = vunpack.c.0.s8 %v11415
      %v11417 = vlaneseq
      %v11418 = vshrl.u32 %v11417, 7
      %v11419 = vsub.s32 %v11416, %v11418
      %v11420 = vrot.slane %v11413, %v11419
      %v11421 = vcombine.low %v10041, %v11420
      %v11422 = vcombine.low %v10058, %v10068
      %v11423 = vcombine.low %v9408, %v9322
      %v11425 = vunpack.c.l.s4 1983009808
      %v11426 = vunpack.c.0.s8 %v11425
      %v11427 = vlaneseq
      %v11428 = vshrl.u32 %v11427, 7
      %v11429 = vsub.s32 %v11426, %v11428
      %v11430 = vrot.slane %v11423, %v11429
      %v11431 = vcombine.low %v11430, %v10085
      %v11432 = vcombine.low %v9330, %v9409
      %v11434 = vunpack.c.l.s4 1983009808
      %v11435 = vunpack.c.0.s8 %v11434
      %v11436 = vlaneseq
      %v11437 = vshrl.u32 %v11436, 7
      %v11438 = vsub.s32 %v11435, %v11437
      %v11439 = vrot.slane %v11432, %v11438
      %v11440 = vcombine.low %v11439, %v10102
      %v11441 = vcombine.low %v9410, %v9370
      %v11443 = vunpack.c.l.s4 1983009808
      %v11444 = vunpack.c.0.s8 %v11443
      %v11445 = vlaneseq
      %v11446 = vshrl.u32 %v11445, 7
      %v11447 = vsub.s32 %v11444, %v11446
      %v11448 = vrot.slane %v11441, %v11447
      %v11449 = vcombine.low %v10109, %v11448
      %v11450 = vcombine.low %v9378, %v9411
      %v11452 = vunpack.c.l.s4 1983009808
      %v11453 = vunpack.c.0.s8 %v11452
      %v11454 = vlaneseq
      %v11455 = vshrl.u32 %v11454, 7
      %v11456 = vsub.s32 %v11453, %v11455
      %v11457 = vrot.slane %v11450, %v11456
      %v11458 = vcombine.low %v10126, %v11457
      %v11459 = vcombine.low %v10143, %v10152
      %v11460 = vcombine.low %v9412, %v10707
      %v11461 = vcombine.low %v10706, %v10708
      %v11463 = vunpack.c.l.s4 1983009808
      %v11464 = vunpack.c.0.s8 %v11463
      %v11465 = vlaneseq
      %v11466 = vshrl.u32 %v11465, 7
      %v11467 = vsub.s32 %v11464, %v11466
      %v11468 = vrot.slane %v11460, %v11467
      %v11470 = vunpack.c.l.s4 1983009808
      %v11471 = vunpack.c.0.s8 %v11470
      %v11472 = vlaneseq
      %v11473 = vshrl.u32 %v11472, 7
      %v11474 = vsub.s32 %v11471, %v11473
      %v11475 = vrot.slane %v11461, %v11474
      %v11476 = vcombine.low %v11468, %v11475
      %v11477 = vcombine.low %v10715, %v10987
      %v11479 = vunpack.c.l.s4 1983009808
      %v11480 = vunpack.c.0.s8 %v11479
      %v11481 = vlaneseq
      %v11482 = vshrl.u32 %v11481, 7
      %v11483 = vsub.s32 %v11480, %v11482
      %v11484 = vrot.slane %v11477, %v11483
      %v11485 = vsel %vm1556, %v11385, 0
      %v11487 = vsel %vm1556, %v11394, 0
      %v11489 = vsel %vm1556, %v11403, 0
      %v11491 = vsel %vm1556, %v11412, 0
      %v11493 = vsel %vm1556, %v11421, 0
      %v11495 = vsel %vm1556, %v11422, 0
      %v11497 = vsel %vm1556, %v11431, 0
      %v11499 = vsel %vm1556, %v11440, 0
      %v11501 = vsel %vm1556, %v11449, 0
      %v11503 = vsel %vm1556, %v11458, 0
      %v11505 = vsel %vm1556, %v11459, 0
      %v11507 = vsel %vm1556, %v11476, 0
      %v11509 = vsel %vm1556, %v11484, 0
      %11511 = vmatprep.subr.mxu0 0.0
      %11512 = vmatpush1.msra.mxu0 %v9114
      %11513 = vmatprep.subr.mxu0 0.0
      %11514 = vmatpush1.msra.mxu0 0.0
      %11515 = vmatprep.subr.mxu0 0.0
      %11516 = vmatpush1.msra.mxu0 0.0
      %11517 = vmatprep.subr.mxu0 0.0
      %11518 = vmatpush1.msra.mxu0 0.0
      %11519 = vmatprep.subr.mxu0 0.0
      %11520 = vmatpush1.msra.mxu0 0.0
      %11521 = vmatprep.subr.mxu0 0.0
      %11522 = vmatpush1.msra.mxu0 0.0
      %11523 = vmatprep.subr.mxu0 0.0
      %11524 = vmatpush1.msra.mxu0 0.0
      %11525 = vmatprep.subr.mxu0 0.0
      %11526 = vmatpush1.msra.mxu0 0.0
      %11527 = vmatprep.subr.mxu0 0.0
      %11528 = vmatpush1.msra.mxu0 0.0
      %11529 = vmatprep.subr.mxu0 0.0
      %11530 = vmatpush1.msra.mxu0 0.0
      %11531 = vmatprep.subr.mxu0 0.0
      %11532 = vmatpush1.msra.mxu0 0.0
      %11533 = vmatprep.subr.mxu0 0.0
      %11534 = vmatpush1.msra.mxu0 0.0
      %11535 = vmatprep.subr.mxu0 0.0
      %11536 = vmatpush1.msra.mxu0 0.0
      %11537 = vmatprep.subr.mxu0 0.0
      %11538 = vmatpush1.msra.mxu0 0.0
      %11539 = vmatprep.subr.mxu0 0.0
      %11540 = vmatpush1.msra.mxu0 0.0
      %11541 = vmatprep.subr.mxu0 0.0
      %11542 = vmatpush1.msra.mxu0 0.0
      %11543 = vmatprep.subr.mxu0 0.0
      %11544 = vmatpush1.msra.mxu0 0.0
      %11545 = vmatprep.subr.mxu0 0.0
      %11546 = vmatpush1.msra.mxu0 0.0
      %11547 = vmatprep.subr.mxu0 0.0
      %11548 = vmatpush1.msra.mxu0 0.0
      %11549 = vmatprep.subr.mxu0 0.0
      %11550 = vmatpush1.msra.mxu0 0.0
      %11551 = vmatprep.subr.mxu0 0.0
      %11552 = vmatpush1.msra.mxu0 0.0
      %11553 = vmatprep.subr.mxu0 0.0
      %11554 = vmatpush1.msra.mxu0 0.0
      %11555 = vmatprep.subr.mxu0 0.0
      %11556 = vmatpush1.msra.mxu0 0.0
      %11557 = vmatprep.subr.mxu0 0.0
      %11558 = vmatpush1.msra.mxu0 0.0
      %11559 = vmatprep.subr.mxu0 0.0
      %11560 = vmatpush1.msra.mxu0 0.0
      %11561 = vmatprep.subr.mxu0 0.0
      %11562 = vmatpush1.msra.mxu0 0.0
      %11563 = vmatprep.subr.mxu0 0.0
      %11564 = vmatpush1.msra.mxu0 0.0
      %11565 = vmatprep.subr.mxu0 0.0
      %11566 = vmatpush1.msra.mxu0 0.0
      %11567 = vmatprep.subr.mxu0 0.0
      %11568 = vmatpush1.msra.mxu0 0.0
      %11569 = vmatprep.subr.mxu0 0.0
      %11570 = vmatpush1.msra.mxu0 0.0
      %11571 = vmatprep.subr.mxu0 0.0
      %11572 = vmatpush1.msra.mxu0 0.0
      %11573 = vmatprep.subr.mxu0 0.0
      %11574 = vmatpush1.msra.mxu0 0.0
      %11575 = vmatprep.mubr.f32.mxu0 0.0
      %11576 = vmatmul.mubr.f32.gmra.mrb[0].mxu0 %v11485
      %v11577 = vpop.f32.mrb[0].mxu0
      %v11578 = vadd.f32 0.0, %v11577
      %v11579 = vpop.f32.mrb[0].mxu0
      %11580 = vmatprep.mubr.f32.mxu0 0.0
      %11581 = vmatmul.mubr.f32.gmra.mrb[0].mxu0 %v11487
      %v11582 = vpop.f32.mrb[0].mxu0
      %v11583 = vadd.f32 0.0, %v11582
      %v11584 = vpop.f32.mrb[0].mxu0
      %11585 = vmatprep.mubr.f32.mxu0 0.0
      %11586 = vmatmul.mubr.f32.gmra.mrb[0].mxu0 %v11489
      %v11587 = vpop.f32.mrb[0].mxu0
      %v11588 = vadd.f32 0.0, %v11587
      %v11589 = vpop.f32.mrb[0].mxu0
      %11590 = vmatprep.mubr.f32.mxu0 0.0
      %11591 = vmatmul.mubr.f32.gmra.mrb[0].mxu0 %v11491
      %v11592 = vpop.f32.mrb[0].mxu0
      %v11593 = vadd.f32 0.0, %v11592
      %v11594 = vpop.f32.mrb[0].mxu0
      %11595 = vmatprep.mubr.f32.mxu0 0.0
      %11596 = vmatmul.mubr.f32.gmra.mrb[0].mxu0 %v11493
      %v11597 = vpop.f32.mrb[0].mxu0
      %v11598 = vadd.f32 0.0, %v11597
      %v11599 = vpop.f32.mrb[0].mxu0
      %11600 = vmatprep.mubr.f32.mxu0 0.0
      %11601 = vmatmul.mubr.f32.gmra.mrb[0].mxu0 %v11495
      %v11602 = vpop.f32.mrb[0].mxu0
      %v11603 = vadd.f32 0.0, %v11602
      %v11604 = vpop.f32.mrb[0].mxu0
      %11605 = vmatprep.mubr.f32.mxu0 0.0
      %11606 = vmatmul.mubr.f32.gmra.mrb[0].mxu0 %v11497
      %v11607 = vpop.f32.mrb[0].mxu0
      %v11608 = vadd.f32 0.0, %v11607
      %v11609 = vpop.f32.mrb[0].mxu0
      %11610 = vmatprep.mubr.f32.mxu0 0.0
      %11611 = vmatmul.mubr.f32.gmra.mrb[0].mxu0 %v11499
      %v11612 = vpop.f32.mrb[0].mxu0
      %v11613 = vadd.f32 0.0, %v11612
      %v11614 = vpop.f32.mrb[0].mxu0
      %11615 = vmatprep.mubr.f32.mxu0 0.0
      %11616 = vmatmul.mubr.f32.gmra.mrb[0].mxu0 %v11501
      %v11617 = vpop.f32.mrb[0].mxu0
      %v11618 = vadd.f32 0.0, %v11617
      %v11619 = vpop.f32.mrb[0].mxu0
      %11620 = vmatprep.mubr.f32.mxu0 0.0
      %11621 = vmatmul.mubr.f32.gmra.mrb[0].mxu0 %v11503
      %v11622 = vpop.f32.mrb[0].mxu0
      %v11623 = vadd.f32 0.0, %v11622
      %v11624 = vpop.f32.mrb[0].mxu0
      %11625 = vmatprep.mubr.f32.mxu0 0.0
      %11626 = vmatmul.mubr.f32.gmra.mrb[0].mxu0 %v11505
      %v11627 = vpop.f32.mrb[0].mxu0
      %v11628 = vadd.f32 0.0, %v11627
      %v11629 = vpop.f32.mrb[0].mxu0
      %11630 = vmatprep.mubr.f32.mxu0 0.0
      %11631 = vmatmul.mubr.f32.gmra.mrb[0].mxu0 %v11507
      %v11632 = vpop.f32.mrb[0].mxu0
      %v11633 = vadd.f32 0.0, %v11632
      %v11634 = vpop.f32.mrb[0].mxu0
      %11635 = vmatprep.mubr.f32.mxu0 0.0
      %11636 = vmatmul.mubr.f32.gmra.mrb[0].mxu0 %v11509
      %v11637 = vpop.f32.mrb[0].mxu0
      %v11638 = vadd.f32 0.0, %v11637
      %v11639 = vpop.f32.mrb[0].mxu0
      %11640 = vdwg.mxu0
      %v11641 = vadd.f32 %v11372, %v11578
      %v11642 = vadd.f32 %v11373, %v11583
      %v11643 = vadd.f32 %v11374, %v11588
      %v11644 = vadd.f32 %v11375, %v11593
      %v11645 = vadd.f32 %v11376, %v11598
      %v11646 = vadd.f32 %v11377, %v11603
      %v11647 = vadd.f32 %v11378, %v11608
      %v11648 = vadd.f32 %v11379, %v11613
      %v11649 = vadd.f32 %v11380, %v11618
      %v11650 = vadd.f32 %v11381, %v11623
      %v11651 = vadd.f32 %v11382, %v11628
      %v11652 = vadd.f32 %v11383, %v11633
      %v11653 = vadd.f32 %v11384, %v11638
      %v11656 = vcombine.high %v9141, %v9141
      %v11658 = vunpack.c.l.s4 1983009808
      %v11659 = vunpack.c.0.s8 %v11658
      %v11660 = vlaneseq
      %v11661 = vshrl.u32 %v11660, 7
      %v11662 = vsub.s32 %v11659, %v11661
      %v11663 = vrot.slane %v9141, %v11662
      %v11665 = vunpack.c.l.s4 1983009808
      %v11666 = vunpack.c.0.s8 %v11665
      %v11667 = vlaneseq
      %v11668 = vshrl.u32 %v11667, 7
      %v11669 = vsub.s32 %v11666, %v11668
      %v11670 = vrot.slane %v11656, %v11669
      %v11671 = vcombine.high %v11663, %v11663
      %v11672 = vcombine.high %v11670, %v11670
      %v11674 = vunpack.c.l.s4 1983009808
      %v11675 = vunpack.c.0.s8 %v11674
      %v11676 = vlaneseq
      %v11677 = vshrl.u32 %v11676, 7
      %v11678 = vsub.s32 %v11675, %v11677
      %v11679 = vrot.slane %v9142, %v11678
      %v11680 = vcombine.low %v9990, %v10000
      %v11681 = vcombine.low %v10007, %v10017
      %v11682 = vcombine.low %v10024, %v10034
      %v11683 = vcombine.low %v10041, %v10051
      %v11684 = vcombine.low %v10075, %v10085
      %v11685 = vcombine.low %v10092, %v10102
      %v11686 = vcombine.low %v10109, %v10119
      %v11687 = vcombine.low %v10126, %v10136
      %v11688 = vcombine.low %v10699, %v10707
      %v11690 = vunpack.c.l.s4 1983009808
      %v11691 = vunpack.c.0.s8 %v11690
      %v11692 = vlaneseq
      %v11693 = vshrl.u32 %v11692, 7
      %v11694 = vsub.s32 %v11691, %v11693
      %v11695 = vrot.slane %v11688, %v11694
      %v11696 = vcombine.low %v11695, %v11475
      %v11697 = vcombine.low %v10715, %v11663
      %v11698 = vcombine.low %v11671, %v11670
      %v11700 = vunpack.c.l.s4 1983009808
      %v11701 = vunpack.c.0.s8 %v11700
      %v11702 = vlaneseq
      %v11703 = vshrl.u32 %v11702, 7
      %v11704 = vsub.s32 %v11701, %v11703
      %v11705 = vrot.slane %v11697, %v11704
      %v11707 = vunpack.c.l.s4 1983009808
      %v11708 = vunpack.c.0.s8 %v11707
      %v11709 = vlaneseq
      %v11710 = vshrl.u32 %v11709, 7
      %v11711 = vsub.s32 %v11708, %v11710
      %v11712 = vrot.slane %v11698, %v11711
      %v11713 = vcombine.low %v11705, %v11712
      %v11714 = vcombine.low %v11672, %v11679
      %v11716 = vunpack.c.l.s4 1983009808
      %v11717 = vunpack.c.0.s8 %v11716
      %v11718 = vlaneseq
      %v11719 = vshrl.u32 %v11718, 7
      %v11720 = vsub.s32 %v11717, %v11719
      %v11721 = vrot.slane %v11714, %v11720
      %v11722 = vsel %vm1556, %v11680, 0
      %v11724 = vsel %vm1556, %v11681, 0
      %v11726 = vsel %vm1556, %v11682, 0
      %v11728 = vsel %vm1556, %v11683, 0
      %v11730 = vsel %vm1556, %v11684, 0
      %v11732 = vsel %vm1556, %v11685, 0
      %v11734 = vsel %vm1556, %v11686, 0
      %v11736 = vsel %vm1556, %v11687, 0
      %v11738 = vsel %vm1556, %v11696, 0
      %v11740 = vsel %vm1556, %v11713, 0
      %v11742 = vsel %vm1556, %v11721, 0
      %11744 = vmatprep.subr.mxu0 0.0
      %11745 = vmatpush1.msra.mxu0 %v9115
      %11746 = vmatprep.subr.mxu0 0.0
      %11747 = vmatpush1.msra.mxu0 0.0
      %11748 = vmatprep.subr.mxu0 0.0
      %11749 = vmatpush1.msra.mxu0 0.0
      %11750 = vmatprep.subr.mxu0 0.0
      %11751 = vmatpush1.msra.mxu0 0.0
      %11752 = vmatprep.subr.mxu0 0.0
      %11753 = vmatpush1.msra.mxu0 0.0
      %11754 = vmatprep.subr.mxu0 0.0
      %11755 = vmatpush1.msra.mxu0 0.0
      %11756 = vmatprep.subr.mxu0 0.0
      %11757 = vmatpush1.msra.mxu0 0.0
      %11758 = vmatprep.subr.mxu0 0.0
      %11759 = vmatpush1.msra.mxu0 0.0
      %11760 = vmatprep.subr.mxu0 0.0
      %11761 = vmatpush1.msra.mxu0 0.0
      %11762 = vmatprep.subr.mxu0 0.0
      %11763 = vmatpush1.msra.mxu0 0.0
      %11764 = vmatprep.subr.mxu0 0.0
      %11765 = vmatpush1.msra.mxu0 0.0
      %11766 = vmatprep.subr.mxu0 0.0
      %11767 = vmatpush1.msra.mxu0 0.0
      %11768 = vmatprep.subr.mxu0 0.0
      %11769 = vmatpush1.msra.mxu0 0.0
      %11770 = vmatprep.subr.mxu0 0.0
      %11771 = vmatpush1.msra.mxu0 0.0
      %11772 = vmatprep.subr.mxu0 0.0
      %11773 = vmatpush1.msra.mxu0 0.0
      %11774 = vmatprep.subr.mxu0 0.0
      %11775 = vmatpush1.msra.mxu0 0.0
      %11776 = vmatprep.subr.mxu0 0.0
      %11777 = vmatpush1.msra.mxu0 0.0
      %11778 = vmatprep.subr.mxu0 0.0
      %11779 = vmatpush1.msra.mxu0 0.0
      %11780 = vmatprep.subr.mxu0 0.0
      %11781 = vmatpush1.msra.mxu0 0.0
      %11782 = vmatprep.subr.mxu0 0.0
      %11783 = vmatpush1.msra.mxu0 0.0
      %11784 = vmatprep.subr.mxu0 0.0
      %11785 = vmatpush1.msra.mxu0 0.0
      %11786 = vmatprep.subr.mxu0 0.0
      %11787 = vmatpush1.msra.mxu0 0.0
      %11788 = vmatprep.subr.mxu0 0.0
      %11789 = vmatpush1.msra.mxu0 0.0
      %11790 = vmatprep.subr.mxu0 0.0
      %11791 = vmatpush1.msra.mxu0 0.0
      %11792 = vmatprep.subr.mxu0 0.0
      %11793 = vmatpush1.msra.mxu0 0.0
      %11794 = vmatprep.subr.mxu0 0.0
      %11795 = vmatpush1.msra.mxu0 0.0
      %11796 = vmatprep.subr.mxu0 0.0
      %11797 = vmatpush1.msra.mxu0 0.0
      %11798 = vmatprep.subr.mxu0 0.0
      %11799 = vmatpush1.msra.mxu0 0.0
      %11800 = vmatprep.subr.mxu0 0.0
      %11801 = vmatpush1.msra.mxu0 0.0
      %11802 = vmatprep.subr.mxu0 0.0
      %11803 = vmatpush1.msra.mxu0 0.0
      %11804 = vmatprep.subr.mxu0 0.0
      %11805 = vmatpush1.msra.mxu0 0.0
      %11806 = vmatprep.subr.mxu0 0.0
      %11807 = vmatpush1.msra.mxu0 0.0
      %11808 = vmatprep.mubr.f32.mxu0 0.0
      %11809 = vmatmul.mubr.f32.gmra.mrb[0].mxu0 %v11722
      %v11810 = vpop.f32.mrb[0].mxu0
      %v11811 = vadd.f32 0.0, %v11810
      %v11812 = vpop.f32.mrb[0].mxu0
      %11813 = vmatprep.mubr.f32.mxu0 0.0
      %11814 = vmatmul.mubr.f32.gmra.mrb[0].mxu0 %v11724
      %v11815 = vpop.f32.mrb[0].mxu0
      %v11816 = vadd.f32 0.0, %v11815
      %v11817 = vpop.f32.mrb[0].mxu0
      %11818 = vmatprep.mubr.f32.mxu0 0.0
      %11819 = vmatmul.mubr.f32.gmra.mrb[0].mxu0 %v11726
      %v11820 = vpop.f32.mrb[0].mxu0
      %v11821 = vadd.f32 0.0, %v11820
      %v11822 = vpop.f32.mrb[0].mxu0
      %11823 = vmatprep.mubr.f32.mxu0 0.0
      %11824 = vmatmul.mubr.f32.gmra.mrb[0].mxu0 %v11728
      %v11825 = vpop.f32.mrb[0].mxu0
      %v11826 = vadd.f32 0.0, %v11825
      %v11827 = vpop.f32.mrb[0].mxu0
      %11828 = vmatprep.mubr.f32.mxu0 0.0
      %11829 = vmatmul.mubr.f32.gmra.mrb[0].mxu0 %v11495
      %v11830 = vpop.f32.mrb[0].mxu0
      %v11831 = vadd.f32 0.0, %v11830
      %v11832 = vpop.f32.mrb[0].mxu0
      %11833 = vmatprep.mubr.f32.mxu0 0.0
      %11834 = vmatmul.mubr.f32.gmra.mrb[0].mxu0 %v11730
      %v11835 = vpop.f32.mrb[0].mxu0
      %v11836 = vadd.f32 0.0, %v11835
      %v11837 = vpop.f32.mrb[0].mxu0
      %11838 = vmatprep.mubr.f32.mxu0 0.0
      %11839 = vmatmul.mubr.f32.gmra.mrb[0].mxu0 %v11732
      %v11840 = vpop.f32.mrb[0].mxu0
      %v11841 = vadd.f32 0.0, %v11840
      %v11842 = vpop.f32.mrb[0].mxu0
      %11843 = vmatprep.mubr.f32.mxu0 0.0
      %11844 = vmatmul.mubr.f32.gmra.mrb[0].mxu0 %v11734
      %v11845 = vpop.f32.mrb[0].mxu0
      %v11846 = vadd.f32 0.0, %v11845
      %v11847 = vpop.f32.mrb[0].mxu0
      %11848 = vmatprep.mubr.f32.mxu0 0.0
      %11849 = vmatmul.mubr.f32.gmra.mrb[0].mxu0 %v11736
      %v11850 = vpop.f32.mrb[0].mxu0
      %v11851 = vadd.f32 0.0, %v11850
      %v11852 = vpop.f32.mrb[0].mxu0
      %11853 = vmatprep.mubr.f32.mxu0 0.0
      %11854 = vmatmul.mubr.f32.gmra.mrb[0].mxu0 %v11505
      %v11855 = vpop.f32.mrb[0].mxu0
      %v11856 = vadd.f32 0.0, %v11855
      %v11857 = vpop.f32.mrb[0].mxu0
      %11858 = vmatprep.mubr.f32.mxu0 0.0
      %11859 = vmatmul.mubr.f32.gmra.mrb[0].mxu0 %v11738
      %v11860 = vpop.f32.mrb[0].mxu0
      %v11861 = vadd.f32 0.0, %v11860
      %v11862 = vpop.f32.mrb[0].mxu0
      %11863 = vmatprep.mubr.f32.mxu0 0.0
      %11864 = vmatmul.mubr.f32.gmra.mrb[0].mxu0 %v11740
      %v11865 = vpop.f32.mrb[0].mxu0
      %v11866 = vadd.f32 0.0, %v11865
      %v11867 = vpop.f32.mrb[0].mxu0
      %11868 = vmatprep.mubr.f32.mxu0 0.0
      %11869 = vmatmul.mubr.f32.gmra.mrb[0].mxu0 %v11742
      %v11870 = vpop.f32.mrb[0].mxu0
      %v11871 = vadd.f32 0.0, %v11870
      %v11872 = vpop.f32.mrb[0].mxu0
      %11873 = vdwg.mxu0
      %v11874 = vadd.f32 %v11641, %v11811
      %v11875 = vadd.f32 %v11642, %v11816
      %v11876 = vadd.f32 %v11643, %v11821
      %v11877 = vadd.f32 %v11644, %v11826
      %v11878 = vadd.f32 %v11645, %v11831
      %v11879 = vadd.f32 %v11646, %v11836
      %v11880 = vadd.f32 %v11647, %v11841
      %v11881 = vadd.f32 %v11648, %v11846
      %v11882 = vadd.f32 %v11649, %v11851
      %v11883 = vadd.f32 %v11650, %v11856
      %v11884 = vadd.f32 %v11651, %v11861
      %v11885 = vadd.f32 %v11652, %v11866
      %v11886 = vadd.f32 %v11653, %v11871
      %v11887 = vcombine.high %v11679, %v11679
      %v11888 = vrot.slane %v11663, 7
      %v11889 = vrot.slane %v11888, 2
      %v11890 = vrot.slane %v11671, 7
      %v11891 = vsel %vm831, %v11889, %v11890
      %v11892 = vrot.slane %v11890, 2
      %v11893 = vrot.slane %v11670, 7
      %v11894 = vsel %vm831, %v11892, %v11893
      %v11895 = vrot.slane %v11893, 2
      %v11896 = vrot.slane %v11672, 7
      %v11897 = vsel %vm831, %v11895, %v11896
      %v11898 = vrot.slane %v11896, 2
      %v11899 = vrot.slane %v11679, 7
      %v11900 = vsel %vm831, %v11898, %v11899
      %v11901 = vrot.slane %v11899, 2
      %v11902 = vrot.slane %v11887, 7
      %v11903 = vsel %vm831, %v11901, %v11902
      %v11904 = vcombine.low %v9622, %v9632
      %v11905 = vcombine.low %v9639, %v9649
      %v11906 = vcombine.low %v9656, %v9666
      %v11907 = vcombine.low %v9673, %v9683
      %v11908 = vcombine.low %v9690, %v9700
      %v11909 = vcombine.low %v9707, %v9717
      %v11910 = vcombine.low %v9724, %v9734
      %v11911 = vcombine.low %v9741, %v9751
      %v11912 = vcombine.low %v9758, %v9768
      %v11913 = vcombine.low %v9775, %v9784
      %v11914 = vcombine.low %v10991, %v10994
      %v11915 = vcombine.low %v10997, %v11000
      %v11917 = vunpack.c.l.s4 1983009808
      %v11918 = vunpack.c.0.s8 %v11917
      %v11919 = vlaneseq
      %v11920 = vshrl.u32 %v11919, 7
      %v11921 = vsub.s32 %v11918, %v11920
      %v11922 = vrot.slane %v11914, %v11921
      %v11924 = vunpack.c.l.s4 1983009808
      %v11925 = vunpack.c.0.s8 %v11924
      %v11926 = vlaneseq
      %v11927 = vshrl.u32 %v11926, 7
      %v11928 = vsub.s32 %v11925, %v11927
      %v11929 = vrot.slane %v11915, %v11928
      %v11930 = vcombine.low %v11922, %v11929
      %v11931 = vcombine.low %v11003, %v11891
      %v11932 = vcombine.low %v11894, %v11897
      %v11934 = vunpack.c.l.s4 1983009808
      %v11935 = vunpack.c.0.s8 %v11934
      %v11936 = vlaneseq
      %v11937 = vshrl.u32 %v11936, 7
      %v11938 = vsub.s32 %v11935, %v11937
      %v11939 = vrot.slane %v11931, %v11938
      %v11941 = vunpack.c.l.s4 1983009808
      %v11942 = vunpack.c.0.s8 %v11941
      %v11943 = vlaneseq
      %v11944 = vshrl.u32 %v11943, 7
      %v11945 = vsub.s32 %v11942, %v11944
      %v11946 = vrot.slane %v11932, %v11945
      %v11947 = vcombine.low %v11939, %v11946
      %v11948 = vcombine.low %v11900, %v11903
      %v11950 = vunpack.c.l.s4 1983009808
      %v11951 = vunpack.c.0.s8 %v11950
      %v11952 = vlaneseq
      %v11953 = vshrl.u32 %v11952, 7
      %v11954 = vsub.s32 %v11951, %v11953
      %v11955 = vrot.slane %v11948, %v11954
      %v11956 = vsel %vm1556, %v11904, 0
      %v11958 = vsel %vm1556, %v11905, 0
      %v11960 = vsel %vm1556, %v11906, 0
      %v11962 = vsel %vm1556, %v11907, 0
      %v11964 = vsel %vm1556, %v11908, 0
      %v11966 = vsel %vm1556, %v11909, 0
      %v11968 = vsel %vm1556, %v11910, 0
      %v11970 = vsel %vm1556, %v11911, 0
      %v11972 = vsel %vm1556, %v11912, 0
      %v11974 = vsel %vm1556, %v11913, 0
      %v11976 = vsel %vm1556, %v11930, 0
      %v11978 = vsel %vm1556, %v11947, 0
      %v11980 = vsel %vm1556, %v11955, 0
      %11982 = vmatprep.subr.mxu0 0.0
      %11983 = vmatpush1.msra.mxu0 %v9116
      %11984 = vmatprep.subr.mxu0 0.0
      %11985 = vmatpush1.msra.mxu0 0.0
      %11986 = vmatprep.subr.mxu0 0.0
      %11987 = vmatpush1.msra.mxu0 0.0
      %11988 = vmatprep.subr.mxu0 0.0
      %11989 = vmatpush1.msra.mxu0 0.0
      %11990 = vmatprep.subr.mxu0 0.0
      %11991 = vmatpush1.msra.mxu0 0.0
      %11992 = vmatprep.subr.mxu0 0.0
      %11993 = vmatpush1.msra.mxu0 0.0
      %11994 = vmatprep.subr.mxu0 0.0
      %11995 = vmatpush1.msra.mxu0 0.0
      %11996 = vmatprep.subr.mxu0 0.0
      %11997 = vmatpush1.msra.mxu0 0.0
      %11998 = vmatprep.subr.mxu0 0.0
      %11999 = vmatpush1.msra.mxu0 0.0
      %12000 = vmatprep.subr.mxu0 0.0
      %12001 = vmatpush1.msra.mxu0 0.0
      %12002 = vmatprep.subr.mxu0 0.0
      %12003 = vmatpush1.msra.mxu0 0.0
      %12004 = vmatprep.subr.mxu0 0.0
      %12005 = vmatpush1.msra.mxu0 0.0
      %12006 = vmatprep.subr.mxu0 0.0
      %12007 = vmatpush1.msra.mxu0 0.0
      %12008 = vmatprep.subr.mxu0 0.0
      %12009 = vmatpush1.msra.mxu0 0.0
      %12010 = vmatprep.subr.mxu0 0.0
      %12011 = vmatpush1.msra.mxu0 0.0
      %12012 = vmatprep.subr.mxu0 0.0
      %12013 = vmatpush1.msra.mxu0 0.0
      %12014 = vmatprep.subr.mxu0 0.0
      %12015 = vmatpush1.msra.mxu0 0.0
      %12016 = vmatprep.subr.mxu0 0.0
      %12017 = vmatpush1.msra.mxu0 0.0
      %12018 = vmatprep.subr.mxu0 0.0
      %12019 = vmatpush1.msra.mxu0 0.0
      %12020 = vmatprep.subr.mxu0 0.0
      %12021 = vmatpush1.msra.mxu0 0.0
      %12022 = vmatprep.subr.mxu0 0.0
      %12023 = vmatpush1.msra.mxu0 0.0
      %12024 = vmatprep.subr.mxu0 0.0
      %12025 = vmatpush1.msra.mxu0 0.0
      %12026 = vmatprep.subr.mxu0 0.0
      %12027 = vmatpush1.msra.mxu0 0.0
      %12028 = vmatprep.subr.mxu0 0.0
      %12029 = vmatpush1.msra.mxu0 0.0
      %12030 = vmatprep.subr.mxu0 0.0
      %12031 = vmatpush1.msra.mxu0 0.0
      %12032 = vmatprep.subr.mxu0 0.0
      %12033 = vmatpush1.msra.mxu0 0.0
      %12034 = vmatprep.subr.mxu0 0.0
      %12035 = vmatpush1.msra.mxu0 0.0
      %12036 = vmatprep.subr.mxu0 0.0
      %12037 = vmatpush1.msra.mxu0 0.0
      %12038 = vmatprep.subr.mxu0 0.0
      %12039 = vmatpush1.msra.mxu0 0.0
      %12040 = vmatprep.subr.mxu0 0.0
      %12041 = vmatpush1.msra.mxu0 0.0
      %12042 = vmatprep.subr.mxu0 0.0
      %12043 = vmatpush1.msra.mxu0 0.0
      %12044 = vmatprep.subr.mxu0 0.0
      %12045 = vmatpush1.msra.mxu0 0.0
      %12046 = vmatprep.mubr.f32.mxu0 0.0
      %12047 = vmatmul.mubr.f32.gmra.mrb[0].mxu0 %v11956
      %v12048 = vpop.f32.mrb[0].mxu0
      %v12049 = vadd.f32 0.0, %v12048
      %v12050 = vpop.f32.mrb[0].mxu0
      %12051 = vmatprep.mubr.f32.mxu0 0.0
      %12052 = vmatmul.mubr.f32.gmra.mrb[0].mxu0 %v11958
      %v12053 = vpop.f32.mrb[0].mxu0
      %v12054 = vadd.f32 0.0, %v12053
      %v12055 = vpop.f32.mrb[0].mxu0
      %12056 = vmatprep.mubr.f32.mxu0 0.0
      %12057 = vmatmul.mubr.f32.gmra.mrb[0].mxu0 %v11960
      %v12058 = vpop.f32.mrb[0].mxu0
      %v12059 = vadd.f32 0.0, %v12058
      %v12060 = vpop.f32.mrb[0].mxu0
      %12061 = vmatprep.mubr.f32.mxu0 0.0
      %12062 = vmatmul.mubr.f32.gmra.mrb[0].mxu0 %v11962
      %v12063 = vpop.f32.mrb[0].mxu0
      %v12064 = vadd.f32 0.0, %v12063
      %v12065 = vpop.f32.mrb[0].mxu0
      %12066 = vmatprep.mubr.f32.mxu0 0.0
      %12067 = vmatmul.mubr.f32.gmra.mrb[0].mxu0 %v11964
      %v12068 = vpop.f32.mrb[0].mxu0
      %v12069 = vadd.f32 0.0, %v12068
      %v12070 = vpop.f32.mrb[0].mxu0
      %12071 = vmatprep.mubr.f32.mxu0 0.0
      %12072 = vmatmul.mubr.f32.gmra.mrb[0].mxu0 %v11966
      %v12073 = vpop.f32.mrb[0].mxu0
      %v12074 = vadd.f32 0.0, %v12073
      %v12075 = vpop.f32.mrb[0].mxu0
      %12076 = vmatprep.mubr.f32.mxu0 0.0
      %12077 = vmatmul.mubr.f32.gmra.mrb[0].mxu0 %v11968
      %v12078 = vpop.f32.mrb[0].mxu0
      %v12079 = vadd.f32 0.0, %v12078
      %v12080 = vpop.f32.mrb[0].mxu0
      %12081 = vmatprep.mubr.f32.mxu0 0.0
      %12082 = vmatmul.mubr.f32.gmra.mrb[0].mxu0 %v11970
      %v12083 = vpop.f32.mrb[0].mxu0
      %v12084 = vadd.f32 0.0, %v12083
      %v12085 = vpop.f32.mrb[0].mxu0
      %12086 = vmatprep.mubr.f32.mxu0 0.0
      %12087 = vmatmul.mubr.f32.gmra.mrb[0].mxu0 %v11972
      %v12088 = vpop.f32.mrb[0].mxu0
      %v12089 = vadd.f32 0.0, %v12088
      %v12090 = vpop.f32.mrb[0].mxu0
      %12091 = vmatprep.mubr.f32.mxu0 0.0
      %12092 = vmatmul.mubr.f32.gmra.mrb[0].mxu0 %v11974
      %v12093 = vpop.f32.mrb[0].mxu0
      %v12094 = vadd.f32 0.0, %v12093
      %v12095 = vpop.f32.mrb[0].mxu0
      %12096 = vmatprep.mubr.f32.mxu0 0.0
      %12097 = vmatmul.mubr.f32.gmra.mrb[0].mxu0 %v11976
      %v12098 = vpop.f32.mrb[0].mxu0
      %v12099 = vadd.f32 0.0, %v12098
      %v12100 = vpop.f32.mrb[0].mxu0
      %12101 = vmatprep.mubr.f32.mxu0 0.0
      %12102 = vmatmul.mubr.f32.gmra.mrb[0].mxu0 %v11978
      %v12103 = vpop.f32.mrb[0].mxu0
      %v12104 = vadd.f32 0.0, %v12103
      %v12105 = vpop.f32.mrb[0].mxu0
      %12106 = vmatprep.mubr.f32.mxu0 0.0
      %12107 = vmatmul.mubr.f32.gmra.mrb[0].mxu0 %v11980
      %v12108 = vpop.f32.mrb[0].mxu0
      %v12109 = vadd.f32 0.0, %v12108
      %v12110 = vpop.f32.mrb[0].mxu0
      %12111 = vdwg.mxu0
      %v12112 = vadd.f32 %v11874, %v12049
      %v12113 = vadd.f32 %v11875, %v12054
      %v12114 = vadd.f32 %v11876, %v12059
      %v12115 = vadd.f32 %v11877, %v12064
      %v12116 = vadd.f32 %v11878, %v12069
      %v12117 = vadd.f32 %v11879, %v12074
      %v12118 = vadd.f32 %v11880, %v12079
      %v12119 = vadd.f32 %v11881, %v12084
      %v12120 = vadd.f32 %v11882, %v12089
      %v12121 = vadd.f32 %v11883, %v12094
      %v12122 = vadd.f32 %v11884, %v12099
      %v12123 = vadd.f32 %v11885, %v12104
      %v12124 = vadd.f32 %v11886, %v12109
      %v12125 = vcombine.low %v10358, %v10368
      %v12126 = vcombine.low %v10375, %v10385
      %v12127 = vcombine.low %v10392, %v10402
      %v12128 = vcombine.low %v10409, %v10419
      %v12129 = vcombine.low %v10426, %v10436
      %v12130 = vcombine.low %v10443, %v10453
      %v12131 = vcombine.low %v10460, %v10470
      %v12132 = vcombine.low %v10477, %v10487
      %v12133 = vcombine.low %v10494, %v10504
      %v12134 = vcombine.low %v10511, %v10520
      %v12135 = vcombine.low %v10812, %v10821
      %v12136 = vcombine.low %v10987, %v11671
      %v12137 = vcombine.low %v11670, %v11672
      %v12139 = vunpack.c.l.s4 1983009808
      %v12140 = vunpack.c.0.s8 %v12139
      %v12141 = vlaneseq
      %v12142 = vshrl.u32 %v12141, 7
      %v12143 = vsub.s32 %v12140, %v12142
      %v12144 = vrot.slane %v12136, %v12143
      %v12146 = vunpack.c.l.s4 1983009808
      %v12147 = vunpack.c.0.s8 %v12146
      %v12148 = vlaneseq
      %v12149 = vshrl.u32 %v12148, 7
      %v12150 = vsub.s32 %v12147, %v12149
      %v12151 = vrot.slane %v12137, %v12150
      %v12152 = vcombine.low %v12144, %v12151
      %v12153 = vcombine.low %v11679, %v11887
      %v12155 = vunpack.c.l.s4 1983009808
      %v12156 = vunpack.c.0.s8 %v12155
      %v12157 = vlaneseq
      %v12158 = vshrl.u32 %v12157, 7
      %v12159 = vsub.s32 %v12156, %v12158
      %v12160 = vrot.slane %v12153, %v12159
      %v12161 = vsel %vm1556, %v12125, 0
      %v12163 = vsel %vm1556, %v12126, 0
      %v12165 = vsel %vm1556, %v12127, 0
      %v12167 = vsel %vm1556, %v12128, 0
      %v12169 = vsel %vm1556, %v12129, 0
      %v12171 = vsel %vm1556, %v12130, 0
      %v12173 = vsel %vm1556, %v12131, 0
      %v12175 = vsel %vm1556, %v12132, 0
      %v12177 = vsel %vm1556, %v12133, 0
      %v12179 = vsel %vm1556, %v12134, 0
      %v12181 = vsel %vm1556, %v12135, 0
      %v12183 = vsel %vm1556, %v12152, 0
      %v12185 = vsel %vm1556, %v12160, 0
      %12187 = vmatprep.subr.mxu0 0.0
      %12188 = vmatpush1.msra.mxu0 %v9117
      %12189 = vmatprep.subr.mxu0 0.0
      %12190 = vmatpush1.msra.mxu0 0.0
      %12191 = vmatprep.subr.mxu0 0.0
      %12192 = vmatpush1.msra.mxu0 0.0
      %12193 = vmatprep.subr.mxu0 0.0
      %12194 = vmatpush1.msra.mxu0 0.0
      %12195 = vmatprep.subr.mxu0 0.0
      %12196 = vmatpush1.msra.mxu0 0.0
      %12197 = vmatprep.subr.mxu0 0.0
      %12198 = vmatpush1.msra.mxu0 0.0
      %12199 = vmatprep.subr.mxu0 0.0
      %12200 = vmatpush1.msra.mxu0 0.0
      %12201 = vmatprep.subr.mxu0 0.0
      %12202 = vmatpush1.msra.mxu0 0.0
      %12203 = vmatprep.subr.mxu0 0.0
      %12204 = vmatpush1.msra.mxu0 0.0
      %12205 = vmatprep.subr.mxu0 0.0
      %12206 = vmatpush1.msra.mxu0 0.0
      %12207 = vmatprep.subr.mxu0 0.0
      %12208 = vmatpush1.msra.mxu0 0.0
      %12209 = vmatprep.subr.mxu0 0.0
      %12210 = vmatpush1.msra.mxu0 0.0
      %12211 = vmatprep.subr.mxu0 0.0
      %12212 = vmatpush1.msra.mxu0 0.0
      %12213 = vmatprep.subr.mxu0 0.0
      %12214 = vmatpush1.msra.mxu0 0.0
      %12215 = vmatprep.subr.mxu0 0.0
      %12216 = vmatpush1.msra.mxu0 0.0
      %12217 = vmatprep.subr.mxu0 0.0
      %12218 = vmatpush1.msra.mxu0 0.0
      %12219 = vmatprep.subr.mxu0 0.0
      %12220 = vmatpush1.msra.mxu0 0.0
      %12221 = vmatprep.subr.mxu0 0.0
      %12222 = vmatpush1.msra.mxu0 0.0
      %12223 = vmatprep.subr.mxu0 0.0
      %12224 = vmatpush1.msra.mxu0 0.0
      %12225 = vmatprep.subr.mxu0 0.0
      %12226 = vmatpush1.msra.mxu0 0.0
      %12227 = vmatprep.subr.mxu0 0.0
      %12228 = vmatpush1.msra.mxu0 0.0
      %12229 = vmatprep.subr.mxu0 0.0
      %12230 = vmatpush1.msra.mxu0 0.0
      %12231 = vmatprep.subr.mxu0 0.0
      %12232 = vmatpush1.msra.mxu0 0.0
      %12233 = vmatprep.subr.mxu0 0.0
      %12234 = vmatpush1.msra.mxu0 0.0
      %12235 = vmatprep.subr.mxu0 0.0
      %12236 = vmatpush1.msra.mxu0 0.0
      %12237 = vmatprep.subr.mxu0 0.0
      %12238 = vmatpush1.msra.mxu0 0.0
      %12239 = vmatprep.subr.mxu0 0.0
      %12240 = vmatpush1.msra.mxu0 0.0
      %12241 = vmatprep.subr.mxu0 0.0
      %12242 = vmatpush1.msra.mxu0 0.0
      %12243 = vmatprep.subr.mxu0 0.0
      %12244 = vmatpush1.msra.mxu0 0.0
      %12245 = vmatprep.subr.mxu0 0.0
      %12246 = vmatpush1.msra.mxu0 0.0
      %12247 = vmatprep.subr.mxu0 0.0
      %12248 = vmatpush1.msra.mxu0 0.0
      %12249 = vmatprep.subr.mxu0 0.0
      %12250 = vmatpush1.msra.mxu0 0.0
      %12251 = vmatprep.mubr.f32.mxu0 0.0
      %12252 = vmatmul.mubr.f32.gmra.mrb[0].mxu0 %v12161
      %v12253 = vpop.f32.mrb[0].mxu0
      %v12254 = vadd.f32 0.0, %v12253
      %v12255 = vpop.f32.mrb[0].mxu0
      %12256 = vmatprep.mubr.f32.mxu0 0.0
      %12257 = vmatmul.mubr.f32.gmra.mrb[0].mxu0 %v12163
      %v12258 = vpop.f32.mrb[0].mxu0
      %v12259 = vadd.f32 0.0, %v12258
      %v12260 = vpop.f32.mrb[0].mxu0
      %12261 = vmatprep.mubr.f32.mxu0 0.0
      %12262 = vmatmul.mubr.f32.gmra.mrb[0].mxu0 %v12165
      %v12263 = vpop.f32.mrb[0].mxu0
      %v12264 = vadd.f32 0.0, %v12263
      %v12265 = vpop.f32.mrb[0].mxu0
      %12266 = vmatprep.mubr.f32.mxu0 0.0
      %12267 = vmatmul.mubr.f32.gmra.mrb[0].mxu0 %v12167
      %v12268 = vpop.f32.mrb[0].mxu0
      %v12269 = vadd.f32 0.0, %v12268
      %v12270 = vpop.f32.mrb[0].mxu0
      %12271 = vmatprep.mubr.f32.mxu0 0.0
      %12272 = vmatmul.mubr.f32.gmra.mrb[0].mxu0 %v12169
      %v12273 = vpop.f32.mrb[0].mxu0
      %v12274 = vadd.f32 0.0, %v12273
      %v12275 = vpop.f32.mrb[0].mxu0
      %12276 = vmatprep.mubr.f32.mxu0 0.0
      %12277 = vmatmul.mubr.f32.gmra.mrb[0].mxu0 %v12171
      %v12278 = vpop.f32.mrb[0].mxu0
      %v12279 = vadd.f32 0.0, %v12278
      %v12280 = vpop.f32.mrb[0].mxu0
      %12281 = vmatprep.mubr.f32.mxu0 0.0
      %12282 = vmatmul.mubr.f32.gmra.mrb[0].mxu0 %v12173
      %v12283 = vpop.f32.mrb[0].mxu0
      %v12284 = vadd.f32 0.0, %v12283
      %v12285 = vpop.f32.mrb[0].mxu0
      %12286 = vmatprep.mubr.f32.mxu0 0.0
      %12287 = vmatmul.mubr.f32.gmra.mrb[0].mxu0 %v12175
      %v12288 = vpop.f32.mrb[0].mxu0
      %v12289 = vadd.f32 0.0, %v12288
      %v12290 = vpop.f32.mrb[0].mxu0
      %12291 = vmatprep.mubr.f32.mxu0 0.0
      %12292 = vmatmul.mubr.f32.gmra.mrb[0].mxu0 %v12177
      %v12293 = vpop.f32.mrb[0].mxu0
      %v12294 = vadd.f32 0.0, %v12293
      %v12295 = vpop.f32.mrb[0].mxu0
      %12296 = vmatprep.mubr.f32.mxu0 0.0
      %12297 = vmatmul.mubr.f32.gmra.mrb[0].mxu0 %v12179
      %v12298 = vpop.f32.mrb[0].mxu0
      %v12299 = vadd.f32 0.0, %v12298
      %v12300 = vpop.f32.mrb[0].mxu0
      %12301 = vmatprep.mubr.f32.mxu0 0.0
      %12302 = vmatmul.mubr.f32.gmra.mrb[0].mxu0 %v12181
      %v12303 = vpop.f32.mrb[0].mxu0
      %v12304 = vadd.f32 0.0, %v12303
      %v12305 = vpop.f32.mrb[0].mxu0
      %12306 = vmatprep.mubr.f32.mxu0 0.0
      %12307 = vmatmul.mubr.f32.gmra.mrb[0].mxu0 %v12183
      %v12308 = vpop.f32.mrb[0].mxu0
      %v12309 = vadd.f32 0.0, %v12308
      %v12310 = vpop.f32.mrb[0].mxu0
      %12311 = vmatprep.mubr.f32.mxu0 0.0
      %12312 = vmatmul.mubr.f32.gmra.mrb[0].mxu0 %v12185
      %v12313 = vpop.f32.mrb[0].mxu0
      %v12314 = vadd.f32 0.0, %v12313
      %v12315 = vpop.f32.mrb[0].mxu0
      %12316 = vdwg.mxu0
      %v12317 = vadd.f32 %v12112, %v12254
      %v12318 = vadd.f32 %v12113, %v12259
      %v12319 = vadd.f32 %v12114, %v12264
      %v12320 = vadd.f32 %v12115, %v12269
      %v12321 = vadd.f32 %v12116, %v12274
      %v12322 = vadd.f32 %v12117, %v12279
      %v12323 = vadd.f32 %v12118, %v12284
      %v12324 = vadd.f32 %v12119, %v12289
      %v12325 = vadd.f32 %v12120, %v12294
      %v12326 = vadd.f32 %v12121, %v12299
      %v12327 = vadd.f32 %v12122, %v12304
      %v12328 = vadd.f32 %v12123, %v12309
      %v12329 = vadd.f32 %v12124, %v12314
      %v12331 = vlaneseq
      %v12332 = vshrl.u32 %v12331, 7
      %v12333 = vsub.s32 0, %v12332
      %v12334 = vrot.slane %v9118, %v12333
      %v12336 = vadd.f32 %v12317, %v12334
      %v12337 = vadd.f32 %v12318, %v12334
      %v12338 = vadd.f32 %v12319, %v12334
      %v12339 = vadd.f32 %v12320, %v12334
      %v12340 = vadd.f32 %v12321, %v12334
      %v12341 = vadd.f32 %v12322, %v12334
      %v12342 = vadd.f32 %v12323, %v12334
      %v12343 = vadd.f32 %v12324, %v12334
      %v12344 = vadd.f32 %v12325, %v12334
      %v12345 = vadd.f32 %v12326, %v12334
      %v12346 = vadd.f32 %v12327, %v12334
      %v12347 = vadd.f32 %v12328, %v12334
      %v12348 = vadd.f32 %v12329, %v12334
      %v12362 = vcombine.high %v12336, %v12336
      %v12364 = vunpack.c.l.s4 1983009808
      %v12365 = vunpack.c.0.s8 %v12364
      %v12366 = vlaneseq
      %v12367 = vshrl.u32 %v12366, 7
      %v12368 = vsub.s32 %v12365, %v12367
      %v12369 = vrot.slane %v12336, %v12368
      %v12371 = vunpack.c.l.s4 1983009808
      %v12372 = vunpack.c.0.s8 %v12371
      %v12373 = vlaneseq
      %v12374 = vshrl.u32 %v12373, 7
      %v12375 = vsub.s32 %v12372, %v12374
      %v12376 = vrot.slane %v12362, %v12375
      %v12377 = vcombine.high %v12369, %v12369
      %v12378 = vcombine.high %v12376, %v12376
      %v12379 = vcombine.high %v12337, %v12337
      %v12381 = vunpack.c.l.s4 1983009808
      %v12382 = vunpack.c.0.s8 %v12381
      %v12383 = vlaneseq
      %v12384 = vshrl.u32 %v12383, 7
      %v12385 = vsub.s32 %v12382, %v12384
      %v12386 = vrot.slane %v12337, %v12385
      %v12388 = vunpack.c.l.s4 1983009808
      %v12389 = vunpack.c.0.s8 %v12388
      %v12390 = vlaneseq
      %v12391 = vshrl.u32 %v12390, 7
      %v12392 = vsub.s32 %v12389, %v12391
      %v12393 = vrot.slane %v12379, %v12392
      %v12394 = vcombine.high %v12386, %v12386
      %v12395 = vcombine.high %v12393, %v12393
      %v12396 = vcombine.high %v12338, %v12338
      %v12398 = vunpack.c.l.s4 1983009808
      %v12399 = vunpack.c.0.s8 %v12398
      %v12400 = vlaneseq
      %v12401 = vshrl.u32 %v12400, 7
      %v12402 = vsub.s32 %v12399, %v12401
      %v12403 = vrot.slane %v12338, %v12402
      %v12405 = vunpack.c.l.s4 1983009808
      %v12406 = vunpack.c.0.s8 %v12405
      %v12407 = vlaneseq
      %v12408 = vshrl.u32 %v12407, 7
      %v12409 = vsub.s32 %v12406, %v12408
      %v12410 = vrot.slane %v12396, %v12409
      %v12411 = vcombine.high %v12403, %v12403
      %v12412 = vcombine.high %v12410, %v12410
      %v12413 = vcombine.high %v12339, %v12339
      %v12415 = vunpack.c.l.s4 1983009808
      %v12416 = vunpack.c.0.s8 %v12415
      %v12417 = vlaneseq
      %v12418 = vshrl.u32 %v12417, 7
      %v12419 = vsub.s32 %v12416, %v12418
      %v12420 = vrot.slane %v12339, %v12419
      %v12422 = vunpack.c.l.s4 1983009808
      %v12423 = vunpack.c.0.s8 %v12422
      %v12424 = vlaneseq
      %v12425 = vshrl.u32 %v12424, 7
      %v12426 = vsub.s32 %v12423, %v12425
      %v12427 = vrot.slane %v12413, %v12426
      %v12428 = vcombine.high %v12420, %v12420
      %v12429 = vcombine.high %v12427, %v12427
      %v12430 = vcombine.high %v12340, %v12340
      %v12432 = vunpack.c.l.s4 1983009808
      %v12433 = vunpack.c.0.s8 %v12432
      %v12434 = vlaneseq
      %v12435 = vshrl.u32 %v12434, 7
      %v12436 = vsub.s32 %v12433, %v12435
      %v12437 = vrot.slane %v12340, %v12436
      %v12439 = vunpack.c.l.s4 1983009808
      %v12440 = vunpack.c.0.s8 %v12439
      %v12441 = vlaneseq
      %v12442 = vshrl.u32 %v12441, 7
      %v12443 = vsub.s32 %v12440, %v12442
      %v12444 = vrot.slane %v12430, %v12443
      %v12445 = vcombine.high %v12437, %v12437
      %v12446 = vcombine.high %v12444, %v12444
      %v12447 = vcombine.high %v12341, %v12341
      %v12449 = vunpack.c.l.s4 1983009808
      %v12450 = vunpack.c.0.s8 %v12449
      %v12451 = vlaneseq
      %v12452 = vshrl.u32 %v12451, 7
      %v12453 = vsub.s32 %v12450, %v12452
      %v12454 = vrot.slane %v12341, %v12453
      %v12456 = vunpack.c.l.s4 1983009808
      %v12457 = vunpack.c.0.s8 %v12456
      %v12458 = vlaneseq
      %v12459 = vshrl.u32 %v12458, 7
      %v12460 = vsub.s32 %v12457, %v12459
      %v12461 = vrot.slane %v12447, %v12460
      %v12462 = vcombine.high %v12454, %v12454
      %v12463 = vcombine.high %v12461, %v12461
      %v12464 = vcombine.high %v12342, %v12342
      %v12466 = vunpack.c.l.s4 1983009808
      %v12467 = vunpack.c.0.s8 %v12466
      %v12468 = vlaneseq
      %v12469 = vshrl.u32 %v12468, 7
      %v12470 = vsub.s32 %v12467, %v12469
      %v12471 = vrot.slane %v12342, %v12470
      %v12473 = vunpack.c.l.s4 1983009808
      %v12474 = vunpack.c.0.s8 %v12473
      %v12475 = vlaneseq
      %v12476 = vshrl.u32 %v12475, 7
      %v12477 = vsub.s32 %v12474, %v12476
      %v12478 = vrot.slane %v12464, %v12477
      %v12479 = vcombine.high %v12471, %v12471
      %v12480 = vcombine.high %v12478, %v12478
      %v12481 = vcombine.high %v12343, %v12343
      %v12483 = vunpack.c.l.s4 1983009808
      %v12484 = vunpack.c.0.s8 %v12483
      %v12485 = vlaneseq
      %v12486 = vshrl.u32 %v12485, 7
      %v12487 = vsub.s32 %v12484, %v12486
      %v12488 = vrot.slane %v12343, %v12487
      %v12490 = vunpack.c.l.s4 1983009808
      %v12491 = vunpack.c.0.s8 %v12490
      %v12492 = vlaneseq
      %v12493 = vshrl.u32 %v12492, 7
      %v12494 = vsub.s32 %v12491, %v12493
      %v12495 = vrot.slane %v12481, %v12494
      %v12496 = vcombine.high %v12488, %v12488
      %v12497 = vcombine.high %v12495, %v12495
      %v12498 = vcombine.high %v12344, %v12344
      %v12500 = vunpack.c.l.s4 1983009808
      %v12501 = vunpack.c.0.s8 %v12500
      %v12502 = vlaneseq
      %v12503 = vshrl.u32 %v12502, 7
      %v12504 = vsub.s32 %v12501, %v12503
      %v12505 = vrot.slane %v12344, %v12504
      %v12507 = vunpack.c.l.s4 1983009808
      %v12508 = vunpack.c.0.s8 %v12507
      %v12509 = vlaneseq
      %v12510 = vshrl.u32 %v12509, 7
      %v12511 = vsub.s32 %v12508, %v12510
      %v12512 = vrot.slane %v12498, %v12511
      %v12513 = vcombine.high %v12505, %v12505
      %v12514 = vcombine.high %v12512, %v12512
      %v12515 = vcombine.high %v12345, %v12345
      %v12517 = vunpack.c.l.s4 1983009808
      %v12518 = vunpack.c.0.s8 %v12517
      %v12519 = vlaneseq
      %v12520 = vshrl.u32 %v12519, 7
      %v12521 = vsub.s32 %v12518, %v12520
      %v12522 = vrot.slane %v12345, %v12521
      %v12524 = vunpack.c.l.s4 1983009808
      %v12525 = vunpack.c.0.s8 %v12524
      %v12526 = vlaneseq
      %v12527 = vshrl.u32 %v12526, 7
      %v12528 = vsub.s32 %v12525, %v12527
      %v12529 = vrot.slane %v12515, %v12528
      %v12530 = vcombine.high %v12522, %v12522
      %v12531 = vcombine.high %v12529, %v12529
      %v12532 = vcombine.high %v12346, %v12346
      %v12534 = vunpack.c.l.s4 1983009808
      %v12535 = vunpack.c.0.s8 %v12534
      %v12536 = vlaneseq
      %v12537 = vshrl.u32 %v12536, 7
      %v12538 = vsub.s32 %v12535, %v12537
      %v12539 = vrot.slane %v12346, %v12538
      %v12541 = vunpack.c.l.s4 1983009808
      %v12542 = vunpack.c.0.s8 %v12541
      %v12543 = vlaneseq
      %v12544 = vshrl.u32 %v12543, 7
      %v12545 = vsub.s32 %v12542, %v12544
      %v12546 = vrot.slane %v12532, %v12545
      %v12547 = vcombine.high %v12539, %v12539
      %v12548 = vcombine.high %v12546, %v12546
      %v12549 = vcombine.high %v12347, %v12347
      %v12551 = vunpack.c.l.s4 1983009808
      %v12552 = vunpack.c.0.s8 %v12551
      %v12553 = vlaneseq
      %v12554 = vshrl.u32 %v12553, 7
      %v12555 = vsub.s32 %v12552, %v12554
      %v12556 = vrot.slane %v12347, %v12555
      %v12558 = vunpack.c.l.s4 1983009808
      %v12559 = vunpack.c.0.s8 %v12558
      %v12560 = vlaneseq
      %v12561 = vshrl.u32 %v12560, 7
      %v12562 = vsub.s32 %v12559, %v12561
      %v12563 = vrot.slane %v12549, %v12562
      %v12564 = vcombine.high %v12556, %v12556
      %v12565 = vcombine.high %v12563, %v12563
      %v12567 = vunpack.c.l.s4 1983009808
      %v12568 = vunpack.c.0.s8 %v12567
      %v12569 = vlaneseq
      %v12570 = vshrl.u32 %v12569, 7
      %v12571 = vsub.s32 %v12568, %v12570
      %v12572 = vrot.slane %v12348, %v12571
      %v12573 = vcombine.high %v12572, %v12572
      %v12574 = vcombine.low %v12369, %v12377
      %v12575 = vcombine.low %v12376, %v12378
      %v12577 = vunpack.c.l.s4 1983009808
      %v12578 = vunpack.c.0.s8 %v12577
      %v12579 = vlaneseq
      %v12580 = vshrl.u32 %v12579, 7
      %v12581 = vsub.s32 %v12578, %v12580
      %v12582 = vrot.slane %v12574, %v12581
      %v12584 = vunpack.c.l.s4 1983009808
      %v12585 = vunpack.c.0.s8 %v12584
      %v12586 = vlaneseq
      %v12587 = vshrl.u32 %v12586, 7
      %v12588 = vsub.s32 %v12585, %v12587
      %v12589 = vrot.slane %v12575, %v12588
      %v12590 = vcombine.low %v12582, %v12589
      %v12592 = vunpack.c.l.s4 1983009808
      %v12593 = vunpack.c.0.s8 %v12592
      %v12594 = vlaneseq
      %v12595 = vshrl.u32 %v12594, 7
      %v12596 = vsub.s32 %v12593, %v12595
      %v12597 = vrot.slane %v12386, %v12596
      %v12598 = vcombine.low %v12394, %v12393
      %v12599 = vcombine.low %v12395, %v12403
      %v12601 = vunpack.c.l.s4 1983009808
      %v12602 = vunpack.c.0.s8 %v12601
      %v12603 = vlaneseq
      %v12604 = vshrl.u32 %v12603, 7
      %v12605 = vsub.s32 %v12602, %v12604
      %v12606 = vrot.slane %v12598, %v12605
      %v12608 = vunpack.c.l.s4 1983009808
      %v12609 = vunpack.c.0.s8 %v12608
      %v12610 = vlaneseq
      %v12611 = vshrl.u32 %v12610, 7
      %v12612 = vsub.s32 %v12609, %v12611
      %v12613 = vrot.slane %v12599, %v12612
      %v12614 = vcombine.low %v12606, %v12613
      %v12616 = vunpack.c.l.s4 1983009808
      %v12617 = vunpack.c.0.s8 %v12616
      %v12618 = vlaneseq
      %v12619 = vshrl.u32 %v12618, 7
      %v12620 = vsub.s32 %v12617, %v12619
      %v12621 = vrot.slane %v12411, %v12620
      %v12622 = vcombine.low %v12410, %v12412
      %v12623 = vcombine.low %v12420, %v12428
      %v12625 = vunpack.c.l.s4 1983009808
      %v12626 = vunpack.c.0.s8 %v12625
      %v12627 = vlaneseq
      %v12628 = vshrl.u32 %v12627, 7
      %v12629 = vsub.s32 %v12626, %v12628
      %v12630 = vrot.slane %v12622, %v12629
      %v12632 = vunpack.c.l.s4 1983009808
      %v12633 = vunpack.c.0.s8 %v12632
      %v12634 = vlaneseq
      %v12635 = vshrl.u32 %v12634, 7
      %v12636 = vsub.s32 %v12633, %v12635
      %v12637 = vrot.slane %v12623, %v12636
      %v12638 = vcombine.low %v12630, %v12637
      %v12640 = vunpack.c.l.s4 1983009808
      %v12641 = vunpack.c.0.s8 %v12640
      %v12642 = vlaneseq
      %v12643 = vshrl.u32 %v12642, 7
      %v12644 = vsub.s32 %v12641, %v12643
      %v12645 = vrot.slane %v12427, %v12644
      %v12646 = vcombine.low %v12429, %v12437
      %v12647 = vcombine.low %v12445, %v12444
      %v12649 = vunpack.c.l.s4 1983009808
      %v12650 = vunpack.c.0.s8 %v12649
      %v12651 = vlaneseq
      %v12652 = vshrl.u32 %v12651, 7
      %v12653 = vsub.s32 %v12650, %v12652
      %v12654 = vrot.slane %v12646, %v12653
      %v12656 = vunpack.c.l.s4 1983009808
      %v12657 = vunpack.c.0.s8 %v12656
      %v12658 = vlaneseq
      %v12659 = vshrl.u32 %v12658, 7
      %v12660 = vsub.s32 %v12657, %v12659
      %v12661 = vrot.slane %v12647, %v12660
      %v12662 = vcombine.low %v12654, %v12661
      %v12664 = vunpack.c.l.s4 1983009808
      %v12665 = vunpack.c.0.s8 %v12664
      %v12666 = vlaneseq
      %v12667 = vshrl.u32 %v12666, 7
      %v12668 = vsub.s32 %v12665, %v12667
      %v12669 = vrot.slane %v12446, %v12668
      %v12670 = vcombine.low %v12454, %v12462
      %v12671 = vcombine.low %v12461, %v12463
      %v12673 = vunpack.c.l.s4 1983009808
      %v12674 = vunpack.c.0.s8 %v12673
      %v12675 = vlaneseq
      %v12676 = vshrl.u32 %v12675, 7
      %v12677 = vsub.s32 %v12674, %v12676
      %v12678 = vrot.slane %v12670, %v12677
      %v12680 = vunpack.c.l.s4 1983009808
      %v12681 = vunpack.c.0.s8 %v12680
      %v12682 = vlaneseq
      %v12683 = vshrl.u32 %v12682, 7
      %v12684 = vsub.s32 %v12681, %v12683
      %v12685 = vrot.slane %v12671, %v12684
      %v12686 = vcombine.low %v12678, %v12685
      %v12688 = vunpack.c.l.s4 1983009808
      %v12689 = vunpack.c.0.s8 %v12688
      %v12690 = vlaneseq
      %v12691 = vshrl.u32 %v12690, 7
      %v12692 = vsub.s32 %v12689, %v12691
      %v12693 = vrot.slane %v12471, %v12692
      %v12694 = vcombine.low %v12479, %v12478
      %v12695 = vcombine.low %v12480, %v12488
      %v12697 = vunpack.c.l.s4 1983009808
      %v12698 = vunpack.c.0.s8 %v12697
      %v12699 = vlaneseq
      %v12700 = vshrl.u32 %v12699, 7
      %v12701 = vsub.s32 %v12698, %v12700
      %v12702 = vrot.slane %v12694, %v12701
      %v12704 = vunpack.c.l.s4 1983009808
      %v12705 = vunpack.c.0.s8 %v12704
      %v12706 = vlaneseq
      %v12707 = vshrl.u32 %v12706, 7
      %v12708 = vsub.s32 %v12705, %v12707
      %v12709 = vrot.slane %v12695, %v12708
      %v12710 = vcombine.low %v12702, %v12709
      %v12712 = vunpack.c.l.s4 1983009808
      %v12713 = vunpack.c.0.s8 %v12712
      %v12714 = vlaneseq
      %v12715 = vshrl.u32 %v12714, 7
      %v12716 = vsub.s32 %v12713, %v12715
      %v12717 = vrot.slane %v12496, %v12716
      %v12718 = vcombine.low %v12495, %v12497
      %v12719 = vcombine.low %v12505, %v12513
      %v12721 = vunpack.c.l.s4 1983009808
      %v12722 = vunpack.c.0.s8 %v12721
      %v12723 = vlaneseq
      %v12724 = vshrl.u32 %v12723, 7
      %v12725 = vsub.s32 %v12722, %v12724
      %v12726 = vrot.slane %v12718, %v12725
      %v12728 = vunpack.c.l.s4 1983009808
      %v12729 = vunpack.c.0.s8 %v12728
      %v12730 = vlaneseq
      %v12731 = vshrl.u32 %v12730, 7
      %v12732 = vsub.s32 %v12729, %v12731
      %v12733 = vrot.slane %v12719, %v12732
      %v12734 = vcombine.low %v12726, %v12733
      %v12736 = vunpack.c.l.s4 1983009808
      %v12737 = vunpack.c.0.s8 %v12736
      %v12738 = vlaneseq
      %v12739 = vshrl.u32 %v12738, 7
      %v12740 = vsub.s32 %v12737, %v12739
      %v12741 = vrot.slane %v12512, %v12740
      %v12742 = vcombine.low %v12514, %v12522
      %v12743 = vcombine.low %v12530, %v12529
      %v12745 = vunpack.c.l.s4 1983009808
      %v12746 = vunpack.c.0.s8 %v12745
      %v12747 = vlaneseq
      %v12748 = vshrl.u32 %v12747, 7
      %v12749 = vsub.s32 %v12746, %v12748
      %v12750 = vrot.slane %v12742, %v12749
      %v12752 = vunpack.c.l.s4 1983009808
      %v12753 = vunpack.c.0.s8 %v12752
      %v12754 = vlaneseq
      %v12755 = vshrl.u32 %v12754, 7
      %v12756 = vsub.s32 %v12753, %v12755
      %v12757 = vrot.slane %v12743, %v12756
      %v12758 = vcombine.low %v12750, %v12757
      %v12760 = vunpack.c.l.s4 1983009808
      %v12761 = vunpack.c.0.s8 %v12760
      %v12762 = vlaneseq
      %v12763 = vshrl.u32 %v12762, 7
      %v12764 = vsub.s32 %v12761, %v12763
      %v12765 = vrot.slane %v12531, %v12764
      %v12766 = vcombine.low %v12539, %v12547
      %v12767 = vcombine.low %v12546, %v12548
      %v12769 = vunpack.c.l.s4 1983009808
      %v12770 = vunpack.c.0.s8 %v12769
      %v12771 = vlaneseq
      %v12772 = vshrl.u32 %v12771, 7
      %v12773 = vsub.s32 %v12770, %v12772
      %v12774 = vrot.slane %v12766, %v12773
      %v12776 = vunpack.c.l.s4 1983009808
      %v12777 = vunpack.c.0.s8 %v12776
      %v12778 = vlaneseq
      %v12779 = vshrl.u32 %v12778, 7
      %v12780 = vsub.s32 %v12777, %v12779
      %v12781 = vrot.slane %v12767, %v12780
      %v12782 = vcombine.low %v12774, %v12781
      %v12784 = vunpack.c.l.s4 1983009808
      %v12785 = vunpack.c.0.s8 %v12784
      %v12786 = vlaneseq
      %v12787 = vshrl.u32 %v12786, 7
      %v12788 = vsub.s32 %v12785, %v12787
      %v12789 = vrot.slane %v12556, %v12788
      %v12790 = vcombine.low %v12564, %v12563
      %v12791 = vcombine.low %v12565, %v12572
      %v12793 = vunpack.c.l.s4 1983009808
      %v12794 = vunpack.c.0.s8 %v12793
      %v12795 = vlaneseq
      %v12796 = vshrl.u32 %v12795, 7
      %v12797 = vsub.s32 %v12794, %v12796
      %v12798 = vrot.slane %v12790, %v12797
      %v12800 = vunpack.c.l.s4 1983009808
      %v12801 = vunpack.c.0.s8 %v12800
      %v12802 = vlaneseq
      %v12803 = vshrl.u32 %v12802, 7
      %v12804 = vsub.s32 %v12801, %v12803
      %v12805 = vrot.slane %v12791, %v12804
      %v12806 = vcombine.low %v12798, %v12805
      %v12808 = vunpack.c.l.s4 1983009808
      %v12809 = vunpack.c.0.s8 %v12808
      %v12810 = vlaneseq
      %v12811 = vshrl.u32 %v12810, 7
      %v12812 = vsub.s32 %v12809, %v12811
      %v12813 = vrot.slane %v12573, %v12812
      %12834 = vst [vmem:[%s278] sm:$0xff] %v12590
      %12835 = vst [vmem:[%s278 + $0x8] sm:$0x3] %v12597
      %12836 = vst [vmem:[%s278 + $0x10] sm:$0xff] %v12614
      %12837 = vst [vmem:[%s278 + $0x18] sm:$0x3] %v12621
      %12838 = vst [vmem:[%s278 + $0x20] sm:$0xff] %v12638
      %12839 = vst [vmem:[%s278 + $0x28] sm:$0x3] %v12645
      %12840 = vst [vmem:[%s278 + $0x30] sm:$0xff] %v12662
      %12841 = vst [vmem:[%s278 + $0x38] sm:$0x3] %v12669
      %12842 = vst [vmem:[%s278 + $0x40] sm:$0xff] %v12686
      %12843 = vst [vmem:[%s278 + $0x48] sm:$0x3] %v12693
      %12844 = vst [vmem:[%s278 + $0x50] sm:$0xff] %v12710
      %12845 = vst [vmem:[%s278 + $0x58] sm:$0x3] %v12717
      %12846 = vst [vmem:[%s278 + $0x60] sm:$0xff] %v12734
      %12847 = vst [vmem:[%s278 + $0x68] sm:$0x3] %v12741
      %12848 = vst [vmem:[%s278 + $0x70] sm:$0xff] %v12758
      %12849 = vst [vmem:[%s278 + $0x78] sm:$0x3] %v12765
      %12850 = vst [vmem:[%s278 + $0x80] sm:$0xff] %v12782
      %12851 = vst [vmem:[%s278 + $0x88] sm:$0x3] %v12789
      %12852 = vst [vmem:[%s278 + $0x90] sm:$0xff] %v12806
      %12853 = vst [vmem:[%s278 + $0x98] sm:$0x3] %v12813
      %p12854 = scmp.lt.s32.totalorder %s18, 1
      %s12855 = scalar_select %p12854, %s18, 1
      %s12856 = smul.addr %s12855, 20
      %s12857 = smul.addr %s12856, 8
      %s12858 = scalar_lea.vmem %s7, %s12857
      // Predicated region
      $region49: #{tpu_custom_call.1} parent=47 // pred_check
        %p12859 = pneg %p188
      $region50: #{tpu_custom_call.1} parent=47 // pred_check_branch
        %12861 = sbr.rel (%p12859) target = $region52
      $region51: #{tpu_custom_call.1} parent=47 // pred_region
        _
      $region52: #{tpu_custom_call.1} parent=47 // pred_fallthru
        _
    $region48: #{tpu_custom_call.1} parent=5 // pred_fallthru
      _
    %p12862 = scmp.le.s32.totalorder 2, %s13
    // Predicated region
    $region53: #{tpu_custom_call.1} parent=5 // pred_check
      %p12863 = pneg %p12862
    $region54: #{tpu_custom_call.1} parent=5 // pred_check_branch
      %12865 = sbr.rel (%p12863) target = $region56
    $region55: #{tpu_custom_call.1} parent=5 // pred_region
      %s12866 = ssub.s32 %s13, 2
      // Predicated region
      $region57: #{tpu_custom_call.1} parent=55 // pred_check
        %p12867 = pneg %p194
      $region58: #{tpu_custom_call.1} parent=55 // pred_check_branch
        %12869 = sbr.rel (%p12867) target = $region60
      $region59: #{tpu_custom_call.1} parent=55 // pred_region
        %p12870 = scmp.lt.s32.totalorder %s19, 1
        %s12871 = scalar_select %p12870, %s19, 1
        %s12872 = smul.addr %s12871, 20
        %s12873 = smul.addr %s12872, 8
        %s12874 = scalar_lea.vmem %s7, %s12873
      $region60: #{tpu_custom_call.1} parent=55 // pred_fallthru
        _
    $region56: #{tpu_custom_call.1} parent=5 // pred_fallthru
      _
  $region6: #{tpu_custom_call.1} parent=0 // loop_footer
    %s17 = sadd.s32 1, %s13
  $region7: #{tpu_custom_call.1} parent=0 // loop_footer_branch
    %12 = sbr.rel target = $region3
  $region8: #{tpu_custom_call.1} parent=0 // loop_exit
    _

</llo_original>
